<compile_context>
chip_gen: v7x
topology: tpu7x:2x2x1
jax: 0.10.0
libtpu: 0.0.40
codegen_flags: <defaults>
</compile_context>

<pallas_src>
import jax
import jax.numpy as jnp
import numpy as np
from jax import lax
from jax.experimental import pallas as pl
from jax.experimental.pallas import tpu as pltpu


def _make_downsample_kernel(H, W, Wp, Cin, Cout, eps, approx_recip):
    HWr = H * Wp                     # conv output rows computed over padded width
    Ho, Wo = H // 2, W // 2

    def kernel(xp_ref, w_ref, b_ref, g_ref, bt_ref, a_ref, o_ref, rowbuf):
        # ---- Conv2d(3x3, s=1, p=1): 9 accumulating MXU matmuls over flat views ----
        # Tap (ky, kx) of the flattened padded image is the sublane slice starting
        # at ky*Wp + kx (near-free vld; no strided 2D slice copies, no lane concat).
        y = jnp.dot(xp_ref[0, pl.ds(0, HWr), :], w_ref[0],
                    preferred_element_type=jnp.float32)              # (HWr, Cout)
        for k9 in range(1, 9):
            ky, kx = divmod(k9, 3)
            view = xp_ref[0, pl.ds(ky * Wp + kx, HWr), :]
            y = y + jnp.dot(view, w_ref[k9], preferred_element_type=jnp.float32)
        y = y + b_ref[...]

        # Columns w in [W, Wp) of every row are junk (wrap / pad); mask them out of
        # the statistics; the pooling stage never reads them.
        col = lax.broadcasted_iota(jnp.int32, (HWr, 1), 0) % Wp
        valid = (col < W).astype(jnp.float32)

        # ---- GroupNorm(eps): two-pass centered stats, group broadcast via matmul ----
        s = jnp.sum(y * valid, axis=0, keepdims=True)                       # (1, Cout)
        mu = jnp.dot(s, a_ref[...], preferred_element_type=jnp.float32)     # group mean
        cen = y - mu
        cm = cen * valid
        ss = jnp.sum(cm * cm, axis=0, keepdims=True)
        var = jnp.dot(ss, a_ref[...], preferred_element_type=jnp.float32)   # group var
        inv = lax.rsqrt(var + eps)
        yn = cen * (inv * g_ref[...]) + bt_ref[...]

        # ---- SiLU (reciprocal on the EUP slot) ----
        z = yn * pl.reciprocal(1.0 + jnp.exp(-yn), approx=approx_recip)

        # ---- MaxPool2d(2, 2) ----
        z4 = z.reshape(Ho, 2, Wp, Cout)                  # free: Wp % 8 == 0
        rowbuf[...] = jnp.maximum(z4[:, 0], z4[:, 1])    # H-pool in registers
        t0 = rowbuf[:, pl.ds(0, Wo, stride=2), :]        # W-pool: stride-2 reads,
        t1 = rowbuf[:, pl.ds(1, Wo, stride=2), :]        # only even/odd cols < W
        o_ref[0] = jnp.maximum(t0, t1).astype(o_ref.dtype)

    return kernel


def downsample2d_nhwc(x_nhwc, w_oihw, bias, gamma, beta, *, num_groups,
                      eps=1e-6, matmul_dtype=jnp.bfloat16):
    """NHWC in / NHWC out (preferred inside a model: no boundary transposes)."""
    B, H, W, Cin = x_nhwc.shape
    Cout = w_oihw.shape[0]
    assert H % 2 == 0 and W % 2 == 0 and Cout % num_groups == 0
    cpg = Cout // num_groups
    Ho, Wo = H // 2, W // 2
    Wp = ((W + 2 + 7) // 8) * 8      # padded width, multiple of 8 (>= W + 2)
    Hp = H + 3                       # 1 top halo + 1 bottom halo + 1 overrun row
    HWr = H * Wp

    # Halo pad + flatten + cast: one fused boundary pass; bf16 halves input HBM traffic.
    xp = jnp.pad(x_nhwc.astype(matmul_dtype),
                 ((0, 0), (1, 2), (1, Wp - W - 1), (0, 0)))
    xp_flat = xp.reshape(B, Hp * Wp, Cin)

    # (Cout, Cin, 3, 3) -> (9, Cin, Cout): tap-major so w_ref[k] is an aligned view.
    w9 = jnp.transpose(w_oihw, (2, 3, 1, 0)).astype(matmul_dtype).reshape(9, Cin, Cout)
    b2 = bias.reshape(1, Cout).astype(jnp.float32)
    g2 = gamma.reshape(1, Cout).astype(jnp.float32)
    bt2 = beta.reshape(1, Cout).astype(jnp.float32)

    # Group-averaging matrix: A[c, c'] = 1/(H*W*cpg) if c, c' share a group, else 0.
    grp = jnp.arange(Cout) // cpg
    A = (grp[:, None] == grp[None, :]).astype(jnp.float32) / float(H * W * cpg)

    approx = bool(jnp.dtype(matmul_dtype) != jnp.dtype(jnp.float32))
    kernel = _make_downsample_kernel(H, W, Wp, Cin, Cout, eps, approx)

    # VMEM budget: double-buffered blocks + scratch + in-flight working values,
    # clamped below the physical per-core capacity (64 MiB v7x, 128 MiB v5e/v6e).
    itm = jnp.dtype(matmul_dtype).itemsize
    est = (2 * Hp * Wp * Cin * itm             # input block (double-buffered)
           + 2 * 9 * Cin * Cout * itm          # weights
           + 2 * (3 * Cout + Cout * Cout) * 4  # bias/gamma/beta + group matrix
           + 2 * Ho * Wo * Cout * 4            # output block
           + Ho * Wp * Cout * 4                # rowbuf scratch
           + 4 * HWr * Cout * 4                # y / centered / z working values
           + 2 * HWr * Cin * itm)              # tap views in flight
    try:
        cap = int(getattr(pltpu.get_tpu_info(), "vmem_capacity_bytes",
                          64 * 1024 * 1024))
    except Exception:
        cap = 64 * 1024 * 1024
    vmem_limit = int(min(int(cap * 0.85), max(32 * 1024 * 1024, 2 * est)))

    out_nhwc = pl.pallas_call(
        kernel,
        out_shape=jax.ShapeDtypeStruct((B, Ho, Wo, Cout), jnp.float32),
        grid_spec=pltpu.PrefetchScalarGridSpec(
            num_scalar_prefetch=0,
            grid=(B,),
            in_specs=[
                pl.BlockSpec((1, Hp * Wp, Cin), lambda b: (b, 0, 0)),
                pl.BlockSpec((9, Cin, Cout), lambda b: (0, 0, 0)),
                pl.BlockSpec((1, Cout), lambda b: (0, 0)),
                pl.BlockSpec((1, Cout), lambda b: (0, 0)),
                pl.BlockSpec((1, Cout), lambda b: (0, 0)),
                pl.BlockSpec((Cout, Cout), lambda b: (0, 0)),
            ],
            out_specs=pl.BlockSpec((1, Ho, Wo, Cout), lambda b: (b, 0, 0, 0)),
            scratch_shapes=[pltpu.VMEM((Ho, Wp, Cout), jnp.float32)],
        ),
        compiler_params=pltpu.CompilerParams(
            dimension_semantics=("parallel",),     # shard batch across TCs on v7x
            vmem_limit_bytes=vmem_limit,
        ),
    )(xp_flat, w9, b2, g2, bt2, A)
    return out_nhwc


def downsample2d(x_nchw, w_oihw, bias, gamma, beta, *, num_groups, eps=1e-6,
                 matmul_dtype=jnp.bfloat16):
    """NCHW wrapper matching the PyTorch module interface."""
    x_nhwc = jnp.transpose(x_nchw, (0, 2, 3, 1))
    out_nhwc = downsample2d_nhwc(x_nhwc, w_oihw, bias, gamma, beta,
                                 num_groups=num_groups, eps=eps,
                                 matmul_dtype=matmul_dtype)
    return jnp.transpose(out_nhwc, (0, 3, 1, 2))


def downsample2d_reference(x, w, b, gamma, beta, *, num_groups, eps=1e-6):
    """Pure-JAX reference matching the PyTorch forward (NCHW, f32)."""
    out = lax.conv_general_dilated(
        x, w, window_strides=(1, 1), padding=((1, 1), (1, 1)),
        dimension_numbers=("NCHW", "OIHW", "NCHW"))
    out = out + b[None, :, None, None]
    B, C, H, W = out.shape
    og = out.reshape(B, num_groups, C // num_groups, H, W)
    mu = og.mean(axis=(2, 3, 4), keepdims=True)
    var = ((og - mu) ** 2).mean(axis=(2, 3, 4), keepdims=True)
    on = ((og - mu) / jnp.sqrt(var + eps)).reshape(B, C, H, W)
    on = on * gamma[None, :, None, None] + beta[None, :, None, None]
    z = on * jax.nn.sigmoid(on)
    return z.reshape(B, C, H // 2, 2, W // 2, 2).max(axis=(3, 5))


if __name__ == "__main__":
    key = jax.random.PRNGKey(0)
    kx, kw, kb, kg, kbt = jax.random.split(key, 5)

    B, Cin, Cout, H, W, G = 2, 4, 8, 16, 16, 2

    x = jax.random.normal(kx, (B, Cin, H, W), dtype=jnp.float32)
    w = 0.1 * jax.random.normal(kw, (Cout, Cin, 3, 3), dtype=jnp.float32)
    b = 0.1 * jax.random.normal(kb, (Cout,), dtype=jnp.float32)
    gamma = 1.0 + 0.1 * jax.random.normal(kg, (Cout,), dtype=jnp.float32)
    beta = 0.1 * jax.random.normal(kbt, (Cout,), dtype=jnp.float32)

    ref = downsample2d_reference(x, w, b, gamma, beta, num_groups=G)

    # Exact-semantics validation: f32 MXU path vs f32 reference.
    out_f32 = jax.block_until_ready(
        downsample2d(x, w, b, gamma, beta, num_groups=G,
                     matmul_dtype=jnp.float32))
    assert out_f32.shape == (B, Cout, H // 2, W // 2), out_f32.shape
    np.testing.assert_allclose(np.asarray(out_f32), np.asarray(ref),
                               rtol=1e-4, atol=1e-4)

    # Production path: bf16 MXU inputs, f32 accumulation / GroupNorm / SiLU.
    out_bf16 = jax.block_until_ready(
        downsample2d(x, w, b, gamma, beta, num_groups=G))
    assert out_bf16.shape == (B, Cout, H // 2, W // 2), out_bf16.shape
    np.testing.assert_allclose(np.asarray(out_bf16), np.asarray(ref),
                               rtol=5e-2, atol=5e-2)

    print("KERNEL_OK")
</pallas_src>

<mosaic_0001>
module attributes {stable_mosaic.version = 11 : i64} {
  func.func @kernel(%arg0: i32, %arg1: memref<1x456x4xf32, #tpu.memory_space<vmem>>, %arg2: memref<9x4x8xf32, #tpu.memory_space<vmem>>, %arg3: memref<1x8xf32, #tpu.memory_space<vmem>>, %arg4: memref<1x8xf32, #tpu.memory_space<vmem>>, %arg5: memref<1x8xf32, #tpu.memory_space<vmem>>, %arg6: memref<8x8xf32, #tpu.memory_space<vmem>>, %arg7: memref<1x8x8x8xf32, #tpu.memory_space<vmem>>, %arg8: memref<8x24x8xf32, #tpu.memory_space<vmem>>) attributes {dimension_semantics = [#tpu.dimension_semantics<parallel>], iteration_bounds = array<i64: 2>, scalar_prefetch = 0 : i64, scratch_operands = 1 : i64, tpu.core_type = #tpu.core_type<tc>, window_params = [{transform_indices = @transform_0, window_bounds = array<i64: 1, 456, 4>}, {pipeline_mode = #tpu.pipeline_mode<synchronous>, transform_indices = @transform_1, window_bounds = array<i64: 9, 4, 8>}, {pipeline_mode = #tpu.pipeline_mode<synchronous>, transform_indices = @transform_2, window_bounds = array<i64: 1, 8>}, {pipeline_mode = #tpu.pipeline_mode<synchronous>, transform_indices = @transform_3, window_bounds = array<i64: 1, 8>}, {pipeline_mode = #tpu.pipeline_mode<synchronous>, transform_indices = @transform_4, window_bounds = array<i64: 1, 8>}, {pipeline_mode = #tpu.pipeline_mode<synchronous>, transform_indices = @transform_5, window_bounds = array<i64: 8, 8>}, {transform_indices = @transform_6, window_bounds = array<i64: 1, 8, 8, 8>}]} {
    %c0 = arith.constant 0 : index
    %c0_0 = arith.constant 0 : index
    %c0_1 = arith.constant 0 : index
    %0 = vector.load %arg1[%c0, %c0_0, %c0_1] : memref<1x456x4xf32, #tpu.memory_space<vmem>>, vector<1x384x4xf32>
    %1 = vector.shape_cast %0 : vector<1x384x4xf32> to vector<384x4xf32>
    %c0_2 = arith.constant 0 : index
    %c0_3 = arith.constant 0 : index
    %c0_4 = arith.constant 0 : index
    %2 = vector.load %arg2[%c0_2, %c0_3, %c0_4] : memref<9x4x8xf32, #tpu.memory_space<vmem>>, vector<1x4x8xf32>
    %3 = vector.shape_cast %2 : vector<1x4x8xf32> to vector<4x8xf32>
    %cst = arith.constant dense<0.000000e+00> : vector<384x8xf32>
    %4 = tpu.matmul %1, %3, %cst {dimension_numbers = #tpu.dot_dimension_numbers<[1], [0], [0], [1], [0, 0, 1, 1], [], []>} : vector<384x4xf32>, vector<4x8xf32>, vector<384x8xf32> -> vector<384x8xf32>
    %c0_5 = arith.constant 0 : index
    %c1 = arith.constant 1 : index
    %c0_6 = arith.constant 0 : index
    %5 = vector.load %arg1[%c0_5, %c1, %c0_6] : memref<1x456x4xf32, #tpu.memory_space<vmem>>, vector<1x384x4xf32>
    %6 = vector.shape_cast %5 : vector<1x384x4xf32> to vector<384x4xf32>
    %c1_7 = arith.constant 1 : index
    %c0_8 = arith.constant 0 : index
    %c0_9 = arith.constant 0 : index
    %7 = vector.load %arg2[%c1_7, %c0_8, %c0_9] : memref<9x4x8xf32, #tpu.memory_space<vmem>>, vector<1x4x8xf32>
    %8 = vector.shape_cast %7 : vector<1x4x8xf32> to vector<4x8xf32>
    %cst_10 = arith.constant dense<0.000000e+00> : vector<384x8xf32>
    %9 = tpu.matmul %6, %8, %cst_10 {dimension_numbers = #tpu.dot_dimension_numbers<[1], [0], [0], [1], [0, 0, 1, 1], [], []>} : vector<384x4xf32>, vector<4x8xf32>, vector<384x8xf32> -> vector<384x8xf32>
    %10 = arith.addf %4, %9 : vector<384x8xf32>
    %c0_11 = arith.constant 0 : index
    %c2 = arith.constant 2 : index
    %c0_12 = arith.constant 0 : index
    %11 = vector.load %arg1[%c0_11, %c2, %c0_12] : memref<1x456x4xf32, #tpu.memory_space<vmem>>, vector<1x384x4xf32>
    %12 = vector.shape_cast %11 : vector<1x384x4xf32> to vector<384x4xf32>
    %c2_13 = arith.constant 2 : index
    %c0_14 = arith.constant 0 : index
    %c0_15 = arith.constant 0 : index
    %13 = vector.load %arg2[%c2_13, %c0_14, %c0_15] : memref<9x4x8xf32, #tpu.memory_space<vmem>>, vector<1x4x8xf32>
    %14 = vector.shape_cast %13 : vector<1x4x8xf32> to vector<4x8xf32>
    %cst_16 = arith.constant dense<0.000000e+00> : vector<384x8xf32>
    %15 = tpu.matmul %12, %14, %cst_16 {dimension_numbers = #tpu.dot_dimension_numbers<[1], [0], [0], [1], [0, 0, 1, 1], [], []>} : vector<384x4xf32>, vector<4x8xf32>, vector<384x8xf32> -> vector<384x8xf32>
    %16 = arith.addf %10, %15 : vector<384x8xf32>
    %c0_17 = arith.constant 0 : index
    %c24 = arith.constant 24 : index
    %c0_18 = arith.constant 0 : index
    %17 = vector.load %arg1[%c0_17, %c24, %c0_18] : memref<1x456x4xf32, #tpu.memory_space<vmem>>, vector<1x384x4xf32>
    %18 = vector.shape_cast %17 : vector<1x384x4xf32> to vector<384x4xf32>
    %c3 = arith.constant 3 : index
    %c0_19 = arith.constant 0 : index
    %c0_20 = arith.constant 0 : index
    %19 = vector.load %arg2[%c3, %c0_19, %c0_20] : memref<9x4x8xf32, #tpu.memory_space<vmem>>, vector<1x4x8xf32>
    %20 = vector.shape_cast %19 : vector<1x4x8xf32> to vector<4x8xf32>
    %cst_21 = arith.constant dense<0.000000e+00> : vector<384x8xf32>
    %21 = tpu.matmul %18, %20, %cst_21 {dimension_numbers = #tpu.dot_dimension_numbers<[1], [0], [0], [1], [0, 0, 1, 1], [], []>} : vector<384x4xf32>, vector<4x8xf32>, vector<384x8xf32> -> vector<384x8xf32>
    %22 = arith.addf %16, %21 : vector<384x8xf32>
    %c0_22 = arith.constant 0 : index
    %c25 = arith.constant 25 : index
    %c0_23 = arith.constant 0 : index
    %23 = vector.load %arg1[%c0_22, %c25, %c0_23] : memref<1x456x4xf32, #tpu.memory_space<vmem>>, vector<1x384x4xf32>
    %24 = vector.shape_cast %23 : vector<1x384x4xf32> to vector<384x4xf32>
    %c4 = arith.constant 4 : index
    %c0_24 = arith.constant 0 : index
    %c0_25 = arith.constant 0 : index
    %25 = vector.load %arg2[%c4, %c0_24, %c0_25] : memref<9x4x8xf32, #tpu.memory_space<vmem>>, vector<1x4x8xf32>
    %26 = vector.shape_cast %25 : vector<1x4x8xf32> to vector<4x8xf32>
    %cst_26 = arith.constant dense<0.000000e+00> : vector<384x8xf32>
    %27 = tpu.matmul %24, %26, %cst_26 {dimension_numbers = #tpu.dot_dimension_numbers<[1], [0], [0], [1], [0, 0, 1, 1], [], []>} : vector<384x4xf32>, vector<4x8xf32>, vector<384x8xf32> -> vector<384x8xf32>
    %28 = arith.addf %22, %27 : vector<384x8xf32>
    %c0_27 = arith.constant 0 : index
    %c26 = arith.constant 26 : index
    %c0_28 = arith.constant 0 : index
    %29 = vector.load %arg1[%c0_27, %c26, %c0_28] : memref<1x456x4xf32, #tpu.memory_space<vmem>>, vector<1x384x4xf32>
    %30 = vector.shape_cast %29 : vector<1x384x4xf32> to vector<384x4xf32>
    %c5 = arith.constant 5 : index
    %c0_29 = arith.constant 0 : index
    %c0_30 = arith.constant 0 : index
    %31 = vector.load %arg2[%c5, %c0_29, %c0_30] : memref<9x4x8xf32, #tpu.memory_space<vmem>>, vector<1x4x8xf32>
    %32 = vector.shape_cast %31 : vector<1x4x8xf32> to vector<4x8xf32>
    %cst_31 = arith.constant dense<0.000000e+00> : vector<384x8xf32>
    %33 = tpu.matmul %30, %32, %cst_31 {dimension_numbers = #tpu.dot_dimension_numbers<[1], [0], [0], [1], [0, 0, 1, 1], [], []>} : vector<384x4xf32>, vector<4x8xf32>, vector<384x8xf32> -> vector<384x8xf32>
    %34 = arith.addf %28, %33 : vector<384x8xf32>
    %c0_32 = arith.constant 0 : index
    %c48 = arith.constant 48 : index
    %c0_33 = arith.constant 0 : index
    %35 = vector.load %arg1[%c0_32, %c48, %c0_33] : memref<1x456x4xf32, #tpu.memory_space<vmem>>, vector<1x384x4xf32>
    %36 = vector.shape_cast %35 : vector<1x384x4xf32> to vector<384x4xf32>
    %c6 = arith.constant 6 : index
    %c0_34 = arith.constant 0 : index
    %c0_35 = arith.constant 0 : index
    %37 = vector.load %arg2[%c6, %c0_34, %c0_35] : memref<9x4x8xf32, #tpu.memory_space<vmem>>, vector<1x4x8xf32>
    %38 = vector.shape_cast %37 : vector<1x4x8xf32> to vector<4x8xf32>
    %cst_36 = arith.constant dense<0.000000e+00> : vector<384x8xf32>
    %39 = tpu.matmul %36, %38, %cst_36 {dimension_numbers = #tpu.dot_dimension_numbers<[1], [0], [0], [1], [0, 0, 1, 1], [], []>} : vector<384x4xf32>, vector<4x8xf32>, vector<384x8xf32> -> vector<384x8xf32>
    %40 = arith.addf %34, %39 : vector<384x8xf32>
    %c0_37 = arith.constant 0 : index
    %c49 = arith.constant 49 : index
    %c0_38 = arith.constant 0 : index
    %41 = vector.load %arg1[%c0_37, %c49, %c0_38] : memref<1x456x4xf32, #tpu.memory_space<vmem>>, vector<1x384x4xf32>
    %42 = vector.shape_cast %41 : vector<1x384x4xf32> to vector<384x4xf32>
    %c7 = arith.constant 7 : index
    %c0_39 = arith.constant 0 : index
    %c0_40 = arith.constant 0 : index
    %43 = vector.load %arg2[%c7, %c0_39, %c0_40] : memref<9x4x8xf32, #tpu.memory_space<vmem>>, vector<1x4x8xf32>
    %44 = vector.shape_cast %43 : vector<1x4x8xf32> to vector<4x8xf32>
    %cst_41 = arith.constant dense<0.000000e+00> : vector<384x8xf32>
    %45 = tpu.matmul %42, %44, %cst_41 {dimension_numbers = #tpu.dot_dimension_numbers<[1], [0], [0], [1], [0, 0, 1, 1], [], []>} : vector<384x4xf32>, vector<4x8xf32>, vector<384x8xf32> -> vector<384x8xf32>
    %46 = arith.addf %40, %45 : vector<384x8xf32>
    %c0_42 = arith.constant 0 : index
    %c50 = arith.constant 50 : index
    %c0_43 = arith.constant 0 : index
    %47 = vector.load %arg1[%c0_42, %c50, %c0_43] : memref<1x456x4xf32, #tpu.memory_space<vmem>>, vector<1x384x4xf32>
    %48 = vector.shape_cast %47 : vector<1x384x4xf32> to vector<384x4xf32>
    %c8 = arith.constant 8 : index
    %c0_44 = arith.constant 0 : index
    %c0_45 = arith.constant 0 : index
    %49 = vector.load %arg2[%c8, %c0_44, %c0_45] : memref<9x4x8xf32, #tpu.memory_space<vmem>>, vector<1x4x8xf32>
    %50 = vector.shape_cast %49 : vector<1x4x8xf32> to vector<4x8xf32>
    %cst_46 = arith.constant dense<0.000000e+00> : vector<384x8xf32>
    %51 = tpu.matmul %48, %50, %cst_46 {dimension_numbers = #tpu.dot_dimension_numbers<[1], [0], [0], [1], [0, 0, 1, 1], [], []>} : vector<384x4xf32>, vector<4x8xf32>, vector<384x8xf32> -> vector<384x8xf32>
    %52 = arith.addf %46, %51 : vector<384x8xf32>
    %c0_47 = arith.constant 0 : index
    %c0_48 = arith.constant 0 : index
    %53 = vector.load %arg3[%c0_47, %c0_48] : memref<1x8xf32, #tpu.memory_space<vmem>>, vector<1x8xf32>
    %54 = vector.broadcast %53 : vector<1x8xf32> to vector<384x8xf32>
    %55 = arith.addf %52, %54 : vector<384x8xf32>
    %56 = tpu.iota {dimensions = array<i32: 0>} : vector<384x1xi32>
    %c24_i32 = arith.constant 24 : i32
    %c0_i32 = arith.constant 0 : i32
    %57 = arith.cmpi eq, %c24_i32, %c0_i32 : i32
    %c1_i32 = arith.constant 1 : i32
    %58 = arith.select %57, %c1_i32, %c24_i32 : i32
    %59 = vector.broadcast %58 : i32 to vector<384x1xi32>
    %60 = arith.remsi %56, %59 : vector<384x1xi32>
    %c0_i32_49 = arith.constant 0 : i32
    %61 = vector.broadcast %c0_i32_49 : i32 to vector<384x1xi32>
    %62 = arith.cmpi ne, %60, %61 : vector<384x1xi32>
    %c0_i32_50 = arith.constant 0 : i32
    %63 = vector.broadcast %c0_i32_50 : i32 to vector<384x1xi32>
    %64 = arith.cmpi slt, %60, %63 : vector<384x1xi32>
    %c0_i32_51 = arith.constant 0 : i32
    %65 = arith.cmpi slt, %58, %c0_i32_51 : i32
    %66 = vector.broadcast %65 : i1 to vector<384x1xi1>
    %67 = vector.broadcast %66 : vector<384x1xi1> to vector<384x1xi1>
    %68 = arith.xori %64, %67 : vector<384x1xi1>
    %69 = arith.andi %68, %62 : vector<384x1xi1>
    %70 = vector.broadcast %58 : i32 to vector<384x1xi32>
    %71 = arith.addi %60, %70 : vector<384x1xi32>
    %72 = arith.select %69, %71, %60 : vector<384x1xi1>, vector<384x1xi32>
    %c16_i32 = arith.constant 16 : i32
    %73 = vector.broadcast %c16_i32 : i32 to vector<384x1xi32>
    %74 = arith.cmpi slt, %72, %73 : vector<384x1xi32>
    %75 = arith.extui %74 : vector<384x1xi1> to vector<384x1xi32>
    %76 = arith.sitofp %75 : vector<384x1xi32> to vector<384x1xf32>
    %77 = vector.broadcast %76 : vector<384x1xf32> to vector<384x8xf32>
    %78 = arith.mulf %55, %77 : vector<384x8xf32>
    %cst_52 = arith.constant dense<0.000000e+00> : vector<8xf32>
    %79 = vector.multi_reduction <add>, %78, %cst_52 [0] : vector<384x8xf32> to vector<8xf32>
    %80 = vector.shape_cast %79 : vector<8xf32> to vector<1x8xf32>
    %c0_53 = arith.constant 0 : index
    %c0_54 = arith.constant 0 : index
    %81 = vector.load %arg6[%c0_53, %c0_54] : memref<8x8xf32, #tpu.memory_space<vmem>>, vector<8x8xf32>
    %cst_55 = arith.constant dense<0.000000e+00> : vector<1x8xf32>
    %82 = tpu.matmul %80, %81, %cst_55 {dimension_numbers = #tpu.dot_dimension_numbers<[1], [0], [0], [1], [0, 0, 1, 1], [], []>} : vector<1x8xf32>, vector<8x8xf32>, vector<1x8xf32> -> vector<1x8xf32>
    %83 = vector.broadcast %82 : vector<1x8xf32> to vector<384x8xf32>
    %84 = arith.subf %55, %83 : vector<384x8xf32>
    %85 = vector.broadcast %76 : vector<384x1xf32> to vector<384x8xf32>
    %86 = arith.mulf %84, %85 : vector<384x8xf32>
    %87 = arith.mulf %86, %86 : vector<384x8xf32>
    %cst_56 = arith.constant dense<0.000000e+00> : vector<8xf32>
    %88 = vector.multi_reduction <add>, %87, %cst_56 [0] : vector<384x8xf32> to vector<8xf32>
    %89 = vector.shape_cast %88 : vector<8xf32> to vector<1x8xf32>
    %c0_57 = arith.constant 0 : index
    %c0_58 = arith.constant 0 : index
    %90 = vector.load %arg6[%c0_57, %c0_58] : memref<8x8xf32, #tpu.memory_space<vmem>>, vector<8x8xf32>
    %cst_59 = arith.constant dense<0.000000e+00> : vector<1x8xf32>
    %91 = tpu.matmul %89, %90, %cst_59 {dimension_numbers = #tpu.dot_dimension_numbers<[1], [0], [0], [1], [0, 0, 1, 1], [], []>} : vector<1x8xf32>, vector<8x8xf32>, vector<1x8xf32> -> vector<1x8xf32>
    %cst_60 = arith.constant 9.99999997E-7 : f32
    %92 = vector.broadcast %cst_60 : f32 to vector<1x8xf32>
    %93 = arith.addf %91, %92 : vector<1x8xf32>
    %94 = math.rsqrt %93 : vector<1x8xf32>
    %c0_61 = arith.constant 0 : index
    %c0_62 = arith.constant 0 : index
    %95 = vector.load %arg4[%c0_61, %c0_62] : memref<1x8xf32, #tpu.memory_space<vmem>>, vector<1x8xf32>
    %96 = arith.mulf %94, %95 : vector<1x8xf32>
    %97 = vector.broadcast %96 : vector<1x8xf32> to vector<384x8xf32>
    %98 = arith.mulf %84, %97 : vector<384x8xf32>
    %c0_63 = arith.constant 0 : index
    %c0_64 = arith.constant 0 : index
    %99 = vector.load %arg5[%c0_63, %c0_64] : memref<1x8xf32, #tpu.memory_space<vmem>>, vector<1x8xf32>
    %100 = vector.broadcast %99 : vector<1x8xf32> to vector<384x8xf32>
    %101 = arith.addf %98, %100 : vector<384x8xf32>
    %cst_65 = arith.constant 0.000000e+00 : f32
    %102 = vector.broadcast %cst_65 : f32 to vector<384x8xf32>
    %103 = arith.subf %102, %101 : vector<384x8xf32>
    %104 = math.exp %103 : vector<384x8xf32>
    %cst_66 = arith.constant 1.000000e+00 : f32
    %105 = vector.broadcast %cst_66 : f32 to vector<384x8xf32>
    %106 = arith.addf %105, %104 : vector<384x8xf32>
    %107 = tpu.reciprocal %106 : vector<384x8xf32> -> vector<384x8xf32>
    %108 = arith.mulf %101, %107 : vector<384x8xf32>
    %109 = vector.shape_cast %108 : vector<384x8xf32> to vector<8x2x24x8xf32>
    %110 = vector.extract_strided_slice %109 {offsets = [0, 0, 0, 0], sizes = [8, 1, 24, 8], strides = [1, 1, 1, 1]} : vector<8x2x24x8xf32> to vector<8x1x24x8xf32>
    %111 = vector.shape_cast %110 : vector<8x1x24x8xf32> to vector<8x24x8xf32>
    %112 = vector.extract_strided_slice %109 {offsets = [0, 1, 0, 0], sizes = [8, 1, 24, 8], strides = [1, 1, 1, 1]} : vector<8x2x24x8xf32> to vector<8x1x24x8xf32>
    %113 = vector.shape_cast %112 : vector<8x1x24x8xf32> to vector<8x24x8xf32>
    %114 = arith.maximumf %111, %113 : vector<8x24x8xf32>
    %c0_67 = arith.constant 0 : index
    %c0_68 = arith.constant 0 : index
    %c0_69 = arith.constant 0 : index
    %115 = vector.load %arg8[%c0_67, %c0_68, %c0_69] : memref<8x24x8xf32, #tpu.memory_space<vmem>>, vector<8x24x8xf32>
    tpu.vector_store %arg8[%c0_67, %c0_68, %c0_69], %114 {strides = array<i32>} : memref<8x24x8xf32, #tpu.memory_space<vmem>>, vector<8x24x8xf32>,
    %c0_70 = arith.constant 0 : index
    %c0_71 = arith.constant 0 : index
    %c0_72 = arith.constant 0 : index
    %116 = tpu.strided_load %arg8[%c0_70, %c0_71, %c0_72] {strides = array<i32: 1, 2, 1>} : memref<8x24x8xf32, #tpu.memory_space<vmem>>, vector<8x8x8xf32>
    %c0_73 = arith.constant 0 : index
    %c1_74 = arith.constant 1 : index
    %c0_75 = arith.constant 0 : index
    %117 = tpu.strided_load %arg8[%c0_73, %c1_74, %c0_75] {strides = array<i32: 1, 2, 1>} : memref<8x24x8xf32, #tpu.memory_space<vmem>>, vector<8x8x8xf32>
    %118 = arith.maximumf %116, %117 : vector<8x8x8xf32>
    %c0_76 = arith.constant 0 : index
    %c0_77 = arith.constant 0 : index
    %c0_78 = arith.constant 0 : index
    %c0_79 = arith.constant 0 : index
    %119 = vector.load %arg7[%c0_76, %c0_77, %c0_78, %c0_79] : memref<1x8x8x8xf32, #tpu.memory_space<vmem>>, vector<1x8x8x8xf32>
    %120 = vector.shape_cast %119 : vector<1x8x8x8xf32> to vector<8x8x8xf32>
    %121 = vector.shape_cast %118 : vector<8x8x8xf32> to vector<1x8x8x8xf32>
    tpu.vector_store %arg7[%c0_76, %c0_77, %c0_78, %c0_79], %121 {strides = array<i32>} : memref<1x8x8x8xf32, #tpu.memory_space<vmem>>, vector<1x8x8x8xf32>,
    return
  }
  func.func @transform_0(%arg0: i32) -> (i32, i32, i32) {
    %c0_i32 = arith.constant 0 : i32
    %c0_i32_0 = arith.constant 0 : i32
    %c0_i32_1 = arith.constant 0 : i32
    return %arg0, %c0_i32, %c0_i32_0 : i32, i32, i32
  }
  func.func @transform_1(%arg0: i32) -> (i32, i32, i32) {
    %c0_i32 = arith.constant 0 : i32
    %c0_i32_0 = arith.constant 0 : i32
    %c0_i32_1 = arith.constant 0 : i32
    %c0_i32_2 = arith.constant 0 : i32
    return %c0_i32, %c0_i32_0, %c0_i32_1 : i32, i32, i32
  }
  func.func @transform_2(%arg0: i32) -> (i32, i32) {
    %c0_i32 = arith.constant 0 : i32
    %c0_i32_0 = arith.constant 0 : i32
    %c0_i32_1 = arith.constant 0 : i32
    return %c0_i32, %c0_i32_0 : i32, i32
  }
  func.func @transform_3(%arg0: i32) -> (i32, i32) {
    %c0_i32 = arith.constant 0 : i32
    %c0_i32_0 = arith.constant 0 : i32
    %c0_i32_1 = arith.constant 0 : i32
    return %c0_i32, %c0_i32_0 : i32, i32
  }
  func.func @transform_4(%arg0: i32) -> (i32, i32) {
    %c0_i32 = arith.constant 0 : i32
    %c0_i32_0 = arith.constant 0 : i32
    %c0_i32_1 = arith.constant 0 : i32
    return %c0_i32, %c0_i32_0 : i32, i32
  }
  func.func @transform_5(%arg0: i32) -> (i32, i32) {
    %c0_i32 = arith.constant 0 : i32
    %c0_i32_0 = arith.constant 0 : i32
    %c0_i32_1 = arith.constant 0 : i32
    return %c0_i32, %c0_i32_0 : i32, i32
  }
  func.func @transform_6(%arg0: i32) -> (i32, i32, i32, i32) {
    %c0_i32 = arith.constant 0 : i32
    %c0_i32_0 = arith.constant 0 : i32
    %c0_i32_1 = arith.constant 0 : i32
    %c0_i32_2 = arith.constant 0 : i32
    return %arg0, %c0_i32, %c0_i32_0, %c0_i32_1 : i32, i32, i32, i32
  }
}

</mosaic_0001>

<llo_original>
// kernel: tpu_custom_call.1
$region0: #{tpu_custom_call.1}
  #allocation0 [shape = 'u32[]', space=smem, size = 0x4, offset = 0x4, fixed_abs, tag = 'smem constant byte address 0x4 - core index']
  #allocation1 [shape = 'u32[144,128]{1,0:T(1,128)}', space=vmem, size = 0x12000, scoped, tag = 'internal scratch']
  #allocation2 [shape = 'f32[8,24,8]{2,1,0:T(8,128)}', space=vmem, size = 0x18000, scoped, tag = 'scratch operand']
  %s0 = inlined_call_operand.vmem [shape: f32[2,456,4], index: 0, kind: input, shape index: {}]
  %s1 = inlined_call_operand.vmem [shape: f32[9,4,8], index: 1, kind: input, shape index: {}]
  %s2 = inlined_call_operand.vmem [shape: f32[1,8], index: 2, kind: input, shape index: {}]
  %s3 = inlined_call_operand.vmem [shape: f32[1,8], index: 3, kind: input, shape index: {}]
  %s4 = inlined_call_operand.vmem [shape: f32[1,8], index: 4, kind: input, shape index: {}]
  %s5 = inlined_call_operand.vmem [shape: f32[8,8], index: 5, kind: input, shape index: {}]
  %s6 = inlined_call_operand.hbm [shape: f32[2,8,8,8], index: 6, kind: output, shape index: {}]
  %s7 = sld [smem:[#allocation0]]
  $region57: #{tpu_custom_call.1} parent=0
    _
  %s9 = ssub.s32 1, %s7
  %s10 = scalar_select 0, %s9, %s7
  $region1: #{tpu_custom_call.1} parent=0
    #allocation3 [shape = 'u8[65536]{0}', space=vmem, size = 0x10000, scoped, tag = 'output window, operand 0']
    #allocation4 [shape = 's32[2]{0}', space=sflag, size = 0x8, scoped, tag = 'scoped memory for tpu_custom_call.1']
    %11 = vsyncpa [#allocation4], 0
    %s12 = scalar_lea.sflag [#allocation4], 1
    %13 = vsyncpa %s12, 0
    loop: start=0, step=1, limit=4
    $region2: #{tpu_custom_call.1} parent=1 // loop_pre_header
      _
    $region3: #{tpu_custom_call.1} parent=1 // loop_header
      %s15 = sphi 0, %s19
      %p16 = scmp.ge.s32.totalorder %s15, 4
      %s25 = sphi 0, %s27
      %s28 = sphi 0, %s25
      %s29 = sphi 0, %s28
      %s45 = sphi 0, %s29
      %s49 = sphi 0, %s49
      %s51 = sphi 0, %s49
      %s52 = sphi 0, %s51
      %s66 = sphi 0, %s52
      %s70 = sphi 0, %s70
      %s72 = sphi 0, %s70
      %s73 = sphi 0, %s72
      %s87 = sphi 0, %s73
      %s91 = sphi 0, %s91
      %s93 = sphi 0, %s91
      %s94 = sphi 0, %s93
      %s108 = sphi 0, %s94
      %s112 = sphi 0, %s112
      %s114 = sphi 0, %s112
      %s115 = sphi 0, %s114
      %s129 = sphi 0, %s115
      %s133 = sphi 0, %s133
      %s135 = sphi 0, %s133
      %s136 = sphi 0, %s135
      %s150 = sphi 0, %s136
      %s156 = sphi 0, %s158
      %s159 = sphi 0, %s156
      %s160 = sphi 0, %s159
      %s176 = sphi 0, %s160
    $region4: #{tpu_custom_call.1} parent=1 // loop_header_branch
      %18 = sbr.rel (%p16) target = $region8
    $region5: #{tpu_custom_call.1} parent=1 // loop_body
      %s20 = ssub.s32 %s15, 1
      %s21 = ssub.s32 %s15, 2
      %s22 = sadd.s32 %s15, 1
      %s23 = ssub.s32 %s15, %s22
      %p24 = scmp.eq.s32.totalorder %s23, 0
      %s26 = sadd.s32 %s25, 1
      %s27 = scalar_select %p24, %s25, %s26
      %p30 = pneg %p24
      %p31 = scmp.eq.s32.totalorder %s15, 1
      %p32 = por %p30, %p31
      %p33 = scmp.ne.s32.totalorder %s25, %s28
      %p34 = scmp.eq.s32.totalorder %s15, 0
      %p35 = por %p33, %p34
      %p36 = scmp.ne.s32.totalorder %s25, %s28
      %p37 = scmp.eq.s32.totalorder %s20, 1
      %p38 = por %p36, %p37
      %p39 = scmp.ne.s32.totalorder %s28, %s29
      %p40 = scmp.eq.s32.totalorder %s20, 0
      %p41 = por %p39, %p40
      %p42 = scmp.ne.s32.totalorder %s28, %s29
      %p43 = scmp.eq.s32.totalorder %s21, 1
      %p44 = por %p42, %p43
      %p46 = scmp.ne.s32.totalorder %s29, %s45
      %p47 = scmp.eq.s32.totalorder %s21, 0
      %p48 = por %p46, %p47
      %s50 = sadd.s32 %s49, 1
      %p53 = scmp.eq.s32.totalorder %s15, 1
      %p54 = scmp.ne.s32.totalorder %s49, %s51
      %p55 = scmp.eq.s32.totalorder %s15, 0
      %p56 = por %p54, %p55
      %p57 = scmp.ne.s32.totalorder %s49, %s51
      %p58 = scmp.eq.s32.totalorder %s20, 1
      %p59 = por %p57, %p58
      %p60 = scmp.ne.s32.totalorder %s51, %s52
      %p61 = scmp.eq.s32.totalorder %s20, 0
      %p62 = por %p60, %p61
      %p63 = scmp.ne.s32.totalorder %s51, %s52
      %p64 = scmp.eq.s32.totalorder %s21, 1
      %p65 = por %p63, %p64
      %p67 = scmp.ne.s32.totalorder %s52, %s66
      %p68 = scmp.eq.s32.totalorder %s21, 0
      %p69 = por %p67, %p68
      %s71 = sadd.s32 %s70, 1
      %p74 = scmp.eq.s32.totalorder %s15, 1
      %p75 = scmp.ne.s32.totalorder %s70, %s72
      %p76 = scmp.eq.s32.totalorder %s15, 0
      %p77 = por %p75, %p76
      %p78 = scmp.ne.s32.totalorder %s70, %s72
      %p79 = scmp.eq.s32.totalorder %s20, 1
      %p80 = por %p78, %p79
      %p81 = scmp.ne.s32.totalorder %s72, %s73
      %p82 = scmp.eq.s32.totalorder %s20, 0
      %p83 = por %p81, %p82
      %p84 = scmp.ne.s32.totalorder %s72, %s73
      %p85 = scmp.eq.s32.totalorder %s21, 1
      %p86 = por %p84, %p85
      %p88 = scmp.ne.s32.totalorder %s73, %s87
      %p89 = scmp.eq.s32.totalorder %s21, 0
      %p90 = por %p88, %p89
      %s92 = sadd.s32 %s91, 1
      %p95 = scmp.eq.s32.totalorder %s15, 1
      %p96 = scmp.ne.s32.totalorder %s91, %s93
      %p97 = scmp.eq.s32.totalorder %s15, 0
      %p98 = por %p96, %p97
      %p99 = scmp.ne.s32.totalorder %s91, %s93
      %p100 = scmp.eq.s32.totalorder %s20, 1
      %p101 = por %p99, %p100
      %p102 = scmp.ne.s32.totalorder %s93, %s94
      %p103 = scmp.eq.s32.totalorder %s20, 0
      %p104 = por %p102, %p103
      %p105 = scmp.ne.s32.totalorder %s93, %s94
      %p106 = scmp.eq.s32.totalorder %s21, 1
      %p107 = por %p105, %p106
      %p109 = scmp.ne.s32.totalorder %s94, %s108
      %p110 = scmp.eq.s32.totalorder %s21, 0
      %p111 = por %p109, %p110
      %s113 = sadd.s32 %s112, 1
      %p116 = scmp.eq.s32.totalorder %s15, 1
      %p117 = scmp.ne.s32.totalorder %s112, %s114
      %p118 = scmp.eq.s32.totalorder %s15, 0
      %p119 = por %p117, %p118
      %p120 = scmp.ne.s32.totalorder %s112, %s114
      %p121 = scmp.eq.s32.totalorder %s20, 1
      %p122 = por %p120, %p121
      %p123 = scmp.ne.s32.totalorder %s114, %s115
      %p124 = scmp.eq.s32.totalorder %s20, 0
      %p125 = por %p123, %p124
      %p126 = scmp.ne.s32.totalorder %s114, %s115
      %p127 = scmp.eq.s32.totalorder %s21, 1
      %p128 = por %p126, %p127
      %p130 = scmp.ne.s32.totalorder %s115, %s129
      %p131 = scmp.eq.s32.totalorder %s21, 0
      %p132 = por %p130, %p131
      %s134 = sadd.s32 %s133, 1
      %p137 = scmp.eq.s32.totalorder %s15, 1
      %p138 = scmp.ne.s32.totalorder %s133, %s135
      %p139 = scmp.eq.s32.totalorder %s15, 0
      %p140 = por %p138, %p139
      %p141 = scmp.ne.s32.totalorder %s133, %s135
      %p142 = scmp.eq.s32.totalorder %s20, 1
      %p143 = por %p141, %p142
      %p144 = scmp.ne.s32.totalorder %s135, %s136
      %p145 = scmp.eq.s32.totalorder %s20, 0
      %p146 = por %p144, %p145
      %p147 = scmp.ne.s32.totalorder %s135, %s136
      %p148 = scmp.eq.s32.totalorder %s21, 1
      %p149 = por %p147, %p148
      %p151 = scmp.ne.s32.totalorder %s136, %s150
      %p152 = scmp.eq.s32.totalorder %s21, 0
      %p153 = por %p151, %p152
      %s154 = ssub.s32 %s15, %s22
      %p155 = scmp.eq.s32.totalorder %s154, 0
      %s157 = sadd.s32 %s156, 1
      %s158 = scalar_select %p155, %s156, %s157
      %p161 = pneg %p155
      %p162 = scmp.eq.s32.totalorder %s15, 1
      %p163 = por %p161, %p162
      %p164 = scmp.ne.s32.totalorder %s156, %s159
      %p165 = scmp.eq.s32.totalorder %s15, 0
      %p166 = por %p164, %p165
      %p167 = scmp.ne.s32.totalorder %s156, %s159
      %p168 = scmp.eq.s32.totalorder %s20, 1
      %p169 = por %p167, %p168
      %p170 = scmp.ne.s32.totalorder %s159, %s160
      %p171 = scmp.eq.s32.totalorder %s20, 0
      %p172 = por %p170, %p171
      %p173 = scmp.ne.s32.totalorder %s159, %s160
      %p174 = scmp.eq.s32.totalorder %s21, 1
      %p175 = por %p173, %p174
      %p177 = scmp.ne.s32.totalorder %s160, %s176
      %p178 = scmp.eq.s32.totalorder %s21, 0
      %p179 = por %p177, %p178
      %p180 = scmp.le.s32.totalorder 1, %s15
      %p181 = scmp.lt.s32.totalorder %s15, 3
      %p182 = pnand %p180, %p181
      %p183 = pneg %p182
      // Predicated region
      $region9: #{tpu_custom_call.1} parent=5 // pred_check
        _
      $region10: #{tpu_custom_call.1} parent=5 // pred_check_branch
        %185 = sbr.rel (%p182) target = $region12
      $region11: #{tpu_custom_call.1} parent=5 // pred_region
        %s186 = ssub.s32 %s15, 1
        // Predicated region
        $region13: #{tpu_custom_call.1} parent=11 // pred_check
          %p187 = pneg %p62
        $region14: #{tpu_custom_call.1} parent=11 // pred_check_branch
          %189 = sbr.rel (%p187) target = $region16
        $region15: #{tpu_custom_call.1} parent=11 // pred_region
          _
        $region16: #{tpu_custom_call.1} parent=11 // pred_fallthru
          _
        // Predicated region
        $region17: #{tpu_custom_call.1} parent=11 // pred_check
          %p190 = pneg %p83
        $region18: #{tpu_custom_call.1} parent=11 // pred_check_branch
          %192 = sbr.rel (%p190) target = $region20
        $region19: #{tpu_custom_call.1} parent=11 // pred_region
          _
        $region20: #{tpu_custom_call.1} parent=11 // pred_fallthru
          _
        // Predicated region
        $region21: #{tpu_custom_call.1} parent=11 // pred_check
          %p193 = pneg %p104
        $region22: #{tpu_custom_call.1} parent=11 // pred_check_branch
          %195 = sbr.rel (%p193) target = $region24
        $region23: #{tpu_custom_call.1} parent=11 // pred_region
          _
        $region24: #{tpu_custom_call.1} parent=11 // pred_fallthru
          _
        // Predicated region
        $region25: #{tpu_custom_call.1} parent=11 // pred_check
          %p196 = pneg %p125
        $region26: #{tpu_custom_call.1} parent=11 // pred_check_branch
          %198 = sbr.rel (%p196) target = $region28
        $region27: #{tpu_custom_call.1} parent=11 // pred_region
          _
        $region28: #{tpu_custom_call.1} parent=11 // pred_fallthru
          _
        // Predicated region
        $region29: #{tpu_custom_call.1} parent=11 // pred_check
          %p199 = pneg %p146
        $region30: #{tpu_custom_call.1} parent=11 // pred_check_branch
          %201 = sbr.rel (%p199) target = $region32
        $region31: #{tpu_custom_call.1} parent=11 // pred_region
          _
        $region32: #{tpu_custom_call.1} parent=11 // pred_fallthru
          _
      $region12: #{tpu_custom_call.1} parent=5 // pred_fallthru
        _
      %p202 = scmp.lt.s32.totalorder %s15, 2
      // Predicated region
      $region33: #{tpu_custom_call.1} parent=5 // pred_check
        %p203 = pneg %p202
      $region34: #{tpu_custom_call.1} parent=5 // pred_check_branch
        %205 = sbr.rel (%p203) target = $region36
      $region35: #{tpu_custom_call.1} parent=5 // pred_region
        // Predicated region
        $region37: #{tpu_custom_call.1} parent=35 // pred_check
          %p206 = pneg %p35
        $region38: #{tpu_custom_call.1} parent=35 // pred_check_branch
          %208 = sbr.rel (%p206) target = $region40
        $region39: #{tpu_custom_call.1} parent=35 // pred_region
          %p209 = scmp.lt.s32.totalorder %s15, 1
          %s210 = scalar_select %p209, %s15, 1
          %s211 = smul.addr %s210, 57
          %s212 = smul.addr %s211, 8
          %s213 = scalar_lea.vmem %s0, %s212
        $region40: #{tpu_custom_call.1} parent=35 // pred_fallthru
          _
      $region36: #{tpu_custom_call.1} parent=5 // pred_fallthru
        _
      %p214 = scmp.le.s32.totalorder 1, %s15
      %p215 = scmp.lt.s32.totalorder %s15, 3
      %p216 = pnand %p214, %p215
      %p217 = pneg %p216
      // Predicated region
      $region41: #{tpu_custom_call.1} parent=5 // pred_check
        _
      $region42: #{tpu_custom_call.1} parent=5 // pred_check_branch
        %219 = sbr.rel (%p216) target = $region44
      $region43: #{tpu_custom_call.1} parent=5 // pred_region
        %s220 = ssub.s32 %s15, 1
        %p221 = scmp.lt.s32.totalorder %s20, 1
        %s222 = scalar_select %p221, %s20, 1
        %s223 = smul.addr %s222, 57
        %s224 = smul.addr %s223, 8
        %s225 = scalar_lea.vmem %s0, %s224
        %p226 = pneg %p41
        %p227 = pneg %p38
        %p228 = pneg %p62
        %p229 = pneg %p59
        %p230 = pneg %p83
        %p231 = pneg %p80
        %p232 = pneg %p104
        %p233 = pneg %p101
        %p234 = pneg %p125
        %p235 = pneg %p122
        %p236 = pneg %p146
        %p237 = pneg %p143
        %p238 = pneg %p172
        %p239 = pneg %p169
        %s240 = sand.u32 %s159, 1
        %s241 = scalar_lea.sflag [#allocation4], %s240
        %s242 = sand.u32 %s159, 1
        %s243 = smul.addr %s242, 64
        %s244 = scalar_lea.vmem [#allocation3], %s243
        %p245 = scmp.lt.s32.totalorder %s20, 1
        %s246 = scalar_select %p245, %s20, 1
        %s247 = smul.addr %s246, 57
        %s248 = smul.addr %s247, 8
        %s249 = scalar_lea.vmem %s0, %s248
        %v250 = vld [vmem:[%s249] sm:$0xff]
        %v251 = vld [vmem:[%s249 + $0x8] sm:$0xff]
        %v252 = vld [vmem:[%s249 + $0x10] sm:$0xff]
        %v253 = vld [vmem:[%s249 + $0x18] sm:$0xff]
        %v254 = vld [vmem:[%s249 + $0x20] sm:$0xff]
        %v255 = vld [vmem:[%s249 + $0x28] sm:$0xff]
        %v256 = vld [vmem:[%s249 + $0x30] sm:$0xff]
        %v257 = vld [vmem:[%s249 + $0x38] sm:$0xff]
        %v258 = vld [vmem:[%s249 + $0x40] sm:$0xff]
        %v259 = vld [vmem:[%s249 + $0x48] sm:$0xff]
        %v260 = vld [vmem:[%s249 + $0x50] sm:$0xff]
        %v261 = vld [vmem:[%s249 + $0x58] sm:$0xff]
        %v262 = vld [vmem:[%s249 + $0x60] sm:$0xff]
        %v263 = vld [vmem:[%s249 + $0x68] sm:$0xff]
        %v264 = vld [vmem:[%s249 + $0x70] sm:$0xff]
        %v265 = vld [vmem:[%s249 + $0x78] sm:$0xff]
        %v266 = vld [vmem:[%s249 + $0x80] sm:$0xff]
        %v267 = vld [vmem:[%s249 + $0x88] sm:$0xff]
        %v268 = vld [vmem:[%s249 + $0x90] sm:$0xff]
        %v269 = vld [vmem:[%s249 + $0x98] sm:$0xff]
        %v270 = vld [vmem:[%s249 + $0xa0] sm:$0xff]
        %v271 = vld [vmem:[%s249 + $0xa8] sm:$0xff]
        %v272 = vld [vmem:[%s249 + $0xb0] sm:$0xff]
        %v273 = vld [vmem:[%s249 + $0xb8] sm:$0xff]
        %v274 = vld [vmem:[%s249 + $0xc0] sm:$0xff]
        %v275 = vld [vmem:[%s249 + $0xc8] sm:$0xff]
        %v276 = vld [vmem:[%s249 + $0xd0] sm:$0xff]
        %v277 = vld [vmem:[%s249 + $0xd8] sm:$0xff]
        %v278 = vld [vmem:[%s249 + $0xe0] sm:$0xff]
        %v279 = vld [vmem:[%s249 + $0xe8] sm:$0xff]
        %v280 = vld [vmem:[%s249 + $0xf0] sm:$0xff]
        %v281 = vld [vmem:[%s249 + $0xf8] sm:$0xff]
        %v282 = vld [vmem:[%s249 + $0x100] sm:$0xff]
        %v283 = vld [vmem:[%s249 + $0x108] sm:$0xff]
        %v284 = vld [vmem:[%s249 + $0x110] sm:$0xff]
        %v285 = vld [vmem:[%s249 + $0x118] sm:$0xff]
        %v286 = vld [vmem:[%s249 + $0x120] sm:$0xff]
        %v287 = vld [vmem:[%s249 + $0x128] sm:$0xff]
        %v288 = vld [vmem:[%s249 + $0x130] sm:$0xff]
        %v289 = vld [vmem:[%s249 + $0x138] sm:$0xff]
        %v290 = vld [vmem:[%s249 + $0x140] sm:$0xff]
        %v291 = vld [vmem:[%s249 + $0x148] sm:$0xff]
        %v292 = vld [vmem:[%s249 + $0x150] sm:$0xff]
        %v293 = vld [vmem:[%s249 + $0x158] sm:$0xff]
        %v294 = vld [vmem:[%s249 + $0x160] sm:$0xff]
        %v295 = vld [vmem:[%s249 + $0x168] sm:$0xff]
        %v296 = vld [vmem:[%s249 + $0x170] sm:$0xff]
        %v297 = vld [vmem:[%s249 + $0x178] sm:$0xff]
        %v298 = vld [vmem:[%s1] sm:$0xf]
        %v299 = vld [vmem:[%s249 + $0x1] sm:$0xff]
        %v300 = vld [vmem:[%s249 + $0x9] sm:$0xff]
        %v301 = vld [vmem:[%s249 + $0x11] sm:$0xff]
        %v302 = vld [vmem:[%s249 + $0x19] sm:$0xff]
        %v303 = vld [vmem:[%s249 + $0x21] sm:$0xff]
        %v304 = vld [vmem:[%s249 + $0x29] sm:$0xff]
        %v305 = vld [vmem:[%s249 + $0x31] sm:$0xff]
        %v306 = vld [vmem:[%s249 + $0x39] sm:$0xff]
        %v307 = vld [vmem:[%s249 + $0x41] sm:$0xff]
        %v308 = vld [vmem:[%s249 + $0x49] sm:$0xff]
        %v309 = vld [vmem:[%s249 + $0x51] sm:$0xff]
        %v310 = vld [vmem:[%s249 + $0x59] sm:$0xff]
        %v311 = vld [vmem:[%s249 + $0x61] sm:$0xff]
        %v312 = vld [vmem:[%s249 + $0x69] sm:$0xff]
        %v313 = vld [vmem:[%s249 + $0x71] sm:$0xff]
        %v314 = vld [vmem:[%s249 + $0x79] sm:$0xff]
        %v315 = vld [vmem:[%s249 + $0x81] sm:$0xff]
        %v316 = vld [vmem:[%s249 + $0x89] sm:$0xff]
        %v317 = vld [vmem:[%s249 + $0x91] sm:$0xff]
        %v318 = vld [vmem:[%s249 + $0x99] sm:$0xff]
        %v319 = vld [vmem:[%s249 + $0xa1] sm:$0xff]
        %v320 = vld [vmem:[%s249 + $0xa9] sm:$0xff]
        %v321 = vld [vmem:[%s249 + $0xb1] sm:$0xff]
        %v322 = vld [vmem:[%s249 + $0xb9] sm:$0xff]
        %v323 = vld [vmem:[%s249 + $0xc1] sm:$0xff]
        %v324 = vld [vmem:[%s249 + $0xc9] sm:$0xff]
        %v325 = vld [vmem:[%s249 + $0xd1] sm:$0xff]
        %v326 = vld [vmem:[%s249 + $0xd9] sm:$0xff]
        %v327 = vld [vmem:[%s249 + $0xe1] sm:$0xff]
        %v328 = vld [vmem:[%s249 + $0xe9] sm:$0xff]
        %v329 = vld [vmem:[%s249 + $0xf1] sm:$0xff]
        %v330 = vld [vmem:[%s249 + $0xf9] sm:$0xff]
        %v331 = vld [vmem:[%s249 + $0x101] sm:$0xff]
        %v332 = vld [vmem:[%s249 + $0x109] sm:$0xff]
        %v333 = vld [vmem:[%s249 + $0x111] sm:$0xff]
        %v334 = vld [vmem:[%s249 + $0x119] sm:$0xff]
        %v335 = vld [vmem:[%s249 + $0x121] sm:$0xff]
        %v336 = vld [vmem:[%s249 + $0x129] sm:$0xff]
        %v337 = vld [vmem:[%s249 + $0x131] sm:$0xff]
        %v338 = vld [vmem:[%s249 + $0x139] sm:$0xff]
        %v339 = vld [vmem:[%s249 + $0x141] sm:$0xff]
        %v340 = vld [vmem:[%s249 + $0x149] sm:$0xff]
        %v341 = vld [vmem:[%s249 + $0x151] sm:$0xff]
        %v342 = vld [vmem:[%s249 + $0x159] sm:$0xff]
        %v343 = vld [vmem:[%s249 + $0x161] sm:$0xff]
        %v344 = vld [vmem:[%s249 + $0x169] sm:$0xff]
        %v345 = vld [vmem:[%s249 + $0x171] sm:$0xff]
        %v346 = vld [vmem:[%s249 + $0x179] sm:$0xff]
        %s347 = scalar_lea.vmem %s1, 4
        %v348 = vld [vmem:[%s347] sm:$0xf]
        %vm349 = vcmask 31744
        %v351 = vsel %vm349, %v299, 0
        %v354 = vsel %vm349, %v300, 0
        %v357 = vsel %vm349, %v301, 0
        %v360 = vsel %vm349, %v302, 0
        %v363 = vsel %vm349, %v303, 0
        %v366 = vsel %vm349, %v304, 0
        %v369 = vsel %vm349, %v305, 0
        %v372 = vsel %vm349, %v306, 0
        %v375 = vsel %vm349, %v307, 0
        %v378 = vsel %vm349, %v308, 0
        %v381 = vsel %vm349, %v309, 0
        %v384 = vsel %vm349, %v310, 0
        %v387 = vsel %vm349, %v311, 0
        %v390 = vsel %vm349, %v312, 0
        %v393 = vsel %vm349, %v313, 0
        %v396 = vsel %vm349, %v314, 0
        %v399 = vsel %vm349, %v315, 0
        %v402 = vsel %vm349, %v316, 0
        %v405 = vsel %vm349, %v317, 0
        %v408 = vsel %vm349, %v318, 0
        %v411 = vsel %vm349, %v319, 0
        %v414 = vsel %vm349, %v320, 0
        %v417 = vsel %vm349, %v321, 0
        %v420 = vsel %vm349, %v322, 0
        %v423 = vsel %vm349, %v323, 0
        %v426 = vsel %vm349, %v324, 0
        %v429 = vsel %vm349, %v325, 0
        %v432 = vsel %vm349, %v326, 0
        %v435 = vsel %vm349, %v327, 0
        %v438 = vsel %vm349, %v328, 0
        %v441 = vsel %vm349, %v329, 0
        %v444 = vsel %vm349, %v330, 0
        %v447 = vsel %vm349, %v331, 0
        %v450 = vsel %vm349, %v332, 0
        %v453 = vsel %vm349, %v333, 0
        %v456 = vsel %vm349, %v334, 0
        %v459 = vsel %vm349, %v335, 0
        %v462 = vsel %vm349, %v336, 0
        %v465 = vsel %vm349, %v337, 0
        %v468 = vsel %vm349, %v338, 0
        %v471 = vsel %vm349, %v339, 0
        %v474 = vsel %vm349, %v340, 0
        %v477 = vsel %vm349, %v341, 0
        %v480 = vsel %vm349, %v342, 0
        %v483 = vsel %vm349, %v343, 0
        %v486 = vsel %vm349, %v344, 0
        %v489 = vsel %vm349, %v345, 0
        %v492 = vsel %vm349, %v346, 0
        %vm494 = vcmask 1043456
        %v496 = vsel %vm494, %v348, 0
        %498 = vmatprep.subr.mxu0 0.0
        %499 = vmatpush1.msra.mxu0 %v496
        %500 = vmatprep.subr.mxu0 0.0
        %501 = vmatpush1.msra.mxu0 0.0
        %502 = vmatprep.subr.mxu0 0.0
        %503 = vmatpush1.msra.mxu0 0.0
        %504 = vmatprep.subr.mxu0 0.0
        %505 = vmatpush1.msra.mxu0 0.0
        %506 = vmatprep.subr.mxu0 0.0
        %507 = vmatpush1.msra.mxu0 0.0
        %508 = vmatprep.subr.mxu0 0.0
        %509 = vmatpush1.msra.mxu0 0.0
        %510 = vmatprep.subr.mxu0 0.0
        %511 = vmatpush1.msra.mxu0 0.0
        %512 = vmatprep.subr.mxu0 0.0
        %513 = vmatpush1.msra.mxu0 0.0
        %514 = vmatprep.subr.mxu0 0.0
        %515 = vmatpush1.msra.mxu0 0.0
        %516 = vmatprep.subr.mxu0 0.0
        %517 = vmatpush1.msra.mxu0 0.0
        %518 = vmatprep.subr.mxu0 0.0
        %519 = vmatpush1.msra.mxu0 0.0
        %520 = vmatprep.subr.mxu0 0.0
        %521 = vmatpush1.msra.mxu0 0.0
        %522 = vmatprep.subr.mxu0 0.0
        %523 = vmatpush1.msra.mxu0 0.0
        %524 = vmatprep.subr.mxu0 0.0
        %525 = vmatpush1.msra.mxu0 0.0
        %526 = vmatprep.subr.mxu0 0.0
        %527 = vmatpush1.msra.mxu0 0.0
        %528 = vmatprep.subr.mxu0 0.0
        %529 = vmatpush1.msra.mxu0 0.0
        %530 = vmatprep.subr.mxu0 0.0
        %531 = vmatpush1.msra.mxu0 0.0
        %532 = vmatprep.subr.mxu0 0.0
        %533 = vmatpush1.msra.mxu0 0.0
        %534 = vmatprep.subr.mxu0 0.0
        %535 = vmatpush1.msra.mxu0 0.0
        %536 = vmatprep.subr.mxu0 0.0
        %537 = vmatpush1.msra.mxu0 0.0
        %538 = vmatprep.subr.mxu0 0.0
        %539 = vmatpush1.msra.mxu0 0.0
        %540 = vmatprep.subr.mxu0 0.0
        %541 = vmatpush1.msra.mxu0 0.0
        %542 = vmatprep.subr.mxu0 0.0
        %543 = vmatpush1.msra.mxu0 0.0
        %544 = vmatprep.subr.mxu0 0.0
        %545 = vmatpush1.msra.mxu0 0.0
        %546 = vmatprep.subr.mxu0 0.0
        %547 = vmatpush1.msra.mxu0 0.0
        %548 = vmatprep.subr.mxu0 0.0
        %549 = vmatpush1.msra.mxu0 0.0
        %550 = vmatprep.subr.mxu0 0.0
        %551 = vmatpush1.msra.mxu0 0.0
        %552 = vmatprep.subr.mxu0 0.0
        %553 = vmatpush1.msra.mxu0 0.0
        %554 = vmatprep.subr.mxu0 0.0
        %555 = vmatpush1.msra.mxu0 0.0
        %556 = vmatprep.subr.mxu0 0.0
        %557 = vmatpush1.msra.mxu0 0.0
        %558 = vmatprep.subr.mxu0 0.0
        %559 = vmatpush1.msra.mxu0 0.0
        %560 = vmatprep.subr.mxu0 0.0
        %561 = vmatpush1.msra.mxu0 0.0
        %562 = vmatprep.mubr.f32.mxu0 0.0
        %563 = vmatmul.mubr.f32.gmra.mrb[0].mxu0 %v351
        %v564 = vpop.f32.mrb[0].mxu0
        %v565 = vadd.f32 0.0, %v564
        %v566 = vpop.f32.mrb[0].mxu0
        %567 = vmatprep.mubr.f32.mxu0 0.0
        %568 = vmatmul.mubr.f32.gmra.mrb[0].mxu0 %v354
        %v569 = vpop.f32.mrb[0].mxu0
        %v570 = vadd.f32 0.0, %v569
        %v571 = vpop.f32.mrb[0].mxu0
        %572 = vmatprep.mubr.f32.mxu0 0.0
        %573 = vmatmul.mubr.f32.gmra.mrb[0].mxu0 %v357
        %v574 = vpop.f32.mrb[0].mxu0
        %v575 = vadd.f32 0.0, %v574
        %v576 = vpop.f32.mrb[0].mxu0
        %577 = vmatprep.mubr.f32.mxu0 0.0
        %578 = vmatmul.mubr.f32.gmra.mrb[0].mxu0 %v360
        %v579 = vpop.f32.mrb[0].mxu0
        %v580 = vadd.f32 0.0, %v579
        %v581 = vpop.f32.mrb[0].mxu0
        %582 = vmatprep.mubr.f32.mxu0 0.0
        %583 = vmatmul.mubr.f32.gmra.mrb[0].mxu0 %v363
        %v584 = vpop.f32.mrb[0].mxu0
        %v585 = vadd.f32 0.0, %v584
        %v586 = vpop.f32.mrb[0].mxu0
        %587 = vmatprep.mubr.f32.mxu0 0.0
        %588 = vmatmul.mubr.f32.gmra.mrb[0].mxu0 %v366
        %v589 = vpop.f32.mrb[0].mxu0
        %v590 = vadd.f32 0.0, %v589
        %v591 = vpop.f32.mrb[0].mxu0
        %592 = vmatprep.mubr.f32.mxu0 0.0
        %593 = vmatmul.mubr.f32.gmra.mrb[0].mxu0 %v369
        %v594 = vpop.f32.mrb[0].mxu0
        %v595 = vadd.f32 0.0, %v594
        %v596 = vpop.f32.mrb[0].mxu0
        %597 = vmatprep.mubr.f32.mxu0 0.0
        %598 = vmatmul.mubr.f32.gmra.mrb[0].mxu0 %v372
        %v599 = vpop.f32.mrb[0].mxu0
        %v600 = vadd.f32 0.0, %v599
        %v601 = vpop.f32.mrb[0].mxu0
        %602 = vmatprep.mubr.f32.mxu0 0.0
        %603 = vmatmul.mubr.f32.gmra.mrb[0].mxu0 %v375
        %v604 = vpop.f32.mrb[0].mxu0
        %v605 = vadd.f32 0.0, %v604
        %v606 = vpop.f32.mrb[0].mxu0
        %607 = vmatprep.mubr.f32.mxu0 0.0
        %608 = vmatmul.mubr.f32.gmra.mrb[0].mxu0 %v378
        %v609 = vpop.f32.mrb[0].mxu0
        %v610 = vadd.f32 0.0, %v609
        %v611 = vpop.f32.mrb[0].mxu0
        %612 = vmatprep.mubr.f32.mxu0 0.0
        %613 = vmatmul.mubr.f32.gmra.mrb[0].mxu0 %v381
        %v614 = vpop.f32.mrb[0].mxu0
        %v615 = vadd.f32 0.0, %v614
        %v616 = vpop.f32.mrb[0].mxu0
        %617 = vmatprep.mubr.f32.mxu0 0.0
        %618 = vmatmul.mubr.f32.gmra.mrb[0].mxu0 %v384
        %v619 = vpop.f32.mrb[0].mxu0
        %v620 = vadd.f32 0.0, %v619
        %v621 = vpop.f32.mrb[0].mxu0
        %622 = vmatprep.mubr.f32.mxu0 0.0
        %623 = vmatmul.mubr.f32.gmra.mrb[0].mxu0 %v387
        %v624 = vpop.f32.mrb[0].mxu0
        %v625 = vadd.f32 0.0, %v624
        %v626 = vpop.f32.mrb[0].mxu0
        %627 = vmatprep.mubr.f32.mxu0 0.0
        %628 = vmatmul.mubr.f32.gmra.mrb[0].mxu0 %v390
        %v629 = vpop.f32.mrb[0].mxu0
        %v630 = vadd.f32 0.0, %v629
        %v631 = vpop.f32.mrb[0].mxu0
        %632 = vmatprep.mubr.f32.mxu0 0.0
        %633 = vmatmul.mubr.f32.gmra.mrb[0].mxu0 %v393
        %v634 = vpop.f32.mrb[0].mxu0
        %v635 = vadd.f32 0.0, %v634
        %v636 = vpop.f32.mrb[0].mxu0
        %637 = vmatprep.mubr.f32.mxu0 0.0
        %638 = vmatmul.mubr.f32.gmra.mrb[0].mxu0 %v396
        %v639 = vpop.f32.mrb[0].mxu0
        %v640 = vadd.f32 0.0, %v639
        %v641 = vpop.f32.mrb[0].mxu0
        %642 = vmatprep.mubr.f32.mxu0 0.0
        %643 = vmatmul.mubr.f32.gmra.mrb[0].mxu0 %v399
        %v644 = vpop.f32.mrb[0].mxu0
        %v645 = vadd.f32 0.0, %v644
        %v646 = vpop.f32.mrb[0].mxu0
        %647 = vmatprep.mubr.f32.mxu0 0.0
        %648 = vmatmul.mubr.f32.gmra.mrb[0].mxu0 %v402
        %v649 = vpop.f32.mrb[0].mxu0
        %v650 = vadd.f32 0.0, %v649
        %v651 = vpop.f32.mrb[0].mxu0
        %652 = vmatprep.mubr.f32.mxu0 0.0
        %653 = vmatmul.mubr.f32.gmra.mrb[0].mxu0 %v405
        %v654 = vpop.f32.mrb[0].mxu0
        %v655 = vadd.f32 0.0, %v654
        %v656 = vpop.f32.mrb[0].mxu0
        %657 = vmatprep.mubr.f32.mxu0 0.0
        %658 = vmatmul.mubr.f32.gmra.mrb[0].mxu0 %v408
        %v659 = vpop.f32.mrb[0].mxu0
        %v660 = vadd.f32 0.0, %v659
        %v661 = vpop.f32.mrb[0].mxu0
        %662 = vmatprep.mubr.f32.mxu0 0.0
        %663 = vmatmul.mubr.f32.gmra.mrb[0].mxu0 %v411
        %v664 = vpop.f32.mrb[0].mxu0
        %v665 = vadd.f32 0.0, %v664
        %v666 = vpop.f32.mrb[0].mxu0
        %667 = vmatprep.mubr.f32.mxu0 0.0
        %668 = vmatmul.mubr.f32.gmra.mrb[0].mxu0 %v414
        %v669 = vpop.f32.mrb[0].mxu0
        %v670 = vadd.f32 0.0, %v669
        %v671 = vpop.f32.mrb[0].mxu0
        %672 = vmatprep.mubr.f32.mxu0 0.0
        %673 = vmatmul.mubr.f32.gmra.mrb[0].mxu0 %v417
        %v674 = vpop.f32.mrb[0].mxu0
        %v675 = vadd.f32 0.0, %v674
        %v676 = vpop.f32.mrb[0].mxu0
        %677 = vmatprep.mubr.f32.mxu0 0.0
        %678 = vmatmul.mubr.f32.gmra.mrb[0].mxu0 %v420
        %v679 = vpop.f32.mrb[0].mxu0
        %v680 = vadd.f32 0.0, %v679
        %v681 = vpop.f32.mrb[0].mxu0
        %682 = vmatprep.mubr.f32.mxu0 0.0
        %683 = vmatmul.mubr.f32.gmra.mrb[0].mxu0 %v423
        %v684 = vpop.f32.mrb[0].mxu0
        %v685 = vadd.f32 0.0, %v684
        %v686 = vpop.f32.mrb[0].mxu0
        %687 = vmatprep.mubr.f32.mxu0 0.0
        %688 = vmatmul.mubr.f32.gmra.mrb[0].mxu0 %v426
        %v689 = vpop.f32.mrb[0].mxu0
        %v690 = vadd.f32 0.0, %v689
        %v691 = vpop.f32.mrb[0].mxu0
        %692 = vmatprep.mubr.f32.mxu0 0.0
        %693 = vmatmul.mubr.f32.gmra.mrb[0].mxu0 %v429
        %v694 = vpop.f32.mrb[0].mxu0
        %v695 = vadd.f32 0.0, %v694
        %v696 = vpop.f32.mrb[0].mxu0
        %697 = vmatprep.mubr.f32.mxu0 0.0
        %698 = vmatmul.mubr.f32.gmra.mrb[0].mxu0 %v432
        %v699 = vpop.f32.mrb[0].mxu0
        %v700 = vadd.f32 0.0, %v699
        %v701 = vpop.f32.mrb[0].mxu0
        %702 = vmatprep.mubr.f32.mxu0 0.0
        %703 = vmatmul.mubr.f32.gmra.mrb[0].mxu0 %v435
        %v704 = vpop.f32.mrb[0].mxu0
        %v705 = vadd.f32 0.0, %v704
        %v706 = vpop.f32.mrb[0].mxu0
        %707 = vmatprep.mubr.f32.mxu0 0.0
        %708 = vmatmul.mubr.f32.gmra.mrb[0].mxu0 %v438
        %v709 = vpop.f32.mrb[0].mxu0
        %v710 = vadd.f32 0.0, %v709
        %v711 = vpop.f32.mrb[0].mxu0
        %712 = vmatprep.mubr.f32.mxu0 0.0
        %713 = vmatmul.mubr.f32.gmra.mrb[0].mxu0 %v441
        %v714 = vpop.f32.mrb[0].mxu0
        %v715 = vadd.f32 0.0, %v714
        %v716 = vpop.f32.mrb[0].mxu0
        %717 = vmatprep.mubr.f32.mxu0 0.0
        %718 = vmatmul.mubr.f32.gmra.mrb[0].mxu0 %v444
        %v719 = vpop.f32.mrb[0].mxu0
        %v720 = vadd.f32 0.0, %v719
        %v721 = vpop.f32.mrb[0].mxu0
        %722 = vmatprep.mubr.f32.mxu0 0.0
        %723 = vmatmul.mubr.f32.gmra.mrb[0].mxu0 %v447
        %v724 = vpop.f32.mrb[0].mxu0
        %v725 = vadd.f32 0.0, %v724
        %v726 = vpop.f32.mrb[0].mxu0
        %727 = vmatprep.mubr.f32.mxu0 0.0
        %728 = vmatmul.mubr.f32.gmra.mrb[0].mxu0 %v450
        %v729 = vpop.f32.mrb[0].mxu0
        %v730 = vadd.f32 0.0, %v729
        %v731 = vpop.f32.mrb[0].mxu0
        %732 = vmatprep.mubr.f32.mxu0 0.0
        %733 = vmatmul.mubr.f32.gmra.mrb[0].mxu0 %v453
        %v734 = vpop.f32.mrb[0].mxu0
        %v735 = vadd.f32 0.0, %v734
        %v736 = vpop.f32.mrb[0].mxu0
        %737 = vmatprep.mubr.f32.mxu0 0.0
        %738 = vmatmul.mubr.f32.gmra.mrb[0].mxu0 %v456
        %v739 = vpop.f32.mrb[0].mxu0
        %v740 = vadd.f32 0.0, %v739
        %v741 = vpop.f32.mrb[0].mxu0
        %742 = vmatprep.mubr.f32.mxu0 0.0
        %743 = vmatmul.mubr.f32.gmra.mrb[0].mxu0 %v459
        %v744 = vpop.f32.mrb[0].mxu0
        %v745 = vadd.f32 0.0, %v744
        %v746 = vpop.f32.mrb[0].mxu0
        %747 = vmatprep.mubr.f32.mxu0 0.0
        %748 = vmatmul.mubr.f32.gmra.mrb[0].mxu0 %v462
        %v749 = vpop.f32.mrb[0].mxu0
        %v750 = vadd.f32 0.0, %v749
        %v751 = vpop.f32.mrb[0].mxu0
        %752 = vmatprep.mubr.f32.mxu0 0.0
        %753 = vmatmul.mubr.f32.gmra.mrb[0].mxu0 %v465
        %v754 = vpop.f32.mrb[0].mxu0
        %v755 = vadd.f32 0.0, %v754
        %v756 = vpop.f32.mrb[0].mxu0
        %757 = vmatprep.mubr.f32.mxu0 0.0
        %758 = vmatmul.mubr.f32.gmra.mrb[0].mxu0 %v468
        %v759 = vpop.f32.mrb[0].mxu0
        %v760 = vadd.f32 0.0, %v759
        %v761 = vpop.f32.mrb[0].mxu0
        %762 = vmatprep.mubr.f32.mxu0 0.0
        %763 = vmatmul.mubr.f32.gmra.mrb[0].mxu0 %v471
        %v764 = vpop.f32.mrb[0].mxu0
        %v765 = vadd.f32 0.0, %v764
        %v766 = vpop.f32.mrb[0].mxu0
        %767 = vmatprep.mubr.f32.mxu0 0.0
        %768 = vmatmul.mubr.f32.gmra.mrb[0].mxu0 %v474
        %v769 = vpop.f32.mrb[0].mxu0
        %v770 = vadd.f32 0.0, %v769
        %v771 = vpop.f32.mrb[0].mxu0
        %772 = vmatprep.mubr.f32.mxu0 0.0
        %773 = vmatmul.mubr.f32.gmra.mrb[0].mxu0 %v477
        %v774 = vpop.f32.mrb[0].mxu0
        %v775 = vadd.f32 0.0, %v774
        %v776 = vpop.f32.mrb[0].mxu0
        %777 = vmatprep.mubr.f32.mxu0 0.0
        %778 = vmatmul.mubr.f32.gmra.mrb[0].mxu0 %v480
        %v779 = vpop.f32.mrb[0].mxu0
        %v780 = vadd.f32 0.0, %v779
        %v781 = vpop.f32.mrb[0].mxu0
        %782 = vmatprep.mubr.f32.mxu0 0.0
        %783 = vmatmul.mubr.f32.gmra.mrb[0].mxu0 %v483
        %v784 = vpop.f32.mrb[0].mxu0
        %v785 = vadd.f32 0.0, %v784
        %v786 = vpop.f32.mrb[0].mxu0
        %787 = vmatprep.mubr.f32.mxu0 0.0
        %788 = vmatmul.mubr.f32.gmra.mrb[0].mxu0 %v486
        %v789 = vpop.f32.mrb[0].mxu0
        %v790 = vadd.f32 0.0, %v789
        %v791 = vpop.f32.mrb[0].mxu0
        %792 = vmatprep.mubr.f32.mxu0 0.0
        %793 = vmatmul.mubr.f32.gmra.mrb[0].mxu0 %v489
        %v794 = vpop.f32.mrb[0].mxu0
        %v795 = vadd.f32 0.0, %v794
        %v796 = vpop.f32.mrb[0].mxu0
        %797 = vmatprep.mubr.f32.mxu0 0.0
        %798 = vmatmul.mubr.f32.gmra.mrb[0].mxu0 %v492
        %v799 = vpop.f32.mrb[0].mxu0
        %v800 = vadd.f32 0.0, %v799
        %v801 = vpop.f32.mrb[0].mxu0
        %802 = vdwg.mxu0
        %v804 = vsel %vm349, %v250, 0
        %v807 = vsel %vm349, %v251, 0
        %v810 = vsel %vm349, %v252, 0
        %v813 = vsel %vm349, %v253, 0
        %v816 = vsel %vm349, %v254, 0
        %v819 = vsel %vm349, %v255, 0
        %v822 = vsel %vm349, %v256, 0
        %v825 = vsel %vm349, %v257, 0
        %v828 = vsel %vm349, %v258, 0
        %v831 = vsel %vm349, %v259, 0
        %v834 = vsel %vm349, %v260, 0
        %v837 = vsel %vm349, %v261, 0
        %v840 = vsel %vm349, %v262, 0
        %v843 = vsel %vm349, %v263, 0
        %v846 = vsel %vm349, %v264, 0
        %v849 = vsel %vm349, %v265, 0
        %v852 = vsel %vm349, %v266, 0
        %v855 = vsel %vm349, %v267, 0
        %v858 = vsel %vm349, %v268, 0
        %v861 = vsel %vm349, %v269, 0
        %v864 = vsel %vm349, %v270, 0
        %v867 = vsel %vm349, %v271, 0
        %v870 = vsel %vm349, %v272, 0
        %v873 = vsel %vm349, %v273, 0
        %v876 = vsel %vm349, %v274, 0
        %v879 = vsel %vm349, %v275, 0
        %v882 = vsel %vm349, %v276, 0
        %v885 = vsel %vm349, %v277, 0
        %v888 = vsel %vm349, %v278, 0
        %v891 = vsel %vm349, %v279, 0
        %v894 = vsel %vm349, %v280, 0
        %v897 = vsel %vm349, %v281, 0
        %v900 = vsel %vm349, %v282, 0
        %v903 = vsel %vm349, %v283, 0
        %v906 = vsel %vm349, %v284, 0
        %v909 = vsel %vm349, %v285, 0
        %v912 = vsel %vm349, %v286, 0
        %v915 = vsel %vm349, %v287, 0
        %v918 = vsel %vm349, %v288, 0
        %v921 = vsel %vm349, %v289, 0
        %v924 = vsel %vm349, %v290, 0
        %v927 = vsel %vm349, %v291, 0
        %v930 = vsel %vm349, %v292, 0
        %v933 = vsel %vm349, %v293, 0
        %v936 = vsel %vm349, %v294, 0
        %v939 = vsel %vm349, %v295, 0
        %v942 = vsel %vm349, %v296, 0
        %v945 = vsel %vm349, %v297, 0
        %v948 = vsel %vm494, %v298, 0
        %950 = vmatprep.subr.mxu0 0.0
        %951 = vmatpush1.msra.mxu0 %v948
        %952 = vmatprep.subr.mxu0 0.0
        %953 = vmatpush1.msra.mxu0 0.0
        %954 = vmatprep.subr.mxu0 0.0
        %955 = vmatpush1.msra.mxu0 0.0
        %956 = vmatprep.subr.mxu0 0.0
        %957 = vmatpush1.msra.mxu0 0.0
        %958 = vmatprep.subr.mxu0 0.0
        %959 = vmatpush1.msra.mxu0 0.0
        %960 = vmatprep.subr.mxu0 0.0
        %961 = vmatpush1.msra.mxu0 0.0
        %962 = vmatprep.subr.mxu0 0.0
        %963 = vmatpush1.msra.mxu0 0.0
        %964 = vmatprep.subr.mxu0 0.0
        %965 = vmatpush1.msra.mxu0 0.0
        %966 = vmatprep.subr.mxu0 0.0
        %967 = vmatpush1.msra.mxu0 0.0
        %968 = vmatprep.subr.mxu0 0.0
        %969 = vmatpush1.msra.mxu0 0.0
        %970 = vmatprep.subr.mxu0 0.0
        %971 = vmatpush1.msra.mxu0 0.0
        %972 = vmatprep.subr.mxu0 0.0
        %973 = vmatpush1.msra.mxu0 0.0
        %974 = vmatprep.subr.mxu0 0.0
        %975 = vmatpush1.msra.mxu0 0.0
        %976 = vmatprep.subr.mxu0 0.0
        %977 = vmatpush1.msra.mxu0 0.0
        %978 = vmatprep.subr.mxu0 0.0
        %979 = vmatpush1.msra.mxu0 0.0
        %980 = vmatprep.subr.mxu0 0.0
        %981 = vmatpush1.msra.mxu0 0.0
        %982 = vmatprep.subr.mxu0 0.0
        %983 = vmatpush1.msra.mxu0 0.0
        %984 = vmatprep.subr.mxu0 0.0
        %985 = vmatpush1.msra.mxu0 0.0
        %986 = vmatprep.subr.mxu0 0.0
        %987 = vmatpush1.msra.mxu0 0.0
        %988 = vmatprep.subr.mxu0 0.0
        %989 = vmatpush1.msra.mxu0 0.0
        %990 = vmatprep.subr.mxu0 0.0
        %991 = vmatpush1.msra.mxu0 0.0
        %992 = vmatprep.subr.mxu0 0.0
        %993 = vmatpush1.msra.mxu0 0.0
        %994 = vmatprep.subr.mxu0 0.0
        %995 = vmatpush1.msra.mxu0 0.0
        %996 = vmatprep.subr.mxu0 0.0
        %997 = vmatpush1.msra.mxu0 0.0
        %998 = vmatprep.subr.mxu0 0.0
        %999 = vmatpush1.msra.mxu0 0.0
        %1000 = vmatprep.subr.mxu0 0.0
        %1001 = vmatpush1.msra.mxu0 0.0
        %1002 = vmatprep.subr.mxu0 0.0
        %1003 = vmatpush1.msra.mxu0 0.0
        %1004 = vmatprep.subr.mxu0 0.0
        %1005 = vmatpush1.msra.mxu0 0.0
        %1006 = vmatprep.subr.mxu0 0.0
        %1007 = vmatpush1.msra.mxu0 0.0
        %1008 = vmatprep.subr.mxu0 0.0
        %1009 = vmatpush1.msra.mxu0 0.0
        %1010 = vmatprep.subr.mxu0 0.0
        %1011 = vmatpush1.msra.mxu0 0.0
        %1012 = vmatprep.subr.mxu0 0.0
        %1013 = vmatpush1.msra.mxu0 0.0
        %1014 = vmatprep.mubr.f32.mxu0 0.0
        %1015 = vmatmul.mubr.f32.gmra.mrb[0].mxu0 %v804
        %v1016 = vpop.f32.mrb[0].mxu0
        %v1017 = vadd.f32 %v565, %v1016
        %v1018 = vpop.f32.mrb[0].mxu0
        %1019 = vmatprep.mubr.f32.mxu0 0.0
        %1020 = vmatmul.mubr.f32.gmra.mrb[0].mxu0 %v807
        %v1021 = vpop.f32.mrb[0].mxu0
        %v1022 = vadd.f32 %v570, %v1021
        %v1023 = vpop.f32.mrb[0].mxu0
        %1024 = vmatprep.mubr.f32.mxu0 0.0
        %1025 = vmatmul.mubr.f32.gmra.mrb[0].mxu0 %v810
        %v1026 = vpop.f32.mrb[0].mxu0
        %v1027 = vadd.f32 %v575, %v1026
        %v1028 = vpop.f32.mrb[0].mxu0
        %1029 = vmatprep.mubr.f32.mxu0 0.0
        %1030 = vmatmul.mubr.f32.gmra.mrb[0].mxu0 %v813
        %v1031 = vpop.f32.mrb[0].mxu0
        %v1032 = vadd.f32 %v580, %v1031
        %v1033 = vpop.f32.mrb[0].mxu0
        %1034 = vmatprep.mubr.f32.mxu0 0.0
        %1035 = vmatmul.mubr.f32.gmra.mrb[0].mxu0 %v816
        %v1036 = vpop.f32.mrb[0].mxu0
        %v1037 = vadd.f32 %v585, %v1036
        %v1038 = vpop.f32.mrb[0].mxu0
        %1039 = vmatprep.mubr.f32.mxu0 0.0
        %1040 = vmatmul.mubr.f32.gmra.mrb[0].mxu0 %v819
        %v1041 = vpop.f32.mrb[0].mxu0
        %v1042 = vadd.f32 %v590, %v1041
        %v1043 = vpop.f32.mrb[0].mxu0
        %1044 = vmatprep.mubr.f32.mxu0 0.0
        %1045 = vmatmul.mubr.f32.gmra.mrb[0].mxu0 %v822
        %v1046 = vpop.f32.mrb[0].mxu0
        %v1047 = vadd.f32 %v595, %v1046
        %v1048 = vpop.f32.mrb[0].mxu0
        %1049 = vmatprep.mubr.f32.mxu0 0.0
        %1050 = vmatmul.mubr.f32.gmra.mrb[0].mxu0 %v825
        %v1051 = vpop.f32.mrb[0].mxu0
        %v1052 = vadd.f32 %v600, %v1051
        %v1053 = vpop.f32.mrb[0].mxu0
        %1054 = vmatprep.mubr.f32.mxu0 0.0
        %1055 = vmatmul.mubr.f32.gmra.mrb[0].mxu0 %v828
        %v1056 = vpop.f32.mrb[0].mxu0
        %v1057 = vadd.f32 %v605, %v1056
        %v1058 = vpop.f32.mrb[0].mxu0
        %1059 = vmatprep.mubr.f32.mxu0 0.0
        %1060 = vmatmul.mubr.f32.gmra.mrb[0].mxu0 %v831
        %v1061 = vpop.f32.mrb[0].mxu0
        %v1062 = vadd.f32 %v610, %v1061
        %v1063 = vpop.f32.mrb[0].mxu0
        %1064 = vmatprep.mubr.f32.mxu0 0.0
        %1065 = vmatmul.mubr.f32.gmra.mrb[0].mxu0 %v834
        %v1066 = vpop.f32.mrb[0].mxu0
        %v1067 = vadd.f32 %v615, %v1066
        %v1068 = vpop.f32.mrb[0].mxu0
        %1069 = vmatprep.mubr.f32.mxu0 0.0
        %1070 = vmatmul.mubr.f32.gmra.mrb[0].mxu0 %v837
        %v1071 = vpop.f32.mrb[0].mxu0
        %v1072 = vadd.f32 %v620, %v1071
        %v1073 = vpop.f32.mrb[0].mxu0
        %1074 = vmatprep.mubr.f32.mxu0 0.0
        %1075 = vmatmul.mubr.f32.gmra.mrb[0].mxu0 %v840
        %v1076 = vpop.f32.mrb[0].mxu0
        %v1077 = vadd.f32 %v625, %v1076
        %v1078 = vpop.f32.mrb[0].mxu0
        %1079 = vmatprep.mubr.f32.mxu0 0.0
        %1080 = vmatmul.mubr.f32.gmra.mrb[0].mxu0 %v843
        %v1081 = vpop.f32.mrb[0].mxu0
        %v1082 = vadd.f32 %v630, %v1081
        %v1083 = vpop.f32.mrb[0].mxu0
        %1084 = vmatprep.mubr.f32.mxu0 0.0
        %1085 = vmatmul.mubr.f32.gmra.mrb[0].mxu0 %v846
        %v1086 = vpop.f32.mrb[0].mxu0
        %v1087 = vadd.f32 %v635, %v1086
        %v1088 = vpop.f32.mrb[0].mxu0
        %1089 = vmatprep.mubr.f32.mxu0 0.0
        %1090 = vmatmul.mubr.f32.gmra.mrb[0].mxu0 %v849
        %v1091 = vpop.f32.mrb[0].mxu0
        %v1092 = vadd.f32 %v640, %v1091
        %v1093 = vpop.f32.mrb[0].mxu0
        %1094 = vmatprep.mubr.f32.mxu0 0.0
        %1095 = vmatmul.mubr.f32.gmra.mrb[0].mxu0 %v852
        %v1096 = vpop.f32.mrb[0].mxu0
        %v1097 = vadd.f32 %v645, %v1096
        %v1098 = vpop.f32.mrb[0].mxu0
        %1099 = vmatprep.mubr.f32.mxu0 0.0
        %1100 = vmatmul.mubr.f32.gmra.mrb[0].mxu0 %v855
        %v1101 = vpop.f32.mrb[0].mxu0
        %v1102 = vadd.f32 %v650, %v1101
        %v1103 = vpop.f32.mrb[0].mxu0
        %1104 = vmatprep.mubr.f32.mxu0 0.0
        %1105 = vmatmul.mubr.f32.gmra.mrb[0].mxu0 %v858
        %v1106 = vpop.f32.mrb[0].mxu0
        %v1107 = vadd.f32 %v655, %v1106
        %v1108 = vpop.f32.mrb[0].mxu0
        %1109 = vmatprep.mubr.f32.mxu0 0.0
        %1110 = vmatmul.mubr.f32.gmra.mrb[0].mxu0 %v861
        %v1111 = vpop.f32.mrb[0].mxu0
        %v1112 = vadd.f32 %v660, %v1111
        %v1113 = vpop.f32.mrb[0].mxu0
        %1114 = vmatprep.mubr.f32.mxu0 0.0
        %1115 = vmatmul.mubr.f32.gmra.mrb[0].mxu0 %v864
        %v1116 = vpop.f32.mrb[0].mxu0
        %v1117 = vadd.f32 %v665, %v1116
        %v1118 = vpop.f32.mrb[0].mxu0
        %1119 = vmatprep.mubr.f32.mxu0 0.0
        %1120 = vmatmul.mubr.f32.gmra.mrb[0].mxu0 %v867
        %v1121 = vpop.f32.mrb[0].mxu0
        %v1122 = vadd.f32 %v670, %v1121
        %v1123 = vpop.f32.mrb[0].mxu0
        %1124 = vmatprep.mubr.f32.mxu0 0.0
        %1125 = vmatmul.mubr.f32.gmra.mrb[0].mxu0 %v870
        %v1126 = vpop.f32.mrb[0].mxu0
        %v1127 = vadd.f32 %v675, %v1126
        %v1128 = vpop.f32.mrb[0].mxu0
        %1129 = vmatprep.mubr.f32.mxu0 0.0
        %1130 = vmatmul.mubr.f32.gmra.mrb[0].mxu0 %v873
        %v1131 = vpop.f32.mrb[0].mxu0
        %v1132 = vadd.f32 %v680, %v1131
        %v1133 = vpop.f32.mrb[0].mxu0
        %1134 = vmatprep.mubr.f32.mxu0 0.0
        %1135 = vmatmul.mubr.f32.gmra.mrb[0].mxu0 %v876
        %v1136 = vpop.f32.mrb[0].mxu0
        %v1137 = vadd.f32 %v685, %v1136
        %v1138 = vpop.f32.mrb[0].mxu0
        %1139 = vmatprep.mubr.f32.mxu0 0.0
        %1140 = vmatmul.mubr.f32.gmra.mrb[0].mxu0 %v879
        %v1141 = vpop.f32.mrb[0].mxu0
        %v1142 = vadd.f32 %v690, %v1141
        %v1143 = vpop.f32.mrb[0].mxu0
        %1144 = vmatprep.mubr.f32.mxu0 0.0
        %1145 = vmatmul.mubr.f32.gmra.mrb[0].mxu0 %v882
        %v1146 = vpop.f32.mrb[0].mxu0
        %v1147 = vadd.f32 %v695, %v1146
        %v1148 = vpop.f32.mrb[0].mxu0
        %1149 = vmatprep.mubr.f32.mxu0 0.0
        %1150 = vmatmul.mubr.f32.gmra.mrb[0].mxu0 %v885
        %v1151 = vpop.f32.mrb[0].mxu0
        %v1152 = vadd.f32 %v700, %v1151
        %v1153 = vpop.f32.mrb[0].mxu0
        %1154 = vmatprep.mubr.f32.mxu0 0.0
        %1155 = vmatmul.mubr.f32.gmra.mrb[0].mxu0 %v888
        %v1156 = vpop.f32.mrb[0].mxu0
        %v1157 = vadd.f32 %v705, %v1156
        %v1158 = vpop.f32.mrb[0].mxu0
        %1159 = vmatprep.mubr.f32.mxu0 0.0
        %1160 = vmatmul.mubr.f32.gmra.mrb[0].mxu0 %v891
        %v1161 = vpop.f32.mrb[0].mxu0
        %v1162 = vadd.f32 %v710, %v1161
        %v1163 = vpop.f32.mrb[0].mxu0
        %1164 = vmatprep.mubr.f32.mxu0 0.0
        %1165 = vmatmul.mubr.f32.gmra.mrb[0].mxu0 %v894
        %v1166 = vpop.f32.mrb[0].mxu0
        %v1167 = vadd.f32 %v715, %v1166
        %v1168 = vpop.f32.mrb[0].mxu0
        %1169 = vmatprep.mubr.f32.mxu0 0.0
        %1170 = vmatmul.mubr.f32.gmra.mrb[0].mxu0 %v897
        %v1171 = vpop.f32.mrb[0].mxu0
        %v1172 = vadd.f32 %v720, %v1171
        %v1173 = vpop.f32.mrb[0].mxu0
        %1174 = vmatprep.mubr.f32.mxu0 0.0
        %1175 = vmatmul.mubr.f32.gmra.mrb[0].mxu0 %v900
        %v1176 = vpop.f32.mrb[0].mxu0
        %v1177 = vadd.f32 %v725, %v1176
        %v1178 = vpop.f32.mrb[0].mxu0
        %1179 = vmatprep.mubr.f32.mxu0 0.0
        %1180 = vmatmul.mubr.f32.gmra.mrb[0].mxu0 %v903
        %v1181 = vpop.f32.mrb[0].mxu0
        %v1182 = vadd.f32 %v730, %v1181
        %v1183 = vpop.f32.mrb[0].mxu0
        %1184 = vmatprep.mubr.f32.mxu0 0.0
        %1185 = vmatmul.mubr.f32.gmra.mrb[0].mxu0 %v906
        %v1186 = vpop.f32.mrb[0].mxu0
        %v1187 = vadd.f32 %v735, %v1186
        %v1188 = vpop.f32.mrb[0].mxu0
        %1189 = vmatprep.mubr.f32.mxu0 0.0
        %1190 = vmatmul.mubr.f32.gmra.mrb[0].mxu0 %v909
        %v1191 = vpop.f32.mrb[0].mxu0
        %v1192 = vadd.f32 %v740, %v1191
        %v1193 = vpop.f32.mrb[0].mxu0
        %1194 = vmatprep.mubr.f32.mxu0 0.0
        %1195 = vmatmul.mubr.f32.gmra.mrb[0].mxu0 %v912
        %v1196 = vpop.f32.mrb[0].mxu0
        %v1197 = vadd.f32 %v745, %v1196
        %v1198 = vpop.f32.mrb[0].mxu0
        %1199 = vmatprep.mubr.f32.mxu0 0.0
        %1200 = vmatmul.mubr.f32.gmra.mrb[0].mxu0 %v915
        %v1201 = vpop.f32.mrb[0].mxu0
        %v1202 = vadd.f32 %v750, %v1201
        %v1203 = vpop.f32.mrb[0].mxu0
        %1204 = vmatprep.mubr.f32.mxu0 0.0
        %1205 = vmatmul.mubr.f32.gmra.mrb[0].mxu0 %v918
        %v1206 = vpop.f32.mrb[0].mxu0
        %v1207 = vadd.f32 %v755, %v1206
        %v1208 = vpop.f32.mrb[0].mxu0
        %1209 = vmatprep.mubr.f32.mxu0 0.0
        %1210 = vmatmul.mubr.f32.gmra.mrb[0].mxu0 %v921
        %v1211 = vpop.f32.mrb[0].mxu0
        %v1212 = vadd.f32 %v760, %v1211
        %v1213 = vpop.f32.mrb[0].mxu0
        %1214 = vmatprep.mubr.f32.mxu0 0.0
        %1215 = vmatmul.mubr.f32.gmra.mrb[0].mxu0 %v924
        %v1216 = vpop.f32.mrb[0].mxu0
        %v1217 = vadd.f32 %v765, %v1216
        %v1218 = vpop.f32.mrb[0].mxu0
        %1219 = vmatprep.mubr.f32.mxu0 0.0
        %1220 = vmatmul.mubr.f32.gmra.mrb[0].mxu0 %v927
        %v1221 = vpop.f32.mrb[0].mxu0
        %v1222 = vadd.f32 %v770, %v1221
        %v1223 = vpop.f32.mrb[0].mxu0
        %1224 = vmatprep.mubr.f32.mxu0 0.0
        %1225 = vmatmul.mubr.f32.gmra.mrb[0].mxu0 %v930
        %v1226 = vpop.f32.mrb[0].mxu0
        %v1227 = vadd.f32 %v775, %v1226
        %v1228 = vpop.f32.mrb[0].mxu0
        %1229 = vmatprep.mubr.f32.mxu0 0.0
        %1230 = vmatmul.mubr.f32.gmra.mrb[0].mxu0 %v933
        %v1231 = vpop.f32.mrb[0].mxu0
        %v1232 = vadd.f32 %v780, %v1231
        %v1233 = vpop.f32.mrb[0].mxu0
        %1234 = vmatprep.mubr.f32.mxu0 0.0
        %1235 = vmatmul.mubr.f32.gmra.mrb[0].mxu0 %v936
        %v1236 = vpop.f32.mrb[0].mxu0
        %v1237 = vadd.f32 %v785, %v1236
        %v1238 = vpop.f32.mrb[0].mxu0
        %1239 = vmatprep.mubr.f32.mxu0 0.0
        %1240 = vmatmul.mubr.f32.gmra.mrb[0].mxu0 %v939
        %v1241 = vpop.f32.mrb[0].mxu0
        %v1242 = vadd.f32 %v790, %v1241
        %v1243 = vpop.f32.mrb[0].mxu0
        %1244 = vmatprep.mubr.f32.mxu0 0.0
        %1245 = vmatmul.mubr.f32.gmra.mrb[0].mxu0 %v942
        %v1246 = vpop.f32.mrb[0].mxu0
        %v1247 = vadd.f32 %v795, %v1246
        %v1248 = vpop.f32.mrb[0].mxu0
        %1249 = vmatprep.mubr.f32.mxu0 0.0
        %1250 = vmatmul.mubr.f32.gmra.mrb[0].mxu0 %v945
        %v1251 = vpop.f32.mrb[0].mxu0
        %v1252 = vadd.f32 %v800, %v1251
        %v1253 = vpop.f32.mrb[0].mxu0
        %1254 = vdwg.mxu0
        %v1255 = vld [vmem:[%s249 + $0x2] sm:$0xff]
        %v1256 = vld [vmem:[%s249 + $0xa] sm:$0xff]
        %v1257 = vld [vmem:[%s249 + $0x12] sm:$0xff]
        %v1258 = vld [vmem:[%s249 + $0x1a] sm:$0xff]
        %v1259 = vld [vmem:[%s249 + $0x22] sm:$0xff]
        %v1260 = vld [vmem:[%s249 + $0x2a] sm:$0xff]
        %v1261 = vld [vmem:[%s249 + $0x32] sm:$0xff]
        %v1262 = vld [vmem:[%s249 + $0x3a] sm:$0xff]
        %v1263 = vld [vmem:[%s249 + $0x42] sm:$0xff]
        %v1264 = vld [vmem:[%s249 + $0x4a] sm:$0xff]
        %v1265 = vld [vmem:[%s249 + $0x52] sm:$0xff]
        %v1266 = vld [vmem:[%s249 + $0x5a] sm:$0xff]
        %v1267 = vld [vmem:[%s249 + $0x62] sm:$0xff]
        %v1268 = vld [vmem:[%s249 + $0x6a] sm:$0xff]
        %v1269 = vld [vmem:[%s249 + $0x72] sm:$0xff]
        %v1270 = vld [vmem:[%s249 + $0x7a] sm:$0xff]
        %v1271 = vld [vmem:[%s249 + $0x82] sm:$0xff]
        %v1272 = vld [vmem:[%s249 + $0x8a] sm:$0xff]
        %v1273 = vld [vmem:[%s249 + $0x92] sm:$0xff]
        %v1274 = vld [vmem:[%s249 + $0x9a] sm:$0xff]
        %v1275 = vld [vmem:[%s249 + $0xa2] sm:$0xff]
        %v1276 = vld [vmem:[%s249 + $0xaa] sm:$0xff]
        %v1277 = vld [vmem:[%s249 + $0xb2] sm:$0xff]
        %v1278 = vld [vmem:[%s249 + $0xba] sm:$0xff]
        %v1279 = vld [vmem:[%s249 + $0xc2] sm:$0xff]
        %v1280 = vld [vmem:[%s249 + $0xca] sm:$0xff]
        %v1281 = vld [vmem:[%s249 + $0xd2] sm:$0xff]
        %v1282 = vld [vmem:[%s249 + $0xda] sm:$0xff]
        %v1283 = vld [vmem:[%s249 + $0xe2] sm:$0xff]
        %v1284 = vld [vmem:[%s249 + $0xea] sm:$0xff]
        %v1285 = vld [vmem:[%s249 + $0xf2] sm:$0xff]
        %v1286 = vld [vmem:[%s249 + $0xfa] sm:$0xff]
        %v1287 = vld [vmem:[%s249 + $0x102] sm:$0xff]
        %v1288 = vld [vmem:[%s249 + $0x10a] sm:$0xff]
        %v1289 = vld [vmem:[%s249 + $0x112] sm:$0xff]
        %v1290 = vld [vmem:[%s249 + $0x11a] sm:$0xff]
        %v1291 = vld [vmem:[%s249 + $0x122] sm:$0xff]
        %v1292 = vld [vmem:[%s249 + $0x12a] sm:$0xff]
        %v1293 = vld [vmem:[%s249 + $0x132] sm:$0xff]
        %v1294 = vld [vmem:[%s249 + $0x13a] sm:$0xff]
        %v1295 = vld [vmem:[%s249 + $0x142] sm:$0xff]
        %v1296 = vld [vmem:[%s249 + $0x14a] sm:$0xff]
        %v1297 = vld [vmem:[%s249 + $0x152] sm:$0xff]
        %v1298 = vld [vmem:[%s249 + $0x15a] sm:$0xff]
        %v1299 = vld [vmem:[%s249 + $0x162] sm:$0xff]
        %v1300 = vld [vmem:[%s249 + $0x16a] sm:$0xff]
        %v1301 = vld [vmem:[%s249 + $0x172] sm:$0xff]
        %v1302 = vld [vmem:[%s249 + $0x17a] sm:$0xff]
        %s1303 = scalar_lea.vmem %s1, 8
        %v1304 = vld [vmem:[%s1303] sm:$0xf]
        %v1306 = vsel %vm349, %v1255, 0
        %v1309 = vsel %vm349, %v1256, 0
        %v1312 = vsel %vm349, %v1257, 0
        %v1315 = vsel %vm349, %v1258, 0
        %v1318 = vsel %vm349, %v1259, 0
        %v1321 = vsel %vm349, %v1260, 0
        %v1324 = vsel %vm349, %v1261, 0
        %v1327 = vsel %vm349, %v1262, 0
        %v1330 = vsel %vm349, %v1263, 0
        %v1333 = vsel %vm349, %v1264, 0
        %v1336 = vsel %vm349, %v1265, 0
        %v1339 = vsel %vm349, %v1266, 0
        %v1342 = vsel %vm349, %v1267, 0
        %v1345 = vsel %vm349, %v1268, 0
        %v1348 = vsel %vm349, %v1269, 0
        %v1351 = vsel %vm349, %v1270, 0
        %v1354 = vsel %vm349, %v1271, 0
        %v1357 = vsel %vm349, %v1272, 0
        %v1360 = vsel %vm349, %v1273, 0
        %v1363 = vsel %vm349, %v1274, 0
        %v1366 = vsel %vm349, %v1275, 0
        %v1369 = vsel %vm349, %v1276, 0
        %v1372 = vsel %vm349, %v1277, 0
        %v1375 = vsel %vm349, %v1278, 0
        %v1378 = vsel %vm349, %v1279, 0
        %v1381 = vsel %vm349, %v1280, 0
        %v1384 = vsel %vm349, %v1281, 0
        %v1387 = vsel %vm349, %v1282, 0
        %v1390 = vsel %vm349, %v1283, 0
        %v1393 = vsel %vm349, %v1284, 0
        %v1396 = vsel %vm349, %v1285, 0
        %v1399 = vsel %vm349, %v1286, 0
        %v1402 = vsel %vm349, %v1287, 0
        %v1405 = vsel %vm349, %v1288, 0
        %v1408 = vsel %vm349, %v1289, 0
        %v1411 = vsel %vm349, %v1290, 0
        %v1414 = vsel %vm349, %v1291, 0
        %v1417 = vsel %vm349, %v1292, 0
        %v1420 = vsel %vm349, %v1293, 0
        %v1423 = vsel %vm349, %v1294, 0
        %v1426 = vsel %vm349, %v1295, 0
        %v1429 = vsel %vm349, %v1296, 0
        %v1432 = vsel %vm349, %v1297, 0
        %v1435 = vsel %vm349, %v1298, 0
        %v1438 = vsel %vm349, %v1299, 0
        %v1441 = vsel %vm349, %v1300, 0
        %v1444 = vsel %vm349, %v1301, 0
        %v1447 = vsel %vm349, %v1302, 0
        %v1450 = vsel %vm494, %v1304, 0
        %1452 = vmatprep.subr.mxu0 0.0
        %1453 = vmatpush1.msra.mxu0 %v1450
        %1454 = vmatprep.subr.mxu0 0.0
        %1455 = vmatpush1.msra.mxu0 0.0
        %1456 = vmatprep.subr.mxu0 0.0
        %1457 = vmatpush1.msra.mxu0 0.0
        %1458 = vmatprep.subr.mxu0 0.0
        %1459 = vmatpush1.msra.mxu0 0.0
        %1460 = vmatprep.subr.mxu0 0.0
        %1461 = vmatpush1.msra.mxu0 0.0
        %1462 = vmatprep.subr.mxu0 0.0
        %1463 = vmatpush1.msra.mxu0 0.0
        %1464 = vmatprep.subr.mxu0 0.0
        %1465 = vmatpush1.msra.mxu0 0.0
        %1466 = vmatprep.subr.mxu0 0.0
        %1467 = vmatpush1.msra.mxu0 0.0
        %1468 = vmatprep.subr.mxu0 0.0
        %1469 = vmatpush1.msra.mxu0 0.0
        %1470 = vmatprep.subr.mxu0 0.0
        %1471 = vmatpush1.msra.mxu0 0.0
        %1472 = vmatprep.subr.mxu0 0.0
        %1473 = vmatpush1.msra.mxu0 0.0
        %1474 = vmatprep.subr.mxu0 0.0
        %1475 = vmatpush1.msra.mxu0 0.0
        %1476 = vmatprep.subr.mxu0 0.0
        %1477 = vmatpush1.msra.mxu0 0.0
        %1478 = vmatprep.subr.mxu0 0.0
        %1479 = vmatpush1.msra.mxu0 0.0
        %1480 = vmatprep.subr.mxu0 0.0
        %1481 = vmatpush1.msra.mxu0 0.0
        %1482 = vmatprep.subr.mxu0 0.0
        %1483 = vmatpush1.msra.mxu0 0.0
        %1484 = vmatprep.subr.mxu0 0.0
        %1485 = vmatpush1.msra.mxu0 0.0
        %1486 = vmatprep.subr.mxu0 0.0
        %1487 = vmatpush1.msra.mxu0 0.0
        %1488 = vmatprep.subr.mxu0 0.0
        %1489 = vmatpush1.msra.mxu0 0.0
        %1490 = vmatprep.subr.mxu0 0.0
        %1491 = vmatpush1.msra.mxu0 0.0
        %1492 = vmatprep.subr.mxu0 0.0
        %1493 = vmatpush1.msra.mxu0 0.0
        %1494 = vmatprep.subr.mxu0 0.0
        %1495 = vmatpush1.msra.mxu0 0.0
        %1496 = vmatprep.subr.mxu0 0.0
        %1497 = vmatpush1.msra.mxu0 0.0
        %1498 = vmatprep.subr.mxu0 0.0
        %1499 = vmatpush1.msra.mxu0 0.0
        %1500 = vmatprep.subr.mxu0 0.0
        %1501 = vmatpush1.msra.mxu0 0.0
        %1502 = vmatprep.subr.mxu0 0.0
        %1503 = vmatpush1.msra.mxu0 0.0
        %1504 = vmatprep.subr.mxu0 0.0
        %1505 = vmatpush1.msra.mxu0 0.0
        %1506 = vmatprep.subr.mxu0 0.0
        %1507 = vmatpush1.msra.mxu0 0.0
        %1508 = vmatprep.subr.mxu0 0.0
        %1509 = vmatpush1.msra.mxu0 0.0
        %1510 = vmatprep.subr.mxu0 0.0
        %1511 = vmatpush1.msra.mxu0 0.0
        %1512 = vmatprep.subr.mxu0 0.0
        %1513 = vmatpush1.msra.mxu0 0.0
        %1514 = vmatprep.subr.mxu0 0.0
        %1515 = vmatpush1.msra.mxu0 0.0
        %1516 = vmatprep.mubr.f32.mxu0 0.0
        %1517 = vmatmul.mubr.f32.gmra.mrb[0].mxu0 %v1306
        %v1518 = vpop.f32.mrb[0].mxu0
        %v1519 = vadd.f32 0.0, %v1518
        %v1520 = vpop.f32.mrb[0].mxu0
        %1521 = vmatprep.mubr.f32.mxu0 0.0
        %1522 = vmatmul.mubr.f32.gmra.mrb[0].mxu0 %v1309
        %v1523 = vpop.f32.mrb[0].mxu0
        %v1524 = vadd.f32 0.0, %v1523
        %v1525 = vpop.f32.mrb[0].mxu0
        %1526 = vmatprep.mubr.f32.mxu0 0.0
        %1527 = vmatmul.mubr.f32.gmra.mrb[0].mxu0 %v1312
        %v1528 = vpop.f32.mrb[0].mxu0
        %v1529 = vadd.f32 0.0, %v1528
        %v1530 = vpop.f32.mrb[0].mxu0
        %1531 = vmatprep.mubr.f32.mxu0 0.0
        %1532 = vmatmul.mubr.f32.gmra.mrb[0].mxu0 %v1315
        %v1533 = vpop.f32.mrb[0].mxu0
        %v1534 = vadd.f32 0.0, %v1533
        %v1535 = vpop.f32.mrb[0].mxu0
        %1536 = vmatprep.mubr.f32.mxu0 0.0
        %1537 = vmatmul.mubr.f32.gmra.mrb[0].mxu0 %v1318
        %v1538 = vpop.f32.mrb[0].mxu0
        %v1539 = vadd.f32 0.0, %v1538
        %v1540 = vpop.f32.mrb[0].mxu0
        %1541 = vmatprep.mubr.f32.mxu0 0.0
        %1542 = vmatmul.mubr.f32.gmra.mrb[0].mxu0 %v1321
        %v1543 = vpop.f32.mrb[0].mxu0
        %v1544 = vadd.f32 0.0, %v1543
        %v1545 = vpop.f32.mrb[0].mxu0
        %1546 = vmatprep.mubr.f32.mxu0 0.0
        %1547 = vmatmul.mubr.f32.gmra.mrb[0].mxu0 %v1324
        %v1548 = vpop.f32.mrb[0].mxu0
        %v1549 = vadd.f32 0.0, %v1548
        %v1550 = vpop.f32.mrb[0].mxu0
        %1551 = vmatprep.mubr.f32.mxu0 0.0
        %1552 = vmatmul.mubr.f32.gmra.mrb[0].mxu0 %v1327
        %v1553 = vpop.f32.mrb[0].mxu0
        %v1554 = vadd.f32 0.0, %v1553
        %v1555 = vpop.f32.mrb[0].mxu0
        %1556 = vmatprep.mubr.f32.mxu0 0.0
        %1557 = vmatmul.mubr.f32.gmra.mrb[0].mxu0 %v1330
        %v1558 = vpop.f32.mrb[0].mxu0
        %v1559 = vadd.f32 0.0, %v1558
        %v1560 = vpop.f32.mrb[0].mxu0
        %1561 = vmatprep.mubr.f32.mxu0 0.0
        %1562 = vmatmul.mubr.f32.gmra.mrb[0].mxu0 %v1333
        %v1563 = vpop.f32.mrb[0].mxu0
        %v1564 = vadd.f32 0.0, %v1563
        %v1565 = vpop.f32.mrb[0].mxu0
        %1566 = vmatprep.mubr.f32.mxu0 0.0
        %1567 = vmatmul.mubr.f32.gmra.mrb[0].mxu0 %v1336
        %v1568 = vpop.f32.mrb[0].mxu0
        %v1569 = vadd.f32 0.0, %v1568
        %v1570 = vpop.f32.mrb[0].mxu0
        %1571 = vmatprep.mubr.f32.mxu0 0.0
        %1572 = vmatmul.mubr.f32.gmra.mrb[0].mxu0 %v1339
        %v1573 = vpop.f32.mrb[0].mxu0
        %v1574 = vadd.f32 0.0, %v1573
        %v1575 = vpop.f32.mrb[0].mxu0
        %1576 = vmatprep.mubr.f32.mxu0 0.0
        %1577 = vmatmul.mubr.f32.gmra.mrb[0].mxu0 %v1342
        %v1578 = vpop.f32.mrb[0].mxu0
        %v1579 = vadd.f32 0.0, %v1578
        %v1580 = vpop.f32.mrb[0].mxu0
        %1581 = vmatprep.mubr.f32.mxu0 0.0
        %1582 = vmatmul.mubr.f32.gmra.mrb[0].mxu0 %v1345
        %v1583 = vpop.f32.mrb[0].mxu0
        %v1584 = vadd.f32 0.0, %v1583
        %v1585 = vpop.f32.mrb[0].mxu0
        %1586 = vmatprep.mubr.f32.mxu0 0.0
        %1587 = vmatmul.mubr.f32.gmra.mrb[0].mxu0 %v1348
        %v1588 = vpop.f32.mrb[0].mxu0
        %v1589 = vadd.f32 0.0, %v1588
        %v1590 = vpop.f32.mrb[0].mxu0
        %1591 = vmatprep.mubr.f32.mxu0 0.0
        %1592 = vmatmul.mubr.f32.gmra.mrb[0].mxu0 %v1351
        %v1593 = vpop.f32.mrb[0].mxu0
        %v1594 = vadd.f32 0.0, %v1593
        %v1595 = vpop.f32.mrb[0].mxu0
        %1596 = vmatprep.mubr.f32.mxu0 0.0
        %1597 = vmatmul.mubr.f32.gmra.mrb[0].mxu0 %v1354
        %v1598 = vpop.f32.mrb[0].mxu0
        %v1599 = vadd.f32 0.0, %v1598
        %v1600 = vpop.f32.mrb[0].mxu0
        %1601 = vmatprep.mubr.f32.mxu0 0.0
        %1602 = vmatmul.mubr.f32.gmra.mrb[0].mxu0 %v1357
        %v1603 = vpop.f32.mrb[0].mxu0
        %v1604 = vadd.f32 0.0, %v1603
        %v1605 = vpop.f32.mrb[0].mxu0
        %1606 = vmatprep.mubr.f32.mxu0 0.0
        %1607 = vmatmul.mubr.f32.gmra.mrb[0].mxu0 %v1360
        %v1608 = vpop.f32.mrb[0].mxu0
        %v1609 = vadd.f32 0.0, %v1608
        %v1610 = vpop.f32.mrb[0].mxu0
        %1611 = vmatprep.mubr.f32.mxu0 0.0
        %1612 = vmatmul.mubr.f32.gmra.mrb[0].mxu0 %v1363
        %v1613 = vpop.f32.mrb[0].mxu0
        %v1614 = vadd.f32 0.0, %v1613
        %v1615 = vpop.f32.mrb[0].mxu0
        %1616 = vmatprep.mubr.f32.mxu0 0.0
        %1617 = vmatmul.mubr.f32.gmra.mrb[0].mxu0 %v1366
        %v1618 = vpop.f32.mrb[0].mxu0
        %v1619 = vadd.f32 0.0, %v1618
        %v1620 = vpop.f32.mrb[0].mxu0
        %1621 = vmatprep.mubr.f32.mxu0 0.0
        %1622 = vmatmul.mubr.f32.gmra.mrb[0].mxu0 %v1369
        %v1623 = vpop.f32.mrb[0].mxu0
        %v1624 = vadd.f32 0.0, %v1623
        %v1625 = vpop.f32.mrb[0].mxu0
        %1626 = vmatprep.mubr.f32.mxu0 0.0
        %1627 = vmatmul.mubr.f32.gmra.mrb[0].mxu0 %v1372
        %v1628 = vpop.f32.mrb[0].mxu0
        %v1629 = vadd.f32 0.0, %v1628
        %v1630 = vpop.f32.mrb[0].mxu0
        %1631 = vmatprep.mubr.f32.mxu0 0.0
        %1632 = vmatmul.mubr.f32.gmra.mrb[0].mxu0 %v1375
        %v1633 = vpop.f32.mrb[0].mxu0
        %v1634 = vadd.f32 0.0, %v1633
        %v1635 = vpop.f32.mrb[0].mxu0
        %1636 = vmatprep.mubr.f32.mxu0 0.0
        %1637 = vmatmul.mubr.f32.gmra.mrb[0].mxu0 %v1378
        %v1638 = vpop.f32.mrb[0].mxu0
        %v1639 = vadd.f32 0.0, %v1638
        %v1640 = vpop.f32.mrb[0].mxu0
        %1641 = vmatprep.mubr.f32.mxu0 0.0
        %1642 = vmatmul.mubr.f32.gmra.mrb[0].mxu0 %v1381
        %v1643 = vpop.f32.mrb[0].mxu0
        %v1644 = vadd.f32 0.0, %v1643
        %v1645 = vpop.f32.mrb[0].mxu0
        %1646 = vmatprep.mubr.f32.mxu0 0.0
        %1647 = vmatmul.mubr.f32.gmra.mrb[0].mxu0 %v1384
        %v1648 = vpop.f32.mrb[0].mxu0
        %v1649 = vadd.f32 0.0, %v1648
        %v1650 = vpop.f32.mrb[0].mxu0
        %1651 = vmatprep.mubr.f32.mxu0 0.0
        %1652 = vmatmul.mubr.f32.gmra.mrb[0].mxu0 %v1387
        %v1653 = vpop.f32.mrb[0].mxu0
        %v1654 = vadd.f32 0.0, %v1653
        %v1655 = vpop.f32.mrb[0].mxu0
        %1656 = vmatprep.mubr.f32.mxu0 0.0
        %1657 = vmatmul.mubr.f32.gmra.mrb[0].mxu0 %v1390
        %v1658 = vpop.f32.mrb[0].mxu0
        %v1659 = vadd.f32 0.0, %v1658
        %v1660 = vpop.f32.mrb[0].mxu0
        %1661 = vmatprep.mubr.f32.mxu0 0.0
        %1662 = vmatmul.mubr.f32.gmra.mrb[0].mxu0 %v1393
        %v1663 = vpop.f32.mrb[0].mxu0
        %v1664 = vadd.f32 0.0, %v1663
        %v1665 = vpop.f32.mrb[0].mxu0
        %1666 = vmatprep.mubr.f32.mxu0 0.0
        %1667 = vmatmul.mubr.f32.gmra.mrb[0].mxu0 %v1396
        %v1668 = vpop.f32.mrb[0].mxu0
        %v1669 = vadd.f32 0.0, %v1668
        %v1670 = vpop.f32.mrb[0].mxu0
        %1671 = vmatprep.mubr.f32.mxu0 0.0
        %1672 = vmatmul.mubr.f32.gmra.mrb[0].mxu0 %v1399
        %v1673 = vpop.f32.mrb[0].mxu0
        %v1674 = vadd.f32 0.0, %v1673
        %v1675 = vpop.f32.mrb[0].mxu0
        %1676 = vmatprep.mubr.f32.mxu0 0.0
        %1677 = vmatmul.mubr.f32.gmra.mrb[0].mxu0 %v1402
        %v1678 = vpop.f32.mrb[0].mxu0
        %v1679 = vadd.f32 0.0, %v1678
        %v1680 = vpop.f32.mrb[0].mxu0
        %1681 = vmatprep.mubr.f32.mxu0 0.0
        %1682 = vmatmul.mubr.f32.gmra.mrb[0].mxu0 %v1405
        %v1683 = vpop.f32.mrb[0].mxu0
        %v1684 = vadd.f32 0.0, %v1683
        %v1685 = vpop.f32.mrb[0].mxu0
        %1686 = vmatprep.mubr.f32.mxu0 0.0
        %1687 = vmatmul.mubr.f32.gmra.mrb[0].mxu0 %v1408
        %v1688 = vpop.f32.mrb[0].mxu0
        %v1689 = vadd.f32 0.0, %v1688
        %v1690 = vpop.f32.mrb[0].mxu0
        %1691 = vmatprep.mubr.f32.mxu0 0.0
        %1692 = vmatmul.mubr.f32.gmra.mrb[0].mxu0 %v1411
        %v1693 = vpop.f32.mrb[0].mxu0
        %v1694 = vadd.f32 0.0, %v1693
        %v1695 = vpop.f32.mrb[0].mxu0
        %1696 = vmatprep.mubr.f32.mxu0 0.0
        %1697 = vmatmul.mubr.f32.gmra.mrb[0].mxu0 %v1414
        %v1698 = vpop.f32.mrb[0].mxu0
        %v1699 = vadd.f32 0.0, %v1698
        %v1700 = vpop.f32.mrb[0].mxu0
        %1701 = vmatprep.mubr.f32.mxu0 0.0
        %1702 = vmatmul.mubr.f32.gmra.mrb[0].mxu0 %v1417
        %v1703 = vpop.f32.mrb[0].mxu0
        %v1704 = vadd.f32 0.0, %v1703
        %v1705 = vpop.f32.mrb[0].mxu0
        %1706 = vmatprep.mubr.f32.mxu0 0.0
        %1707 = vmatmul.mubr.f32.gmra.mrb[0].mxu0 %v1420
        %v1708 = vpop.f32.mrb[0].mxu0
        %v1709 = vadd.f32 0.0, %v1708
        %v1710 = vpop.f32.mrb[0].mxu0
        %1711 = vmatprep.mubr.f32.mxu0 0.0
        %1712 = vmatmul.mubr.f32.gmra.mrb[0].mxu0 %v1423
        %v1713 = vpop.f32.mrb[0].mxu0
        %v1714 = vadd.f32 0.0, %v1713
        %v1715 = vpop.f32.mrb[0].mxu0
        %1716 = vmatprep.mubr.f32.mxu0 0.0
        %1717 = vmatmul.mubr.f32.gmra.mrb[0].mxu0 %v1426
        %v1718 = vpop.f32.mrb[0].mxu0
        %v1719 = vadd.f32 0.0, %v1718
        %v1720 = vpop.f32.mrb[0].mxu0
        %1721 = vmatprep.mubr.f32.mxu0 0.0
        %1722 = vmatmul.mubr.f32.gmra.mrb[0].mxu0 %v1429
        %v1723 = vpop.f32.mrb[0].mxu0
        %v1724 = vadd.f32 0.0, %v1723
        %v1725 = vpop.f32.mrb[0].mxu0
        %1726 = vmatprep.mubr.f32.mxu0 0.0
        %1727 = vmatmul.mubr.f32.gmra.mrb[0].mxu0 %v1432
        %v1728 = vpop.f32.mrb[0].mxu0
        %v1729 = vadd.f32 0.0, %v1728
        %v1730 = vpop.f32.mrb[0].mxu0
        %1731 = vmatprep.mubr.f32.mxu0 0.0
        %1732 = vmatmul.mubr.f32.gmra.mrb[0].mxu0 %v1435
        %v1733 = vpop.f32.mrb[0].mxu0
        %v1734 = vadd.f32 0.0, %v1733
        %v1735 = vpop.f32.mrb[0].mxu0
        %1736 = vmatprep.mubr.f32.mxu0 0.0
        %1737 = vmatmul.mubr.f32.gmra.mrb[0].mxu0 %v1438
        %v1738 = vpop.f32.mrb[0].mxu0
        %v1739 = vadd.f32 0.0, %v1738
        %v1740 = vpop.f32.mrb[0].mxu0
        %1741 = vmatprep.mubr.f32.mxu0 0.0
        %1742 = vmatmul.mubr.f32.gmra.mrb[0].mxu0 %v1441
        %v1743 = vpop.f32.mrb[0].mxu0
        %v1744 = vadd.f32 0.0, %v1743
        %v1745 = vpop.f32.mrb[0].mxu0
        %1746 = vmatprep.mubr.f32.mxu0 0.0
        %1747 = vmatmul.mubr.f32.gmra.mrb[0].mxu0 %v1444
        %v1748 = vpop.f32.mrb[0].mxu0
        %v1749 = vadd.f32 0.0, %v1748
        %v1750 = vpop.f32.mrb[0].mxu0
        %1751 = vmatprep.mubr.f32.mxu0 0.0
        %1752 = vmatmul.mubr.f32.gmra.mrb[0].mxu0 %v1447
        %v1753 = vpop.f32.mrb[0].mxu0
        %v1754 = vadd.f32 0.0, %v1753
        %v1755 = vpop.f32.mrb[0].mxu0
        %1756 = vdwg.mxu0
        %v1757 = vadd.f32 %v1017, %v1519
        %v1758 = vadd.f32 %v1022, %v1524
        %v1759 = vadd.f32 %v1027, %v1529
        %v1760 = vadd.f32 %v1032, %v1534
        %v1761 = vadd.f32 %v1037, %v1539
        %v1762 = vadd.f32 %v1042, %v1544
        %v1763 = vadd.f32 %v1047, %v1549
        %v1764 = vadd.f32 %v1052, %v1554
        %v1765 = vadd.f32 %v1057, %v1559
        %v1766 = vadd.f32 %v1062, %v1564
        %v1767 = vadd.f32 %v1067, %v1569
        %v1768 = vadd.f32 %v1072, %v1574
        %v1769 = vadd.f32 %v1077, %v1579
        %v1770 = vadd.f32 %v1082, %v1584
        %v1771 = vadd.f32 %v1087, %v1589
        %v1772 = vadd.f32 %v1092, %v1594
        %v1773 = vadd.f32 %v1097, %v1599
        %v1774 = vadd.f32 %v1102, %v1604
        %v1775 = vadd.f32 %v1107, %v1609
        %v1776 = vadd.f32 %v1112, %v1614
        %v1777 = vadd.f32 %v1117, %v1619
        %v1778 = vadd.f32 %v1122, %v1624
        %v1779 = vadd.f32 %v1127, %v1629
        %v1780 = vadd.f32 %v1132, %v1634
        %v1781 = vadd.f32 %v1137, %v1639
        %v1782 = vadd.f32 %v1142, %v1644
        %v1783 = vadd.f32 %v1147, %v1649
        %v1784 = vadd.f32 %v1152, %v1654
        %v1785 = vadd.f32 %v1157, %v1659
        %v1786 = vadd.f32 %v1162, %v1664
        %v1787 = vadd.f32 %v1167, %v1669
        %v1788 = vadd.f32 %v1172, %v1674
        %v1789 = vadd.f32 %v1177, %v1679
        %v1790 = vadd.f32 %v1182, %v1684
        %v1791 = vadd.f32 %v1187, %v1689
        %v1792 = vadd.f32 %v1192, %v1694
        %v1793 = vadd.f32 %v1197, %v1699
        %v1794 = vadd.f32 %v1202, %v1704
        %v1795 = vadd.f32 %v1207, %v1709
        %v1796 = vadd.f32 %v1212, %v1714
        %v1797 = vadd.f32 %v1217, %v1719
        %v1798 = vadd.f32 %v1222, %v1724
        %v1799 = vadd.f32 %v1227, %v1729
        %v1800 = vadd.f32 %v1232, %v1734
        %v1801 = vadd.f32 %v1237, %v1739
        %v1802 = vadd.f32 %v1242, %v1744
        %v1803 = vadd.f32 %v1247, %v1749
        %v1804 = vadd.f32 %v1252, %v1754
        %v1805 = vld [vmem:[%s249 + $0x18] sm:$0xff]
        %v1806 = vld [vmem:[%s249 + $0x20] sm:$0xff]
        %v1807 = vld [vmem:[%s249 + $0x28] sm:$0xff]
        %v1808 = vld [vmem:[%s249 + $0x30] sm:$0xff]
        %v1809 = vld [vmem:[%s249 + $0x38] sm:$0xff]
        %v1810 = vld [vmem:[%s249 + $0x40] sm:$0xff]
        %v1811 = vld [vmem:[%s249 + $0x48] sm:$0xff]
        %v1812 = vld [vmem:[%s249 + $0x50] sm:$0xff]
        %v1813 = vld [vmem:[%s249 + $0x58] sm:$0xff]
        %v1814 = vld [vmem:[%s249 + $0x60] sm:$0xff]
        %v1815 = vld [vmem:[%s249 + $0x68] sm:$0xff]
        %v1816 = vld [vmem:[%s249 + $0x70] sm:$0xff]
        %v1817 = vld [vmem:[%s249 + $0x78] sm:$0xff]
        %v1818 = vld [vmem:[%s249 + $0x80] sm:$0xff]
        %v1819 = vld [vmem:[%s249 + $0x88] sm:$0xff]
        %v1820 = vld [vmem:[%s249 + $0x90] sm:$0xff]
        %v1821 = vld [vmem:[%s249 + $0x98] sm:$0xff]
        %v1822 = vld [vmem:[%s249 + $0xa0] sm:$0xff]
        %v1823 = vld [vmem:[%s249 + $0xa8] sm:$0xff]
        %v1824 = vld [vmem:[%s249 + $0xb0] sm:$0xff]
        %v1825 = vld [vmem:[%s249 + $0xb8] sm:$0xff]
        %v1826 = vld [vmem:[%s249 + $0xc0] sm:$0xff]
        %v1827 = vld [vmem:[%s249 + $0xc8] sm:$0xff]
        %v1828 = vld [vmem:[%s249 + $0xd0] sm:$0xff]
        %v1829 = vld [vmem:[%s249 + $0xd8] sm:$0xff]
        %v1830 = vld [vmem:[%s249 + $0xe0] sm:$0xff]
        %v1831 = vld [vmem:[%s249 + $0xe8] sm:$0xff]
        %v1832 = vld [vmem:[%s249 + $0xf0] sm:$0xff]
        %v1833 = vld [vmem:[%s249 + $0xf8] sm:$0xff]
        %v1834 = vld [vmem:[%s249 + $0x100] sm:$0xff]
        %v1835 = vld [vmem:[%s249 + $0x108] sm:$0xff]
        %v1836 = vld [vmem:[%s249 + $0x110] sm:$0xff]
        %v1837 = vld [vmem:[%s249 + $0x118] sm:$0xff]
        %v1838 = vld [vmem:[%s249 + $0x120] sm:$0xff]
        %v1839 = vld [vmem:[%s249 + $0x128] sm:$0xff]
        %v1840 = vld [vmem:[%s249 + $0x130] sm:$0xff]
        %v1841 = vld [vmem:[%s249 + $0x138] sm:$0xff]
        %v1842 = vld [vmem:[%s249 + $0x140] sm:$0xff]
        %v1843 = vld [vmem:[%s249 + $0x148] sm:$0xff]
        %v1844 = vld [vmem:[%s249 + $0x150] sm:$0xff]
        %v1845 = vld [vmem:[%s249 + $0x158] sm:$0xff]
        %v1846 = vld [vmem:[%s249 + $0x160] sm:$0xff]
        %v1847 = vld [vmem:[%s249 + $0x168] sm:$0xff]
        %v1848 = vld [vmem:[%s249 + $0x170] sm:$0xff]
        %v1849 = vld [vmem:[%s249 + $0x178] sm:$0xff]
        %v1850 = vld [vmem:[%s249 + $0x180] sm:$0xff]
        %v1851 = vld [vmem:[%s249 + $0x188] sm:$0xff]
        %v1852 = vld [vmem:[%s249 + $0x190] sm:$0xff]
        %s1853 = scalar_lea.vmem %s1, 12
        %v1854 = vld [vmem:[%s1853] sm:$0xf]
        %v1856 = vsel %vm349, %v1805, 0
        %v1859 = vsel %vm349, %v1806, 0
        %v1862 = vsel %vm349, %v1807, 0
        %v1865 = vsel %vm349, %v1808, 0
        %v1868 = vsel %vm349, %v1809, 0
        %v1871 = vsel %vm349, %v1810, 0
        %v1874 = vsel %vm349, %v1811, 0
        %v1877 = vsel %vm349, %v1812, 0
        %v1880 = vsel %vm349, %v1813, 0
        %v1883 = vsel %vm349, %v1814, 0
        %v1886 = vsel %vm349, %v1815, 0
        %v1889 = vsel %vm349, %v1816, 0
        %v1892 = vsel %vm349, %v1817, 0
        %v1895 = vsel %vm349, %v1818, 0
        %v1898 = vsel %vm349, %v1819, 0
        %v1901 = vsel %vm349, %v1820, 0
        %v1904 = vsel %vm349, %v1821, 0
        %v1907 = vsel %vm349, %v1822, 0
        %v1910 = vsel %vm349, %v1823, 0
        %v1913 = vsel %vm349, %v1824, 0
        %v1916 = vsel %vm349, %v1825, 0
        %v1919 = vsel %vm349, %v1826, 0
        %v1922 = vsel %vm349, %v1827, 0
        %v1925 = vsel %vm349, %v1828, 0
        %v1928 = vsel %vm349, %v1829, 0
        %v1931 = vsel %vm349, %v1830, 0
        %v1934 = vsel %vm349, %v1831, 0
        %v1937 = vsel %vm349, %v1832, 0
        %v1940 = vsel %vm349, %v1833, 0
        %v1943 = vsel %vm349, %v1834, 0
        %v1946 = vsel %vm349, %v1835, 0
        %v1949 = vsel %vm349, %v1836, 0
        %v1952 = vsel %vm349, %v1837, 0
        %v1955 = vsel %vm349, %v1838, 0
        %v1958 = vsel %vm349, %v1839, 0
        %v1961 = vsel %vm349, %v1840, 0
        %v1964 = vsel %vm349, %v1841, 0
        %v1967 = vsel %vm349, %v1842, 0
        %v1970 = vsel %vm349, %v1843, 0
        %v1973 = vsel %vm349, %v1844, 0
        %v1976 = vsel %vm349, %v1845, 0
        %v1979 = vsel %vm349, %v1846, 0
        %v1982 = vsel %vm349, %v1847, 0
        %v1985 = vsel %vm349, %v1848, 0
        %v1988 = vsel %vm349, %v1849, 0
        %v1991 = vsel %vm349, %v1850, 0
        %v1994 = vsel %vm349, %v1851, 0
        %v1997 = vsel %vm349, %v1852, 0
        %v2000 = vsel %vm494, %v1854, 0
        %2002 = vmatprep.subr.mxu0 0.0
        %2003 = vmatpush1.msra.mxu0 %v2000
        %2004 = vmatprep.subr.mxu0 0.0
        %2005 = vmatpush1.msra.mxu0 0.0
        %2006 = vmatprep.subr.mxu0 0.0
        %2007 = vmatpush1.msra.mxu0 0.0
        %2008 = vmatprep.subr.mxu0 0.0
        %2009 = vmatpush1.msra.mxu0 0.0
        %2010 = vmatprep.subr.mxu0 0.0
        %2011 = vmatpush1.msra.mxu0 0.0
        %2012 = vmatprep.subr.mxu0 0.0
        %2013 = vmatpush1.msra.mxu0 0.0
        %2014 = vmatprep.subr.mxu0 0.0
        %2015 = vmatpush1.msra.mxu0 0.0
        %2016 = vmatprep.subr.mxu0 0.0
        %2017 = vmatpush1.msra.mxu0 0.0
        %2018 = vmatprep.subr.mxu0 0.0
        %2019 = vmatpush1.msra.mxu0 0.0
        %2020 = vmatprep.subr.mxu0 0.0
        %2021 = vmatpush1.msra.mxu0 0.0
        %2022 = vmatprep.subr.mxu0 0.0
        %2023 = vmatpush1.msra.mxu0 0.0
        %2024 = vmatprep.subr.mxu0 0.0
        %2025 = vmatpush1.msra.mxu0 0.0
        %2026 = vmatprep.subr.mxu0 0.0
        %2027 = vmatpush1.msra.mxu0 0.0
        %2028 = vmatprep.subr.mxu0 0.0
        %2029 = vmatpush1.msra.mxu0 0.0
        %2030 = vmatprep.subr.mxu0 0.0
        %2031 = vmatpush1.msra.mxu0 0.0
        %2032 = vmatprep.subr.mxu0 0.0
        %2033 = vmatpush1.msra.mxu0 0.0
        %2034 = vmatprep.subr.mxu0 0.0
        %2035 = vmatpush1.msra.mxu0 0.0
        %2036 = vmatprep.subr.mxu0 0.0
        %2037 = vmatpush1.msra.mxu0 0.0
        %2038 = vmatprep.subr.mxu0 0.0
        %2039 = vmatpush1.msra.mxu0 0.0
        %2040 = vmatprep.subr.mxu0 0.0
        %2041 = vmatpush1.msra.mxu0 0.0
        %2042 = vmatprep.subr.mxu0 0.0
        %2043 = vmatpush1.msra.mxu0 0.0
        %2044 = vmatprep.subr.mxu0 0.0
        %2045 = vmatpush1.msra.mxu0 0.0
        %2046 = vmatprep.subr.mxu0 0.0
        %2047 = vmatpush1.msra.mxu0 0.0
        %2048 = vmatprep.subr.mxu0 0.0
        %2049 = vmatpush1.msra.mxu0 0.0
        %2050 = vmatprep.subr.mxu0 0.0
        %2051 = vmatpush1.msra.mxu0 0.0
        %2052 = vmatprep.subr.mxu0 0.0
        %2053 = vmatpush1.msra.mxu0 0.0
        %2054 = vmatprep.subr.mxu0 0.0
        %2055 = vmatpush1.msra.mxu0 0.0
        %2056 = vmatprep.subr.mxu0 0.0
        %2057 = vmatpush1.msra.mxu0 0.0
        %2058 = vmatprep.subr.mxu0 0.0
        %2059 = vmatpush1.msra.mxu0 0.0
        %2060 = vmatprep.subr.mxu0 0.0
        %2061 = vmatpush1.msra.mxu0 0.0
        %2062 = vmatprep.subr.mxu0 0.0
        %2063 = vmatpush1.msra.mxu0 0.0
        %2064 = vmatprep.subr.mxu0 0.0
        %2065 = vmatpush1.msra.mxu0 0.0
        %2066 = vmatprep.mubr.f32.mxu0 0.0
        %2067 = vmatmul.mubr.f32.gmra.mrb[0].mxu0 %v1856
        %v2068 = vpop.f32.mrb[0].mxu0
        %v2069 = vadd.f32 0.0, %v2068
        %v2070 = vpop.f32.mrb[0].mxu0
        %2071 = vmatprep.mubr.f32.mxu0 0.0
        %2072 = vmatmul.mubr.f32.gmra.mrb[0].mxu0 %v1859
        %v2073 = vpop.f32.mrb[0].mxu0
        %v2074 = vadd.f32 0.0, %v2073
        %v2075 = vpop.f32.mrb[0].mxu0
        %2076 = vmatprep.mubr.f32.mxu0 0.0
        %2077 = vmatmul.mubr.f32.gmra.mrb[0].mxu0 %v1862
        %v2078 = vpop.f32.mrb[0].mxu0
        %v2079 = vadd.f32 0.0, %v2078
        %v2080 = vpop.f32.mrb[0].mxu0
        %2081 = vmatprep.mubr.f32.mxu0 0.0
        %2082 = vmatmul.mubr.f32.gmra.mrb[0].mxu0 %v1865
        %v2083 = vpop.f32.mrb[0].mxu0
        %v2084 = vadd.f32 0.0, %v2083
        %v2085 = vpop.f32.mrb[0].mxu0
        %2086 = vmatprep.mubr.f32.mxu0 0.0
        %2087 = vmatmul.mubr.f32.gmra.mrb[0].mxu0 %v1868
        %v2088 = vpop.f32.mrb[0].mxu0
        %v2089 = vadd.f32 0.0, %v2088
        %v2090 = vpop.f32.mrb[0].mxu0
        %2091 = vmatprep.mubr.f32.mxu0 0.0
        %2092 = vmatmul.mubr.f32.gmra.mrb[0].mxu0 %v1871
        %v2093 = vpop.f32.mrb[0].mxu0
        %v2094 = vadd.f32 0.0, %v2093
        %v2095 = vpop.f32.mrb[0].mxu0
        %2096 = vmatprep.mubr.f32.mxu0 0.0
        %2097 = vmatmul.mubr.f32.gmra.mrb[0].mxu0 %v1874
        %v2098 = vpop.f32.mrb[0].mxu0
        %v2099 = vadd.f32 0.0, %v2098
        %v2100 = vpop.f32.mrb[0].mxu0
        %2101 = vmatprep.mubr.f32.mxu0 0.0
        %2102 = vmatmul.mubr.f32.gmra.mrb[0].mxu0 %v1877
        %v2103 = vpop.f32.mrb[0].mxu0
        %v2104 = vadd.f32 0.0, %v2103
        %v2105 = vpop.f32.mrb[0].mxu0
        %2106 = vmatprep.mubr.f32.mxu0 0.0
        %2107 = vmatmul.mubr.f32.gmra.mrb[0].mxu0 %v1880
        %v2108 = vpop.f32.mrb[0].mxu0
        %v2109 = vadd.f32 0.0, %v2108
        %v2110 = vpop.f32.mrb[0].mxu0
        %2111 = vmatprep.mubr.f32.mxu0 0.0
        %2112 = vmatmul.mubr.f32.gmra.mrb[0].mxu0 %v1883
        %v2113 = vpop.f32.mrb[0].mxu0
        %v2114 = vadd.f32 0.0, %v2113
        %v2115 = vpop.f32.mrb[0].mxu0
        %2116 = vmatprep.mubr.f32.mxu0 0.0
        %2117 = vmatmul.mubr.f32.gmra.mrb[0].mxu0 %v1886
        %v2118 = vpop.f32.mrb[0].mxu0
        %v2119 = vadd.f32 0.0, %v2118
        %v2120 = vpop.f32.mrb[0].mxu0
        %2121 = vmatprep.mubr.f32.mxu0 0.0
        %2122 = vmatmul.mubr.f32.gmra.mrb[0].mxu0 %v1889
        %v2123 = vpop.f32.mrb[0].mxu0
        %v2124 = vadd.f32 0.0, %v2123
        %v2125 = vpop.f32.mrb[0].mxu0
        %2126 = vmatprep.mubr.f32.mxu0 0.0
        %2127 = vmatmul.mubr.f32.gmra.mrb[0].mxu0 %v1892
        %v2128 = vpop.f32.mrb[0].mxu0
        %v2129 = vadd.f32 0.0, %v2128
        %v2130 = vpop.f32.mrb[0].mxu0
        %2131 = vmatprep.mubr.f32.mxu0 0.0
        %2132 = vmatmul.mubr.f32.gmra.mrb[0].mxu0 %v1895
        %v2133 = vpop.f32.mrb[0].mxu0
        %v2134 = vadd.f32 0.0, %v2133
        %v2135 = vpop.f32.mrb[0].mxu0
        %2136 = vmatprep.mubr.f32.mxu0 0.0
        %2137 = vmatmul.mubr.f32.gmra.mrb[0].mxu0 %v1898
        %v2138 = vpop.f32.mrb[0].mxu0
        %v2139 = vadd.f32 0.0, %v2138
        %v2140 = vpop.f32.mrb[0].mxu0
        %2141 = vmatprep.mubr.f32.mxu0 0.0
        %2142 = vmatmul.mubr.f32.gmra.mrb[0].mxu0 %v1901
        %v2143 = vpop.f32.mrb[0].mxu0
        %v2144 = vadd.f32 0.0, %v2143
        %v2145 = vpop.f32.mrb[0].mxu0
        %2146 = vmatprep.mubr.f32.mxu0 0.0
        %2147 = vmatmul.mubr.f32.gmra.mrb[0].mxu0 %v1904
        %v2148 = vpop.f32.mrb[0].mxu0
        %v2149 = vadd.f32 0.0, %v2148
        %v2150 = vpop.f32.mrb[0].mxu0
        %2151 = vmatprep.mubr.f32.mxu0 0.0
        %2152 = vmatmul.mubr.f32.gmra.mrb[0].mxu0 %v1907
        %v2153 = vpop.f32.mrb[0].mxu0
        %v2154 = vadd.f32 0.0, %v2153
        %v2155 = vpop.f32.mrb[0].mxu0
        %2156 = vmatprep.mubr.f32.mxu0 0.0
        %2157 = vmatmul.mubr.f32.gmra.mrb[0].mxu0 %v1910
        %v2158 = vpop.f32.mrb[0].mxu0
        %v2159 = vadd.f32 0.0, %v2158
        %v2160 = vpop.f32.mrb[0].mxu0
        %2161 = vmatprep.mubr.f32.mxu0 0.0
        %2162 = vmatmul.mubr.f32.gmra.mrb[0].mxu0 %v1913
        %v2163 = vpop.f32.mrb[0].mxu0
        %v2164 = vadd.f32 0.0, %v2163
        %v2165 = vpop.f32.mrb[0].mxu0
        %2166 = vmatprep.mubr.f32.mxu0 0.0
        %2167 = vmatmul.mubr.f32.gmra.mrb[0].mxu0 %v1916
        %v2168 = vpop.f32.mrb[0].mxu0
        %v2169 = vadd.f32 0.0, %v2168
        %v2170 = vpop.f32.mrb[0].mxu0
        %2171 = vmatprep.mubr.f32.mxu0 0.0
        %2172 = vmatmul.mubr.f32.gmra.mrb[0].mxu0 %v1919
        %v2173 = vpop.f32.mrb[0].mxu0
        %v2174 = vadd.f32 0.0, %v2173
        %v2175 = vpop.f32.mrb[0].mxu0
        %2176 = vmatprep.mubr.f32.mxu0 0.0
        %2177 = vmatmul.mubr.f32.gmra.mrb[0].mxu0 %v1922
        %v2178 = vpop.f32.mrb[0].mxu0
        %v2179 = vadd.f32 0.0, %v2178
        %v2180 = vpop.f32.mrb[0].mxu0
        %2181 = vmatprep.mubr.f32.mxu0 0.0
        %2182 = vmatmul.mubr.f32.gmra.mrb[0].mxu0 %v1925
        %v2183 = vpop.f32.mrb[0].mxu0
        %v2184 = vadd.f32 0.0, %v2183
        %v2185 = vpop.f32.mrb[0].mxu0
        %2186 = vmatprep.mubr.f32.mxu0 0.0
        %2187 = vmatmul.mubr.f32.gmra.mrb[0].mxu0 %v1928
        %v2188 = vpop.f32.mrb[0].mxu0
        %v2189 = vadd.f32 0.0, %v2188
        %v2190 = vpop.f32.mrb[0].mxu0
        %2191 = vmatprep.mubr.f32.mxu0 0.0
        %2192 = vmatmul.mubr.f32.gmra.mrb[0].mxu0 %v1931
        %v2193 = vpop.f32.mrb[0].mxu0
        %v2194 = vadd.f32 0.0, %v2193
        %v2195 = vpop.f32.mrb[0].mxu0
        %2196 = vmatprep.mubr.f32.mxu0 0.0
        %2197 = vmatmul.mubr.f32.gmra.mrb[0].mxu0 %v1934
        %v2198 = vpop.f32.mrb[0].mxu0
        %v2199 = vadd.f32 0.0, %v2198
        %v2200 = vpop.f32.mrb[0].mxu0
        %2201 = vmatprep.mubr.f32.mxu0 0.0
        %2202 = vmatmul.mubr.f32.gmra.mrb[0].mxu0 %v1937
        %v2203 = vpop.f32.mrb[0].mxu0
        %v2204 = vadd.f32 0.0, %v2203
        %v2205 = vpop.f32.mrb[0].mxu0
        %2206 = vmatprep.mubr.f32.mxu0 0.0
        %2207 = vmatmul.mubr.f32.gmra.mrb[0].mxu0 %v1940
        %v2208 = vpop.f32.mrb[0].mxu0
        %v2209 = vadd.f32 0.0, %v2208
        %v2210 = vpop.f32.mrb[0].mxu0
        %2211 = vmatprep.mubr.f32.mxu0 0.0
        %2212 = vmatmul.mubr.f32.gmra.mrb[0].mxu0 %v1943
        %v2213 = vpop.f32.mrb[0].mxu0
        %v2214 = vadd.f32 0.0, %v2213
        %v2215 = vpop.f32.mrb[0].mxu0
        %2216 = vmatprep.mubr.f32.mxu0 0.0
        %2217 = vmatmul.mubr.f32.gmra.mrb[0].mxu0 %v1946
        %v2218 = vpop.f32.mrb[0].mxu0
        %v2219 = vadd.f32 0.0, %v2218
        %v2220 = vpop.f32.mrb[0].mxu0
        %2221 = vmatprep.mubr.f32.mxu0 0.0
        %2222 = vmatmul.mubr.f32.gmra.mrb[0].mxu0 %v1949
        %v2223 = vpop.f32.mrb[0].mxu0
        %v2224 = vadd.f32 0.0, %v2223
        %v2225 = vpop.f32.mrb[0].mxu0
        %2226 = vmatprep.mubr.f32.mxu0 0.0
        %2227 = vmatmul.mubr.f32.gmra.mrb[0].mxu0 %v1952
        %v2228 = vpop.f32.mrb[0].mxu0
        %v2229 = vadd.f32 0.0, %v2228
        %v2230 = vpop.f32.mrb[0].mxu0
        %2231 = vmatprep.mubr.f32.mxu0 0.0
        %2232 = vmatmul.mubr.f32.gmra.mrb[0].mxu0 %v1955
        %v2233 = vpop.f32.mrb[0].mxu0
        %v2234 = vadd.f32 0.0, %v2233
        %v2235 = vpop.f32.mrb[0].mxu0
        %2236 = vmatprep.mubr.f32.mxu0 0.0
        %2237 = vmatmul.mubr.f32.gmra.mrb[0].mxu0 %v1958
        %v2238 = vpop.f32.mrb[0].mxu0
        %v2239 = vadd.f32 0.0, %v2238
        %v2240 = vpop.f32.mrb[0].mxu0
        %2241 = vmatprep.mubr.f32.mxu0 0.0
        %2242 = vmatmul.mubr.f32.gmra.mrb[0].mxu0 %v1961
        %v2243 = vpop.f32.mrb[0].mxu0
        %v2244 = vadd.f32 0.0, %v2243
        %v2245 = vpop.f32.mrb[0].mxu0
        %2246 = vmatprep.mubr.f32.mxu0 0.0
        %2247 = vmatmul.mubr.f32.gmra.mrb[0].mxu0 %v1964
        %v2248 = vpop.f32.mrb[0].mxu0
        %v2249 = vadd.f32 0.0, %v2248
        %v2250 = vpop.f32.mrb[0].mxu0
        %2251 = vmatprep.mubr.f32.mxu0 0.0
        %2252 = vmatmul.mubr.f32.gmra.mrb[0].mxu0 %v1967
        %v2253 = vpop.f32.mrb[0].mxu0
        %v2254 = vadd.f32 0.0, %v2253
        %v2255 = vpop.f32.mrb[0].mxu0
        %2256 = vmatprep.mubr.f32.mxu0 0.0
        %2257 = vmatmul.mubr.f32.gmra.mrb[0].mxu0 %v1970
        %v2258 = vpop.f32.mrb[0].mxu0
        %v2259 = vadd.f32 0.0, %v2258
        %v2260 = vpop.f32.mrb[0].mxu0
        %2261 = vmatprep.mubr.f32.mxu0 0.0
        %2262 = vmatmul.mubr.f32.gmra.mrb[0].mxu0 %v1973
        %v2263 = vpop.f32.mrb[0].mxu0
        %v2264 = vadd.f32 0.0, %v2263
        %v2265 = vpop.f32.mrb[0].mxu0
        %2266 = vmatprep.mubr.f32.mxu0 0.0
        %2267 = vmatmul.mubr.f32.gmra.mrb[0].mxu0 %v1976
        %v2268 = vpop.f32.mrb[0].mxu0
        %v2269 = vadd.f32 0.0, %v2268
        %v2270 = vpop.f32.mrb[0].mxu0
        %2271 = vmatprep.mubr.f32.mxu0 0.0
        %2272 = vmatmul.mubr.f32.gmra.mrb[0].mxu0 %v1979
        %v2273 = vpop.f32.mrb[0].mxu0
        %v2274 = vadd.f32 0.0, %v2273
        %v2275 = vpop.f32.mrb[0].mxu0
        %2276 = vmatprep.mubr.f32.mxu0 0.0
        %2277 = vmatmul.mubr.f32.gmra.mrb[0].mxu0 %v1982
        %v2278 = vpop.f32.mrb[0].mxu0
        %v2279 = vadd.f32 0.0, %v2278
        %v2280 = vpop.f32.mrb[0].mxu0
        %2281 = vmatprep.mubr.f32.mxu0 0.0
        %2282 = vmatmul.mubr.f32.gmra.mrb[0].mxu0 %v1985
        %v2283 = vpop.f32.mrb[0].mxu0
        %v2284 = vadd.f32 0.0, %v2283
        %v2285 = vpop.f32.mrb[0].mxu0
        %2286 = vmatprep.mubr.f32.mxu0 0.0
        %2287 = vmatmul.mubr.f32.gmra.mrb[0].mxu0 %v1988
        %v2288 = vpop.f32.mrb[0].mxu0
        %v2289 = vadd.f32 0.0, %v2288
        %v2290 = vpop.f32.mrb[0].mxu0
        %2291 = vmatprep.mubr.f32.mxu0 0.0
        %2292 = vmatmul.mubr.f32.gmra.mrb[0].mxu0 %v1991
        %v2293 = vpop.f32.mrb[0].mxu0
        %v2294 = vadd.f32 0.0, %v2293
        %v2295 = vpop.f32.mrb[0].mxu0
        %2296 = vmatprep.mubr.f32.mxu0 0.0
        %2297 = vmatmul.mubr.f32.gmra.mrb[0].mxu0 %v1994
        %v2298 = vpop.f32.mrb[0].mxu0
        %v2299 = vadd.f32 0.0, %v2298
        %v2300 = vpop.f32.mrb[0].mxu0
        %2301 = vmatprep.mubr.f32.mxu0 0.0
        %2302 = vmatmul.mubr.f32.gmra.mrb[0].mxu0 %v1997
        %v2303 = vpop.f32.mrb[0].mxu0
        %v2304 = vadd.f32 0.0, %v2303
        %v2305 = vpop.f32.mrb[0].mxu0
        %2306 = vdwg.mxu0
        %v2307 = vadd.f32 %v1757, %v2069
        %v2308 = vadd.f32 %v1758, %v2074
        %v2309 = vadd.f32 %v1759, %v2079
        %v2310 = vadd.f32 %v1760, %v2084
        %v2311 = vadd.f32 %v1761, %v2089
        %v2312 = vadd.f32 %v1762, %v2094
        %v2313 = vadd.f32 %v1763, %v2099
        %v2314 = vadd.f32 %v1764, %v2104
        %v2315 = vadd.f32 %v1765, %v2109
        %v2316 = vadd.f32 %v1766, %v2114
        %v2317 = vadd.f32 %v1767, %v2119
        %v2318 = vadd.f32 %v1768, %v2124
        %v2319 = vadd.f32 %v1769, %v2129
        %v2320 = vadd.f32 %v1770, %v2134
        %v2321 = vadd.f32 %v1771, %v2139
        %v2322 = vadd.f32 %v1772, %v2144
        %v2323 = vadd.f32 %v1773, %v2149
        %v2324 = vadd.f32 %v1774, %v2154
        %v2325 = vadd.f32 %v1775, %v2159
        %v2326 = vadd.f32 %v1776, %v2164
        %v2327 = vadd.f32 %v1777, %v2169
        %v2328 = vadd.f32 %v1778, %v2174
        %v2329 = vadd.f32 %v1779, %v2179
        %v2330 = vadd.f32 %v1780, %v2184
        %v2331 = vadd.f32 %v1781, %v2189
        %v2332 = vadd.f32 %v1782, %v2194
        %v2333 = vadd.f32 %v1783, %v2199
        %v2334 = vadd.f32 %v1784, %v2204
        %v2335 = vadd.f32 %v1785, %v2209
        %v2336 = vadd.f32 %v1786, %v2214
        %v2337 = vadd.f32 %v1787, %v2219
        %v2338 = vadd.f32 %v1788, %v2224
        %v2339 = vadd.f32 %v1789, %v2229
        %v2340 = vadd.f32 %v1790, %v2234
        %v2341 = vadd.f32 %v1791, %v2239
        %v2342 = vadd.f32 %v1792, %v2244
        %v2343 = vadd.f32 %v1793, %v2249
        %v2344 = vadd.f32 %v1794, %v2254
        %v2345 = vadd.f32 %v1795, %v2259
        %v2346 = vadd.f32 %v1796, %v2264
        %v2347 = vadd.f32 %v1797, %v2269
        %v2348 = vadd.f32 %v1798, %v2274
        %v2349 = vadd.f32 %v1799, %v2279
        %v2350 = vadd.f32 %v1800, %v2284
        %v2351 = vadd.f32 %v1801, %v2289
        %v2352 = vadd.f32 %v1802, %v2294
        %v2353 = vadd.f32 %v1803, %v2299
        %v2354 = vadd.f32 %v1804, %v2304
        %v2355 = vld [vmem:[%s249 + $0x19] sm:$0xff]
        %v2356 = vld [vmem:[%s249 + $0x21] sm:$0xff]
        %v2357 = vld [vmem:[%s249 + $0x29] sm:$0xff]
        %v2358 = vld [vmem:[%s249 + $0x31] sm:$0xff]
        %v2359 = vld [vmem:[%s249 + $0x39] sm:$0xff]
        %v2360 = vld [vmem:[%s249 + $0x41] sm:$0xff]
        %v2361 = vld [vmem:[%s249 + $0x49] sm:$0xff]
        %v2362 = vld [vmem:[%s249 + $0x51] sm:$0xff]
        %v2363 = vld [vmem:[%s249 + $0x59] sm:$0xff]
        %v2364 = vld [vmem:[%s249 + $0x61] sm:$0xff]
        %v2365 = vld [vmem:[%s249 + $0x69] sm:$0xff]
        %v2366 = vld [vmem:[%s249 + $0x71] sm:$0xff]
        %v2367 = vld [vmem:[%s249 + $0x79] sm:$0xff]
        %v2368 = vld [vmem:[%s249 + $0x81] sm:$0xff]
        %v2369 = vld [vmem:[%s249 + $0x89] sm:$0xff]
        %v2370 = vld [vmem:[%s249 + $0x91] sm:$0xff]
        %v2371 = vld [vmem:[%s249 + $0x99] sm:$0xff]
        %v2372 = vld [vmem:[%s249 + $0xa1] sm:$0xff]
        %v2373 = vld [vmem:[%s249 + $0xa9] sm:$0xff]
        %v2374 = vld [vmem:[%s249 + $0xb1] sm:$0xff]
        %v2375 = vld [vmem:[%s249 + $0xb9] sm:$0xff]
        %v2376 = vld [vmem:[%s249 + $0xc1] sm:$0xff]
        %v2377 = vld [vmem:[%s249 + $0xc9] sm:$0xff]
        %v2378 = vld [vmem:[%s249 + $0xd1] sm:$0xff]
        %v2379 = vld [vmem:[%s249 + $0xd9] sm:$0xff]
        %v2380 = vld [vmem:[%s249 + $0xe1] sm:$0xff]
        %v2381 = vld [vmem:[%s249 + $0xe9] sm:$0xff]
        %v2382 = vld [vmem:[%s249 + $0xf1] sm:$0xff]
        %v2383 = vld [vmem:[%s249 + $0xf9] sm:$0xff]
        %v2384 = vld [vmem:[%s249 + $0x101] sm:$0xff]
        %v2385 = vld [vmem:[%s249 + $0x109] sm:$0xff]
        %v2386 = vld [vmem:[%s249 + $0x111] sm:$0xff]
        %v2387 = vld [vmem:[%s249 + $0x119] sm:$0xff]
        %v2388 = vld [vmem:[%s249 + $0x121] sm:$0xff]
        %v2389 = vld [vmem:[%s249 + $0x129] sm:$0xff]
        %v2390 = vld [vmem:[%s249 + $0x131] sm:$0xff]
        %v2391 = vld [vmem:[%s249 + $0x139] sm:$0xff]
        %v2392 = vld [vmem:[%s249 + $0x141] sm:$0xff]
        %v2393 = vld [vmem:[%s249 + $0x149] sm:$0xff]
        %v2394 = vld [vmem:[%s249 + $0x151] sm:$0xff]
        %v2395 = vld [vmem:[%s249 + $0x159] sm:$0xff]
        %v2396 = vld [vmem:[%s249 + $0x161] sm:$0xff]
        %v2397 = vld [vmem:[%s249 + $0x169] sm:$0xff]
        %v2398 = vld [vmem:[%s249 + $0x171] sm:$0xff]
        %v2399 = vld [vmem:[%s249 + $0x179] sm:$0xff]
        %v2400 = vld [vmem:[%s249 + $0x181] sm:$0xff]
        %v2401 = vld [vmem:[%s249 + $0x189] sm:$0xff]
        %v2402 = vld [vmem:[%s249 + $0x191] sm:$0xff]
        %s2403 = scalar_lea.vmem %s1, 16
        %v2404 = vld [vmem:[%s2403] sm:$0xf]
        %v2406 = vsel %vm349, %v2355, 0
        %v2409 = vsel %vm349, %v2356, 0
        %v2412 = vsel %vm349, %v2357, 0
        %v2415 = vsel %vm349, %v2358, 0
        %v2418 = vsel %vm349, %v2359, 0
        %v2421 = vsel %vm349, %v2360, 0
        %v2424 = vsel %vm349, %v2361, 0
        %v2427 = vsel %vm349, %v2362, 0
        %v2430 = vsel %vm349, %v2363, 0
        %v2433 = vsel %vm349, %v2364, 0
        %v2436 = vsel %vm349, %v2365, 0
        %v2439 = vsel %vm349, %v2366, 0
        %v2442 = vsel %vm349, %v2367, 0
        %v2445 = vsel %vm349, %v2368, 0
        %v2448 = vsel %vm349, %v2369, 0
        %v2451 = vsel %vm349, %v2370, 0
        %v2454 = vsel %vm349, %v2371, 0
        %v2457 = vsel %vm349, %v2372, 0
        %v2460 = vsel %vm349, %v2373, 0
        %v2463 = vsel %vm349, %v2374, 0
        %v2466 = vsel %vm349, %v2375, 0
        %v2469 = vsel %vm349, %v2376, 0
        %v2472 = vsel %vm349, %v2377, 0
        %v2475 = vsel %vm349, %v2378, 0
        %v2478 = vsel %vm349, %v2379, 0
        %v2481 = vsel %vm349, %v2380, 0
        %v2484 = vsel %vm349, %v2381, 0
        %v2487 = vsel %vm349, %v2382, 0
        %v2490 = vsel %vm349, %v2383, 0
        %v2493 = vsel %vm349, %v2384, 0
        %v2496 = vsel %vm349, %v2385, 0
        %v2499 = vsel %vm349, %v2386, 0
        %v2502 = vsel %vm349, %v2387, 0
        %v2505 = vsel %vm349, %v2388, 0
        %v2508 = vsel %vm349, %v2389, 0
        %v2511 = vsel %vm349, %v2390, 0
        %v2514 = vsel %vm349, %v2391, 0
        %v2517 = vsel %vm349, %v2392, 0
        %v2520 = vsel %vm349, %v2393, 0
        %v2523 = vsel %vm349, %v2394, 0
        %v2526 = vsel %vm349, %v2395, 0
        %v2529 = vsel %vm349, %v2396, 0
        %v2532 = vsel %vm349, %v2397, 0
        %v2535 = vsel %vm349, %v2398, 0
        %v2538 = vsel %vm349, %v2399, 0
        %v2541 = vsel %vm349, %v2400, 0
        %v2544 = vsel %vm349, %v2401, 0
        %v2547 = vsel %vm349, %v2402, 0
        %v2550 = vsel %vm494, %v2404, 0
        %2552 = vmatprep.subr.mxu0 0.0
        %2553 = vmatpush1.msra.mxu0 %v2550
        %2554 = vmatprep.subr.mxu0 0.0
        %2555 = vmatpush1.msra.mxu0 0.0
        %2556 = vmatprep.subr.mxu0 0.0
        %2557 = vmatpush1.msra.mxu0 0.0
        %2558 = vmatprep.subr.mxu0 0.0
        %2559 = vmatpush1.msra.mxu0 0.0
        %2560 = vmatprep.subr.mxu0 0.0
        %2561 = vmatpush1.msra.mxu0 0.0
        %2562 = vmatprep.subr.mxu0 0.0
        %2563 = vmatpush1.msra.mxu0 0.0
        %2564 = vmatprep.subr.mxu0 0.0
        %2565 = vmatpush1.msra.mxu0 0.0
        %2566 = vmatprep.subr.mxu0 0.0
        %2567 = vmatpush1.msra.mxu0 0.0
        %2568 = vmatprep.subr.mxu0 0.0
        %2569 = vmatpush1.msra.mxu0 0.0
        %2570 = vmatprep.subr.mxu0 0.0
        %2571 = vmatpush1.msra.mxu0 0.0
        %2572 = vmatprep.subr.mxu0 0.0
        %2573 = vmatpush1.msra.mxu0 0.0
        %2574 = vmatprep.subr.mxu0 0.0
        %2575 = vmatpush1.msra.mxu0 0.0
        %2576 = vmatprep.subr.mxu0 0.0
        %2577 = vmatpush1.msra.mxu0 0.0
        %2578 = vmatprep.subr.mxu0 0.0
        %2579 = vmatpush1.msra.mxu0 0.0
        %2580 = vmatprep.subr.mxu0 0.0
        %2581 = vmatpush1.msra.mxu0 0.0
        %2582 = vmatprep.subr.mxu0 0.0
        %2583 = vmatpush1.msra.mxu0 0.0
        %2584 = vmatprep.subr.mxu0 0.0
        %2585 = vmatpush1.msra.mxu0 0.0
        %2586 = vmatprep.subr.mxu0 0.0
        %2587 = vmatpush1.msra.mxu0 0.0
        %2588 = vmatprep.subr.mxu0 0.0
        %2589 = vmatpush1.msra.mxu0 0.0
        %2590 = vmatprep.subr.mxu0 0.0
        %2591 = vmatpush1.msra.mxu0 0.0
        %2592 = vmatprep.subr.mxu0 0.0
        %2593 = vmatpush1.msra.mxu0 0.0
        %2594 = vmatprep.subr.mxu0 0.0
        %2595 = vmatpush1.msra.mxu0 0.0
        %2596 = vmatprep.subr.mxu0 0.0
        %2597 = vmatpush1.msra.mxu0 0.0
        %2598 = vmatprep.subr.mxu0 0.0
        %2599 = vmatpush1.msra.mxu0 0.0
        %2600 = vmatprep.subr.mxu0 0.0
        %2601 = vmatpush1.msra.mxu0 0.0
        %2602 = vmatprep.subr.mxu0 0.0
        %2603 = vmatpush1.msra.mxu0 0.0
        %2604 = vmatprep.subr.mxu0 0.0
        %2605 = vmatpush1.msra.mxu0 0.0
        %2606 = vmatprep.subr.mxu0 0.0
        %2607 = vmatpush1.msra.mxu0 0.0
        %2608 = vmatprep.subr.mxu0 0.0
        %2609 = vmatpush1.msra.mxu0 0.0
        %2610 = vmatprep.subr.mxu0 0.0
        %2611 = vmatpush1.msra.mxu0 0.0
        %2612 = vmatprep.subr.mxu0 0.0
        %2613 = vmatpush1.msra.mxu0 0.0
        %2614 = vmatprep.subr.mxu0 0.0
        %2615 = vmatpush1.msra.mxu0 0.0
        %2616 = vmatprep.mubr.f32.mxu0 0.0
        %2617 = vmatmul.mubr.f32.gmra.mrb[0].mxu0 %v2406
        %v2618 = vpop.f32.mrb[0].mxu0
        %v2619 = vadd.f32 0.0, %v2618
        %v2620 = vpop.f32.mrb[0].mxu0
        %2621 = vmatprep.mubr.f32.mxu0 0.0
        %2622 = vmatmul.mubr.f32.gmra.mrb[0].mxu0 %v2409
        %v2623 = vpop.f32.mrb[0].mxu0
        %v2624 = vadd.f32 0.0, %v2623
        %v2625 = vpop.f32.mrb[0].mxu0
        %2626 = vmatprep.mubr.f32.mxu0 0.0
        %2627 = vmatmul.mubr.f32.gmra.mrb[0].mxu0 %v2412
        %v2628 = vpop.f32.mrb[0].mxu0
        %v2629 = vadd.f32 0.0, %v2628
        %v2630 = vpop.f32.mrb[0].mxu0
        %2631 = vmatprep.mubr.f32.mxu0 0.0
        %2632 = vmatmul.mubr.f32.gmra.mrb[0].mxu0 %v2415
        %v2633 = vpop.f32.mrb[0].mxu0
        %v2634 = vadd.f32 0.0, %v2633
        %v2635 = vpop.f32.mrb[0].mxu0
        %2636 = vmatprep.mubr.f32.mxu0 0.0
        %2637 = vmatmul.mubr.f32.gmra.mrb[0].mxu0 %v2418
        %v2638 = vpop.f32.mrb[0].mxu0
        %v2639 = vadd.f32 0.0, %v2638
        %v2640 = vpop.f32.mrb[0].mxu0
        %2641 = vmatprep.mubr.f32.mxu0 0.0
        %2642 = vmatmul.mubr.f32.gmra.mrb[0].mxu0 %v2421
        %v2643 = vpop.f32.mrb[0].mxu0
        %v2644 = vadd.f32 0.0, %v2643
        %v2645 = vpop.f32.mrb[0].mxu0
        %2646 = vmatprep.mubr.f32.mxu0 0.0
        %2647 = vmatmul.mubr.f32.gmra.mrb[0].mxu0 %v2424
        %v2648 = vpop.f32.mrb[0].mxu0
        %v2649 = vadd.f32 0.0, %v2648
        %v2650 = vpop.f32.mrb[0].mxu0
        %2651 = vmatprep.mubr.f32.mxu0 0.0
        %2652 = vmatmul.mubr.f32.gmra.mrb[0].mxu0 %v2427
        %v2653 = vpop.f32.mrb[0].mxu0
        %v2654 = vadd.f32 0.0, %v2653
        %v2655 = vpop.f32.mrb[0].mxu0
        %2656 = vmatprep.mubr.f32.mxu0 0.0
        %2657 = vmatmul.mubr.f32.gmra.mrb[0].mxu0 %v2430
        %v2658 = vpop.f32.mrb[0].mxu0
        %v2659 = vadd.f32 0.0, %v2658
        %v2660 = vpop.f32.mrb[0].mxu0
        %2661 = vmatprep.mubr.f32.mxu0 0.0
        %2662 = vmatmul.mubr.f32.gmra.mrb[0].mxu0 %v2433
        %v2663 = vpop.f32.mrb[0].mxu0
        %v2664 = vadd.f32 0.0, %v2663
        %v2665 = vpop.f32.mrb[0].mxu0
        %2666 = vmatprep.mubr.f32.mxu0 0.0
        %2667 = vmatmul.mubr.f32.gmra.mrb[0].mxu0 %v2436
        %v2668 = vpop.f32.mrb[0].mxu0
        %v2669 = vadd.f32 0.0, %v2668
        %v2670 = vpop.f32.mrb[0].mxu0
        %2671 = vmatprep.mubr.f32.mxu0 0.0
        %2672 = vmatmul.mubr.f32.gmra.mrb[0].mxu0 %v2439
        %v2673 = vpop.f32.mrb[0].mxu0
        %v2674 = vadd.f32 0.0, %v2673
        %v2675 = vpop.f32.mrb[0].mxu0
        %2676 = vmatprep.mubr.f32.mxu0 0.0
        %2677 = vmatmul.mubr.f32.gmra.mrb[0].mxu0 %v2442
        %v2678 = vpop.f32.mrb[0].mxu0
        %v2679 = vadd.f32 0.0, %v2678
        %v2680 = vpop.f32.mrb[0].mxu0
        %2681 = vmatprep.mubr.f32.mxu0 0.0
        %2682 = vmatmul.mubr.f32.gmra.mrb[0].mxu0 %v2445
        %v2683 = vpop.f32.mrb[0].mxu0
        %v2684 = vadd.f32 0.0, %v2683
        %v2685 = vpop.f32.mrb[0].mxu0
        %2686 = vmatprep.mubr.f32.mxu0 0.0
        %2687 = vmatmul.mubr.f32.gmra.mrb[0].mxu0 %v2448
        %v2688 = vpop.f32.mrb[0].mxu0
        %v2689 = vadd.f32 0.0, %v2688
        %v2690 = vpop.f32.mrb[0].mxu0
        %2691 = vmatprep.mubr.f32.mxu0 0.0
        %2692 = vmatmul.mubr.f32.gmra.mrb[0].mxu0 %v2451
        %v2693 = vpop.f32.mrb[0].mxu0
        %v2694 = vadd.f32 0.0, %v2693
        %v2695 = vpop.f32.mrb[0].mxu0
        %2696 = vmatprep.mubr.f32.mxu0 0.0
        %2697 = vmatmul.mubr.f32.gmra.mrb[0].mxu0 %v2454
        %v2698 = vpop.f32.mrb[0].mxu0
        %v2699 = vadd.f32 0.0, %v2698
        %v2700 = vpop.f32.mrb[0].mxu0
        %2701 = vmatprep.mubr.f32.mxu0 0.0
        %2702 = vmatmul.mubr.f32.gmra.mrb[0].mxu0 %v2457
        %v2703 = vpop.f32.mrb[0].mxu0
        %v2704 = vadd.f32 0.0, %v2703
        %v2705 = vpop.f32.mrb[0].mxu0
        %2706 = vmatprep.mubr.f32.mxu0 0.0
        %2707 = vmatmul.mubr.f32.gmra.mrb[0].mxu0 %v2460
        %v2708 = vpop.f32.mrb[0].mxu0
        %v2709 = vadd.f32 0.0, %v2708
        %v2710 = vpop.f32.mrb[0].mxu0
        %2711 = vmatprep.mubr.f32.mxu0 0.0
        %2712 = vmatmul.mubr.f32.gmra.mrb[0].mxu0 %v2463
        %v2713 = vpop.f32.mrb[0].mxu0
        %v2714 = vadd.f32 0.0, %v2713
        %v2715 = vpop.f32.mrb[0].mxu0
        %2716 = vmatprep.mubr.f32.mxu0 0.0
        %2717 = vmatmul.mubr.f32.gmra.mrb[0].mxu0 %v2466
        %v2718 = vpop.f32.mrb[0].mxu0
        %v2719 = vadd.f32 0.0, %v2718
        %v2720 = vpop.f32.mrb[0].mxu0
        %2721 = vmatprep.mubr.f32.mxu0 0.0
        %2722 = vmatmul.mubr.f32.gmra.mrb[0].mxu0 %v2469
        %v2723 = vpop.f32.mrb[0].mxu0
        %v2724 = vadd.f32 0.0, %v2723
        %v2725 = vpop.f32.mrb[0].mxu0
        %2726 = vmatprep.mubr.f32.mxu0 0.0
        %2727 = vmatmul.mubr.f32.gmra.mrb[0].mxu0 %v2472
        %v2728 = vpop.f32.mrb[0].mxu0
        %v2729 = vadd.f32 0.0, %v2728
        %v2730 = vpop.f32.mrb[0].mxu0
        %2731 = vmatprep.mubr.f32.mxu0 0.0
        %2732 = vmatmul.mubr.f32.gmra.mrb[0].mxu0 %v2475
        %v2733 = vpop.f32.mrb[0].mxu0
        %v2734 = vadd.f32 0.0, %v2733
        %v2735 = vpop.f32.mrb[0].mxu0
        %2736 = vmatprep.mubr.f32.mxu0 0.0
        %2737 = vmatmul.mubr.f32.gmra.mrb[0].mxu0 %v2478
        %v2738 = vpop.f32.mrb[0].mxu0
        %v2739 = vadd.f32 0.0, %v2738
        %v2740 = vpop.f32.mrb[0].mxu0
        %2741 = vmatprep.mubr.f32.mxu0 0.0
        %2742 = vmatmul.mubr.f32.gmra.mrb[0].mxu0 %v2481
        %v2743 = vpop.f32.mrb[0].mxu0
        %v2744 = vadd.f32 0.0, %v2743
        %v2745 = vpop.f32.mrb[0].mxu0
        %2746 = vmatprep.mubr.f32.mxu0 0.0
        %2747 = vmatmul.mubr.f32.gmra.mrb[0].mxu0 %v2484
        %v2748 = vpop.f32.mrb[0].mxu0
        %v2749 = vadd.f32 0.0, %v2748
        %v2750 = vpop.f32.mrb[0].mxu0
        %2751 = vmatprep.mubr.f32.mxu0 0.0
        %2752 = vmatmul.mubr.f32.gmra.mrb[0].mxu0 %v2487
        %v2753 = vpop.f32.mrb[0].mxu0
        %v2754 = vadd.f32 0.0, %v2753
        %v2755 = vpop.f32.mrb[0].mxu0
        %2756 = vmatprep.mubr.f32.mxu0 0.0
        %2757 = vmatmul.mubr.f32.gmra.mrb[0].mxu0 %v2490
        %v2758 = vpop.f32.mrb[0].mxu0
        %v2759 = vadd.f32 0.0, %v2758
        %v2760 = vpop.f32.mrb[0].mxu0
        %2761 = vmatprep.mubr.f32.mxu0 0.0
        %2762 = vmatmul.mubr.f32.gmra.mrb[0].mxu0 %v2493
        %v2763 = vpop.f32.mrb[0].mxu0
        %v2764 = vadd.f32 0.0, %v2763
        %v2765 = vpop.f32.mrb[0].mxu0
        %2766 = vmatprep.mubr.f32.mxu0 0.0
        %2767 = vmatmul.mubr.f32.gmra.mrb[0].mxu0 %v2496
        %v2768 = vpop.f32.mrb[0].mxu0
        %v2769 = vadd.f32 0.0, %v2768
        %v2770 = vpop.f32.mrb[0].mxu0
        %2771 = vmatprep.mubr.f32.mxu0 0.0
        %2772 = vmatmul.mubr.f32.gmra.mrb[0].mxu0 %v2499
        %v2773 = vpop.f32.mrb[0].mxu0
        %v2774 = vadd.f32 0.0, %v2773
        %v2775 = vpop.f32.mrb[0].mxu0
        %2776 = vmatprep.mubr.f32.mxu0 0.0
        %2777 = vmatmul.mubr.f32.gmra.mrb[0].mxu0 %v2502
        %v2778 = vpop.f32.mrb[0].mxu0
        %v2779 = vadd.f32 0.0, %v2778
        %v2780 = vpop.f32.mrb[0].mxu0
        %2781 = vmatprep.mubr.f32.mxu0 0.0
        %2782 = vmatmul.mubr.f32.gmra.mrb[0].mxu0 %v2505
        %v2783 = vpop.f32.mrb[0].mxu0
        %v2784 = vadd.f32 0.0, %v2783
        %v2785 = vpop.f32.mrb[0].mxu0
        %2786 = vmatprep.mubr.f32.mxu0 0.0
        %2787 = vmatmul.mubr.f32.gmra.mrb[0].mxu0 %v2508
        %v2788 = vpop.f32.mrb[0].mxu0
        %v2789 = vadd.f32 0.0, %v2788
        %v2790 = vpop.f32.mrb[0].mxu0
        %2791 = vmatprep.mubr.f32.mxu0 0.0
        %2792 = vmatmul.mubr.f32.gmra.mrb[0].mxu0 %v2511
        %v2793 = vpop.f32.mrb[0].mxu0
        %v2794 = vadd.f32 0.0, %v2793
        %v2795 = vpop.f32.mrb[0].mxu0
        %2796 = vmatprep.mubr.f32.mxu0 0.0
        %2797 = vmatmul.mubr.f32.gmra.mrb[0].mxu0 %v2514
        %v2798 = vpop.f32.mrb[0].mxu0
        %v2799 = vadd.f32 0.0, %v2798
        %v2800 = vpop.f32.mrb[0].mxu0
        %2801 = vmatprep.mubr.f32.mxu0 0.0
        %2802 = vmatmul.mubr.f32.gmra.mrb[0].mxu0 %v2517
        %v2803 = vpop.f32.mrb[0].mxu0
        %v2804 = vadd.f32 0.0, %v2803
        %v2805 = vpop.f32.mrb[0].mxu0
        %2806 = vmatprep.mubr.f32.mxu0 0.0
        %2807 = vmatmul.mubr.f32.gmra.mrb[0].mxu0 %v2520
        %v2808 = vpop.f32.mrb[0].mxu0
        %v2809 = vadd.f32 0.0, %v2808
        %v2810 = vpop.f32.mrb[0].mxu0
        %2811 = vmatprep.mubr.f32.mxu0 0.0
        %2812 = vmatmul.mubr.f32.gmra.mrb[0].mxu0 %v2523
        %v2813 = vpop.f32.mrb[0].mxu0
        %v2814 = vadd.f32 0.0, %v2813
        %v2815 = vpop.f32.mrb[0].mxu0
        %2816 = vmatprep.mubr.f32.mxu0 0.0
        %2817 = vmatmul.mubr.f32.gmra.mrb[0].mxu0 %v2526
        %v2818 = vpop.f32.mrb[0].mxu0
        %v2819 = vadd.f32 0.0, %v2818
        %v2820 = vpop.f32.mrb[0].mxu0
        %2821 = vmatprep.mubr.f32.mxu0 0.0
        %2822 = vmatmul.mubr.f32.gmra.mrb[0].mxu0 %v2529
        %v2823 = vpop.f32.mrb[0].mxu0
        %v2824 = vadd.f32 0.0, %v2823
        %v2825 = vpop.f32.mrb[0].mxu0
        %2826 = vmatprep.mubr.f32.mxu0 0.0
        %2827 = vmatmul.mubr.f32.gmra.mrb[0].mxu0 %v2532
        %v2828 = vpop.f32.mrb[0].mxu0
        %v2829 = vadd.f32 0.0, %v2828
        %v2830 = vpop.f32.mrb[0].mxu0
        %2831 = vmatprep.mubr.f32.mxu0 0.0
        %2832 = vmatmul.mubr.f32.gmra.mrb[0].mxu0 %v2535
        %v2833 = vpop.f32.mrb[0].mxu0
        %v2834 = vadd.f32 0.0, %v2833
        %v2835 = vpop.f32.mrb[0].mxu0
        %2836 = vmatprep.mubr.f32.mxu0 0.0
        %2837 = vmatmul.mubr.f32.gmra.mrb[0].mxu0 %v2538
        %v2838 = vpop.f32.mrb[0].mxu0
        %v2839 = vadd.f32 0.0, %v2838
        %v2840 = vpop.f32.mrb[0].mxu0
        %2841 = vmatprep.mubr.f32.mxu0 0.0
        %2842 = vmatmul.mubr.f32.gmra.mrb[0].mxu0 %v2541
        %v2843 = vpop.f32.mrb[0].mxu0
        %v2844 = vadd.f32 0.0, %v2843
        %v2845 = vpop.f32.mrb[0].mxu0
        %2846 = vmatprep.mubr.f32.mxu0 0.0
        %2847 = vmatmul.mubr.f32.gmra.mrb[0].mxu0 %v2544
        %v2848 = vpop.f32.mrb[0].mxu0
        %v2849 = vadd.f32 0.0, %v2848
        %v2850 = vpop.f32.mrb[0].mxu0
        %2851 = vmatprep.mubr.f32.mxu0 0.0
        %2852 = vmatmul.mubr.f32.gmra.mrb[0].mxu0 %v2547
        %v2853 = vpop.f32.mrb[0].mxu0
        %v2854 = vadd.f32 0.0, %v2853
        %v2855 = vpop.f32.mrb[0].mxu0
        %2856 = vdwg.mxu0
        %v2857 = vadd.f32 %v2307, %v2619
        %v2858 = vadd.f32 %v2308, %v2624
        %v2859 = vadd.f32 %v2309, %v2629
        %v2860 = vadd.f32 %v2310, %v2634
        %v2861 = vadd.f32 %v2311, %v2639
        %v2862 = vadd.f32 %v2312, %v2644
        %v2863 = vadd.f32 %v2313, %v2649
        %v2864 = vadd.f32 %v2314, %v2654
        %v2865 = vadd.f32 %v2315, %v2659
        %v2866 = vadd.f32 %v2316, %v2664
        %v2867 = vadd.f32 %v2317, %v2669
        %v2868 = vadd.f32 %v2318, %v2674
        %v2869 = vadd.f32 %v2319, %v2679
        %v2870 = vadd.f32 %v2320, %v2684
        %v2871 = vadd.f32 %v2321, %v2689
        %v2872 = vadd.f32 %v2322, %v2694
        %v2873 = vadd.f32 %v2323, %v2699
        %v2874 = vadd.f32 %v2324, %v2704
        %v2875 = vadd.f32 %v2325, %v2709
        %v2876 = vadd.f32 %v2326, %v2714
        %v2877 = vadd.f32 %v2327, %v2719
        %v2878 = vadd.f32 %v2328, %v2724
        %v2879 = vadd.f32 %v2329, %v2729
        %v2880 = vadd.f32 %v2330, %v2734
        %v2881 = vadd.f32 %v2331, %v2739
        %v2882 = vadd.f32 %v2332, %v2744
        %v2883 = vadd.f32 %v2333, %v2749
        %v2884 = vadd.f32 %v2334, %v2754
        %v2885 = vadd.f32 %v2335, %v2759
        %v2886 = vadd.f32 %v2336, %v2764
        %v2887 = vadd.f32 %v2337, %v2769
        %v2888 = vadd.f32 %v2338, %v2774
        %v2889 = vadd.f32 %v2339, %v2779
        %v2890 = vadd.f32 %v2340, %v2784
        %v2891 = vadd.f32 %v2341, %v2789
        %v2892 = vadd.f32 %v2342, %v2794
        %v2893 = vadd.f32 %v2343, %v2799
        %v2894 = vadd.f32 %v2344, %v2804
        %v2895 = vadd.f32 %v2345, %v2809
        %v2896 = vadd.f32 %v2346, %v2814
        %v2897 = vadd.f32 %v2347, %v2819
        %v2898 = vadd.f32 %v2348, %v2824
        %v2899 = vadd.f32 %v2349, %v2829
        %v2900 = vadd.f32 %v2350, %v2834
        %v2901 = vadd.f32 %v2351, %v2839
        %v2902 = vadd.f32 %v2352, %v2844
        %v2903 = vadd.f32 %v2353, %v2849
        %v2904 = vadd.f32 %v2354, %v2854
        %v2905 = vld [vmem:[%s249 + $0x1a] sm:$0xff]
        %v2906 = vld [vmem:[%s249 + $0x22] sm:$0xff]
        %v2907 = vld [vmem:[%s249 + $0x2a] sm:$0xff]
        %v2908 = vld [vmem:[%s249 + $0x32] sm:$0xff]
        %v2909 = vld [vmem:[%s249 + $0x3a] sm:$0xff]
        %v2910 = vld [vmem:[%s249 + $0x42] sm:$0xff]
        %v2911 = vld [vmem:[%s249 + $0x4a] sm:$0xff]
        %v2912 = vld [vmem:[%s249 + $0x52] sm:$0xff]
        %v2913 = vld [vmem:[%s249 + $0x5a] sm:$0xff]
        %v2914 = vld [vmem:[%s249 + $0x62] sm:$0xff]
        %v2915 = vld [vmem:[%s249 + $0x6a] sm:$0xff]
        %v2916 = vld [vmem:[%s249 + $0x72] sm:$0xff]
        %v2917 = vld [vmem:[%s249 + $0x7a] sm:$0xff]
        %v2918 = vld [vmem:[%s249 + $0x82] sm:$0xff]
        %v2919 = vld [vmem:[%s249 + $0x8a] sm:$0xff]
        %v2920 = vld [vmem:[%s249 + $0x92] sm:$0xff]
        %v2921 = vld [vmem:[%s249 + $0x9a] sm:$0xff]
        %v2922 = vld [vmem:[%s249 + $0xa2] sm:$0xff]
        %v2923 = vld [vmem:[%s249 + $0xaa] sm:$0xff]
        %v2924 = vld [vmem:[%s249 + $0xb2] sm:$0xff]
        %v2925 = vld [vmem:[%s249 + $0xba] sm:$0xff]
        %v2926 = vld [vmem:[%s249 + $0xc2] sm:$0xff]
        %v2927 = vld [vmem:[%s249 + $0xca] sm:$0xff]
        %v2928 = vld [vmem:[%s249 + $0xd2] sm:$0xff]
        %v2929 = vld [vmem:[%s249 + $0xda] sm:$0xff]
        %v2930 = vld [vmem:[%s249 + $0xe2] sm:$0xff]
        %v2931 = vld [vmem:[%s249 + $0xea] sm:$0xff]
        %v2932 = vld [vmem:[%s249 + $0xf2] sm:$0xff]
        %v2933 = vld [vmem:[%s249 + $0xfa] sm:$0xff]
        %v2934 = vld [vmem:[%s249 + $0x102] sm:$0xff]
        %v2935 = vld [vmem:[%s249 + $0x10a] sm:$0xff]
        %v2936 = vld [vmem:[%s249 + $0x112] sm:$0xff]
        %v2937 = vld [vmem:[%s249 + $0x11a] sm:$0xff]
        %v2938 = vld [vmem:[%s249 + $0x122] sm:$0xff]
        %v2939 = vld [vmem:[%s249 + $0x12a] sm:$0xff]
        %v2940 = vld [vmem:[%s249 + $0x132] sm:$0xff]
        %v2941 = vld [vmem:[%s249 + $0x13a] sm:$0xff]
        %v2942 = vld [vmem:[%s249 + $0x142] sm:$0xff]
        %v2943 = vld [vmem:[%s249 + $0x14a] sm:$0xff]
        %v2944 = vld [vmem:[%s249 + $0x152] sm:$0xff]
        %v2945 = vld [vmem:[%s249 + $0x15a] sm:$0xff]
        %v2946 = vld [vmem:[%s249 + $0x162] sm:$0xff]
        %v2947 = vld [vmem:[%s249 + $0x16a] sm:$0xff]
        %v2948 = vld [vmem:[%s249 + $0x172] sm:$0xff]
        %v2949 = vld [vmem:[%s249 + $0x17a] sm:$0xff]
        %v2950 = vld [vmem:[%s249 + $0x182] sm:$0xff]
        %v2951 = vld [vmem:[%s249 + $0x18a] sm:$0xff]
        %v2952 = vld [vmem:[%s249 + $0x192] sm:$0xff]
        %s2953 = scalar_lea.vmem %s1, 20
        %v2954 = vld [vmem:[%s2953] sm:$0xf]
        %v2956 = vsel %vm349, %v2905, 0
        %v2959 = vsel %vm349, %v2906, 0
        %v2962 = vsel %vm349, %v2907, 0
        %v2965 = vsel %vm349, %v2908, 0
        %v2968 = vsel %vm349, %v2909, 0
        %v2971 = vsel %vm349, %v2910, 0
        %v2974 = vsel %vm349, %v2911, 0
        %v2977 = vsel %vm349, %v2912, 0
        %v2980 = vsel %vm349, %v2913, 0
        %v2983 = vsel %vm349, %v2914, 0
        %v2986 = vsel %vm349, %v2915, 0
        %v2989 = vsel %vm349, %v2916, 0
        %v2992 = vsel %vm349, %v2917, 0
        %v2995 = vsel %vm349, %v2918, 0
        %v2998 = vsel %vm349, %v2919, 0
        %v3001 = vsel %vm349, %v2920, 0
        %v3004 = vsel %vm349, %v2921, 0
        %v3007 = vsel %vm349, %v2922, 0
        %v3010 = vsel %vm349, %v2923, 0
        %v3013 = vsel %vm349, %v2924, 0
        %v3016 = vsel %vm349, %v2925, 0
        %v3019 = vsel %vm349, %v2926, 0
        %v3022 = vsel %vm349, %v2927, 0
        %v3025 = vsel %vm349, %v2928, 0
        %v3028 = vsel %vm349, %v2929, 0
        %v3031 = vsel %vm349, %v2930, 0
        %v3034 = vsel %vm349, %v2931, 0
        %v3037 = vsel %vm349, %v2932, 0
        %v3040 = vsel %vm349, %v2933, 0
        %v3043 = vsel %vm349, %v2934, 0
        %v3046 = vsel %vm349, %v2935, 0
        %v3049 = vsel %vm349, %v2936, 0
        %v3052 = vsel %vm349, %v2937, 0
        %v3055 = vsel %vm349, %v2938, 0
        %v3058 = vsel %vm349, %v2939, 0
        %v3061 = vsel %vm349, %v2940, 0
        %v3064 = vsel %vm349, %v2941, 0
        %v3067 = vsel %vm349, %v2942, 0
        %v3070 = vsel %vm349, %v2943, 0
        %v3073 = vsel %vm349, %v2944, 0
        %v3076 = vsel %vm349, %v2945, 0
        %v3079 = vsel %vm349, %v2946, 0
        %v3082 = vsel %vm349, %v2947, 0
        %v3085 = vsel %vm349, %v2948, 0
        %v3088 = vsel %vm349, %v2949, 0
        %v3091 = vsel %vm349, %v2950, 0
        %v3094 = vsel %vm349, %v2951, 0
        %v3097 = vsel %vm349, %v2952, 0
        %v3100 = vsel %vm494, %v2954, 0
        %3102 = vmatprep.subr.mxu0 0.0
        %3103 = vmatpush1.msra.mxu0 %v3100
        %3104 = vmatprep.subr.mxu0 0.0
        %3105 = vmatpush1.msra.mxu0 0.0
        %3106 = vmatprep.subr.mxu0 0.0
        %3107 = vmatpush1.msra.mxu0 0.0
        %3108 = vmatprep.subr.mxu0 0.0
        %3109 = vmatpush1.msra.mxu0 0.0
        %3110 = vmatprep.subr.mxu0 0.0
        %3111 = vmatpush1.msra.mxu0 0.0
        %3112 = vmatprep.subr.mxu0 0.0
        %3113 = vmatpush1.msra.mxu0 0.0
        %3114 = vmatprep.subr.mxu0 0.0
        %3115 = vmatpush1.msra.mxu0 0.0
        %3116 = vmatprep.subr.mxu0 0.0
        %3117 = vmatpush1.msra.mxu0 0.0
        %3118 = vmatprep.subr.mxu0 0.0
        %3119 = vmatpush1.msra.mxu0 0.0
        %3120 = vmatprep.subr.mxu0 0.0
        %3121 = vmatpush1.msra.mxu0 0.0
        %3122 = vmatprep.subr.mxu0 0.0
        %3123 = vmatpush1.msra.mxu0 0.0
        %3124 = vmatprep.subr.mxu0 0.0
        %3125 = vmatpush1.msra.mxu0 0.0
        %3126 = vmatprep.subr.mxu0 0.0
        %3127 = vmatpush1.msra.mxu0 0.0
        %3128 = vmatprep.subr.mxu0 0.0
        %3129 = vmatpush1.msra.mxu0 0.0
        %3130 = vmatprep.subr.mxu0 0.0
        %3131 = vmatpush1.msra.mxu0 0.0
        %3132 = vmatprep.subr.mxu0 0.0
        %3133 = vmatpush1.msra.mxu0 0.0
        %3134 = vmatprep.subr.mxu0 0.0
        %3135 = vmatpush1.msra.mxu0 0.0
        %3136 = vmatprep.subr.mxu0 0.0
        %3137 = vmatpush1.msra.mxu0 0.0
        %3138 = vmatprep.subr.mxu0 0.0
        %3139 = vmatpush1.msra.mxu0 0.0
        %3140 = vmatprep.subr.mxu0 0.0
        %3141 = vmatpush1.msra.mxu0 0.0
        %3142 = vmatprep.subr.mxu0 0.0
        %3143 = vmatpush1.msra.mxu0 0.0
        %3144 = vmatprep.subr.mxu0 0.0
        %3145 = vmatpush1.msra.mxu0 0.0
        %3146 = vmatprep.subr.mxu0 0.0
        %3147 = vmatpush1.msra.mxu0 0.0
        %3148 = vmatprep.subr.mxu0 0.0
        %3149 = vmatpush1.msra.mxu0 0.0
        %3150 = vmatprep.subr.mxu0 0.0
        %3151 = vmatpush1.msra.mxu0 0.0
        %3152 = vmatprep.subr.mxu0 0.0
        %3153 = vmatpush1.msra.mxu0 0.0
        %3154 = vmatprep.subr.mxu0 0.0
        %3155 = vmatpush1.msra.mxu0 0.0
        %3156 = vmatprep.subr.mxu0 0.0
        %3157 = vmatpush1.msra.mxu0 0.0
        %3158 = vmatprep.subr.mxu0 0.0
        %3159 = vmatpush1.msra.mxu0 0.0
        %3160 = vmatprep.subr.mxu0 0.0
        %3161 = vmatpush1.msra.mxu0 0.0
        %3162 = vmatprep.subr.mxu0 0.0
        %3163 = vmatpush1.msra.mxu0 0.0
        %3164 = vmatprep.subr.mxu0 0.0
        %3165 = vmatpush1.msra.mxu0 0.0
        %3166 = vmatprep.mubr.f32.mxu0 0.0
        %3167 = vmatmul.mubr.f32.gmra.mrb[0].mxu0 %v2956
        %v3168 = vpop.f32.mrb[0].mxu0
        %v3169 = vadd.f32 0.0, %v3168
        %v3170 = vpop.f32.mrb[0].mxu0
        %3171 = vmatprep.mubr.f32.mxu0 0.0
        %3172 = vmatmul.mubr.f32.gmra.mrb[0].mxu0 %v2959
        %v3173 = vpop.f32.mrb[0].mxu0
        %v3174 = vadd.f32 0.0, %v3173
        %v3175 = vpop.f32.mrb[0].mxu0
        %3176 = vmatprep.mubr.f32.mxu0 0.0
        %3177 = vmatmul.mubr.f32.gmra.mrb[0].mxu0 %v2962
        %v3178 = vpop.f32.mrb[0].mxu0
        %v3179 = vadd.f32 0.0, %v3178
        %v3180 = vpop.f32.mrb[0].mxu0
        %3181 = vmatprep.mubr.f32.mxu0 0.0
        %3182 = vmatmul.mubr.f32.gmra.mrb[0].mxu0 %v2965
        %v3183 = vpop.f32.mrb[0].mxu0
        %v3184 = vadd.f32 0.0, %v3183
        %v3185 = vpop.f32.mrb[0].mxu0
        %3186 = vmatprep.mubr.f32.mxu0 0.0
        %3187 = vmatmul.mubr.f32.gmra.mrb[0].mxu0 %v2968
        %v3188 = vpop.f32.mrb[0].mxu0
        %v3189 = vadd.f32 0.0, %v3188
        %v3190 = vpop.f32.mrb[0].mxu0
        %3191 = vmatprep.mubr.f32.mxu0 0.0
        %3192 = vmatmul.mubr.f32.gmra.mrb[0].mxu0 %v2971
        %v3193 = vpop.f32.mrb[0].mxu0
        %v3194 = vadd.f32 0.0, %v3193
        %v3195 = vpop.f32.mrb[0].mxu0
        %3196 = vmatprep.mubr.f32.mxu0 0.0
        %3197 = vmatmul.mubr.f32.gmra.mrb[0].mxu0 %v2974
        %v3198 = vpop.f32.mrb[0].mxu0
        %v3199 = vadd.f32 0.0, %v3198
        %v3200 = vpop.f32.mrb[0].mxu0
        %3201 = vmatprep.mubr.f32.mxu0 0.0
        %3202 = vmatmul.mubr.f32.gmra.mrb[0].mxu0 %v2977
        %v3203 = vpop.f32.mrb[0].mxu0
        %v3204 = vadd.f32 0.0, %v3203
        %v3205 = vpop.f32.mrb[0].mxu0
        %3206 = vmatprep.mubr.f32.mxu0 0.0
        %3207 = vmatmul.mubr.f32.gmra.mrb[0].mxu0 %v2980
        %v3208 = vpop.f32.mrb[0].mxu0
        %v3209 = vadd.f32 0.0, %v3208
        %v3210 = vpop.f32.mrb[0].mxu0
        %3211 = vmatprep.mubr.f32.mxu0 0.0
        %3212 = vmatmul.mubr.f32.gmra.mrb[0].mxu0 %v2983
        %v3213 = vpop.f32.mrb[0].mxu0
        %v3214 = vadd.f32 0.0, %v3213
        %v3215 = vpop.f32.mrb[0].mxu0
        %3216 = vmatprep.mubr.f32.mxu0 0.0
        %3217 = vmatmul.mubr.f32.gmra.mrb[0].mxu0 %v2986
        %v3218 = vpop.f32.mrb[0].mxu0
        %v3219 = vadd.f32 0.0, %v3218
        %v3220 = vpop.f32.mrb[0].mxu0
        %3221 = vmatprep.mubr.f32.mxu0 0.0
        %3222 = vmatmul.mubr.f32.gmra.mrb[0].mxu0 %v2989
        %v3223 = vpop.f32.mrb[0].mxu0
        %v3224 = vadd.f32 0.0, %v3223
        %v3225 = vpop.f32.mrb[0].mxu0
        %3226 = vmatprep.mubr.f32.mxu0 0.0
        %3227 = vmatmul.mubr.f32.gmra.mrb[0].mxu0 %v2992
        %v3228 = vpop.f32.mrb[0].mxu0
        %v3229 = vadd.f32 0.0, %v3228
        %v3230 = vpop.f32.mrb[0].mxu0
        %3231 = vmatprep.mubr.f32.mxu0 0.0
        %3232 = vmatmul.mubr.f32.gmra.mrb[0].mxu0 %v2995
        %v3233 = vpop.f32.mrb[0].mxu0
        %v3234 = vadd.f32 0.0, %v3233
        %v3235 = vpop.f32.mrb[0].mxu0
        %3236 = vmatprep.mubr.f32.mxu0 0.0
        %3237 = vmatmul.mubr.f32.gmra.mrb[0].mxu0 %v2998
        %v3238 = vpop.f32.mrb[0].mxu0
        %v3239 = vadd.f32 0.0, %v3238
        %v3240 = vpop.f32.mrb[0].mxu0
        %3241 = vmatprep.mubr.f32.mxu0 0.0
        %3242 = vmatmul.mubr.f32.gmra.mrb[0].mxu0 %v3001
        %v3243 = vpop.f32.mrb[0].mxu0
        %v3244 = vadd.f32 0.0, %v3243
        %v3245 = vpop.f32.mrb[0].mxu0
        %3246 = vmatprep.mubr.f32.mxu0 0.0
        %3247 = vmatmul.mubr.f32.gmra.mrb[0].mxu0 %v3004
        %v3248 = vpop.f32.mrb[0].mxu0
        %v3249 = vadd.f32 0.0, %v3248
        %v3250 = vpop.f32.mrb[0].mxu0
        %3251 = vmatprep.mubr.f32.mxu0 0.0
        %3252 = vmatmul.mubr.f32.gmra.mrb[0].mxu0 %v3007
        %v3253 = vpop.f32.mrb[0].mxu0
        %v3254 = vadd.f32 0.0, %v3253
        %v3255 = vpop.f32.mrb[0].mxu0
        %3256 = vmatprep.mubr.f32.mxu0 0.0
        %3257 = vmatmul.mubr.f32.gmra.mrb[0].mxu0 %v3010
        %v3258 = vpop.f32.mrb[0].mxu0
        %v3259 = vadd.f32 0.0, %v3258
        %v3260 = vpop.f32.mrb[0].mxu0
        %3261 = vmatprep.mubr.f32.mxu0 0.0
        %3262 = vmatmul.mubr.f32.gmra.mrb[0].mxu0 %v3013
        %v3263 = vpop.f32.mrb[0].mxu0
        %v3264 = vadd.f32 0.0, %v3263
        %v3265 = vpop.f32.mrb[0].mxu0
        %3266 = vmatprep.mubr.f32.mxu0 0.0
        %3267 = vmatmul.mubr.f32.gmra.mrb[0].mxu0 %v3016
        %v3268 = vpop.f32.mrb[0].mxu0
        %v3269 = vadd.f32 0.0, %v3268
        %v3270 = vpop.f32.mrb[0].mxu0
        %3271 = vmatprep.mubr.f32.mxu0 0.0
        %3272 = vmatmul.mubr.f32.gmra.mrb[0].mxu0 %v3019
        %v3273 = vpop.f32.mrb[0].mxu0
        %v3274 = vadd.f32 0.0, %v3273
        %v3275 = vpop.f32.mrb[0].mxu0
        %3276 = vmatprep.mubr.f32.mxu0 0.0
        %3277 = vmatmul.mubr.f32.gmra.mrb[0].mxu0 %v3022
        %v3278 = vpop.f32.mrb[0].mxu0
        %v3279 = vadd.f32 0.0, %v3278
        %v3280 = vpop.f32.mrb[0].mxu0
        %3281 = vmatprep.mubr.f32.mxu0 0.0
        %3282 = vmatmul.mubr.f32.gmra.mrb[0].mxu0 %v3025
        %v3283 = vpop.f32.mrb[0].mxu0
        %v3284 = vadd.f32 0.0, %v3283
        %v3285 = vpop.f32.mrb[0].mxu0
        %3286 = vmatprep.mubr.f32.mxu0 0.0
        %3287 = vmatmul.mubr.f32.gmra.mrb[0].mxu0 %v3028
        %v3288 = vpop.f32.mrb[0].mxu0
        %v3289 = vadd.f32 0.0, %v3288
        %v3290 = vpop.f32.mrb[0].mxu0
        %3291 = vmatprep.mubr.f32.mxu0 0.0
        %3292 = vmatmul.mubr.f32.gmra.mrb[0].mxu0 %v3031
        %v3293 = vpop.f32.mrb[0].mxu0
        %v3294 = vadd.f32 0.0, %v3293
        %v3295 = vpop.f32.mrb[0].mxu0
        %3296 = vmatprep.mubr.f32.mxu0 0.0
        %3297 = vmatmul.mubr.f32.gmra.mrb[0].mxu0 %v3034
        %v3298 = vpop.f32.mrb[0].mxu0
        %v3299 = vadd.f32 0.0, %v3298
        %v3300 = vpop.f32.mrb[0].mxu0
        %3301 = vmatprep.mubr.f32.mxu0 0.0
        %3302 = vmatmul.mubr.f32.gmra.mrb[0].mxu0 %v3037
        %v3303 = vpop.f32.mrb[0].mxu0
        %v3304 = vadd.f32 0.0, %v3303
        %v3305 = vpop.f32.mrb[0].mxu0
        %3306 = vmatprep.mubr.f32.mxu0 0.0
        %3307 = vmatmul.mubr.f32.gmra.mrb[0].mxu0 %v3040
        %v3308 = vpop.f32.mrb[0].mxu0
        %v3309 = vadd.f32 0.0, %v3308
        %v3310 = vpop.f32.mrb[0].mxu0
        %3311 = vmatprep.mubr.f32.mxu0 0.0
        %3312 = vmatmul.mubr.f32.gmra.mrb[0].mxu0 %v3043
        %v3313 = vpop.f32.mrb[0].mxu0
        %v3314 = vadd.f32 0.0, %v3313
        %v3315 = vpop.f32.mrb[0].mxu0
        %3316 = vmatprep.mubr.f32.mxu0 0.0
        %3317 = vmatmul.mubr.f32.gmra.mrb[0].mxu0 %v3046
        %v3318 = vpop.f32.mrb[0].mxu0
        %v3319 = vadd.f32 0.0, %v3318
        %v3320 = vpop.f32.mrb[0].mxu0
        %3321 = vmatprep.mubr.f32.mxu0 0.0
        %3322 = vmatmul.mubr.f32.gmra.mrb[0].mxu0 %v3049
        %v3323 = vpop.f32.mrb[0].mxu0
        %v3324 = vadd.f32 0.0, %v3323
        %v3325 = vpop.f32.mrb[0].mxu0
        %3326 = vmatprep.mubr.f32.mxu0 0.0
        %3327 = vmatmul.mubr.f32.gmra.mrb[0].mxu0 %v3052
        %v3328 = vpop.f32.mrb[0].mxu0
        %v3329 = vadd.f32 0.0, %v3328
        %v3330 = vpop.f32.mrb[0].mxu0
        %3331 = vmatprep.mubr.f32.mxu0 0.0
        %3332 = vmatmul.mubr.f32.gmra.mrb[0].mxu0 %v3055
        %v3333 = vpop.f32.mrb[0].mxu0
        %v3334 = vadd.f32 0.0, %v3333
        %v3335 = vpop.f32.mrb[0].mxu0
        %3336 = vmatprep.mubr.f32.mxu0 0.0
        %3337 = vmatmul.mubr.f32.gmra.mrb[0].mxu0 %v3058
        %v3338 = vpop.f32.mrb[0].mxu0
        %v3339 = vadd.f32 0.0, %v3338
        %v3340 = vpop.f32.mrb[0].mxu0
        %3341 = vmatprep.mubr.f32.mxu0 0.0
        %3342 = vmatmul.mubr.f32.gmra.mrb[0].mxu0 %v3061
        %v3343 = vpop.f32.mrb[0].mxu0
        %v3344 = vadd.f32 0.0, %v3343
        %v3345 = vpop.f32.mrb[0].mxu0
        %3346 = vmatprep.mubr.f32.mxu0 0.0
        %3347 = vmatmul.mubr.f32.gmra.mrb[0].mxu0 %v3064
        %v3348 = vpop.f32.mrb[0].mxu0
        %v3349 = vadd.f32 0.0, %v3348
        %v3350 = vpop.f32.mrb[0].mxu0
        %3351 = vmatprep.mubr.f32.mxu0 0.0
        %3352 = vmatmul.mubr.f32.gmra.mrb[0].mxu0 %v3067
        %v3353 = vpop.f32.mrb[0].mxu0
        %v3354 = vadd.f32 0.0, %v3353
        %v3355 = vpop.f32.mrb[0].mxu0
        %3356 = vmatprep.mubr.f32.mxu0 0.0
        %3357 = vmatmul.mubr.f32.gmra.mrb[0].mxu0 %v3070
        %v3358 = vpop.f32.mrb[0].mxu0
        %v3359 = vadd.f32 0.0, %v3358
        %v3360 = vpop.f32.mrb[0].mxu0
        %3361 = vmatprep.mubr.f32.mxu0 0.0
        %3362 = vmatmul.mubr.f32.gmra.mrb[0].mxu0 %v3073
        %v3363 = vpop.f32.mrb[0].mxu0
        %v3364 = vadd.f32 0.0, %v3363
        %v3365 = vpop.f32.mrb[0].mxu0
        %3366 = vmatprep.mubr.f32.mxu0 0.0
        %3367 = vmatmul.mubr.f32.gmra.mrb[0].mxu0 %v3076
        %v3368 = vpop.f32.mrb[0].mxu0
        %v3369 = vadd.f32 0.0, %v3368
        %v3370 = vpop.f32.mrb[0].mxu0
        %3371 = vmatprep.mubr.f32.mxu0 0.0
        %3372 = vmatmul.mubr.f32.gmra.mrb[0].mxu0 %v3079
        %v3373 = vpop.f32.mrb[0].mxu0
        %v3374 = vadd.f32 0.0, %v3373
        %v3375 = vpop.f32.mrb[0].mxu0
        %3376 = vmatprep.mubr.f32.mxu0 0.0
        %3377 = vmatmul.mubr.f32.gmra.mrb[0].mxu0 %v3082
        %v3378 = vpop.f32.mrb[0].mxu0
        %v3379 = vadd.f32 0.0, %v3378
        %v3380 = vpop.f32.mrb[0].mxu0
        %3381 = vmatprep.mubr.f32.mxu0 0.0
        %3382 = vmatmul.mubr.f32.gmra.mrb[0].mxu0 %v3085
        %v3383 = vpop.f32.mrb[0].mxu0
        %v3384 = vadd.f32 0.0, %v3383
        %v3385 = vpop.f32.mrb[0].mxu0
        %3386 = vmatprep.mubr.f32.mxu0 0.0
        %3387 = vmatmul.mubr.f32.gmra.mrb[0].mxu0 %v3088
        %v3388 = vpop.f32.mrb[0].mxu0
        %v3389 = vadd.f32 0.0, %v3388
        %v3390 = vpop.f32.mrb[0].mxu0
        %3391 = vmatprep.mubr.f32.mxu0 0.0
        %3392 = vmatmul.mubr.f32.gmra.mrb[0].mxu0 %v3091
        %v3393 = vpop.f32.mrb[0].mxu0
        %v3394 = vadd.f32 0.0, %v3393
        %v3395 = vpop.f32.mrb[0].mxu0
        %3396 = vmatprep.mubr.f32.mxu0 0.0
        %3397 = vmatmul.mubr.f32.gmra.mrb[0].mxu0 %v3094
        %v3398 = vpop.f32.mrb[0].mxu0
        %v3399 = vadd.f32 0.0, %v3398
        %v3400 = vpop.f32.mrb[0].mxu0
        %3401 = vmatprep.mubr.f32.mxu0 0.0
        %3402 = vmatmul.mubr.f32.gmra.mrb[0].mxu0 %v3097
        %v3403 = vpop.f32.mrb[0].mxu0
        %v3404 = vadd.f32 0.0, %v3403
        %v3405 = vpop.f32.mrb[0].mxu0
        %3406 = vdwg.mxu0
        %v3407 = vadd.f32 %v2857, %v3169
        %v3408 = vadd.f32 %v2858, %v3174
        %v3409 = vadd.f32 %v2859, %v3179
        %v3410 = vadd.f32 %v2860, %v3184
        %v3411 = vadd.f32 %v2861, %v3189
        %v3412 = vadd.f32 %v2862, %v3194
        %v3413 = vadd.f32 %v2863, %v3199
        %v3414 = vadd.f32 %v2864, %v3204
        %v3415 = vadd.f32 %v2865, %v3209
        %v3416 = vadd.f32 %v2866, %v3214
        %v3417 = vadd.f32 %v2867, %v3219
        %v3418 = vadd.f32 %v2868, %v3224
        %v3419 = vadd.f32 %v2869, %v3229
        %v3420 = vadd.f32 %v2870, %v3234
        %v3421 = vadd.f32 %v2871, %v3239
        %v3422 = vadd.f32 %v2872, %v3244
        %v3423 = vadd.f32 %v2873, %v3249
        %v3424 = vadd.f32 %v2874, %v3254
        %v3425 = vadd.f32 %v2875, %v3259
        %v3426 = vadd.f32 %v2876, %v3264
        %v3427 = vadd.f32 %v2877, %v3269
        %v3428 = vadd.f32 %v2878, %v3274
        %v3429 = vadd.f32 %v2879, %v3279
        %v3430 = vadd.f32 %v2880, %v3284
        %v3431 = vadd.f32 %v2881, %v3289
        %v3432 = vadd.f32 %v2882, %v3294
        %v3433 = vadd.f32 %v2883, %v3299
        %v3434 = vadd.f32 %v2884, %v3304
        %v3435 = vadd.f32 %v2885, %v3309
        %v3436 = vadd.f32 %v2886, %v3314
        %v3437 = vadd.f32 %v2887, %v3319
        %v3438 = vadd.f32 %v2888, %v3324
        %v3439 = vadd.f32 %v2889, %v3329
        %v3440 = vadd.f32 %v2890, %v3334
        %v3441 = vadd.f32 %v2891, %v3339
        %v3442 = vadd.f32 %v2892, %v3344
        %v3443 = vadd.f32 %v2893, %v3349
        %v3444 = vadd.f32 %v2894, %v3354
        %v3445 = vadd.f32 %v2895, %v3359
        %v3446 = vadd.f32 %v2896, %v3364
        %v3447 = vadd.f32 %v2897, %v3369
        %v3448 = vadd.f32 %v2898, %v3374
        %v3449 = vadd.f32 %v2899, %v3379
        %v3450 = vadd.f32 %v2900, %v3384
        %v3451 = vadd.f32 %v2901, %v3389
        %v3452 = vadd.f32 %v2902, %v3394
        %v3453 = vadd.f32 %v2903, %v3399
        %v3454 = vadd.f32 %v2904, %v3404
        %v3455 = vld [vmem:[%s249 + $0x30] sm:$0xff]
        %v3456 = vld [vmem:[%s249 + $0x38] sm:$0xff]
        %v3457 = vld [vmem:[%s249 + $0x40] sm:$0xff]
        %v3458 = vld [vmem:[%s249 + $0x48] sm:$0xff]
        %v3459 = vld [vmem:[%s249 + $0x50] sm:$0xff]
        %v3460 = vld [vmem:[%s249 + $0x58] sm:$0xff]
        %v3461 = vld [vmem:[%s249 + $0x60] sm:$0xff]
        %v3462 = vld [vmem:[%s249 + $0x68] sm:$0xff]
        %v3463 = vld [vmem:[%s249 + $0x70] sm:$0xff]
        %v3464 = vld [vmem:[%s249 + $0x78] sm:$0xff]
        %v3465 = vld [vmem:[%s249 + $0x80] sm:$0xff]
        %v3466 = vld [vmem:[%s249 + $0x88] sm:$0xff]
        %v3467 = vld [vmem:[%s249 + $0x90] sm:$0xff]
        %v3468 = vld [vmem:[%s249 + $0x98] sm:$0xff]
        %v3469 = vld [vmem:[%s249 + $0xa0] sm:$0xff]
        %v3470 = vld [vmem:[%s249 + $0xa8] sm:$0xff]
        %v3471 = vld [vmem:[%s249 + $0xb0] sm:$0xff]
        %v3472 = vld [vmem:[%s249 + $0xb8] sm:$0xff]
        %v3473 = vld [vmem:[%s249 + $0xc0] sm:$0xff]
        %v3474 = vld [vmem:[%s249 + $0xc8] sm:$0xff]
        %v3475 = vld [vmem:[%s249 + $0xd0] sm:$0xff]
        %v3476 = vld [vmem:[%s249 + $0xd8] sm:$0xff]
        %v3477 = vld [vmem:[%s249 + $0xe0] sm:$0xff]
        %v3478 = vld [vmem:[%s249 + $0xe8] sm:$0xff]
        %v3479 = vld [vmem:[%s249 + $0xf0] sm:$0xff]
        %v3480 = vld [vmem:[%s249 + $0xf8] sm:$0xff]
        %v3481 = vld [vmem:[%s249 + $0x100] sm:$0xff]
        %v3482 = vld [vmem:[%s249 + $0x108] sm:$0xff]
        %v3483 = vld [vmem:[%s249 + $0x110] sm:$0xff]
        %v3484 = vld [vmem:[%s249 + $0x118] sm:$0xff]
        %v3485 = vld [vmem:[%s249 + $0x120] sm:$0xff]
        %v3486 = vld [vmem:[%s249 + $0x128] sm:$0xff]
        %v3487 = vld [vmem:[%s249 + $0x130] sm:$0xff]
        %v3488 = vld [vmem:[%s249 + $0x138] sm:$0xff]
        %v3489 = vld [vmem:[%s249 + $0x140] sm:$0xff]
        %v3490 = vld [vmem:[%s249 + $0x148] sm:$0xff]
        %v3491 = vld [vmem:[%s249 + $0x150] sm:$0xff]
        %v3492 = vld [vmem:[%s249 + $0x158] sm:$0xff]
        %v3493 = vld [vmem:[%s249 + $0x160] sm:$0xff]
        %v3494 = vld [vmem:[%s249 + $0x168] sm:$0xff]
        %v3495 = vld [vmem:[%s249 + $0x170] sm:$0xff]
        %v3496 = vld [vmem:[%s249 + $0x178] sm:$0xff]
        %v3497 = vld [vmem:[%s249 + $0x180] sm:$0xff]
        %v3498 = vld [vmem:[%s249 + $0x188] sm:$0xff]
        %v3499 = vld [vmem:[%s249 + $0x190] sm:$0xff]
        %v3500 = vld [vmem:[%s249 + $0x198] sm:$0xff]
        %v3501 = vld [vmem:[%s249 + $0x1a0] sm:$0xff]
        %v3502 = vld [vmem:[%s249 + $0x1a8] sm:$0xff]
        %s3503 = scalar_lea.vmem %s1, 24
        %v3504 = vld [vmem:[%s3503] sm:$0xf]
        %v3506 = vsel %vm349, %v3455, 0
        %v3509 = vsel %vm349, %v3456, 0
        %v3512 = vsel %vm349, %v3457, 0
        %v3515 = vsel %vm349, %v3458, 0
        %v3518 = vsel %vm349, %v3459, 0
        %v3521 = vsel %vm349, %v3460, 0
        %v3524 = vsel %vm349, %v3461, 0
        %v3527 = vsel %vm349, %v3462, 0
        %v3530 = vsel %vm349, %v3463, 0
        %v3533 = vsel %vm349, %v3464, 0
        %v3536 = vsel %vm349, %v3465, 0
        %v3539 = vsel %vm349, %v3466, 0
        %v3542 = vsel %vm349, %v3467, 0
        %v3545 = vsel %vm349, %v3468, 0
        %v3548 = vsel %vm349, %v3469, 0
        %v3551 = vsel %vm349, %v3470, 0
        %v3554 = vsel %vm349, %v3471, 0
        %v3557 = vsel %vm349, %v3472, 0
        %v3560 = vsel %vm349, %v3473, 0
        %v3563 = vsel %vm349, %v3474, 0
        %v3566 = vsel %vm349, %v3475, 0
        %v3569 = vsel %vm349, %v3476, 0
        %v3572 = vsel %vm349, %v3477, 0
        %v3575 = vsel %vm349, %v3478, 0
        %v3578 = vsel %vm349, %v3479, 0
        %v3581 = vsel %vm349, %v3480, 0
        %v3584 = vsel %vm349, %v3481, 0
        %v3587 = vsel %vm349, %v3482, 0
        %v3590 = vsel %vm349, %v3483, 0
        %v3593 = vsel %vm349, %v3484, 0
        %v3596 = vsel %vm349, %v3485, 0
        %v3599 = vsel %vm349, %v3486, 0
        %v3602 = vsel %vm349, %v3487, 0
        %v3605 = vsel %vm349, %v3488, 0
        %v3608 = vsel %vm349, %v3489, 0
        %v3611 = vsel %vm349, %v3490, 0
        %v3614 = vsel %vm349, %v3491, 0
        %v3617 = vsel %vm349, %v3492, 0
        %v3620 = vsel %vm349, %v3493, 0
        %v3623 = vsel %vm349, %v3494, 0
        %v3626 = vsel %vm349, %v3495, 0
        %v3629 = vsel %vm349, %v3496, 0
        %v3632 = vsel %vm349, %v3497, 0
        %v3635 = vsel %vm349, %v3498, 0
        %v3638 = vsel %vm349, %v3499, 0
        %v3641 = vsel %vm349, %v3500, 0
        %v3644 = vsel %vm349, %v3501, 0
        %v3647 = vsel %vm349, %v3502, 0
        %v3650 = vsel %vm494, %v3504, 0
        %3652 = vmatprep.subr.mxu0 0.0
        %3653 = vmatpush1.msra.mxu0 %v3650
        %3654 = vmatprep.subr.mxu0 0.0
        %3655 = vmatpush1.msra.mxu0 0.0
        %3656 = vmatprep.subr.mxu0 0.0
        %3657 = vmatpush1.msra.mxu0 0.0
        %3658 = vmatprep.subr.mxu0 0.0
        %3659 = vmatpush1.msra.mxu0 0.0
        %3660 = vmatprep.subr.mxu0 0.0
        %3661 = vmatpush1.msra.mxu0 0.0
        %3662 = vmatprep.subr.mxu0 0.0
        %3663 = vmatpush1.msra.mxu0 0.0
        %3664 = vmatprep.subr.mxu0 0.0
        %3665 = vmatpush1.msra.mxu0 0.0
        %3666 = vmatprep.subr.mxu0 0.0
        %3667 = vmatpush1.msra.mxu0 0.0
        %3668 = vmatprep.subr.mxu0 0.0
        %3669 = vmatpush1.msra.mxu0 0.0
        %3670 = vmatprep.subr.mxu0 0.0
        %3671 = vmatpush1.msra.mxu0 0.0
        %3672 = vmatprep.subr.mxu0 0.0
        %3673 = vmatpush1.msra.mxu0 0.0
        %3674 = vmatprep.subr.mxu0 0.0
        %3675 = vmatpush1.msra.mxu0 0.0
        %3676 = vmatprep.subr.mxu0 0.0
        %3677 = vmatpush1.msra.mxu0 0.0
        %3678 = vmatprep.subr.mxu0 0.0
        %3679 = vmatpush1.msra.mxu0 0.0
        %3680 = vmatprep.subr.mxu0 0.0
        %3681 = vmatpush1.msra.mxu0 0.0
        %3682 = vmatprep.subr.mxu0 0.0
        %3683 = vmatpush1.msra.mxu0 0.0
        %3684 = vmatprep.subr.mxu0 0.0
        %3685 = vmatpush1.msra.mxu0 0.0
        %3686 = vmatprep.subr.mxu0 0.0
        %3687 = vmatpush1.msra.mxu0 0.0
        %3688 = vmatprep.subr.mxu0 0.0
        %3689 = vmatpush1.msra.mxu0 0.0
        %3690 = vmatprep.subr.mxu0 0.0
        %3691 = vmatpush1.msra.mxu0 0.0
        %3692 = vmatprep.subr.mxu0 0.0
        %3693 = vmatpush1.msra.mxu0 0.0
        %3694 = vmatprep.subr.mxu0 0.0
        %3695 = vmatpush1.msra.mxu0 0.0
        %3696 = vmatprep.subr.mxu0 0.0
        %3697 = vmatpush1.msra.mxu0 0.0
        %3698 = vmatprep.subr.mxu0 0.0
        %3699 = vmatpush1.msra.mxu0 0.0
        %3700 = vmatprep.subr.mxu0 0.0
        %3701 = vmatpush1.msra.mxu0 0.0
        %3702 = vmatprep.subr.mxu0 0.0
        %3703 = vmatpush1.msra.mxu0 0.0
        %3704 = vmatprep.subr.mxu0 0.0
        %3705 = vmatpush1.msra.mxu0 0.0
        %3706 = vmatprep.subr.mxu0 0.0
        %3707 = vmatpush1.msra.mxu0 0.0
        %3708 = vmatprep.subr.mxu0 0.0
        %3709 = vmatpush1.msra.mxu0 0.0
        %3710 = vmatprep.subr.mxu0 0.0
        %3711 = vmatpush1.msra.mxu0 0.0
        %3712 = vmatprep.subr.mxu0 0.0
        %3713 = vmatpush1.msra.mxu0 0.0
        %3714 = vmatprep.subr.mxu0 0.0
        %3715 = vmatpush1.msra.mxu0 0.0
        %3716 = vmatprep.mubr.f32.mxu0 0.0
        %3717 = vmatmul.mubr.f32.gmra.mrb[0].mxu0 %v3506
        %v3718 = vpop.f32.mrb[0].mxu0
        %v3719 = vadd.f32 0.0, %v3718
        %v3720 = vpop.f32.mrb[0].mxu0
        %3721 = vmatprep.mubr.f32.mxu0 0.0
        %3722 = vmatmul.mubr.f32.gmra.mrb[0].mxu0 %v3509
        %v3723 = vpop.f32.mrb[0].mxu0
        %v3724 = vadd.f32 0.0, %v3723
        %v3725 = vpop.f32.mrb[0].mxu0
        %3726 = vmatprep.mubr.f32.mxu0 0.0
        %3727 = vmatmul.mubr.f32.gmra.mrb[0].mxu0 %v3512
        %v3728 = vpop.f32.mrb[0].mxu0
        %v3729 = vadd.f32 0.0, %v3728
        %v3730 = vpop.f32.mrb[0].mxu0
        %3731 = vmatprep.mubr.f32.mxu0 0.0
        %3732 = vmatmul.mubr.f32.gmra.mrb[0].mxu0 %v3515
        %v3733 = vpop.f32.mrb[0].mxu0
        %v3734 = vadd.f32 0.0, %v3733
        %v3735 = vpop.f32.mrb[0].mxu0
        %3736 = vmatprep.mubr.f32.mxu0 0.0
        %3737 = vmatmul.mubr.f32.gmra.mrb[0].mxu0 %v3518
        %v3738 = vpop.f32.mrb[0].mxu0
        %v3739 = vadd.f32 0.0, %v3738
        %v3740 = vpop.f32.mrb[0].mxu0
        %3741 = vmatprep.mubr.f32.mxu0 0.0
        %3742 = vmatmul.mubr.f32.gmra.mrb[0].mxu0 %v3521
        %v3743 = vpop.f32.mrb[0].mxu0
        %v3744 = vadd.f32 0.0, %v3743
        %v3745 = vpop.f32.mrb[0].mxu0
        %3746 = vmatprep.mubr.f32.mxu0 0.0
        %3747 = vmatmul.mubr.f32.gmra.mrb[0].mxu0 %v3524
        %v3748 = vpop.f32.mrb[0].mxu0
        %v3749 = vadd.f32 0.0, %v3748
        %v3750 = vpop.f32.mrb[0].mxu0
        %3751 = vmatprep.mubr.f32.mxu0 0.0
        %3752 = vmatmul.mubr.f32.gmra.mrb[0].mxu0 %v3527
        %v3753 = vpop.f32.mrb[0].mxu0
        %v3754 = vadd.f32 0.0, %v3753
        %v3755 = vpop.f32.mrb[0].mxu0
        %3756 = vmatprep.mubr.f32.mxu0 0.0
        %3757 = vmatmul.mubr.f32.gmra.mrb[0].mxu0 %v3530
        %v3758 = vpop.f32.mrb[0].mxu0
        %v3759 = vadd.f32 0.0, %v3758
        %v3760 = vpop.f32.mrb[0].mxu0
        %3761 = vmatprep.mubr.f32.mxu0 0.0
        %3762 = vmatmul.mubr.f32.gmra.mrb[0].mxu0 %v3533
        %v3763 = vpop.f32.mrb[0].mxu0
        %v3764 = vadd.f32 0.0, %v3763
        %v3765 = vpop.f32.mrb[0].mxu0
        %3766 = vmatprep.mubr.f32.mxu0 0.0
        %3767 = vmatmul.mubr.f32.gmra.mrb[0].mxu0 %v3536
        %v3768 = vpop.f32.mrb[0].mxu0
        %v3769 = vadd.f32 0.0, %v3768
        %v3770 = vpop.f32.mrb[0].mxu0
        %3771 = vmatprep.mubr.f32.mxu0 0.0
        %3772 = vmatmul.mubr.f32.gmra.mrb[0].mxu0 %v3539
        %v3773 = vpop.f32.mrb[0].mxu0
        %v3774 = vadd.f32 0.0, %v3773
        %v3775 = vpop.f32.mrb[0].mxu0
        %3776 = vmatprep.mubr.f32.mxu0 0.0
        %3777 = vmatmul.mubr.f32.gmra.mrb[0].mxu0 %v3542
        %v3778 = vpop.f32.mrb[0].mxu0
        %v3779 = vadd.f32 0.0, %v3778
        %v3780 = vpop.f32.mrb[0].mxu0
        %3781 = vmatprep.mubr.f32.mxu0 0.0
        %3782 = vmatmul.mubr.f32.gmra.mrb[0].mxu0 %v3545
        %v3783 = vpop.f32.mrb[0].mxu0
        %v3784 = vadd.f32 0.0, %v3783
        %v3785 = vpop.f32.mrb[0].mxu0
        %3786 = vmatprep.mubr.f32.mxu0 0.0
        %3787 = vmatmul.mubr.f32.gmra.mrb[0].mxu0 %v3548
        %v3788 = vpop.f32.mrb[0].mxu0
        %v3789 = vadd.f32 0.0, %v3788
        %v3790 = vpop.f32.mrb[0].mxu0
        %3791 = vmatprep.mubr.f32.mxu0 0.0
        %3792 = vmatmul.mubr.f32.gmra.mrb[0].mxu0 %v3551
        %v3793 = vpop.f32.mrb[0].mxu0
        %v3794 = vadd.f32 0.0, %v3793
        %v3795 = vpop.f32.mrb[0].mxu0
        %3796 = vmatprep.mubr.f32.mxu0 0.0
        %3797 = vmatmul.mubr.f32.gmra.mrb[0].mxu0 %v3554
        %v3798 = vpop.f32.mrb[0].mxu0
        %v3799 = vadd.f32 0.0, %v3798
        %v3800 = vpop.f32.mrb[0].mxu0
        %3801 = vmatprep.mubr.f32.mxu0 0.0
        %3802 = vmatmul.mubr.f32.gmra.mrb[0].mxu0 %v3557
        %v3803 = vpop.f32.mrb[0].mxu0
        %v3804 = vadd.f32 0.0, %v3803
        %v3805 = vpop.f32.mrb[0].mxu0
        %3806 = vmatprep.mubr.f32.mxu0 0.0
        %3807 = vmatmul.mubr.f32.gmra.mrb[0].mxu0 %v3560
        %v3808 = vpop.f32.mrb[0].mxu0
        %v3809 = vadd.f32 0.0, %v3808
        %v3810 = vpop.f32.mrb[0].mxu0
        %3811 = vmatprep.mubr.f32.mxu0 0.0
        %3812 = vmatmul.mubr.f32.gmra.mrb[0].mxu0 %v3563
        %v3813 = vpop.f32.mrb[0].mxu0
        %v3814 = vadd.f32 0.0, %v3813
        %v3815 = vpop.f32.mrb[0].mxu0
        %3816 = vmatprep.mubr.f32.mxu0 0.0
        %3817 = vmatmul.mubr.f32.gmra.mrb[0].mxu0 %v3566
        %v3818 = vpop.f32.mrb[0].mxu0
        %v3819 = vadd.f32 0.0, %v3818
        %v3820 = vpop.f32.mrb[0].mxu0
        %3821 = vmatprep.mubr.f32.mxu0 0.0
        %3822 = vmatmul.mubr.f32.gmra.mrb[0].mxu0 %v3569
        %v3823 = vpop.f32.mrb[0].mxu0
        %v3824 = vadd.f32 0.0, %v3823
        %v3825 = vpop.f32.mrb[0].mxu0
        %3826 = vmatprep.mubr.f32.mxu0 0.0
        %3827 = vmatmul.mubr.f32.gmra.mrb[0].mxu0 %v3572
        %v3828 = vpop.f32.mrb[0].mxu0
        %v3829 = vadd.f32 0.0, %v3828
        %v3830 = vpop.f32.mrb[0].mxu0
        %3831 = vmatprep.mubr.f32.mxu0 0.0
        %3832 = vmatmul.mubr.f32.gmra.mrb[0].mxu0 %v3575
        %v3833 = vpop.f32.mrb[0].mxu0
        %v3834 = vadd.f32 0.0, %v3833
        %v3835 = vpop.f32.mrb[0].mxu0
        %3836 = vmatprep.mubr.f32.mxu0 0.0
        %3837 = vmatmul.mubr.f32.gmra.mrb[0].mxu0 %v3578
        %v3838 = vpop.f32.mrb[0].mxu0
        %v3839 = vadd.f32 0.0, %v3838
        %v3840 = vpop.f32.mrb[0].mxu0
        %3841 = vmatprep.mubr.f32.mxu0 0.0
        %3842 = vmatmul.mubr.f32.gmra.mrb[0].mxu0 %v3581
        %v3843 = vpop.f32.mrb[0].mxu0
        %v3844 = vadd.f32 0.0, %v3843
        %v3845 = vpop.f32.mrb[0].mxu0
        %3846 = vmatprep.mubr.f32.mxu0 0.0
        %3847 = vmatmul.mubr.f32.gmra.mrb[0].mxu0 %v3584
        %v3848 = vpop.f32.mrb[0].mxu0
        %v3849 = vadd.f32 0.0, %v3848
        %v3850 = vpop.f32.mrb[0].mxu0
        %3851 = vmatprep.mubr.f32.mxu0 0.0
        %3852 = vmatmul.mubr.f32.gmra.mrb[0].mxu0 %v3587
        %v3853 = vpop.f32.mrb[0].mxu0
        %v3854 = vadd.f32 0.0, %v3853
        %v3855 = vpop.f32.mrb[0].mxu0
        %3856 = vmatprep.mubr.f32.mxu0 0.0
        %3857 = vmatmul.mubr.f32.gmra.mrb[0].mxu0 %v3590
        %v3858 = vpop.f32.mrb[0].mxu0
        %v3859 = vadd.f32 0.0, %v3858
        %v3860 = vpop.f32.mrb[0].mxu0
        %3861 = vmatprep.mubr.f32.mxu0 0.0
        %3862 = vmatmul.mubr.f32.gmra.mrb[0].mxu0 %v3593
        %v3863 = vpop.f32.mrb[0].mxu0
        %v3864 = vadd.f32 0.0, %v3863
        %v3865 = vpop.f32.mrb[0].mxu0
        %3866 = vmatprep.mubr.f32.mxu0 0.0
        %3867 = vmatmul.mubr.f32.gmra.mrb[0].mxu0 %v3596
        %v3868 = vpop.f32.mrb[0].mxu0
        %v3869 = vadd.f32 0.0, %v3868
        %v3870 = vpop.f32.mrb[0].mxu0
        %3871 = vmatprep.mubr.f32.mxu0 0.0
        %3872 = vmatmul.mubr.f32.gmra.mrb[0].mxu0 %v3599
        %v3873 = vpop.f32.mrb[0].mxu0
        %v3874 = vadd.f32 0.0, %v3873
        %v3875 = vpop.f32.mrb[0].mxu0
        %3876 = vmatprep.mubr.f32.mxu0 0.0
        %3877 = vmatmul.mubr.f32.gmra.mrb[0].mxu0 %v3602
        %v3878 = vpop.f32.mrb[0].mxu0
        %v3879 = vadd.f32 0.0, %v3878
        %v3880 = vpop.f32.mrb[0].mxu0
        %3881 = vmatprep.mubr.f32.mxu0 0.0
        %3882 = vmatmul.mubr.f32.gmra.mrb[0].mxu0 %v3605
        %v3883 = vpop.f32.mrb[0].mxu0
        %v3884 = vadd.f32 0.0, %v3883
        %v3885 = vpop.f32.mrb[0].mxu0
        %3886 = vmatprep.mubr.f32.mxu0 0.0
        %3887 = vmatmul.mubr.f32.gmra.mrb[0].mxu0 %v3608
        %v3888 = vpop.f32.mrb[0].mxu0
        %v3889 = vadd.f32 0.0, %v3888
        %v3890 = vpop.f32.mrb[0].mxu0
        %3891 = vmatprep.mubr.f32.mxu0 0.0
        %3892 = vmatmul.mubr.f32.gmra.mrb[0].mxu0 %v3611
        %v3893 = vpop.f32.mrb[0].mxu0
        %v3894 = vadd.f32 0.0, %v3893
        %v3895 = vpop.f32.mrb[0].mxu0
        %3896 = vmatprep.mubr.f32.mxu0 0.0
        %3897 = vmatmul.mubr.f32.gmra.mrb[0].mxu0 %v3614
        %v3898 = vpop.f32.mrb[0].mxu0
        %v3899 = vadd.f32 0.0, %v3898
        %v3900 = vpop.f32.mrb[0].mxu0
        %3901 = vmatprep.mubr.f32.mxu0 0.0
        %3902 = vmatmul.mubr.f32.gmra.mrb[0].mxu0 %v3617
        %v3903 = vpop.f32.mrb[0].mxu0
        %v3904 = vadd.f32 0.0, %v3903
        %v3905 = vpop.f32.mrb[0].mxu0
        %3906 = vmatprep.mubr.f32.mxu0 0.0
        %3907 = vmatmul.mubr.f32.gmra.mrb[0].mxu0 %v3620
        %v3908 = vpop.f32.mrb[0].mxu0
        %v3909 = vadd.f32 0.0, %v3908
        %v3910 = vpop.f32.mrb[0].mxu0
        %3911 = vmatprep.mubr.f32.mxu0 0.0
        %3912 = vmatmul.mubr.f32.gmra.mrb[0].mxu0 %v3623
        %v3913 = vpop.f32.mrb[0].mxu0
        %v3914 = vadd.f32 0.0, %v3913
        %v3915 = vpop.f32.mrb[0].mxu0
        %3916 = vmatprep.mubr.f32.mxu0 0.0
        %3917 = vmatmul.mubr.f32.gmra.mrb[0].mxu0 %v3626
        %v3918 = vpop.f32.mrb[0].mxu0
        %v3919 = vadd.f32 0.0, %v3918
        %v3920 = vpop.f32.mrb[0].mxu0
        %3921 = vmatprep.mubr.f32.mxu0 0.0
        %3922 = vmatmul.mubr.f32.gmra.mrb[0].mxu0 %v3629
        %v3923 = vpop.f32.mrb[0].mxu0
        %v3924 = vadd.f32 0.0, %v3923
        %v3925 = vpop.f32.mrb[0].mxu0
        %3926 = vmatprep.mubr.f32.mxu0 0.0
        %3927 = vmatmul.mubr.f32.gmra.mrb[0].mxu0 %v3632
        %v3928 = vpop.f32.mrb[0].mxu0
        %v3929 = vadd.f32 0.0, %v3928
        %v3930 = vpop.f32.mrb[0].mxu0
        %3931 = vmatprep.mubr.f32.mxu0 0.0
        %3932 = vmatmul.mubr.f32.gmra.mrb[0].mxu0 %v3635
        %v3933 = vpop.f32.mrb[0].mxu0
        %v3934 = vadd.f32 0.0, %v3933
        %v3935 = vpop.f32.mrb[0].mxu0
        %3936 = vmatprep.mubr.f32.mxu0 0.0
        %3937 = vmatmul.mubr.f32.gmra.mrb[0].mxu0 %v3638
        %v3938 = vpop.f32.mrb[0].mxu0
        %v3939 = vadd.f32 0.0, %v3938
        %v3940 = vpop.f32.mrb[0].mxu0
        %3941 = vmatprep.mubr.f32.mxu0 0.0
        %3942 = vmatmul.mubr.f32.gmra.mrb[0].mxu0 %v3641
        %v3943 = vpop.f32.mrb[0].mxu0
        %v3944 = vadd.f32 0.0, %v3943
        %v3945 = vpop.f32.mrb[0].mxu0
        %3946 = vmatprep.mubr.f32.mxu0 0.0
        %3947 = vmatmul.mubr.f32.gmra.mrb[0].mxu0 %v3644
        %v3948 = vpop.f32.mrb[0].mxu0
        %v3949 = vadd.f32 0.0, %v3948
        %v3950 = vpop.f32.mrb[0].mxu0
        %3951 = vmatprep.mubr.f32.mxu0 0.0
        %3952 = vmatmul.mubr.f32.gmra.mrb[0].mxu0 %v3647
        %v3953 = vpop.f32.mrb[0].mxu0
        %v3954 = vadd.f32 0.0, %v3953
        %v3955 = vpop.f32.mrb[0].mxu0
        %3956 = vdwg.mxu0
        %v3957 = vadd.f32 %v3407, %v3719
        %v3958 = vadd.f32 %v3408, %v3724
        %v3959 = vadd.f32 %v3409, %v3729
        %v3960 = vadd.f32 %v3410, %v3734
        %v3961 = vadd.f32 %v3411, %v3739
        %v3962 = vadd.f32 %v3412, %v3744
        %v3963 = vadd.f32 %v3413, %v3749
        %v3964 = vadd.f32 %v3414, %v3754
        %v3965 = vadd.f32 %v3415, %v3759
        %v3966 = vadd.f32 %v3416, %v3764
        %v3967 = vadd.f32 %v3417, %v3769
        %v3968 = vadd.f32 %v3418, %v3774
        %v3969 = vadd.f32 %v3419, %v3779
        %v3970 = vadd.f32 %v3420, %v3784
        %v3971 = vadd.f32 %v3421, %v3789
        %v3972 = vadd.f32 %v3422, %v3794
        %v3973 = vadd.f32 %v3423, %v3799
        %v3974 = vadd.f32 %v3424, %v3804
        %v3975 = vadd.f32 %v3425, %v3809
        %v3976 = vadd.f32 %v3426, %v3814
        %v3977 = vadd.f32 %v3427, %v3819
        %v3978 = vadd.f32 %v3428, %v3824
        %v3979 = vadd.f32 %v3429, %v3829
        %v3980 = vadd.f32 %v3430, %v3834
        %v3981 = vadd.f32 %v3431, %v3839
        %v3982 = vadd.f32 %v3432, %v3844
        %v3983 = vadd.f32 %v3433, %v3849
        %v3984 = vadd.f32 %v3434, %v3854
        %v3985 = vadd.f32 %v3435, %v3859
        %v3986 = vadd.f32 %v3436, %v3864
        %v3987 = vadd.f32 %v3437, %v3869
        %v3988 = vadd.f32 %v3438, %v3874
        %v3989 = vadd.f32 %v3439, %v3879
        %v3990 = vadd.f32 %v3440, %v3884
        %v3991 = vadd.f32 %v3441, %v3889
        %v3992 = vadd.f32 %v3442, %v3894
        %v3993 = vadd.f32 %v3443, %v3899
        %v3994 = vadd.f32 %v3444, %v3904
        %v3995 = vadd.f32 %v3445, %v3909
        %v3996 = vadd.f32 %v3446, %v3914
        %v3997 = vadd.f32 %v3447, %v3919
        %v3998 = vadd.f32 %v3448, %v3924
        %v3999 = vadd.f32 %v3449, %v3929
        %v4000 = vadd.f32 %v3450, %v3934
        %v4001 = vadd.f32 %v3451, %v3939
        %v4002 = vadd.f32 %v3452, %v3944
        %v4003 = vadd.f32 %v3453, %v3949
        %v4004 = vadd.f32 %v3454, %v3954
        %v4005 = vld [vmem:[%s249 + $0x31] sm:$0xff]
        %v4006 = vld [vmem:[%s249 + $0x39] sm:$0xff]
        %v4007 = vld [vmem:[%s249 + $0x41] sm:$0xff]
        %v4008 = vld [vmem:[%s249 + $0x49] sm:$0xff]
        %v4009 = vld [vmem:[%s249 + $0x51] sm:$0xff]
        %v4010 = vld [vmem:[%s249 + $0x59] sm:$0xff]
        %v4011 = vld [vmem:[%s249 + $0x61] sm:$0xff]
        %v4012 = vld [vmem:[%s249 + $0x69] sm:$0xff]
        %v4013 = vld [vmem:[%s249 + $0x71] sm:$0xff]
        %v4014 = vld [vmem:[%s249 + $0x79] sm:$0xff]
        %v4015 = vld [vmem:[%s249 + $0x81] sm:$0xff]
        %v4016 = vld [vmem:[%s249 + $0x89] sm:$0xff]
        %v4017 = vld [vmem:[%s249 + $0x91] sm:$0xff]
        %v4018 = vld [vmem:[%s249 + $0x99] sm:$0xff]
        %v4019 = vld [vmem:[%s249 + $0xa1] sm:$0xff]
        %v4020 = vld [vmem:[%s249 + $0xa9] sm:$0xff]
        %v4021 = vld [vmem:[%s249 + $0xb1] sm:$0xff]
        %v4022 = vld [vmem:[%s249 + $0xb9] sm:$0xff]
        %v4023 = vld [vmem:[%s249 + $0xc1] sm:$0xff]
        %v4024 = vld [vmem:[%s249 + $0xc9] sm:$0xff]
        %v4025 = vld [vmem:[%s249 + $0xd1] sm:$0xff]
        %v4026 = vld [vmem:[%s249 + $0xd9] sm:$0xff]
        %v4027 = vld [vmem:[%s249 + $0xe1] sm:$0xff]
        %v4028 = vld [vmem:[%s249 + $0xe9] sm:$0xff]
        %v4029 = vld [vmem:[%s249 + $0xf1] sm:$0xff]
        %v4030 = vld [vmem:[%s249 + $0xf9] sm:$0xff]
        %v4031 = vld [vmem:[%s249 + $0x101] sm:$0xff]
        %v4032 = vld [vmem:[%s249 + $0x109] sm:$0xff]
        %v4033 = vld [vmem:[%s249 + $0x111] sm:$0xff]
        %v4034 = vld [vmem:[%s249 + $0x119] sm:$0xff]
        %v4035 = vld [vmem:[%s249 + $0x121] sm:$0xff]
        %v4036 = vld [vmem:[%s249 + $0x129] sm:$0xff]
        %v4037 = vld [vmem:[%s249 + $0x131] sm:$0xff]
        %v4038 = vld [vmem:[%s249 + $0x139] sm:$0xff]
        %v4039 = vld [vmem:[%s249 + $0x141] sm:$0xff]
        %v4040 = vld [vmem:[%s249 + $0x149] sm:$0xff]
        %v4041 = vld [vmem:[%s249 + $0x151] sm:$0xff]
        %v4042 = vld [vmem:[%s249 + $0x159] sm:$0xff]
        %v4043 = vld [vmem:[%s249 + $0x161] sm:$0xff]
        %v4044 = vld [vmem:[%s249 + $0x169] sm:$0xff]
        %v4045 = vld [vmem:[%s249 + $0x171] sm:$0xff]
        %v4046 = vld [vmem:[%s249 + $0x179] sm:$0xff]
        %v4047 = vld [vmem:[%s249 + $0x181] sm:$0xff]
        %v4048 = vld [vmem:[%s249 + $0x189] sm:$0xff]
        %v4049 = vld [vmem:[%s249 + $0x191] sm:$0xff]
        %v4050 = vld [vmem:[%s249 + $0x199] sm:$0xff]
        %v4051 = vld [vmem:[%s249 + $0x1a1] sm:$0xff]
        %v4052 = vld [vmem:[%s249 + $0x1a9] sm:$0xff]
        %s4053 = scalar_lea.vmem %s1, 28
        %v4054 = vld [vmem:[%s4053] sm:$0xf]
        %v4056 = vsel %vm349, %v4005, 0
        %v4059 = vsel %vm349, %v4006, 0
        %v4062 = vsel %vm349, %v4007, 0
        %v4065 = vsel %vm349, %v4008, 0
        %v4068 = vsel %vm349, %v4009, 0
        %v4071 = vsel %vm349, %v4010, 0
        %v4074 = vsel %vm349, %v4011, 0
        %v4077 = vsel %vm349, %v4012, 0
        %v4080 = vsel %vm349, %v4013, 0
        %v4083 = vsel %vm349, %v4014, 0
        %v4086 = vsel %vm349, %v4015, 0
        %v4089 = vsel %vm349, %v4016, 0
        %v4092 = vsel %vm349, %v4017, 0
        %v4095 = vsel %vm349, %v4018, 0
        %v4098 = vsel %vm349, %v4019, 0
        %v4101 = vsel %vm349, %v4020, 0
        %v4104 = vsel %vm349, %v4021, 0
        %v4107 = vsel %vm349, %v4022, 0
        %v4110 = vsel %vm349, %v4023, 0
        %v4113 = vsel %vm349, %v4024, 0
        %v4116 = vsel %vm349, %v4025, 0
        %v4119 = vsel %vm349, %v4026, 0
        %v4122 = vsel %vm349, %v4027, 0
        %v4125 = vsel %vm349, %v4028, 0
        %v4128 = vsel %vm349, %v4029, 0
        %v4131 = vsel %vm349, %v4030, 0
        %v4134 = vsel %vm349, %v4031, 0
        %v4137 = vsel %vm349, %v4032, 0
        %v4140 = vsel %vm349, %v4033, 0
        %v4143 = vsel %vm349, %v4034, 0
        %v4146 = vsel %vm349, %v4035, 0
        %v4149 = vsel %vm349, %v4036, 0
        %v4152 = vsel %vm349, %v4037, 0
        %v4155 = vsel %vm349, %v4038, 0
        %v4158 = vsel %vm349, %v4039, 0
        %v4161 = vsel %vm349, %v4040, 0
        %v4164 = vsel %vm349, %v4041, 0
        %v4167 = vsel %vm349, %v4042, 0
        %v4170 = vsel %vm349, %v4043, 0
        %v4173 = vsel %vm349, %v4044, 0
        %v4176 = vsel %vm349, %v4045, 0
        %v4179 = vsel %vm349, %v4046, 0
        %v4182 = vsel %vm349, %v4047, 0
        %v4185 = vsel %vm349, %v4048, 0
        %v4188 = vsel %vm349, %v4049, 0
        %v4191 = vsel %vm349, %v4050, 0
        %v4194 = vsel %vm349, %v4051, 0
        %v4197 = vsel %vm349, %v4052, 0
        %v4200 = vsel %vm494, %v4054, 0
        %4202 = vmatprep.subr.mxu0 0.0
        %4203 = vmatpush1.msra.mxu0 %v4200
        %4204 = vmatprep.subr.mxu0 0.0
        %4205 = vmatpush1.msra.mxu0 0.0
        %4206 = vmatprep.subr.mxu0 0.0
        %4207 = vmatpush1.msra.mxu0 0.0
        %4208 = vmatprep.subr.mxu0 0.0
        %4209 = vmatpush1.msra.mxu0 0.0
        %4210 = vmatprep.subr.mxu0 0.0
        %4211 = vmatpush1.msra.mxu0 0.0
        %4212 = vmatprep.subr.mxu0 0.0
        %4213 = vmatpush1.msra.mxu0 0.0
        %4214 = vmatprep.subr.mxu0 0.0
        %4215 = vmatpush1.msra.mxu0 0.0
        %4216 = vmatprep.subr.mxu0 0.0
        %4217 = vmatpush1.msra.mxu0 0.0
        %4218 = vmatprep.subr.mxu0 0.0
        %4219 = vmatpush1.msra.mxu0 0.0
        %4220 = vmatprep.subr.mxu0 0.0
        %4221 = vmatpush1.msra.mxu0 0.0
        %4222 = vmatprep.subr.mxu0 0.0
        %4223 = vmatpush1.msra.mxu0 0.0
        %4224 = vmatprep.subr.mxu0 0.0
        %4225 = vmatpush1.msra.mxu0 0.0
        %4226 = vmatprep.subr.mxu0 0.0
        %4227 = vmatpush1.msra.mxu0 0.0
        %4228 = vmatprep.subr.mxu0 0.0
        %4229 = vmatpush1.msra.mxu0 0.0
        %4230 = vmatprep.subr.mxu0 0.0
        %4231 = vmatpush1.msra.mxu0 0.0
        %4232 = vmatprep.subr.mxu0 0.0
        %4233 = vmatpush1.msra.mxu0 0.0
        %4234 = vmatprep.subr.mxu0 0.0
        %4235 = vmatpush1.msra.mxu0 0.0
        %4236 = vmatprep.subr.mxu0 0.0
        %4237 = vmatpush1.msra.mxu0 0.0
        %4238 = vmatprep.subr.mxu0 0.0
        %4239 = vmatpush1.msra.mxu0 0.0
        %4240 = vmatprep.subr.mxu0 0.0
        %4241 = vmatpush1.msra.mxu0 0.0
        %4242 = vmatprep.subr.mxu0 0.0
        %4243 = vmatpush1.msra.mxu0 0.0
        %4244 = vmatprep.subr.mxu0 0.0
        %4245 = vmatpush1.msra.mxu0 0.0
        %4246 = vmatprep.subr.mxu0 0.0
        %4247 = vmatpush1.msra.mxu0 0.0
        %4248 = vmatprep.subr.mxu0 0.0
        %4249 = vmatpush1.msra.mxu0 0.0
        %4250 = vmatprep.subr.mxu0 0.0
        %4251 = vmatpush1.msra.mxu0 0.0
        %4252 = vmatprep.subr.mxu0 0.0
        %4253 = vmatpush1.msra.mxu0 0.0
        %4254 = vmatprep.subr.mxu0 0.0
        %4255 = vmatpush1.msra.mxu0 0.0
        %4256 = vmatprep.subr.mxu0 0.0
        %4257 = vmatpush1.msra.mxu0 0.0
        %4258 = vmatprep.subr.mxu0 0.0
        %4259 = vmatpush1.msra.mxu0 0.0
        %4260 = vmatprep.subr.mxu0 0.0
        %4261 = vmatpush1.msra.mxu0 0.0
        %4262 = vmatprep.subr.mxu0 0.0
        %4263 = vmatpush1.msra.mxu0 0.0
        %4264 = vmatprep.subr.mxu0 0.0
        %4265 = vmatpush1.msra.mxu0 0.0
        %4266 = vmatprep.mubr.f32.mxu0 0.0
        %4267 = vmatmul.mubr.f32.gmra.mrb[0].mxu0 %v4056
        %v4268 = vpop.f32.mrb[0].mxu0
        %v4269 = vadd.f32 0.0, %v4268
        %v4270 = vpop.f32.mrb[0].mxu0
        %4271 = vmatprep.mubr.f32.mxu0 0.0
        %4272 = vmatmul.mubr.f32.gmra.mrb[0].mxu0 %v4059
        %v4273 = vpop.f32.mrb[0].mxu0
        %v4274 = vadd.f32 0.0, %v4273
        %v4275 = vpop.f32.mrb[0].mxu0
        %4276 = vmatprep.mubr.f32.mxu0 0.0
        %4277 = vmatmul.mubr.f32.gmra.mrb[0].mxu0 %v4062
        %v4278 = vpop.f32.mrb[0].mxu0
        %v4279 = vadd.f32 0.0, %v4278
        %v4280 = vpop.f32.mrb[0].mxu0
        %4281 = vmatprep.mubr.f32.mxu0 0.0
        %4282 = vmatmul.mubr.f32.gmra.mrb[0].mxu0 %v4065
        %v4283 = vpop.f32.mrb[0].mxu0
        %v4284 = vadd.f32 0.0, %v4283
        %v4285 = vpop.f32.mrb[0].mxu0
        %4286 = vmatprep.mubr.f32.mxu0 0.0
        %4287 = vmatmul.mubr.f32.gmra.mrb[0].mxu0 %v4068
        %v4288 = vpop.f32.mrb[0].mxu0
        %v4289 = vadd.f32 0.0, %v4288
        %v4290 = vpop.f32.mrb[0].mxu0
        %4291 = vmatprep.mubr.f32.mxu0 0.0
        %4292 = vmatmul.mubr.f32.gmra.mrb[0].mxu0 %v4071
        %v4293 = vpop.f32.mrb[0].mxu0
        %v4294 = vadd.f32 0.0, %v4293
        %v4295 = vpop.f32.mrb[0].mxu0
        %4296 = vmatprep.mubr.f32.mxu0 0.0
        %4297 = vmatmul.mubr.f32.gmra.mrb[0].mxu0 %v4074
        %v4298 = vpop.f32.mrb[0].mxu0
        %v4299 = vadd.f32 0.0, %v4298
        %v4300 = vpop.f32.mrb[0].mxu0
        %4301 = vmatprep.mubr.f32.mxu0 0.0
        %4302 = vmatmul.mubr.f32.gmra.mrb[0].mxu0 %v4077
        %v4303 = vpop.f32.mrb[0].mxu0
        %v4304 = vadd.f32 0.0, %v4303
        %v4305 = vpop.f32.mrb[0].mxu0
        %4306 = vmatprep.mubr.f32.mxu0 0.0
        %4307 = vmatmul.mubr.f32.gmra.mrb[0].mxu0 %v4080
        %v4308 = vpop.f32.mrb[0].mxu0
        %v4309 = vadd.f32 0.0, %v4308
        %v4310 = vpop.f32.mrb[0].mxu0
        %4311 = vmatprep.mubr.f32.mxu0 0.0
        %4312 = vmatmul.mubr.f32.gmra.mrb[0].mxu0 %v4083
        %v4313 = vpop.f32.mrb[0].mxu0
        %v4314 = vadd.f32 0.0, %v4313
        %v4315 = vpop.f32.mrb[0].mxu0
        %4316 = vmatprep.mubr.f32.mxu0 0.0
        %4317 = vmatmul.mubr.f32.gmra.mrb[0].mxu0 %v4086
        %v4318 = vpop.f32.mrb[0].mxu0
        %v4319 = vadd.f32 0.0, %v4318
        %v4320 = vpop.f32.mrb[0].mxu0
        %4321 = vmatprep.mubr.f32.mxu0 0.0
        %4322 = vmatmul.mubr.f32.gmra.mrb[0].mxu0 %v4089
        %v4323 = vpop.f32.mrb[0].mxu0
        %v4324 = vadd.f32 0.0, %v4323
        %v4325 = vpop.f32.mrb[0].mxu0
        %4326 = vmatprep.mubr.f32.mxu0 0.0
        %4327 = vmatmul.mubr.f32.gmra.mrb[0].mxu0 %v4092
        %v4328 = vpop.f32.mrb[0].mxu0
        %v4329 = vadd.f32 0.0, %v4328
        %v4330 = vpop.f32.mrb[0].mxu0
        %4331 = vmatprep.mubr.f32.mxu0 0.0
        %4332 = vmatmul.mubr.f32.gmra.mrb[0].mxu0 %v4095
        %v4333 = vpop.f32.mrb[0].mxu0
        %v4334 = vadd.f32 0.0, %v4333
        %v4335 = vpop.f32.mrb[0].mxu0
        %4336 = vmatprep.mubr.f32.mxu0 0.0
        %4337 = vmatmul.mubr.f32.gmra.mrb[0].mxu0 %v4098
        %v4338 = vpop.f32.mrb[0].mxu0
        %v4339 = vadd.f32 0.0, %v4338
        %v4340 = vpop.f32.mrb[0].mxu0
        %4341 = vmatprep.mubr.f32.mxu0 0.0
        %4342 = vmatmul.mubr.f32.gmra.mrb[0].mxu0 %v4101
        %v4343 = vpop.f32.mrb[0].mxu0
        %v4344 = vadd.f32 0.0, %v4343
        %v4345 = vpop.f32.mrb[0].mxu0
        %4346 = vmatprep.mubr.f32.mxu0 0.0
        %4347 = vmatmul.mubr.f32.gmra.mrb[0].mxu0 %v4104
        %v4348 = vpop.f32.mrb[0].mxu0
        %v4349 = vadd.f32 0.0, %v4348
        %v4350 = vpop.f32.mrb[0].mxu0
        %4351 = vmatprep.mubr.f32.mxu0 0.0
        %4352 = vmatmul.mubr.f32.gmra.mrb[0].mxu0 %v4107
        %v4353 = vpop.f32.mrb[0].mxu0
        %v4354 = vadd.f32 0.0, %v4353
        %v4355 = vpop.f32.mrb[0].mxu0
        %4356 = vmatprep.mubr.f32.mxu0 0.0
        %4357 = vmatmul.mubr.f32.gmra.mrb[0].mxu0 %v4110
        %v4358 = vpop.f32.mrb[0].mxu0
        %v4359 = vadd.f32 0.0, %v4358
        %v4360 = vpop.f32.mrb[0].mxu0
        %4361 = vmatprep.mubr.f32.mxu0 0.0
        %4362 = vmatmul.mubr.f32.gmra.mrb[0].mxu0 %v4113
        %v4363 = vpop.f32.mrb[0].mxu0
        %v4364 = vadd.f32 0.0, %v4363
        %v4365 = vpop.f32.mrb[0].mxu0
        %4366 = vmatprep.mubr.f32.mxu0 0.0
        %4367 = vmatmul.mubr.f32.gmra.mrb[0].mxu0 %v4116
        %v4368 = vpop.f32.mrb[0].mxu0
        %v4369 = vadd.f32 0.0, %v4368
        %v4370 = vpop.f32.mrb[0].mxu0
        %4371 = vmatprep.mubr.f32.mxu0 0.0
        %4372 = vmatmul.mubr.f32.gmra.mrb[0].mxu0 %v4119
        %v4373 = vpop.f32.mrb[0].mxu0
        %v4374 = vadd.f32 0.0, %v4373
        %v4375 = vpop.f32.mrb[0].mxu0
        %4376 = vmatprep.mubr.f32.mxu0 0.0
        %4377 = vmatmul.mubr.f32.gmra.mrb[0].mxu0 %v4122
        %v4378 = vpop.f32.mrb[0].mxu0
        %v4379 = vadd.f32 0.0, %v4378
        %v4380 = vpop.f32.mrb[0].mxu0
        %4381 = vmatprep.mubr.f32.mxu0 0.0
        %4382 = vmatmul.mubr.f32.gmra.mrb[0].mxu0 %v4125
        %v4383 = vpop.f32.mrb[0].mxu0
        %v4384 = vadd.f32 0.0, %v4383
        %v4385 = vpop.f32.mrb[0].mxu0
        %4386 = vmatprep.mubr.f32.mxu0 0.0
        %4387 = vmatmul.mubr.f32.gmra.mrb[0].mxu0 %v4128
        %v4388 = vpop.f32.mrb[0].mxu0
        %v4389 = vadd.f32 0.0, %v4388
        %v4390 = vpop.f32.mrb[0].mxu0
        %4391 = vmatprep.mubr.f32.mxu0 0.0
        %4392 = vmatmul.mubr.f32.gmra.mrb[0].mxu0 %v4131
        %v4393 = vpop.f32.mrb[0].mxu0
        %v4394 = vadd.f32 0.0, %v4393
        %v4395 = vpop.f32.mrb[0].mxu0
        %4396 = vmatprep.mubr.f32.mxu0 0.0
        %4397 = vmatmul.mubr.f32.gmra.mrb[0].mxu0 %v4134
        %v4398 = vpop.f32.mrb[0].mxu0
        %v4399 = vadd.f32 0.0, %v4398
        %v4400 = vpop.f32.mrb[0].mxu0
        %4401 = vmatprep.mubr.f32.mxu0 0.0
        %4402 = vmatmul.mubr.f32.gmra.mrb[0].mxu0 %v4137
        %v4403 = vpop.f32.mrb[0].mxu0
        %v4404 = vadd.f32 0.0, %v4403
        %v4405 = vpop.f32.mrb[0].mxu0
        %4406 = vmatprep.mubr.f32.mxu0 0.0
        %4407 = vmatmul.mubr.f32.gmra.mrb[0].mxu0 %v4140
        %v4408 = vpop.f32.mrb[0].mxu0
        %v4409 = vadd.f32 0.0, %v4408
        %v4410 = vpop.f32.mrb[0].mxu0
        %4411 = vmatprep.mubr.f32.mxu0 0.0
        %4412 = vmatmul.mubr.f32.gmra.mrb[0].mxu0 %v4143
        %v4413 = vpop.f32.mrb[0].mxu0
        %v4414 = vadd.f32 0.0, %v4413
        %v4415 = vpop.f32.mrb[0].mxu0
        %4416 = vmatprep.mubr.f32.mxu0 0.0
        %4417 = vmatmul.mubr.f32.gmra.mrb[0].mxu0 %v4146
        %v4418 = vpop.f32.mrb[0].mxu0
        %v4419 = vadd.f32 0.0, %v4418
        %v4420 = vpop.f32.mrb[0].mxu0
        %4421 = vmatprep.mubr.f32.mxu0 0.0
        %4422 = vmatmul.mubr.f32.gmra.mrb[0].mxu0 %v4149
        %v4423 = vpop.f32.mrb[0].mxu0
        %v4424 = vadd.f32 0.0, %v4423
        %v4425 = vpop.f32.mrb[0].mxu0
        %4426 = vmatprep.mubr.f32.mxu0 0.0
        %4427 = vmatmul.mubr.f32.gmra.mrb[0].mxu0 %v4152
        %v4428 = vpop.f32.mrb[0].mxu0
        %v4429 = vadd.f32 0.0, %v4428
        %v4430 = vpop.f32.mrb[0].mxu0
        %4431 = vmatprep.mubr.f32.mxu0 0.0
        %4432 = vmatmul.mubr.f32.gmra.mrb[0].mxu0 %v4155
        %v4433 = vpop.f32.mrb[0].mxu0
        %v4434 = vadd.f32 0.0, %v4433
        %v4435 = vpop.f32.mrb[0].mxu0
        %4436 = vmatprep.mubr.f32.mxu0 0.0
        %4437 = vmatmul.mubr.f32.gmra.mrb[0].mxu0 %v4158
        %v4438 = vpop.f32.mrb[0].mxu0
        %v4439 = vadd.f32 0.0, %v4438
        %v4440 = vpop.f32.mrb[0].mxu0
        %4441 = vmatprep.mubr.f32.mxu0 0.0
        %4442 = vmatmul.mubr.f32.gmra.mrb[0].mxu0 %v4161
        %v4443 = vpop.f32.mrb[0].mxu0
        %v4444 = vadd.f32 0.0, %v4443
        %v4445 = vpop.f32.mrb[0].mxu0
        %4446 = vmatprep.mubr.f32.mxu0 0.0
        %4447 = vmatmul.mubr.f32.gmra.mrb[0].mxu0 %v4164
        %v4448 = vpop.f32.mrb[0].mxu0
        %v4449 = vadd.f32 0.0, %v4448
        %v4450 = vpop.f32.mrb[0].mxu0
        %4451 = vmatprep.mubr.f32.mxu0 0.0
        %4452 = vmatmul.mubr.f32.gmra.mrb[0].mxu0 %v4167
        %v4453 = vpop.f32.mrb[0].mxu0
        %v4454 = vadd.f32 0.0, %v4453
        %v4455 = vpop.f32.mrb[0].mxu0
        %4456 = vmatprep.mubr.f32.mxu0 0.0
        %4457 = vmatmul.mubr.f32.gmra.mrb[0].mxu0 %v4170
        %v4458 = vpop.f32.mrb[0].mxu0
        %v4459 = vadd.f32 0.0, %v4458
        %v4460 = vpop.f32.mrb[0].mxu0
        %4461 = vmatprep.mubr.f32.mxu0 0.0
        %4462 = vmatmul.mubr.f32.gmra.mrb[0].mxu0 %v4173
        %v4463 = vpop.f32.mrb[0].mxu0
        %v4464 = vadd.f32 0.0, %v4463
        %v4465 = vpop.f32.mrb[0].mxu0
        %4466 = vmatprep.mubr.f32.mxu0 0.0
        %4467 = vmatmul.mubr.f32.gmra.mrb[0].mxu0 %v4176
        %v4468 = vpop.f32.mrb[0].mxu0
        %v4469 = vadd.f32 0.0, %v4468
        %v4470 = vpop.f32.mrb[0].mxu0
        %4471 = vmatprep.mubr.f32.mxu0 0.0
        %4472 = vmatmul.mubr.f32.gmra.mrb[0].mxu0 %v4179
        %v4473 = vpop.f32.mrb[0].mxu0
        %v4474 = vadd.f32 0.0, %v4473
        %v4475 = vpop.f32.mrb[0].mxu0
        %4476 = vmatprep.mubr.f32.mxu0 0.0
        %4477 = vmatmul.mubr.f32.gmra.mrb[0].mxu0 %v4182
        %v4478 = vpop.f32.mrb[0].mxu0
        %v4479 = vadd.f32 0.0, %v4478
        %v4480 = vpop.f32.mrb[0].mxu0
        %4481 = vmatprep.mubr.f32.mxu0 0.0
        %4482 = vmatmul.mubr.f32.gmra.mrb[0].mxu0 %v4185
        %v4483 = vpop.f32.mrb[0].mxu0
        %v4484 = vadd.f32 0.0, %v4483
        %v4485 = vpop.f32.mrb[0].mxu0
        %4486 = vmatprep.mubr.f32.mxu0 0.0
        %4487 = vmatmul.mubr.f32.gmra.mrb[0].mxu0 %v4188
        %v4488 = vpop.f32.mrb[0].mxu0
        %v4489 = vadd.f32 0.0, %v4488
        %v4490 = vpop.f32.mrb[0].mxu0
        %4491 = vmatprep.mubr.f32.mxu0 0.0
        %4492 = vmatmul.mubr.f32.gmra.mrb[0].mxu0 %v4191
        %v4493 = vpop.f32.mrb[0].mxu0
        %v4494 = vadd.f32 0.0, %v4493
        %v4495 = vpop.f32.mrb[0].mxu0
        %4496 = vmatprep.mubr.f32.mxu0 0.0
        %4497 = vmatmul.mubr.f32.gmra.mrb[0].mxu0 %v4194
        %v4498 = vpop.f32.mrb[0].mxu0
        %v4499 = vadd.f32 0.0, %v4498
        %v4500 = vpop.f32.mrb[0].mxu0
        %4501 = vmatprep.mubr.f32.mxu0 0.0
        %4502 = vmatmul.mubr.f32.gmra.mrb[0].mxu0 %v4197
        %v4503 = vpop.f32.mrb[0].mxu0
        %v4504 = vadd.f32 0.0, %v4503
        %v4505 = vpop.f32.mrb[0].mxu0
        %4506 = vdwg.mxu0
        %v4507 = vadd.f32 %v3957, %v4269
        %v4508 = vadd.f32 %v3958, %v4274
        %v4509 = vadd.f32 %v3959, %v4279
        %v4510 = vadd.f32 %v3960, %v4284
        %v4511 = vadd.f32 %v3961, %v4289
        %v4512 = vadd.f32 %v3962, %v4294
        %v4513 = vadd.f32 %v3963, %v4299
        %v4514 = vadd.f32 %v3964, %v4304
        %v4515 = vadd.f32 %v3965, %v4309
        %v4516 = vadd.f32 %v3966, %v4314
        %v4517 = vadd.f32 %v3967, %v4319
        %v4518 = vadd.f32 %v3968, %v4324
        %v4519 = vadd.f32 %v3969, %v4329
        %v4520 = vadd.f32 %v3970, %v4334
        %v4521 = vadd.f32 %v3971, %v4339
        %v4522 = vadd.f32 %v3972, %v4344
        %v4523 = vadd.f32 %v3973, %v4349
        %v4524 = vadd.f32 %v3974, %v4354
        %v4525 = vadd.f32 %v3975, %v4359
        %v4526 = vadd.f32 %v3976, %v4364
        %v4527 = vadd.f32 %v3977, %v4369
        %v4528 = vadd.f32 %v3978, %v4374
        %v4529 = vadd.f32 %v3979, %v4379
        %v4530 = vadd.f32 %v3980, %v4384
        %v4531 = vadd.f32 %v3981, %v4389
        %v4532 = vadd.f32 %v3982, %v4394
        %v4533 = vadd.f32 %v3983, %v4399
        %v4534 = vadd.f32 %v3984, %v4404
        %v4535 = vadd.f32 %v3985, %v4409
        %v4536 = vadd.f32 %v3986, %v4414
        %v4537 = vadd.f32 %v3987, %v4419
        %v4538 = vadd.f32 %v3988, %v4424
        %v4539 = vadd.f32 %v3989, %v4429
        %v4540 = vadd.f32 %v3990, %v4434
        %v4541 = vadd.f32 %v3991, %v4439
        %v4542 = vadd.f32 %v3992, %v4444
        %v4543 = vadd.f32 %v3993, %v4449
        %v4544 = vadd.f32 %v3994, %v4454
        %v4545 = vadd.f32 %v3995, %v4459
        %v4546 = vadd.f32 %v3996, %v4464
        %v4547 = vadd.f32 %v3997, %v4469
        %v4548 = vadd.f32 %v3998, %v4474
        %v4549 = vadd.f32 %v3999, %v4479
        %v4550 = vadd.f32 %v4000, %v4484
        %v4551 = vadd.f32 %v4001, %v4489
        %v4552 = vadd.f32 %v4002, %v4494
        %v4553 = vadd.f32 %v4003, %v4499
        %v4554 = vadd.f32 %v4004, %v4504
        %v4555 = vld [vmem:[%s249 + $0x32] sm:$0xff]
        %v4556 = vld [vmem:[%s249 + $0x3a] sm:$0xff]
        %v4557 = vld [vmem:[%s249 + $0x42] sm:$0xff]
        %v4558 = vld [vmem:[%s249 + $0x4a] sm:$0xff]
        %v4559 = vld [vmem:[%s249 + $0x52] sm:$0xff]
        %v4560 = vld [vmem:[%s249 + $0x5a] sm:$0xff]
        %v4561 = vld [vmem:[%s249 + $0x62] sm:$0xff]
        %v4562 = vld [vmem:[%s249 + $0x6a] sm:$0xff]
        %v4563 = vld [vmem:[%s249 + $0x72] sm:$0xff]
        %v4564 = vld [vmem:[%s249 + $0x7a] sm:$0xff]
        %v4565 = vld [vmem:[%s249 + $0x82] sm:$0xff]
        %v4566 = vld [vmem:[%s249 + $0x8a] sm:$0xff]
        %v4567 = vld [vmem:[%s249 + $0x92] sm:$0xff]
        %v4568 = vld [vmem:[%s249 + $0x9a] sm:$0xff]
        %v4569 = vld [vmem:[%s249 + $0xa2] sm:$0xff]
        %v4570 = vld [vmem:[%s249 + $0xaa] sm:$0xff]
        %v4571 = vld [vmem:[%s249 + $0xb2] sm:$0xff]
        %v4572 = vld [vmem:[%s249 + $0xba] sm:$0xff]
        %v4573 = vld [vmem:[%s249 + $0xc2] sm:$0xff]
        %v4574 = vld [vmem:[%s249 + $0xca] sm:$0xff]
        %v4575 = vld [vmem:[%s249 + $0xd2] sm:$0xff]
        %v4576 = vld [vmem:[%s249 + $0xda] sm:$0xff]
        %v4577 = vld [vmem:[%s249 + $0xe2] sm:$0xff]
        %v4578 = vld [vmem:[%s249 + $0xea] sm:$0xff]
        %v4579 = vld [vmem:[%s249 + $0xf2] sm:$0xff]
        %v4580 = vld [vmem:[%s249 + $0xfa] sm:$0xff]
        %v4581 = vld [vmem:[%s249 + $0x102] sm:$0xff]
        %v4582 = vld [vmem:[%s249 + $0x10a] sm:$0xff]
        %v4583 = vld [vmem:[%s249 + $0x112] sm:$0xff]
        %v4584 = vld [vmem:[%s249 + $0x11a] sm:$0xff]
        %v4585 = vld [vmem:[%s249 + $0x122] sm:$0xff]
        %v4586 = vld [vmem:[%s249 + $0x12a] sm:$0xff]
        %v4587 = vld [vmem:[%s249 + $0x132] sm:$0xff]
        %v4588 = vld [vmem:[%s249 + $0x13a] sm:$0xff]
        %v4589 = vld [vmem:[%s249 + $0x142] sm:$0xff]
        %v4590 = vld [vmem:[%s249 + $0x14a] sm:$0xff]
        %v4591 = vld [vmem:[%s249 + $0x152] sm:$0xff]
        %v4592 = vld [vmem:[%s249 + $0x15a] sm:$0xff]
        %v4593 = vld [vmem:[%s249 + $0x162] sm:$0xff]
        %v4594 = vld [vmem:[%s249 + $0x16a] sm:$0xff]
        %v4595 = vld [vmem:[%s249 + $0x172] sm:$0xff]
        %v4596 = vld [vmem:[%s249 + $0x17a] sm:$0xff]
        %v4597 = vld [vmem:[%s249 + $0x182] sm:$0xff]
        %v4598 = vld [vmem:[%s249 + $0x18a] sm:$0xff]
        %v4599 = vld [vmem:[%s249 + $0x192] sm:$0xff]
        %v4600 = vld [vmem:[%s249 + $0x19a] sm:$0xff]
        %v4601 = vld [vmem:[%s249 + $0x1a2] sm:$0xff]
        %v4602 = vld [vmem:[%s249 + $0x1aa] sm:$0xff]
        %s4603 = scalar_lea.vmem %s1, 32
        %v4604 = vld [vmem:[%s4603] sm:$0xf]
        %v4606 = vsel %vm349, %v4555, 0
        %v4609 = vsel %vm349, %v4556, 0
        %v4612 = vsel %vm349, %v4557, 0
        %v4615 = vsel %vm349, %v4558, 0
        %v4618 = vsel %vm349, %v4559, 0
        %v4621 = vsel %vm349, %v4560, 0
        %v4624 = vsel %vm349, %v4561, 0
        %v4627 = vsel %vm349, %v4562, 0
        %v4630 = vsel %vm349, %v4563, 0
        %v4633 = vsel %vm349, %v4564, 0
        %v4636 = vsel %vm349, %v4565, 0
        %v4639 = vsel %vm349, %v4566, 0
        %v4642 = vsel %vm349, %v4567, 0
        %v4645 = vsel %vm349, %v4568, 0
        %v4648 = vsel %vm349, %v4569, 0
        %v4651 = vsel %vm349, %v4570, 0
        %v4654 = vsel %vm349, %v4571, 0
        %v4657 = vsel %vm349, %v4572, 0
        %v4660 = vsel %vm349, %v4573, 0
        %v4663 = vsel %vm349, %v4574, 0
        %v4666 = vsel %vm349, %v4575, 0
        %v4669 = vsel %vm349, %v4576, 0
        %v4672 = vsel %vm349, %v4577, 0
        %v4675 = vsel %vm349, %v4578, 0
        %v4678 = vsel %vm349, %v4579, 0
        %v4681 = vsel %vm349, %v4580, 0
        %v4684 = vsel %vm349, %v4581, 0
        %v4687 = vsel %vm349, %v4582, 0
        %v4690 = vsel %vm349, %v4583, 0
        %v4693 = vsel %vm349, %v4584, 0
        %v4696 = vsel %vm349, %v4585, 0
        %v4699 = vsel %vm349, %v4586, 0
        %v4702 = vsel %vm349, %v4587, 0
        %v4705 = vsel %vm349, %v4588, 0
        %v4708 = vsel %vm349, %v4589, 0
        %v4711 = vsel %vm349, %v4590, 0
        %v4714 = vsel %vm349, %v4591, 0
        %v4717 = vsel %vm349, %v4592, 0
        %v4720 = vsel %vm349, %v4593, 0
        %v4723 = vsel %vm349, %v4594, 0
        %v4726 = vsel %vm349, %v4595, 0
        %v4729 = vsel %vm349, %v4596, 0
        %v4732 = vsel %vm349, %v4597, 0
        %v4735 = vsel %vm349, %v4598, 0
        %v4738 = vsel %vm349, %v4599, 0
        %v4741 = vsel %vm349, %v4600, 0
        %v4744 = vsel %vm349, %v4601, 0
        %v4747 = vsel %vm349, %v4602, 0
        %v4750 = vsel %vm494, %v4604, 0
        %4752 = vmatprep.subr.mxu0 0.0
        %4753 = vmatpush1.msra.mxu0 %v4750
        %4754 = vmatprep.subr.mxu0 0.0
        %4755 = vmatpush1.msra.mxu0 0.0
        %4756 = vmatprep.subr.mxu0 0.0
        %4757 = vmatpush1.msra.mxu0 0.0
        %4758 = vmatprep.subr.mxu0 0.0
        %4759 = vmatpush1.msra.mxu0 0.0
        %4760 = vmatprep.subr.mxu0 0.0
        %4761 = vmatpush1.msra.mxu0 0.0
        %4762 = vmatprep.subr.mxu0 0.0
        %4763 = vmatpush1.msra.mxu0 0.0
        %4764 = vmatprep.subr.mxu0 0.0
        %4765 = vmatpush1.msra.mxu0 0.0
        %4766 = vmatprep.subr.mxu0 0.0
        %4767 = vmatpush1.msra.mxu0 0.0
        %4768 = vmatprep.subr.mxu0 0.0
        %4769 = vmatpush1.msra.mxu0 0.0
        %4770 = vmatprep.subr.mxu0 0.0
        %4771 = vmatpush1.msra.mxu0 0.0
        %4772 = vmatprep.subr.mxu0 0.0
        %4773 = vmatpush1.msra.mxu0 0.0
        %4774 = vmatprep.subr.mxu0 0.0
        %4775 = vmatpush1.msra.mxu0 0.0
        %4776 = vmatprep.subr.mxu0 0.0
        %4777 = vmatpush1.msra.mxu0 0.0
        %4778 = vmatprep.subr.mxu0 0.0
        %4779 = vmatpush1.msra.mxu0 0.0
        %4780 = vmatprep.subr.mxu0 0.0
        %4781 = vmatpush1.msra.mxu0 0.0
        %4782 = vmatprep.subr.mxu0 0.0
        %4783 = vmatpush1.msra.mxu0 0.0
        %4784 = vmatprep.subr.mxu0 0.0
        %4785 = vmatpush1.msra.mxu0 0.0
        %4786 = vmatprep.subr.mxu0 0.0
        %4787 = vmatpush1.msra.mxu0 0.0
        %4788 = vmatprep.subr.mxu0 0.0
        %4789 = vmatpush1.msra.mxu0 0.0
        %4790 = vmatprep.subr.mxu0 0.0
        %4791 = vmatpush1.msra.mxu0 0.0
        %4792 = vmatprep.subr.mxu0 0.0
        %4793 = vmatpush1.msra.mxu0 0.0
        %4794 = vmatprep.subr.mxu0 0.0
        %4795 = vmatpush1.msra.mxu0 0.0
        %4796 = vmatprep.subr.mxu0 0.0
        %4797 = vmatpush1.msra.mxu0 0.0
        %4798 = vmatprep.subr.mxu0 0.0
        %4799 = vmatpush1.msra.mxu0 0.0
        %4800 = vmatprep.subr.mxu0 0.0
        %4801 = vmatpush1.msra.mxu0 0.0
        %4802 = vmatprep.subr.mxu0 0.0
        %4803 = vmatpush1.msra.mxu0 0.0
        %4804 = vmatprep.subr.mxu0 0.0
        %4805 = vmatpush1.msra.mxu0 0.0
        %4806 = vmatprep.subr.mxu0 0.0
        %4807 = vmatpush1.msra.mxu0 0.0
        %4808 = vmatprep.subr.mxu0 0.0
        %4809 = vmatpush1.msra.mxu0 0.0
        %4810 = vmatprep.subr.mxu0 0.0
        %4811 = vmatpush1.msra.mxu0 0.0
        %4812 = vmatprep.subr.mxu0 0.0
        %4813 = vmatpush1.msra.mxu0 0.0
        %4814 = vmatprep.subr.mxu0 0.0
        %4815 = vmatpush1.msra.mxu0 0.0
        %4816 = vmatprep.mubr.f32.mxu0 0.0
        %4817 = vmatmul.mubr.f32.gmra.mrb[0].mxu0 %v4606
        %v4818 = vpop.f32.mrb[0].mxu0
        %v4819 = vadd.f32 0.0, %v4818
        %v4820 = vpop.f32.mrb[0].mxu0
        %4821 = vmatprep.mubr.f32.mxu0 0.0
        %4822 = vmatmul.mubr.f32.gmra.mrb[0].mxu0 %v4609
        %v4823 = vpop.f32.mrb[0].mxu0
        %v4824 = vadd.f32 0.0, %v4823
        %v4825 = vpop.f32.mrb[0].mxu0
        %4826 = vmatprep.mubr.f32.mxu0 0.0
        %4827 = vmatmul.mubr.f32.gmra.mrb[0].mxu0 %v4612
        %v4828 = vpop.f32.mrb[0].mxu0
        %v4829 = vadd.f32 0.0, %v4828
        %v4830 = vpop.f32.mrb[0].mxu0
        %4831 = vmatprep.mubr.f32.mxu0 0.0
        %4832 = vmatmul.mubr.f32.gmra.mrb[0].mxu0 %v4615
        %v4833 = vpop.f32.mrb[0].mxu0
        %v4834 = vadd.f32 0.0, %v4833
        %v4835 = vpop.f32.mrb[0].mxu0
        %4836 = vmatprep.mubr.f32.mxu0 0.0
        %4837 = vmatmul.mubr.f32.gmra.mrb[0].mxu0 %v4618
        %v4838 = vpop.f32.mrb[0].mxu0
        %v4839 = vadd.f32 0.0, %v4838
        %v4840 = vpop.f32.mrb[0].mxu0
        %4841 = vmatprep.mubr.f32.mxu0 0.0
        %4842 = vmatmul.mubr.f32.gmra.mrb[0].mxu0 %v4621
        %v4843 = vpop.f32.mrb[0].mxu0
        %v4844 = vadd.f32 0.0, %v4843
        %v4845 = vpop.f32.mrb[0].mxu0
        %4846 = vmatprep.mubr.f32.mxu0 0.0
        %4847 = vmatmul.mubr.f32.gmra.mrb[0].mxu0 %v4624
        %v4848 = vpop.f32.mrb[0].mxu0
        %v4849 = vadd.f32 0.0, %v4848
        %v4850 = vpop.f32.mrb[0].mxu0
        %4851 = vmatprep.mubr.f32.mxu0 0.0
        %4852 = vmatmul.mubr.f32.gmra.mrb[0].mxu0 %v4627
        %v4853 = vpop.f32.mrb[0].mxu0
        %v4854 = vadd.f32 0.0, %v4853
        %v4855 = vpop.f32.mrb[0].mxu0
        %4856 = vmatprep.mubr.f32.mxu0 0.0
        %4857 = vmatmul.mubr.f32.gmra.mrb[0].mxu0 %v4630
        %v4858 = vpop.f32.mrb[0].mxu0
        %v4859 = vadd.f32 0.0, %v4858
        %v4860 = vpop.f32.mrb[0].mxu0
        %4861 = vmatprep.mubr.f32.mxu0 0.0
        %4862 = vmatmul.mubr.f32.gmra.mrb[0].mxu0 %v4633
        %v4863 = vpop.f32.mrb[0].mxu0
        %v4864 = vadd.f32 0.0, %v4863
        %v4865 = vpop.f32.mrb[0].mxu0
        %4866 = vmatprep.mubr.f32.mxu0 0.0
        %4867 = vmatmul.mubr.f32.gmra.mrb[0].mxu0 %v4636
        %v4868 = vpop.f32.mrb[0].mxu0
        %v4869 = vadd.f32 0.0, %v4868
        %v4870 = vpop.f32.mrb[0].mxu0
        %4871 = vmatprep.mubr.f32.mxu0 0.0
        %4872 = vmatmul.mubr.f32.gmra.mrb[0].mxu0 %v4639
        %v4873 = vpop.f32.mrb[0].mxu0
        %v4874 = vadd.f32 0.0, %v4873
        %v4875 = vpop.f32.mrb[0].mxu0
        %4876 = vmatprep.mubr.f32.mxu0 0.0
        %4877 = vmatmul.mubr.f32.gmra.mrb[0].mxu0 %v4642
        %v4878 = vpop.f32.mrb[0].mxu0
        %v4879 = vadd.f32 0.0, %v4878
        %v4880 = vpop.f32.mrb[0].mxu0
        %4881 = vmatprep.mubr.f32.mxu0 0.0
        %4882 = vmatmul.mubr.f32.gmra.mrb[0].mxu0 %v4645
        %v4883 = vpop.f32.mrb[0].mxu0
        %v4884 = vadd.f32 0.0, %v4883
        %v4885 = vpop.f32.mrb[0].mxu0
        %4886 = vmatprep.mubr.f32.mxu0 0.0
        %4887 = vmatmul.mubr.f32.gmra.mrb[0].mxu0 %v4648
        %v4888 = vpop.f32.mrb[0].mxu0
        %v4889 = vadd.f32 0.0, %v4888
        %v4890 = vpop.f32.mrb[0].mxu0
        %4891 = vmatprep.mubr.f32.mxu0 0.0
        %4892 = vmatmul.mubr.f32.gmra.mrb[0].mxu0 %v4651
        %v4893 = vpop.f32.mrb[0].mxu0
        %v4894 = vadd.f32 0.0, %v4893
        %v4895 = vpop.f32.mrb[0].mxu0
        %4896 = vmatprep.mubr.f32.mxu0 0.0
        %4897 = vmatmul.mubr.f32.gmra.mrb[0].mxu0 %v4654
        %v4898 = vpop.f32.mrb[0].mxu0
        %v4899 = vadd.f32 0.0, %v4898
        %v4900 = vpop.f32.mrb[0].mxu0
        %4901 = vmatprep.mubr.f32.mxu0 0.0
        %4902 = vmatmul.mubr.f32.gmra.mrb[0].mxu0 %v4657
        %v4903 = vpop.f32.mrb[0].mxu0
        %v4904 = vadd.f32 0.0, %v4903
        %v4905 = vpop.f32.mrb[0].mxu0
        %4906 = vmatprep.mubr.f32.mxu0 0.0
        %4907 = vmatmul.mubr.f32.gmra.mrb[0].mxu0 %v4660
        %v4908 = vpop.f32.mrb[0].mxu0
        %v4909 = vadd.f32 0.0, %v4908
        %v4910 = vpop.f32.mrb[0].mxu0
        %4911 = vmatprep.mubr.f32.mxu0 0.0
        %4912 = vmatmul.mubr.f32.gmra.mrb[0].mxu0 %v4663
        %v4913 = vpop.f32.mrb[0].mxu0
        %v4914 = vadd.f32 0.0, %v4913
        %v4915 = vpop.f32.mrb[0].mxu0
        %4916 = vmatprep.mubr.f32.mxu0 0.0
        %4917 = vmatmul.mubr.f32.gmra.mrb[0].mxu0 %v4666
        %v4918 = vpop.f32.mrb[0].mxu0
        %v4919 = vadd.f32 0.0, %v4918
        %v4920 = vpop.f32.mrb[0].mxu0
        %4921 = vmatprep.mubr.f32.mxu0 0.0
        %4922 = vmatmul.mubr.f32.gmra.mrb[0].mxu0 %v4669
        %v4923 = vpop.f32.mrb[0].mxu0
        %v4924 = vadd.f32 0.0, %v4923
        %v4925 = vpop.f32.mrb[0].mxu0
        %4926 = vmatprep.mubr.f32.mxu0 0.0
        %4927 = vmatmul.mubr.f32.gmra.mrb[0].mxu0 %v4672
        %v4928 = vpop.f32.mrb[0].mxu0
        %v4929 = vadd.f32 0.0, %v4928
        %v4930 = vpop.f32.mrb[0].mxu0
        %4931 = vmatprep.mubr.f32.mxu0 0.0
        %4932 = vmatmul.mubr.f32.gmra.mrb[0].mxu0 %v4675
        %v4933 = vpop.f32.mrb[0].mxu0
        %v4934 = vadd.f32 0.0, %v4933
        %v4935 = vpop.f32.mrb[0].mxu0
        %4936 = vmatprep.mubr.f32.mxu0 0.0
        %4937 = vmatmul.mubr.f32.gmra.mrb[0].mxu0 %v4678
        %v4938 = vpop.f32.mrb[0].mxu0
        %v4939 = vadd.f32 0.0, %v4938
        %v4940 = vpop.f32.mrb[0].mxu0
        %4941 = vmatprep.mubr.f32.mxu0 0.0
        %4942 = vmatmul.mubr.f32.gmra.mrb[0].mxu0 %v4681
        %v4943 = vpop.f32.mrb[0].mxu0
        %v4944 = vadd.f32 0.0, %v4943
        %v4945 = vpop.f32.mrb[0].mxu0
        %4946 = vmatprep.mubr.f32.mxu0 0.0
        %4947 = vmatmul.mubr.f32.gmra.mrb[0].mxu0 %v4684
        %v4948 = vpop.f32.mrb[0].mxu0
        %v4949 = vadd.f32 0.0, %v4948
        %v4950 = vpop.f32.mrb[0].mxu0
        %4951 = vmatprep.mubr.f32.mxu0 0.0
        %4952 = vmatmul.mubr.f32.gmra.mrb[0].mxu0 %v4687
        %v4953 = vpop.f32.mrb[0].mxu0
        %v4954 = vadd.f32 0.0, %v4953
        %v4955 = vpop.f32.mrb[0].mxu0
        %4956 = vmatprep.mubr.f32.mxu0 0.0
        %4957 = vmatmul.mubr.f32.gmra.mrb[0].mxu0 %v4690
        %v4958 = vpop.f32.mrb[0].mxu0
        %v4959 = vadd.f32 0.0, %v4958
        %v4960 = vpop.f32.mrb[0].mxu0
        %4961 = vmatprep.mubr.f32.mxu0 0.0
        %4962 = vmatmul.mubr.f32.gmra.mrb[0].mxu0 %v4693
        %v4963 = vpop.f32.mrb[0].mxu0
        %v4964 = vadd.f32 0.0, %v4963
        %v4965 = vpop.f32.mrb[0].mxu0
        %4966 = vmatprep.mubr.f32.mxu0 0.0
        %4967 = vmatmul.mubr.f32.gmra.mrb[0].mxu0 %v4696
        %v4968 = vpop.f32.mrb[0].mxu0
        %v4969 = vadd.f32 0.0, %v4968
        %v4970 = vpop.f32.mrb[0].mxu0
        %4971 = vmatprep.mubr.f32.mxu0 0.0
        %4972 = vmatmul.mubr.f32.gmra.mrb[0].mxu0 %v4699
        %v4973 = vpop.f32.mrb[0].mxu0
        %v4974 = vadd.f32 0.0, %v4973
        %v4975 = vpop.f32.mrb[0].mxu0
        %4976 = vmatprep.mubr.f32.mxu0 0.0
        %4977 = vmatmul.mubr.f32.gmra.mrb[0].mxu0 %v4702
        %v4978 = vpop.f32.mrb[0].mxu0
        %v4979 = vadd.f32 0.0, %v4978
        %v4980 = vpop.f32.mrb[0].mxu0
        %4981 = vmatprep.mubr.f32.mxu0 0.0
        %4982 = vmatmul.mubr.f32.gmra.mrb[0].mxu0 %v4705
        %v4983 = vpop.f32.mrb[0].mxu0
        %v4984 = vadd.f32 0.0, %v4983
        %v4985 = vpop.f32.mrb[0].mxu0
        %4986 = vmatprep.mubr.f32.mxu0 0.0
        %4987 = vmatmul.mubr.f32.gmra.mrb[0].mxu0 %v4708
        %v4988 = vpop.f32.mrb[0].mxu0
        %v4989 = vadd.f32 0.0, %v4988
        %v4990 = vpop.f32.mrb[0].mxu0
        %4991 = vmatprep.mubr.f32.mxu0 0.0
        %4992 = vmatmul.mubr.f32.gmra.mrb[0].mxu0 %v4711
        %v4993 = vpop.f32.mrb[0].mxu0
        %v4994 = vadd.f32 0.0, %v4993
        %v4995 = vpop.f32.mrb[0].mxu0
        %4996 = vmatprep.mubr.f32.mxu0 0.0
        %4997 = vmatmul.mubr.f32.gmra.mrb[0].mxu0 %v4714
        %v4998 = vpop.f32.mrb[0].mxu0
        %v4999 = vadd.f32 0.0, %v4998
        %v5000 = vpop.f32.mrb[0].mxu0
        %5001 = vmatprep.mubr.f32.mxu0 0.0
        %5002 = vmatmul.mubr.f32.gmra.mrb[0].mxu0 %v4717
        %v5003 = vpop.f32.mrb[0].mxu0
        %v5004 = vadd.f32 0.0, %v5003
        %v5005 = vpop.f32.mrb[0].mxu0
        %5006 = vmatprep.mubr.f32.mxu0 0.0
        %5007 = vmatmul.mubr.f32.gmra.mrb[0].mxu0 %v4720
        %v5008 = vpop.f32.mrb[0].mxu0
        %v5009 = vadd.f32 0.0, %v5008
        %v5010 = vpop.f32.mrb[0].mxu0
        %5011 = vmatprep.mubr.f32.mxu0 0.0
        %5012 = vmatmul.mubr.f32.gmra.mrb[0].mxu0 %v4723
        %v5013 = vpop.f32.mrb[0].mxu0
        %v5014 = vadd.f32 0.0, %v5013
        %v5015 = vpop.f32.mrb[0].mxu0
        %5016 = vmatprep.mubr.f32.mxu0 0.0
        %5017 = vmatmul.mubr.f32.gmra.mrb[0].mxu0 %v4726
        %v5018 = vpop.f32.mrb[0].mxu0
        %v5019 = vadd.f32 0.0, %v5018
        %v5020 = vpop.f32.mrb[0].mxu0
        %5021 = vmatprep.mubr.f32.mxu0 0.0
        %5022 = vmatmul.mubr.f32.gmra.mrb[0].mxu0 %v4729
        %v5023 = vpop.f32.mrb[0].mxu0
        %v5024 = vadd.f32 0.0, %v5023
        %v5025 = vpop.f32.mrb[0].mxu0
        %5026 = vmatprep.mubr.f32.mxu0 0.0
        %5027 = vmatmul.mubr.f32.gmra.mrb[0].mxu0 %v4732
        %v5028 = vpop.f32.mrb[0].mxu0
        %v5029 = vadd.f32 0.0, %v5028
        %v5030 = vpop.f32.mrb[0].mxu0
        %5031 = vmatprep.mubr.f32.mxu0 0.0
        %5032 = vmatmul.mubr.f32.gmra.mrb[0].mxu0 %v4735
        %v5033 = vpop.f32.mrb[0].mxu0
        %v5034 = vadd.f32 0.0, %v5033
        %v5035 = vpop.f32.mrb[0].mxu0
        %5036 = vmatprep.mubr.f32.mxu0 0.0
        %5037 = vmatmul.mubr.f32.gmra.mrb[0].mxu0 %v4738
        %v5038 = vpop.f32.mrb[0].mxu0
        %v5039 = vadd.f32 0.0, %v5038
        %v5040 = vpop.f32.mrb[0].mxu0
        %5041 = vmatprep.mubr.f32.mxu0 0.0
        %5042 = vmatmul.mubr.f32.gmra.mrb[0].mxu0 %v4741
        %v5043 = vpop.f32.mrb[0].mxu0
        %v5044 = vadd.f32 0.0, %v5043
        %v5045 = vpop.f32.mrb[0].mxu0
        %5046 = vmatprep.mubr.f32.mxu0 0.0
        %5047 = vmatmul.mubr.f32.gmra.mrb[0].mxu0 %v4744
        %v5048 = vpop.f32.mrb[0].mxu0
        %v5049 = vadd.f32 0.0, %v5048
        %v5050 = vpop.f32.mrb[0].mxu0
        %5051 = vmatprep.mubr.f32.mxu0 0.0
        %5052 = vmatmul.mubr.f32.gmra.mrb[0].mxu0 %v4747
        %v5053 = vpop.f32.mrb[0].mxu0
        %v5054 = vadd.f32 0.0, %v5053
        %v5055 = vpop.f32.mrb[0].mxu0
        %5056 = vdwg.mxu0
        %v5057 = vadd.f32 %v4507, %v4819
        %v5058 = vadd.f32 %v4508, %v4824
        %v5059 = vadd.f32 %v4509, %v4829
        %v5060 = vadd.f32 %v4510, %v4834
        %v5061 = vadd.f32 %v4511, %v4839
        %v5062 = vadd.f32 %v4512, %v4844
        %v5063 = vadd.f32 %v4513, %v4849
        %v5064 = vadd.f32 %v4514, %v4854
        %v5065 = vadd.f32 %v4515, %v4859
        %v5066 = vadd.f32 %v4516, %v4864
        %v5067 = vadd.f32 %v4517, %v4869
        %v5068 = vadd.f32 %v4518, %v4874
        %v5069 = vadd.f32 %v4519, %v4879
        %v5070 = vadd.f32 %v4520, %v4884
        %v5071 = vadd.f32 %v4521, %v4889
        %v5072 = vadd.f32 %v4522, %v4894
        %v5073 = vadd.f32 %v4523, %v4899
        %v5074 = vadd.f32 %v4524, %v4904
        %v5075 = vadd.f32 %v4525, %v4909
        %v5076 = vadd.f32 %v4526, %v4914
        %v5077 = vadd.f32 %v4527, %v4919
        %v5078 = vadd.f32 %v4528, %v4924
        %v5079 = vadd.f32 %v4529, %v4929
        %v5080 = vadd.f32 %v4530, %v4934
        %v5081 = vadd.f32 %v4531, %v4939
        %v5082 = vadd.f32 %v4532, %v4944
        %v5083 = vadd.f32 %v4533, %v4949
        %v5084 = vadd.f32 %v4534, %v4954
        %v5085 = vadd.f32 %v4535, %v4959
        %v5086 = vadd.f32 %v4536, %v4964
        %v5087 = vadd.f32 %v4537, %v4969
        %v5088 = vadd.f32 %v4538, %v4974
        %v5089 = vadd.f32 %v4539, %v4979
        %v5090 = vadd.f32 %v4540, %v4984
        %v5091 = vadd.f32 %v4541, %v4989
        %v5092 = vadd.f32 %v4542, %v4994
        %v5093 = vadd.f32 %v4543, %v4999
        %v5094 = vadd.f32 %v4544, %v5004
        %v5095 = vadd.f32 %v4545, %v5009
        %v5096 = vadd.f32 %v4546, %v5014
        %v5097 = vadd.f32 %v4547, %v5019
        %v5098 = vadd.f32 %v4548, %v5024
        %v5099 = vadd.f32 %v4549, %v5029
        %v5100 = vadd.f32 %v4550, %v5034
        %v5101 = vadd.f32 %v4551, %v5039
        %v5102 = vadd.f32 %v4552, %v5044
        %v5103 = vadd.f32 %v4553, %v5049
        %v5104 = vadd.f32 %v4554, %v5054
        %v5105 = vld [vmem:[%s2] sm:$0x1]
        %v5107 = vlaneseq
        %v5108 = vshrl.u32 %v5107, 7
        %v5109 = vsub.s32 0, %v5108
        %v5110 = vrot.slane %v5105, %v5109
        %v5112 = vadd.f32 %v5057, %v5110
        %v5113 = vadd.f32 %v5058, %v5110
        %v5114 = vadd.f32 %v5059, %v5110
        %v5115 = vadd.f32 %v5060, %v5110
        %v5116 = vadd.f32 %v5061, %v5110
        %v5117 = vadd.f32 %v5062, %v5110
        %v5118 = vadd.f32 %v5063, %v5110
        %v5119 = vadd.f32 %v5064, %v5110
        %v5120 = vadd.f32 %v5065, %v5110
        %v5121 = vadd.f32 %v5066, %v5110
        %v5122 = vadd.f32 %v5067, %v5110
        %v5123 = vadd.f32 %v5068, %v5110
        %v5124 = vadd.f32 %v5069, %v5110
        %v5125 = vadd.f32 %v5070, %v5110
        %v5126 = vadd.f32 %v5071, %v5110
        %v5127 = vadd.f32 %v5072, %v5110
        %v5128 = vadd.f32 %v5073, %v5110
        %v5129 = vadd.f32 %v5074, %v5110
        %v5130 = vadd.f32 %v5075, %v5110
        %v5131 = vadd.f32 %v5076, %v5110
        %v5132 = vadd.f32 %v5077, %v5110
        %v5133 = vadd.f32 %v5078, %v5110
        %v5134 = vadd.f32 %v5079, %v5110
        %v5135 = vadd.f32 %v5080, %v5110
        %v5136 = vadd.f32 %v5081, %v5110
        %v5137 = vadd.f32 %v5082, %v5110
        %v5138 = vadd.f32 %v5083, %v5110
        %v5139 = vadd.f32 %v5084, %v5110
        %v5140 = vadd.f32 %v5085, %v5110
        %v5141 = vadd.f32 %v5086, %v5110
        %v5142 = vadd.f32 %v5087, %v5110
        %v5143 = vadd.f32 %v5088, %v5110
        %v5144 = vadd.f32 %v5089, %v5110
        %v5145 = vadd.f32 %v5090, %v5110
        %v5146 = vadd.f32 %v5091, %v5110
        %v5147 = vadd.f32 %v5092, %v5110
        %v5148 = vadd.f32 %v5093, %v5110
        %v5149 = vadd.f32 %v5094, %v5110
        %v5150 = vadd.f32 %v5095, %v5110
        %v5151 = vadd.f32 %v5096, %v5110
        %v5152 = vadd.f32 %v5097, %v5110
        %v5153 = vadd.f32 %v5098, %v5110
        %v5154 = vadd.f32 %v5099, %v5110
        %v5155 = vadd.f32 %v5100, %v5110
        %v5156 = vadd.f32 %v5101, %v5110
        %v5157 = vadd.f32 %v5102, %v5110
        %v5158 = vadd.f32 %v5103, %v5110
        %v5159 = vadd.f32 %v5104, %v5110
        %v5160 = vlaneseq
        %v5161 = vshrl.u32 %v5160, 7
        %v5162 = vadd.s32 %v5161, 8
        %v5163 = vadd.s32 %v5161, 16
        %v5164 = vadd.s32 %v5161, 24
        %v5165 = vadd.s32 %v5161, 32
        %v5166 = vadd.s32 %v5161, 40
        %v5167 = vadd.s32 %v5161, 48
        %v5168 = vadd.s32 %v5161, 56
        %v5169 = vadd.s32 %v5161, 64
        %v5170 = vadd.s32 %v5161, 72
        %v5171 = vadd.s32 %v5161, 80
        %v5172 = vadd.s32 %v5161, 88
        %v5173 = vadd.s32 %v5161, 96
        %v5174 = vadd.s32 %v5161, 104
        %v5175 = vadd.s32 %v5161, 112
        %v5176 = vadd.s32 %v5161, 120
        %v5177 = vadd.s32 %v5161, 128
        %v5178 = vadd.s32 %v5161, 136
        %v5179 = vadd.s32 %v5161, 144
        %v5180 = vadd.s32 %v5161, 152
        %v5181 = vadd.s32 %v5161, 160
        %v5182 = vadd.s32 %v5161, 168
        %v5183 = vadd.s32 %v5161, 176
        %v5184 = vadd.s32 %v5161, 184
        %v5185 = vadd.s32 %v5161, 192
        %v5186 = vadd.s32 %v5161, 200
        %v5187 = vadd.s32 %v5161, 208
        %v5188 = vadd.s32 %v5161, 216
        %v5189 = vadd.s32 %v5161, 224
        %v5190 = vadd.s32 %v5161, 232
        %v5191 = vadd.s32 %v5161, 240
        %v5192 = vadd.s32 %v5161, 248
        %v5193 = vadd.s32 %v5161, 256
        %v5194 = vadd.s32 %v5161, 264
        %v5195 = vadd.s32 %v5161, 272
        %v5196 = vadd.s32 %v5161, 280
        %v5197 = vadd.s32 %v5161, 288
        %v5198 = vadd.s32 %v5161, 296
        %v5199 = vadd.s32 %v5161, 304
        %v5200 = vadd.s32 %v5161, 312
        %v5201 = vadd.s32 %v5161, 320
        %v5202 = vadd.s32 %v5161, 328
        %v5203 = vadd.s32 %v5161, 336
        %v5204 = vadd.s32 %v5161, 344
        %v5205 = vadd.s32 %v5161, 352
        %v5206 = vadd.s32 %v5161, 360
        %v5207 = vadd.s32 %v5161, 368
        %v5208 = vadd.s32 %v5161, 376
        %vm5209 = vcmp.lt.s32.totalorder %v5161, 0
        %v5210 = vsub.s32 0, %v5161
        %v5211 = vsel %vm5209, %v5210, %v5161
        %v5212 = vmul.u32.u64.compose %v5211, 2863311531
        %v5213 = vextract.low.u32 %v5212
        %v5214 = vextract.high.u32 %v5212
        %v5215 = vshrl.u32 %v5214, 4
        %v5216 = vmul.u32 %v5215, 24
        %v5217 = vsub.s32 %v5211, %v5216
        %v5218 = vsub.s32 0, %v5217
        %v5219 = vsel %vm5209, %v5218, %v5217
        %vm5220 = vcmp.lt.s32.totalorder %v5162, 0
        %v5221 = vsub.s32 0, %v5162
        %v5222 = vsel %vm5220, %v5221, %v5162
        %v5223 = vmul.u32.u64.compose %v5222, 2863311531
        %v5224 = vextract.low.u32 %v5223
        %v5225 = vextract.high.u32 %v5223
        %v5226 = vshrl.u32 %v5225, 4
        %v5227 = vmul.u32 %v5226, 24
        %v5228 = vsub.s32 %v5222, %v5227
        %v5229 = vsub.s32 0, %v5228
        %v5230 = vsel %vm5220, %v5229, %v5228
        %vm5231 = vcmp.lt.s32.totalorder %v5163, 0
        %v5232 = vsub.s32 0, %v5163
        %v5233 = vsel %vm5231, %v5232, %v5163
        %v5234 = vmul.u32.u64.compose %v5233, 2863311531
        %v5235 = vextract.low.u32 %v5234
        %v5236 = vextract.high.u32 %v5234
        %v5237 = vshrl.u32 %v5236, 4
        %v5238 = vmul.u32 %v5237, 24
        %v5239 = vsub.s32 %v5233, %v5238
        %v5240 = vsub.s32 0, %v5239
        %v5241 = vsel %vm5231, %v5240, %v5239
        %vm5242 = vcmp.lt.s32.totalorder %v5164, 0
        %v5243 = vsub.s32 0, %v5164
        %v5244 = vsel %vm5242, %v5243, %v5164
        %v5245 = vmul.u32.u64.compose %v5244, 2863311531
        %v5246 = vextract.low.u32 %v5245
        %v5247 = vextract.high.u32 %v5245
        %v5248 = vshrl.u32 %v5247, 4
        %v5249 = vmul.u32 %v5248, 24
        %v5250 = vsub.s32 %v5244, %v5249
        %v5251 = vsub.s32 0, %v5250
        %v5252 = vsel %vm5242, %v5251, %v5250
        %vm5253 = vcmp.lt.s32.totalorder %v5165, 0
        %v5254 = vsub.s32 0, %v5165
        %v5255 = vsel %vm5253, %v5254, %v5165
        %v5256 = vmul.u32.u64.compose %v5255, 2863311531
        %v5257 = vextract.low.u32 %v5256
        %v5258 = vextract.high.u32 %v5256
        %v5259 = vshrl.u32 %v5258, 4
        %v5260 = vmul.u32 %v5259, 24
        %v5261 = vsub.s32 %v5255, %v5260
        %v5262 = vsub.s32 0, %v5261
        %v5263 = vsel %vm5253, %v5262, %v5261
        %vm5264 = vcmp.lt.s32.totalorder %v5166, 0
        %v5265 = vsub.s32 0, %v5166
        %v5266 = vsel %vm5264, %v5265, %v5166
        %v5267 = vmul.u32.u64.compose %v5266, 2863311531
        %v5268 = vextract.low.u32 %v5267
        %v5269 = vextract.high.u32 %v5267
        %v5270 = vshrl.u32 %v5269, 4
        %v5271 = vmul.u32 %v5270, 24
        %v5272 = vsub.s32 %v5266, %v5271
        %v5273 = vsub.s32 0, %v5272
        %v5274 = vsel %vm5264, %v5273, %v5272
        %vm5275 = vcmp.lt.s32.totalorder %v5167, 0
        %v5276 = vsub.s32 0, %v5167
        %v5277 = vsel %vm5275, %v5276, %v5167
        %v5278 = vmul.u32.u64.compose %v5277, 2863311531
        %v5279 = vextract.low.u32 %v5278
        %v5280 = vextract.high.u32 %v5278
        %v5281 = vshrl.u32 %v5280, 4
        %v5282 = vmul.u32 %v5281, 24
        %v5283 = vsub.s32 %v5277, %v5282
        %v5284 = vsub.s32 0, %v5283
        %v5285 = vsel %vm5275, %v5284, %v5283
        %vm5286 = vcmp.lt.s32.totalorder %v5168, 0
        %v5287 = vsub.s32 0, %v5168
        %v5288 = vsel %vm5286, %v5287, %v5168
        %v5289 = vmul.u32.u64.compose %v5288, 2863311531
        %v5290 = vextract.low.u32 %v5289
        %v5291 = vextract.high.u32 %v5289
        %v5292 = vshrl.u32 %v5291, 4
        %v5293 = vmul.u32 %v5292, 24
        %v5294 = vsub.s32 %v5288, %v5293
        %v5295 = vsub.s32 0, %v5294
        %v5296 = vsel %vm5286, %v5295, %v5294
        %vm5297 = vcmp.lt.s32.totalorder %v5169, 0
        %v5298 = vsub.s32 0, %v5169
        %v5299 = vsel %vm5297, %v5298, %v5169
        %v5300 = vmul.u32.u64.compose %v5299, 2863311531
        %v5301 = vextract.low.u32 %v5300
        %v5302 = vextract.high.u32 %v5300
        %v5303 = vshrl.u32 %v5302, 4
        %v5304 = vmul.u32 %v5303, 24
        %v5305 = vsub.s32 %v5299, %v5304
        %v5306 = vsub.s32 0, %v5305
        %v5307 = vsel %vm5297, %v5306, %v5305
        %vm5308 = vcmp.lt.s32.totalorder %v5170, 0
        %v5309 = vsub.s32 0, %v5170
        %v5310 = vsel %vm5308, %v5309, %v5170
        %v5311 = vmul.u32.u64.compose %v5310, 2863311531
        %v5312 = vextract.low.u32 %v5311
        %v5313 = vextract.high.u32 %v5311
        %v5314 = vshrl.u32 %v5313, 4
        %v5315 = vmul.u32 %v5314, 24
        %v5316 = vsub.s32 %v5310, %v5315
        %v5317 = vsub.s32 0, %v5316
        %v5318 = vsel %vm5308, %v5317, %v5316
        %vm5319 = vcmp.lt.s32.totalorder %v5171, 0
        %v5320 = vsub.s32 0, %v5171
        %v5321 = vsel %vm5319, %v5320, %v5171
        %v5322 = vmul.u32.u64.compose %v5321, 2863311531
        %v5323 = vextract.low.u32 %v5322
        %v5324 = vextract.high.u32 %v5322
        %v5325 = vshrl.u32 %v5324, 4
        %v5326 = vmul.u32 %v5325, 24
        %v5327 = vsub.s32 %v5321, %v5326
        %v5328 = vsub.s32 0, %v5327
        %v5329 = vsel %vm5319, %v5328, %v5327
        %vm5330 = vcmp.lt.s32.totalorder %v5172, 0
        %v5331 = vsub.s32 0, %v5172
        %v5332 = vsel %vm5330, %v5331, %v5172
        %v5333 = vmul.u32.u64.compose %v5332, 2863311531
        %v5334 = vextract.low.u32 %v5333
        %v5335 = vextract.high.u32 %v5333
        %v5336 = vshrl.u32 %v5335, 4
        %v5337 = vmul.u32 %v5336, 24
        %v5338 = vsub.s32 %v5332, %v5337
        %v5339 = vsub.s32 0, %v5338
        %v5340 = vsel %vm5330, %v5339, %v5338
        %vm5341 = vcmp.lt.s32.totalorder %v5173, 0
        %v5342 = vsub.s32 0, %v5173
        %v5343 = vsel %vm5341, %v5342, %v5173
        %v5344 = vmul.u32.u64.compose %v5343, 2863311531
        %v5345 = vextract.low.u32 %v5344
        %v5346 = vextract.high.u32 %v5344
        %v5347 = vshrl.u32 %v5346, 4
        %v5348 = vmul.u32 %v5347, 24
        %v5349 = vsub.s32 %v5343, %v5348
        %v5350 = vsub.s32 0, %v5349
        %v5351 = vsel %vm5341, %v5350, %v5349
        %vm5352 = vcmp.lt.s32.totalorder %v5174, 0
        %v5353 = vsub.s32 0, %v5174
        %v5354 = vsel %vm5352, %v5353, %v5174
        %v5355 = vmul.u32.u64.compose %v5354, 2863311531
        %v5356 = vextract.low.u32 %v5355
        %v5357 = vextract.high.u32 %v5355
        %v5358 = vshrl.u32 %v5357, 4
        %v5359 = vmul.u32 %v5358, 24
        %v5360 = vsub.s32 %v5354, %v5359
        %v5361 = vsub.s32 0, %v5360
        %v5362 = vsel %vm5352, %v5361, %v5360
        %vm5363 = vcmp.lt.s32.totalorder %v5175, 0
        %v5364 = vsub.s32 0, %v5175
        %v5365 = vsel %vm5363, %v5364, %v5175
        %v5366 = vmul.u32.u64.compose %v5365, 2863311531
        %v5367 = vextract.low.u32 %v5366
        %v5368 = vextract.high.u32 %v5366
        %v5369 = vshrl.u32 %v5368, 4
        %v5370 = vmul.u32 %v5369, 24
        %v5371 = vsub.s32 %v5365, %v5370
        %v5372 = vsub.s32 0, %v5371
        %v5373 = vsel %vm5363, %v5372, %v5371
        %vm5374 = vcmp.lt.s32.totalorder %v5176, 0
        %v5375 = vsub.s32 0, %v5176
        %v5376 = vsel %vm5374, %v5375, %v5176
        %v5377 = vmul.u32.u64.compose %v5376, 2863311531
        %v5378 = vextract.low.u32 %v5377
        %v5379 = vextract.high.u32 %v5377
        %v5380 = vshrl.u32 %v5379, 4
        %v5381 = vmul.u32 %v5380, 24
        %v5382 = vsub.s32 %v5376, %v5381
        %v5383 = vsub.s32 0, %v5382
        %v5384 = vsel %vm5374, %v5383, %v5382
        %vm5385 = vcmp.lt.s32.totalorder %v5177, 0
        %v5386 = vsub.s32 0, %v5177
        %v5387 = vsel %vm5385, %v5386, %v5177
        %v5388 = vmul.u32.u64.compose %v5387, 2863311531
        %v5389 = vextract.low.u32 %v5388
        %v5390 = vextract.high.u32 %v5388
        %v5391 = vshrl.u32 %v5390, 4
        %v5392 = vmul.u32 %v5391, 24
        %v5393 = vsub.s32 %v5387, %v5392
        %v5394 = vsub.s32 0, %v5393
        %v5395 = vsel %vm5385, %v5394, %v5393
        %vm5396 = vcmp.lt.s32.totalorder %v5178, 0
        %v5397 = vsub.s32 0, %v5178
        %v5398 = vsel %vm5396, %v5397, %v5178
        %v5399 = vmul.u32.u64.compose %v5398, 2863311531
        %v5400 = vextract.low.u32 %v5399
        %v5401 = vextract.high.u32 %v5399
        %v5402 = vshrl.u32 %v5401, 4
        %v5403 = vmul.u32 %v5402, 24
        %v5404 = vsub.s32 %v5398, %v5403
        %v5405 = vsub.s32 0, %v5404
        %v5406 = vsel %vm5396, %v5405, %v5404
        %vm5407 = vcmp.lt.s32.totalorder %v5179, 0
        %v5408 = vsub.s32 0, %v5179
        %v5409 = vsel %vm5407, %v5408, %v5179
        %v5410 = vmul.u32.u64.compose %v5409, 2863311531
        %v5411 = vextract.low.u32 %v5410
        %v5412 = vextract.high.u32 %v5410
        %v5413 = vshrl.u32 %v5412, 4
        %v5414 = vmul.u32 %v5413, 24
        %v5415 = vsub.s32 %v5409, %v5414
        %v5416 = vsub.s32 0, %v5415
        %v5417 = vsel %vm5407, %v5416, %v5415
        %vm5418 = vcmp.lt.s32.totalorder %v5180, 0
        %v5419 = vsub.s32 0, %v5180
        %v5420 = vsel %vm5418, %v5419, %v5180
        %v5421 = vmul.u32.u64.compose %v5420, 2863311531
        %v5422 = vextract.low.u32 %v5421
        %v5423 = vextract.high.u32 %v5421
        %v5424 = vshrl.u32 %v5423, 4
        %v5425 = vmul.u32 %v5424, 24
        %v5426 = vsub.s32 %v5420, %v5425
        %v5427 = vsub.s32 0, %v5426
        %v5428 = vsel %vm5418, %v5427, %v5426
        %vm5429 = vcmp.lt.s32.totalorder %v5181, 0
        %v5430 = vsub.s32 0, %v5181
        %v5431 = vsel %vm5429, %v5430, %v5181
        %v5432 = vmul.u32.u64.compose %v5431, 2863311531
        %v5433 = vextract.low.u32 %v5432
        %v5434 = vextract.high.u32 %v5432
        %v5435 = vshrl.u32 %v5434, 4
        %v5436 = vmul.u32 %v5435, 24
        %v5437 = vsub.s32 %v5431, %v5436
        %v5438 = vsub.s32 0, %v5437
        %v5439 = vsel %vm5429, %v5438, %v5437
        %vm5440 = vcmp.lt.s32.totalorder %v5182, 0
        %v5441 = vsub.s32 0, %v5182
        %v5442 = vsel %vm5440, %v5441, %v5182
        %v5443 = vmul.u32.u64.compose %v5442, 2863311531
        %v5444 = vextract.low.u32 %v5443
        %v5445 = vextract.high.u32 %v5443
        %v5446 = vshrl.u32 %v5445, 4
        %v5447 = vmul.u32 %v5446, 24
        %v5448 = vsub.s32 %v5442, %v5447
        %v5449 = vsub.s32 0, %v5448
        %v5450 = vsel %vm5440, %v5449, %v5448
        %vm5451 = vcmp.lt.s32.totalorder %v5183, 0
        %v5452 = vsub.s32 0, %v5183
        %v5453 = vsel %vm5451, %v5452, %v5183
        %v5454 = vmul.u32.u64.compose %v5453, 2863311531
        %v5455 = vextract.low.u32 %v5454
        %v5456 = vextract.high.u32 %v5454
        %v5457 = vshrl.u32 %v5456, 4
        %v5458 = vmul.u32 %v5457, 24
        %v5459 = vsub.s32 %v5453, %v5458
        %v5460 = vsub.s32 0, %v5459
        %v5461 = vsel %vm5451, %v5460, %v5459
        %vm5462 = vcmp.lt.s32.totalorder %v5184, 0
        %v5463 = vsub.s32 0, %v5184
        %v5464 = vsel %vm5462, %v5463, %v5184
        %v5465 = vmul.u32.u64.compose %v5464, 2863311531
        %v5466 = vextract.low.u32 %v5465
        %v5467 = vextract.high.u32 %v5465
        %v5468 = vshrl.u32 %v5467, 4
        %v5469 = vmul.u32 %v5468, 24
        %v5470 = vsub.s32 %v5464, %v5469
        %v5471 = vsub.s32 0, %v5470
        %v5472 = vsel %vm5462, %v5471, %v5470
        %vm5473 = vcmp.lt.s32.totalorder %v5185, 0
        %v5474 = vsub.s32 0, %v5185
        %v5475 = vsel %vm5473, %v5474, %v5185
        %v5476 = vmul.u32.u64.compose %v5475, 2863311531
        %v5477 = vextract.low.u32 %v5476
        %v5478 = vextract.high.u32 %v5476
        %v5479 = vshrl.u32 %v5478, 4
        %v5480 = vmul.u32 %v5479, 24
        %v5481 = vsub.s32 %v5475, %v5480
        %v5482 = vsub.s32 0, %v5481
        %v5483 = vsel %vm5473, %v5482, %v5481
        %vm5484 = vcmp.lt.s32.totalorder %v5186, 0
        %v5485 = vsub.s32 0, %v5186
        %v5486 = vsel %vm5484, %v5485, %v5186
        %v5487 = vmul.u32.u64.compose %v5486, 2863311531
        %v5488 = vextract.low.u32 %v5487
        %v5489 = vextract.high.u32 %v5487
        %v5490 = vshrl.u32 %v5489, 4
        %v5491 = vmul.u32 %v5490, 24
        %v5492 = vsub.s32 %v5486, %v5491
        %v5493 = vsub.s32 0, %v5492
        %v5494 = vsel %vm5484, %v5493, %v5492
        %vm5495 = vcmp.lt.s32.totalorder %v5187, 0
        %v5496 = vsub.s32 0, %v5187
        %v5497 = vsel %vm5495, %v5496, %v5187
        %v5498 = vmul.u32.u64.compose %v5497, 2863311531
        %v5499 = vextract.low.u32 %v5498
        %v5500 = vextract.high.u32 %v5498
        %v5501 = vshrl.u32 %v5500, 4
        %v5502 = vmul.u32 %v5501, 24
        %v5503 = vsub.s32 %v5497, %v5502
        %v5504 = vsub.s32 0, %v5503
        %v5505 = vsel %vm5495, %v5504, %v5503
        %vm5506 = vcmp.lt.s32.totalorder %v5188, 0
        %v5507 = vsub.s32 0, %v5188
        %v5508 = vsel %vm5506, %v5507, %v5188
        %v5509 = vmul.u32.u64.compose %v5508, 2863311531
        %v5510 = vextract.low.u32 %v5509
        %v5511 = vextract.high.u32 %v5509
        %v5512 = vshrl.u32 %v5511, 4
        %v5513 = vmul.u32 %v5512, 24
        %v5514 = vsub.s32 %v5508, %v5513
        %v5515 = vsub.s32 0, %v5514
        %v5516 = vsel %vm5506, %v5515, %v5514
        %vm5517 = vcmp.lt.s32.totalorder %v5189, 0
        %v5518 = vsub.s32 0, %v5189
        %v5519 = vsel %vm5517, %v5518, %v5189
        %v5520 = vmul.u32.u64.compose %v5519, 2863311531
        %v5521 = vextract.low.u32 %v5520
        %v5522 = vextract.high.u32 %v5520
        %v5523 = vshrl.u32 %v5522, 4
        %v5524 = vmul.u32 %v5523, 24
        %v5525 = vsub.s32 %v5519, %v5524
        %v5526 = vsub.s32 0, %v5525
        %v5527 = vsel %vm5517, %v5526, %v5525
        %vm5528 = vcmp.lt.s32.totalorder %v5190, 0
        %v5529 = vsub.s32 0, %v5190
        %v5530 = vsel %vm5528, %v5529, %v5190
        %v5531 = vmul.u32.u64.compose %v5530, 2863311531
        %v5532 = vextract.low.u32 %v5531
        %v5533 = vextract.high.u32 %v5531
        %v5534 = vshrl.u32 %v5533, 4
        %v5535 = vmul.u32 %v5534, 24
        %v5536 = vsub.s32 %v5530, %v5535
        %v5537 = vsub.s32 0, %v5536
        %v5538 = vsel %vm5528, %v5537, %v5536
        %vm5539 = vcmp.lt.s32.totalorder %v5191, 0
        %v5540 = vsub.s32 0, %v5191
        %v5541 = vsel %vm5539, %v5540, %v5191
        %v5542 = vmul.u32.u64.compose %v5541, 2863311531
        %v5543 = vextract.low.u32 %v5542
        %v5544 = vextract.high.u32 %v5542
        %v5545 = vshrl.u32 %v5544, 4
        %v5546 = vmul.u32 %v5545, 24
        %v5547 = vsub.s32 %v5541, %v5546
        %v5548 = vsub.s32 0, %v5547
        %v5549 = vsel %vm5539, %v5548, %v5547
        %vm5550 = vcmp.lt.s32.totalorder %v5192, 0
        %v5551 = vsub.s32 0, %v5192
        %v5552 = vsel %vm5550, %v5551, %v5192
        %v5553 = vmul.u32.u64.compose %v5552, 2863311531
        %v5554 = vextract.low.u32 %v5553
        %v5555 = vextract.high.u32 %v5553
        %v5556 = vshrl.u32 %v5555, 4
        %v5557 = vmul.u32 %v5556, 24
        %v5558 = vsub.s32 %v5552, %v5557
        %v5559 = vsub.s32 0, %v5558
        %v5560 = vsel %vm5550, %v5559, %v5558
        %vm5561 = vcmp.lt.s32.totalorder %v5193, 0
        %v5562 = vsub.s32 0, %v5193
        %v5563 = vsel %vm5561, %v5562, %v5193
        %v5564 = vmul.u32.u64.compose %v5563, 2863311531
        %v5565 = vextract.low.u32 %v5564
        %v5566 = vextract.high.u32 %v5564
        %v5567 = vshrl.u32 %v5566, 4
        %v5568 = vmul.u32 %v5567, 24
        %v5569 = vsub.s32 %v5563, %v5568
        %v5570 = vsub.s32 0, %v5569
        %v5571 = vsel %vm5561, %v5570, %v5569
        %vm5572 = vcmp.lt.s32.totalorder %v5194, 0
        %v5573 = vsub.s32 0, %v5194
        %v5574 = vsel %vm5572, %v5573, %v5194
        %v5575 = vmul.u32.u64.compose %v5574, 2863311531
        %v5576 = vextract.low.u32 %v5575
        %v5577 = vextract.high.u32 %v5575
        %v5578 = vshrl.u32 %v5577, 4
        %v5579 = vmul.u32 %v5578, 24
        %v5580 = vsub.s32 %v5574, %v5579
        %v5581 = vsub.s32 0, %v5580
        %v5582 = vsel %vm5572, %v5581, %v5580
        %vm5583 = vcmp.lt.s32.totalorder %v5195, 0
        %v5584 = vsub.s32 0, %v5195
        %v5585 = vsel %vm5583, %v5584, %v5195
        %v5586 = vmul.u32.u64.compose %v5585, 2863311531
        %v5587 = vextract.low.u32 %v5586
        %v5588 = vextract.high.u32 %v5586
        %v5589 = vshrl.u32 %v5588, 4
        %v5590 = vmul.u32 %v5589, 24
        %v5591 = vsub.s32 %v5585, %v5590
        %v5592 = vsub.s32 0, %v5591
        %v5593 = vsel %vm5583, %v5592, %v5591
        %vm5594 = vcmp.lt.s32.totalorder %v5196, 0
        %v5595 = vsub.s32 0, %v5196
        %v5596 = vsel %vm5594, %v5595, %v5196
        %v5597 = vmul.u32.u64.compose %v5596, 2863311531
        %v5598 = vextract.low.u32 %v5597
        %v5599 = vextract.high.u32 %v5597
        %v5600 = vshrl.u32 %v5599, 4
        %v5601 = vmul.u32 %v5600, 24
        %v5602 = vsub.s32 %v5596, %v5601
        %v5603 = vsub.s32 0, %v5602
        %v5604 = vsel %vm5594, %v5603, %v5602
        %vm5605 = vcmp.lt.s32.totalorder %v5197, 0
        %v5606 = vsub.s32 0, %v5197
        %v5607 = vsel %vm5605, %v5606, %v5197
        %v5608 = vmul.u32.u64.compose %v5607, 2863311531
        %v5609 = vextract.low.u32 %v5608
        %v5610 = vextract.high.u32 %v5608
        %v5611 = vshrl.u32 %v5610, 4
        %v5612 = vmul.u32 %v5611, 24
        %v5613 = vsub.s32 %v5607, %v5612
        %v5614 = vsub.s32 0, %v5613
        %v5615 = vsel %vm5605, %v5614, %v5613
        %vm5616 = vcmp.lt.s32.totalorder %v5198, 0
        %v5617 = vsub.s32 0, %v5198
        %v5618 = vsel %vm5616, %v5617, %v5198
        %v5619 = vmul.u32.u64.compose %v5618, 2863311531
        %v5620 = vextract.low.u32 %v5619
        %v5621 = vextract.high.u32 %v5619
        %v5622 = vshrl.u32 %v5621, 4
        %v5623 = vmul.u32 %v5622, 24
        %v5624 = vsub.s32 %v5618, %v5623
        %v5625 = vsub.s32 0, %v5624
        %v5626 = vsel %vm5616, %v5625, %v5624
        %vm5627 = vcmp.lt.s32.totalorder %v5199, 0
        %v5628 = vsub.s32 0, %v5199
        %v5629 = vsel %vm5627, %v5628, %v5199
        %v5630 = vmul.u32.u64.compose %v5629, 2863311531
        %v5631 = vextract.low.u32 %v5630
        %v5632 = vextract.high.u32 %v5630
        %v5633 = vshrl.u32 %v5632, 4
        %v5634 = vmul.u32 %v5633, 24
        %v5635 = vsub.s32 %v5629, %v5634
        %v5636 = vsub.s32 0, %v5635
        %v5637 = vsel %vm5627, %v5636, %v5635
        %vm5638 = vcmp.lt.s32.totalorder %v5200, 0
        %v5639 = vsub.s32 0, %v5200
        %v5640 = vsel %vm5638, %v5639, %v5200
        %v5641 = vmul.u32.u64.compose %v5640, 2863311531
        %v5642 = vextract.low.u32 %v5641
        %v5643 = vextract.high.u32 %v5641
        %v5644 = vshrl.u32 %v5643, 4
        %v5645 = vmul.u32 %v5644, 24
        %v5646 = vsub.s32 %v5640, %v5645
        %v5647 = vsub.s32 0, %v5646
        %v5648 = vsel %vm5638, %v5647, %v5646
        %vm5649 = vcmp.lt.s32.totalorder %v5201, 0
        %v5650 = vsub.s32 0, %v5201
        %v5651 = vsel %vm5649, %v5650, %v5201
        %v5652 = vmul.u32.u64.compose %v5651, 2863311531
        %v5653 = vextract.low.u32 %v5652
        %v5654 = vextract.high.u32 %v5652
        %v5655 = vshrl.u32 %v5654, 4
        %v5656 = vmul.u32 %v5655, 24
        %v5657 = vsub.s32 %v5651, %v5656
        %v5658 = vsub.s32 0, %v5657
        %v5659 = vsel %vm5649, %v5658, %v5657
        %vm5660 = vcmp.lt.s32.totalorder %v5202, 0
        %v5661 = vsub.s32 0, %v5202
        %v5662 = vsel %vm5660, %v5661, %v5202
        %v5663 = vmul.u32.u64.compose %v5662, 2863311531
        %v5664 = vextract.low.u32 %v5663
        %v5665 = vextract.high.u32 %v5663
        %v5666 = vshrl.u32 %v5665, 4
        %v5667 = vmul.u32 %v5666, 24
        %v5668 = vsub.s32 %v5662, %v5667
        %v5669 = vsub.s32 0, %v5668
        %v5670 = vsel %vm5660, %v5669, %v5668
        %vm5671 = vcmp.lt.s32.totalorder %v5203, 0
        %v5672 = vsub.s32 0, %v5203
        %v5673 = vsel %vm5671, %v5672, %v5203
        %v5674 = vmul.u32.u64.compose %v5673, 2863311531
        %v5675 = vextract.low.u32 %v5674
        %v5676 = vextract.high.u32 %v5674
        %v5677 = vshrl.u32 %v5676, 4
        %v5678 = vmul.u32 %v5677, 24
        %v5679 = vsub.s32 %v5673, %v5678
        %v5680 = vsub.s32 0, %v5679
        %v5681 = vsel %vm5671, %v5680, %v5679
        %vm5682 = vcmp.lt.s32.totalorder %v5204, 0
        %v5683 = vsub.s32 0, %v5204
        %v5684 = vsel %vm5682, %v5683, %v5204
        %v5685 = vmul.u32.u64.compose %v5684, 2863311531
        %v5686 = vextract.low.u32 %v5685
        %v5687 = vextract.high.u32 %v5685
        %v5688 = vshrl.u32 %v5687, 4
        %v5689 = vmul.u32 %v5688, 24
        %v5690 = vsub.s32 %v5684, %v5689
        %v5691 = vsub.s32 0, %v5690
        %v5692 = vsel %vm5682, %v5691, %v5690
        %vm5693 = vcmp.lt.s32.totalorder %v5205, 0
        %v5694 = vsub.s32 0, %v5205
        %v5695 = vsel %vm5693, %v5694, %v5205
        %v5696 = vmul.u32.u64.compose %v5695, 2863311531
        %v5697 = vextract.low.u32 %v5696
        %v5698 = vextract.high.u32 %v5696
        %v5699 = vshrl.u32 %v5698, 4
        %v5700 = vmul.u32 %v5699, 24
        %v5701 = vsub.s32 %v5695, %v5700
        %v5702 = vsub.s32 0, %v5701
        %v5703 = vsel %vm5693, %v5702, %v5701
        %vm5704 = vcmp.lt.s32.totalorder %v5206, 0
        %v5705 = vsub.s32 0, %v5206
        %v5706 = vsel %vm5704, %v5705, %v5206
        %v5707 = vmul.u32.u64.compose %v5706, 2863311531
        %v5708 = vextract.low.u32 %v5707
        %v5709 = vextract.high.u32 %v5707
        %v5710 = vshrl.u32 %v5709, 4
        %v5711 = vmul.u32 %v5710, 24
        %v5712 = vsub.s32 %v5706, %v5711
        %v5713 = vsub.s32 0, %v5712
        %v5714 = vsel %vm5704, %v5713, %v5712
        %vm5715 = vcmp.lt.s32.totalorder %v5207, 0
        %v5716 = vsub.s32 0, %v5207
        %v5717 = vsel %vm5715, %v5716, %v5207
        %v5718 = vmul.u32.u64.compose %v5717, 2863311531
        %v5719 = vextract.low.u32 %v5718
        %v5720 = vextract.high.u32 %v5718
        %v5721 = vshrl.u32 %v5720, 4
        %v5722 = vmul.u32 %v5721, 24
        %v5723 = vsub.s32 %v5717, %v5722
        %v5724 = vsub.s32 0, %v5723
        %v5725 = vsel %vm5715, %v5724, %v5723
        %vm5726 = vcmp.lt.s32.totalorder %v5208, 0
        %v5727 = vsub.s32 0, %v5208
        %v5728 = vsel %vm5726, %v5727, %v5208
        %v5729 = vmul.u32.u64.compose %v5728, 2863311531
        %v5730 = vextract.low.u32 %v5729
        %v5731 = vextract.high.u32 %v5729
        %v5732 = vshrl.u32 %v5731, 4
        %v5733 = vmul.u32 %v5732, 24
        %v5734 = vsub.s32 %v5728, %v5733
        %v5735 = vsub.s32 0, %v5734
        %v5736 = vsel %vm5726, %v5735, %v5734
        %vm5737 = vcmp.ne.s32.totalorder %v5219, 0
        %vm5738 = vcmp.ne.s32.totalorder %v5230, 0
        %vm5739 = vcmp.ne.s32.totalorder %v5241, 0
        %vm5740 = vcmp.ne.s32.totalorder %v5252, 0
        %vm5741 = vcmp.ne.s32.totalorder %v5263, 0
        %vm5742 = vcmp.ne.s32.totalorder %v5274, 0
        %vm5743 = vcmp.ne.s32.totalorder %v5285, 0
        %vm5744 = vcmp.ne.s32.totalorder %v5296, 0
        %vm5745 = vcmp.ne.s32.totalorder %v5307, 0
        %vm5746 = vcmp.ne.s32.totalorder %v5318, 0
        %vm5747 = vcmp.ne.s32.totalorder %v5329, 0
        %vm5748 = vcmp.ne.s32.totalorder %v5340, 0
        %vm5749 = vcmp.ne.s32.totalorder %v5351, 0
        %vm5750 = vcmp.ne.s32.totalorder %v5362, 0
        %vm5751 = vcmp.ne.s32.totalorder %v5373, 0
        %vm5752 = vcmp.ne.s32.totalorder %v5384, 0
        %vm5753 = vcmp.ne.s32.totalorder %v5395, 0
        %vm5754 = vcmp.ne.s32.totalorder %v5406, 0
        %vm5755 = vcmp.ne.s32.totalorder %v5417, 0
        %vm5756 = vcmp.ne.s32.totalorder %v5428, 0
        %vm5757 = vcmp.ne.s32.totalorder %v5439, 0
        %vm5758 = vcmp.ne.s32.totalorder %v5450, 0
        %vm5759 = vcmp.ne.s32.totalorder %v5461, 0
        %vm5760 = vcmp.ne.s32.totalorder %v5472, 0
        %vm5761 = vcmp.ne.s32.totalorder %v5483, 0
        %vm5762 = vcmp.ne.s32.totalorder %v5494, 0
        %vm5763 = vcmp.ne.s32.totalorder %v5505, 0
        %vm5764 = vcmp.ne.s32.totalorder %v5516, 0
        %vm5765 = vcmp.ne.s32.totalorder %v5527, 0
        %vm5766 = vcmp.ne.s32.totalorder %v5538, 0
        %vm5767 = vcmp.ne.s32.totalorder %v5549, 0
        %vm5768 = vcmp.ne.s32.totalorder %v5560, 0
        %vm5769 = vcmp.ne.s32.totalorder %v5571, 0
        %vm5770 = vcmp.ne.s32.totalorder %v5582, 0
        %vm5771 = vcmp.ne.s32.totalorder %v5593, 0
        %vm5772 = vcmp.ne.s32.totalorder %v5604, 0
        %vm5773 = vcmp.ne.s32.totalorder %v5615, 0
        %vm5774 = vcmp.ne.s32.totalorder %v5626, 0
        %vm5775 = vcmp.ne.s32.totalorder %v5637, 0
        %vm5776 = vcmp.ne.s32.totalorder %v5648, 0
        %vm5777 = vcmp.ne.s32.totalorder %v5659, 0
        %vm5778 = vcmp.ne.s32.totalorder %v5670, 0
        %vm5779 = vcmp.ne.s32.totalorder %v5681, 0
        %vm5780 = vcmp.ne.s32.totalorder %v5692, 0
        %vm5781 = vcmp.ne.s32.totalorder %v5703, 0
        %vm5782 = vcmp.ne.s32.totalorder %v5714, 0
        %vm5783 = vcmp.ne.s32.totalorder %v5725, 0
        %vm5784 = vcmp.ne.s32.totalorder %v5736, 0
        %vm5785 = vcmp.lt.s32.totalorder %v5219, 0
        %vm5786 = vcmp.lt.s32.totalorder %v5230, 0
        %vm5787 = vcmp.lt.s32.totalorder %v5241, 0
        %vm5788 = vcmp.lt.s32.totalorder %v5252, 0
        %vm5789 = vcmp.lt.s32.totalorder %v5263, 0
        %vm5790 = vcmp.lt.s32.totalorder %v5274, 0
        %vm5791 = vcmp.lt.s32.totalorder %v5285, 0
        %vm5792 = vcmp.lt.s32.totalorder %v5296, 0
        %vm5793 = vcmp.lt.s32.totalorder %v5307, 0
        %vm5794 = vcmp.lt.s32.totalorder %v5318, 0
        %vm5795 = vcmp.lt.s32.totalorder %v5329, 0
        %vm5796 = vcmp.lt.s32.totalorder %v5340, 0
        %vm5797 = vcmp.lt.s32.totalorder %v5351, 0
        %vm5798 = vcmp.lt.s32.totalorder %v5362, 0
        %vm5799 = vcmp.lt.s32.totalorder %v5373, 0
        %vm5800 = vcmp.lt.s32.totalorder %v5384, 0
        %vm5801 = vcmp.lt.s32.totalorder %v5395, 0
        %vm5802 = vcmp.lt.s32.totalorder %v5406, 0
        %vm5803 = vcmp.lt.s32.totalorder %v5417, 0
        %vm5804 = vcmp.lt.s32.totalorder %v5428, 0
        %vm5805 = vcmp.lt.s32.totalorder %v5439, 0
        %vm5806 = vcmp.lt.s32.totalorder %v5450, 0
        %vm5807 = vcmp.lt.s32.totalorder %v5461, 0
        %vm5808 = vcmp.lt.s32.totalorder %v5472, 0
        %vm5809 = vcmp.lt.s32.totalorder %v5483, 0
        %vm5810 = vcmp.lt.s32.totalorder %v5494, 0
        %vm5811 = vcmp.lt.s32.totalorder %v5505, 0
        %vm5812 = vcmp.lt.s32.totalorder %v5516, 0
        %vm5813 = vcmp.lt.s32.totalorder %v5527, 0
        %vm5814 = vcmp.lt.s32.totalorder %v5538, 0
        %vm5815 = vcmp.lt.s32.totalorder %v5549, 0
        %vm5816 = vcmp.lt.s32.totalorder %v5560, 0
        %vm5817 = vcmp.lt.s32.totalorder %v5571, 0
        %vm5818 = vcmp.lt.s32.totalorder %v5582, 0
        %vm5819 = vcmp.lt.s32.totalorder %v5593, 0
        %vm5820 = vcmp.lt.s32.totalorder %v5604, 0
        %vm5821 = vcmp.lt.s32.totalorder %v5615, 0
        %vm5822 = vcmp.lt.s32.totalorder %v5626, 0
        %vm5823 = vcmp.lt.s32.totalorder %v5637, 0
        %vm5824 = vcmp.lt.s32.totalorder %v5648, 0
        %vm5825 = vcmp.lt.s32.totalorder %v5659, 0
        %vm5826 = vcmp.lt.s32.totalorder %v5670, 0
        %vm5827 = vcmp.lt.s32.totalorder %v5681, 0
        %vm5828 = vcmp.lt.s32.totalorder %v5692, 0
        %vm5829 = vcmp.lt.s32.totalorder %v5703, 0
        %vm5830 = vcmp.lt.s32.totalorder %v5714, 0
        %vm5831 = vcmp.lt.s32.totalorder %v5725, 0
        %vm5832 = vcmp.lt.s32.totalorder %v5736, 0
        %vm5833 = vmand %vm5785, %vm5737
        %vm5834 = vmand %vm5786, %vm5738
        %vm5835 = vmand %vm5787, %vm5739
        %vm5836 = vmand %vm5788, %vm5740
        %vm5837 = vmand %vm5789, %vm5741
        %vm5838 = vmand %vm5790, %vm5742
        %vm5839 = vmand %vm5791, %vm5743
        %vm5840 = vmand %vm5792, %vm5744
        %vm5841 = vmand %vm5793, %vm5745
        %vm5842 = vmand %vm5794, %vm5746
        %vm5843 = vmand %vm5795, %vm5747
        %vm5844 = vmand %vm5796, %vm5748
        %vm5845 = vmand %vm5797, %vm5749
        %vm5846 = vmand %vm5798, %vm5750
        %vm5847 = vmand %vm5799, %vm5751
        %vm5848 = vmand %vm5800, %vm5752
        %vm5849 = vmand %vm5801, %vm5753
        %vm5850 = vmand %vm5802, %vm5754
        %vm5851 = vmand %vm5803, %vm5755
        %vm5852 = vmand %vm5804, %vm5756
        %vm5853 = vmand %vm5805, %vm5757
        %vm5854 = vmand %vm5806, %vm5758
        %vm5855 = vmand %vm5807, %vm5759
        %vm5856 = vmand %vm5808, %vm5760
        %vm5857 = vmand %vm5809, %vm5761
        %vm5858 = vmand %vm5810, %vm5762
        %vm5859 = vmand %vm5811, %vm5763
        %vm5860 = vmand %vm5812, %vm5764
        %vm5861 = vmand %vm5813, %vm5765
        %vm5862 = vmand %vm5814, %vm5766
        %vm5863 = vmand %vm5815, %vm5767
        %vm5864 = vmand %vm5816, %vm5768
        %vm5865 = vmand %vm5817, %vm5769
        %vm5866 = vmand %vm5818, %vm5770
        %vm5867 = vmand %vm5819, %vm5771
        %vm5868 = vmand %vm5820, %vm5772
        %vm5869 = vmand %vm5821, %vm5773
        %vm5870 = vmand %vm5822, %vm5774
        %vm5871 = vmand %vm5823, %vm5775
        %vm5872 = vmand %vm5824, %vm5776
        %vm5873 = vmand %vm5825, %vm5777
        %vm5874 = vmand %vm5826, %vm5778
        %vm5875 = vmand %vm5827, %vm5779
        %vm5876 = vmand %vm5828, %vm5780
        %vm5877 = vmand %vm5829, %vm5781
        %vm5878 = vmand %vm5830, %vm5782
        %vm5879 = vmand %vm5831, %vm5783
        %vm5880 = vmand %vm5832, %vm5784
        %v5881 = vadd.s32 %v5219, 24
        %v5882 = vadd.s32 %v5230, 24
        %v5883 = vadd.s32 %v5241, 24
        %v5884 = vadd.s32 %v5252, 24
        %v5885 = vadd.s32 %v5263, 24
        %v5886 = vadd.s32 %v5274, 24
        %v5887 = vadd.s32 %v5285, 24
        %v5888 = vadd.s32 %v5296, 24
        %v5889 = vadd.s32 %v5307, 24
        %v5890 = vadd.s32 %v5318, 24
        %v5891 = vadd.s32 %v5329, 24
        %v5892 = vadd.s32 %v5340, 24
        %v5893 = vadd.s32 %v5351, 24
        %v5894 = vadd.s32 %v5362, 24
        %v5895 = vadd.s32 %v5373, 24
        %v5896 = vadd.s32 %v5384, 24
        %v5897 = vadd.s32 %v5395, 24
        %v5898 = vadd.s32 %v5406, 24
        %v5899 = vadd.s32 %v5417, 24
        %v5900 = vadd.s32 %v5428, 24
        %v5901 = vadd.s32 %v5439, 24
        %v5902 = vadd.s32 %v5450, 24
        %v5903 = vadd.s32 %v5461, 24
        %v5904 = vadd.s32 %v5472, 24
        %v5905 = vadd.s32 %v5483, 24
        %v5906 = vadd.s32 %v5494, 24
        %v5907 = vadd.s32 %v5505, 24
        %v5908 = vadd.s32 %v5516, 24
        %v5909 = vadd.s32 %v5527, 24
        %v5910 = vadd.s32 %v5538, 24
        %v5911 = vadd.s32 %v5549, 24
        %v5912 = vadd.s32 %v5560, 24
        %v5913 = vadd.s32 %v5571, 24
        %v5914 = vadd.s32 %v5582, 24
        %v5915 = vadd.s32 %v5593, 24
        %v5916 = vadd.s32 %v5604, 24
        %v5917 = vadd.s32 %v5615, 24
        %v5918 = vadd.s32 %v5626, 24
        %v5919 = vadd.s32 %v5637, 24
        %v5920 = vadd.s32 %v5648, 24
        %v5921 = vadd.s32 %v5659, 24
        %v5922 = vadd.s32 %v5670, 24
        %v5923 = vadd.s32 %v5681, 24
        %v5924 = vadd.s32 %v5692, 24
        %v5925 = vadd.s32 %v5703, 24
        %v5926 = vadd.s32 %v5714, 24
        %v5927 = vadd.s32 %v5725, 24
        %v5928 = vadd.s32 %v5736, 24
        %v5929 = vsel %vm5833, %v5881, %v5219
        %v5930 = vsel %vm5834, %v5882, %v5230
        %v5931 = vsel %vm5835, %v5883, %v5241
        %v5932 = vsel %vm5836, %v5884, %v5252
        %v5933 = vsel %vm5837, %v5885, %v5263
        %v5934 = vsel %vm5838, %v5886, %v5274
        %v5935 = vsel %vm5839, %v5887, %v5285
        %v5936 = vsel %vm5840, %v5888, %v5296
        %v5937 = vsel %vm5841, %v5889, %v5307
        %v5938 = vsel %vm5842, %v5890, %v5318
        %v5939 = vsel %vm5843, %v5891, %v5329
        %v5940 = vsel %vm5844, %v5892, %v5340
        %v5941 = vsel %vm5845, %v5893, %v5351
        %v5942 = vsel %vm5846, %v5894, %v5362
        %v5943 = vsel %vm5847, %v5895, %v5373
        %v5944 = vsel %vm5848, %v5896, %v5384
        %v5945 = vsel %vm5849, %v5897, %v5395
        %v5946 = vsel %vm5850, %v5898, %v5406
        %v5947 = vsel %vm5851, %v5899, %v5417
        %v5948 = vsel %vm5852, %v5900, %v5428
        %v5949 = vsel %vm5853, %v5901, %v5439
        %v5950 = vsel %vm5854, %v5902, %v5450
        %v5951 = vsel %vm5855, %v5903, %v5461
        %v5952 = vsel %vm5856, %v5904, %v5472
        %v5953 = vsel %vm5857, %v5905, %v5483
        %v5954 = vsel %vm5858, %v5906, %v5494
        %v5955 = vsel %vm5859, %v5907, %v5505
        %v5956 = vsel %vm5860, %v5908, %v5516
        %v5957 = vsel %vm5861, %v5909, %v5527
        %v5958 = vsel %vm5862, %v5910, %v5538
        %v5959 = vsel %vm5863, %v5911, %v5549
        %v5960 = vsel %vm5864, %v5912, %v5560
        %v5961 = vsel %vm5865, %v5913, %v5571
        %v5962 = vsel %vm5866, %v5914, %v5582
        %v5963 = vsel %vm5867, %v5915, %v5593
        %v5964 = vsel %vm5868, %v5916, %v5604
        %v5965 = vsel %vm5869, %v5917, %v5615
        %v5966 = vsel %vm5870, %v5918, %v5626
        %v5967 = vsel %vm5871, %v5919, %v5637
        %v5968 = vsel %vm5872, %v5920, %v5648
        %v5969 = vsel %vm5873, %v5921, %v5659
        %v5970 = vsel %vm5874, %v5922, %v5670
        %v5971 = vsel %vm5875, %v5923, %v5681
        %v5972 = vsel %vm5876, %v5924, %v5692
        %v5973 = vsel %vm5877, %v5925, %v5703
        %v5974 = vsel %vm5878, %v5926, %v5714
        %v5975 = vsel %vm5879, %v5927, %v5725
        %v5976 = vsel %vm5880, %v5928, %v5736
        %vm5977 = vcmp.lt.s32.totalorder %v5929, 16
        %vm5978 = vcmp.lt.s32.totalorder %v5930, 16
        %vm5979 = vcmp.lt.s32.totalorder %v5931, 16
        %vm5980 = vcmp.lt.s32.totalorder %v5932, 16
        %vm5981 = vcmp.lt.s32.totalorder %v5933, 16
        %vm5982 = vcmp.lt.s32.totalorder %v5934, 16
        %vm5983 = vcmp.lt.s32.totalorder %v5935, 16
        %vm5984 = vcmp.lt.s32.totalorder %v5936, 16
        %vm5985 = vcmp.lt.s32.totalorder %v5937, 16
        %vm5986 = vcmp.lt.s32.totalorder %v5938, 16
        %vm5987 = vcmp.lt.s32.totalorder %v5939, 16
        %vm5988 = vcmp.lt.s32.totalorder %v5940, 16
        %vm5989 = vcmp.lt.s32.totalorder %v5941, 16
        %vm5990 = vcmp.lt.s32.totalorder %v5942, 16
        %vm5991 = vcmp.lt.s32.totalorder %v5943, 16
        %vm5992 = vcmp.lt.s32.totalorder %v5944, 16
        %vm5993 = vcmp.lt.s32.totalorder %v5945, 16
        %vm5994 = vcmp.lt.s32.totalorder %v5946, 16
        %vm5995 = vcmp.lt.s32.totalorder %v5947, 16
        %vm5996 = vcmp.lt.s32.totalorder %v5948, 16
        %vm5997 = vcmp.lt.s32.totalorder %v5949, 16
        %vm5998 = vcmp.lt.s32.totalorder %v5950, 16
        %vm5999 = vcmp.lt.s32.totalorder %v5951, 16
        %vm6000 = vcmp.lt.s32.totalorder %v5952, 16
        %vm6001 = vcmp.lt.s32.totalorder %v5953, 16
        %vm6002 = vcmp.lt.s32.totalorder %v5954, 16
        %vm6003 = vcmp.lt.s32.totalorder %v5955, 16
        %vm6004 = vcmp.lt.s32.totalorder %v5956, 16
        %vm6005 = vcmp.lt.s32.totalorder %v5957, 16
        %vm6006 = vcmp.lt.s32.totalorder %v5958, 16
        %vm6007 = vcmp.lt.s32.totalorder %v5959, 16
        %vm6008 = vcmp.lt.s32.totalorder %v5960, 16
        %vm6009 = vcmp.lt.s32.totalorder %v5961, 16
        %vm6010 = vcmp.lt.s32.totalorder %v5962, 16
        %vm6011 = vcmp.lt.s32.totalorder %v5963, 16
        %vm6012 = vcmp.lt.s32.totalorder %v5964, 16
        %vm6013 = vcmp.lt.s32.totalorder %v5965, 16
        %vm6014 = vcmp.lt.s32.totalorder %v5966, 16
        %vm6015 = vcmp.lt.s32.totalorder %v5967, 16
        %vm6016 = vcmp.lt.s32.totalorder %v5968, 16
        %vm6017 = vcmp.lt.s32.totalorder %v5969, 16
        %vm6018 = vcmp.lt.s32.totalorder %v5970, 16
        %vm6019 = vcmp.lt.s32.totalorder %v5971, 16
        %vm6020 = vcmp.lt.s32.totalorder %v5972, 16
        %vm6021 = vcmp.lt.s32.totalorder %v5973, 16
        %vm6022 = vcmp.lt.s32.totalorder %v5974, 16
        %vm6023 = vcmp.lt.s32.totalorder %v5975, 16
        %vm6024 = vcmp.lt.s32.totalorder %v5976, 16
        %v6025 = vsel %vm5977, 1, 0
        %v6026 = vsel %vm5978, 1, 0
        %v6027 = vsel %vm5979, 1, 0
        %v6028 = vsel %vm5980, 1, 0
        %v6029 = vsel %vm5981, 1, 0
        %v6030 = vsel %vm5982, 1, 0
        %v6031 = vsel %vm5983, 1, 0
        %v6032 = vsel %vm5984, 1, 0
        %v6033 = vsel %vm5985, 1, 0
        %v6034 = vsel %vm5986, 1, 0
        %v6035 = vsel %vm5987, 1, 0
        %v6036 = vsel %vm5988, 1, 0
        %v6037 = vsel %vm5989, 1, 0
        %v6038 = vsel %vm5990, 1, 0
        %v6039 = vsel %vm5991, 1, 0
        %v6040 = vsel %vm5992, 1, 0
        %v6041 = vsel %vm5993, 1, 0
        %v6042 = vsel %vm5994, 1, 0
        %v6043 = vsel %vm5995, 1, 0
        %v6044 = vsel %vm5996, 1, 0
        %v6045 = vsel %vm5997, 1, 0
        %v6046 = vsel %vm5998, 1, 0
        %v6047 = vsel %vm5999, 1, 0
        %v6048 = vsel %vm6000, 1, 0
        %v6049 = vsel %vm6001, 1, 0
        %v6050 = vsel %vm6002, 1, 0
        %v6051 = vsel %vm6003, 1, 0
        %v6052 = vsel %vm6004, 1, 0
        %v6053 = vsel %vm6005, 1, 0
        %v6054 = vsel %vm6006, 1, 0
        %v6055 = vsel %vm6007, 1, 0
        %v6056 = vsel %vm6008, 1, 0
        %v6057 = vsel %vm6009, 1, 0
        %v6058 = vsel %vm6010, 1, 0
        %v6059 = vsel %vm6011, 1, 0
        %v6060 = vsel %vm6012, 1, 0
        %v6061 = vsel %vm6013, 1, 0
        %v6062 = vsel %vm6014, 1, 0
        %v6063 = vsel %vm6015, 1, 0
        %v6064 = vsel %vm6016, 1, 0
        %v6065 = vsel %vm6017, 1, 0
        %v6066 = vsel %vm6018, 1, 0
        %v6067 = vsel %vm6019, 1, 0
        %v6068 = vsel %vm6020, 1, 0
        %v6069 = vsel %vm6021, 1, 0
        %v6070 = vsel %vm6022, 1, 0
        %v6071 = vsel %vm6023, 1, 0
        %v6072 = vsel %vm6024, 1, 0
        %v6073 = vcvt.s32.f32 %v6025
        %v6074 = vcvt.s32.f32 %v6026
        %v6075 = vcvt.s32.f32 %v6027
        %v6076 = vcvt.s32.f32 %v6028
        %v6077 = vcvt.s32.f32 %v6029
        %v6078 = vcvt.s32.f32 %v6030
        %v6079 = vcvt.s32.f32 %v6031
        %v6080 = vcvt.s32.f32 %v6032
        %v6081 = vcvt.s32.f32 %v6033
        %v6082 = vcvt.s32.f32 %v6034
        %v6083 = vcvt.s32.f32 %v6035
        %v6084 = vcvt.s32.f32 %v6036
        %v6085 = vcvt.s32.f32 %v6037
        %v6086 = vcvt.s32.f32 %v6038
        %v6087 = vcvt.s32.f32 %v6039
        %v6088 = vcvt.s32.f32 %v6040
        %v6089 = vcvt.s32.f32 %v6041
        %v6090 = vcvt.s32.f32 %v6042
        %v6091 = vcvt.s32.f32 %v6043
        %v6092 = vcvt.s32.f32 %v6044
        %v6093 = vcvt.s32.f32 %v6045
        %v6094 = vcvt.s32.f32 %v6046
        %v6095 = vcvt.s32.f32 %v6047
        %v6096 = vcvt.s32.f32 %v6048
        %v6097 = vcvt.s32.f32 %v6049
        %v6098 = vcvt.s32.f32 %v6050
        %v6099 = vcvt.s32.f32 %v6051
        %v6100 = vcvt.s32.f32 %v6052
        %v6101 = vcvt.s32.f32 %v6053
        %v6102 = vcvt.s32.f32 %v6054
        %v6103 = vcvt.s32.f32 %v6055
        %v6104 = vcvt.s32.f32 %v6056
        %v6105 = vcvt.s32.f32 %v6057
        %v6106 = vcvt.s32.f32 %v6058
        %v6107 = vcvt.s32.f32 %v6059
        %v6108 = vcvt.s32.f32 %v6060
        %v6109 = vcvt.s32.f32 %v6061
        %v6110 = vcvt.s32.f32 %v6062
        %v6111 = vcvt.s32.f32 %v6063
        %v6112 = vcvt.s32.f32 %v6064
        %v6113 = vcvt.s32.f32 %v6065
        %v6114 = vcvt.s32.f32 %v6066
        %v6115 = vcvt.s32.f32 %v6067
        %v6116 = vcvt.s32.f32 %v6068
        %v6117 = vcvt.s32.f32 %v6069
        %v6118 = vcvt.s32.f32 %v6070
        %v6119 = vcvt.s32.f32 %v6071
        %v6120 = vcvt.s32.f32 %v6072
        %v6121 = vmul.f32 %v5112, %v6073
        %v6122 = vmul.f32 %v5113, %v6074
        %v6123 = vmul.f32 %v5114, %v6075
        %v6124 = vmul.f32 %v5115, %v6076
        %v6125 = vmul.f32 %v5116, %v6077
        %v6126 = vmul.f32 %v5117, %v6078
        %v6127 = vmul.f32 %v5118, %v6079
        %v6128 = vmul.f32 %v5119, %v6080
        %v6129 = vmul.f32 %v5120, %v6081
        %v6130 = vmul.f32 %v5121, %v6082
        %v6131 = vmul.f32 %v5122, %v6083
        %v6132 = vmul.f32 %v5123, %v6084
        %v6133 = vmul.f32 %v5124, %v6085
        %v6134 = vmul.f32 %v5125, %v6086
        %v6135 = vmul.f32 %v5126, %v6087
        %v6136 = vmul.f32 %v5127, %v6088
        %v6137 = vmul.f32 %v5128, %v6089
        %v6138 = vmul.f32 %v5129, %v6090
        %v6139 = vmul.f32 %v5130, %v6091
        %v6140 = vmul.f32 %v5131, %v6092
        %v6141 = vmul.f32 %v5132, %v6093
        %v6142 = vmul.f32 %v5133, %v6094
        %v6143 = vmul.f32 %v5134, %v6095
        %v6144 = vmul.f32 %v5135, %v6096
        %v6145 = vmul.f32 %v5136, %v6097
        %v6146 = vmul.f32 %v5137, %v6098
        %v6147 = vmul.f32 %v5138, %v6099
        %v6148 = vmul.f32 %v5139, %v6100
        %v6149 = vmul.f32 %v5140, %v6101
        %v6150 = vmul.f32 %v5141, %v6102
        %v6151 = vmul.f32 %v5142, %v6103
        %v6152 = vmul.f32 %v5143, %v6104
        %v6153 = vmul.f32 %v5144, %v6105
        %v6154 = vmul.f32 %v5145, %v6106
        %v6155 = vmul.f32 %v5146, %v6107
        %v6156 = vmul.f32 %v5147, %v6108
        %v6157 = vmul.f32 %v5148, %v6109
        %v6158 = vmul.f32 %v5149, %v6110
        %v6159 = vmul.f32 %v5150, %v6111
        %v6160 = vmul.f32 %v5151, %v6112
        %v6161 = vmul.f32 %v5152, %v6113
        %v6162 = vmul.f32 %v5153, %v6114
        %v6163 = vmul.f32 %v5154, %v6115
        %v6164 = vmul.f32 %v5155, %v6116
        %v6165 = vmul.f32 %v5156, %v6117
        %v6166 = vmul.f32 %v5157, %v6118
        %v6167 = vmul.f32 %v5158, %v6119
        %v6168 = vmul.f32 %v5159, %v6120
        %vm6169 = vcmask 64512
        %v6170 = vsel %vm6169, %v6121, 0.0
        %v6171 = vsel %vm6169, %v6122, 0.0
        %v6172 = vadd.f32 %v6170, %v6171
        %v6173 = vsel %vm6169, %v6123, 0.0
        %v6174 = vadd.f32 %v6172, %v6173
        %v6175 = vsel %vm6169, %v6124, 0.0
        %v6176 = vadd.f32 %v6174, %v6175
        %v6177 = vsel %vm6169, %v6125, 0.0
        %v6178 = vadd.f32 %v6176, %v6177
        %v6179 = vsel %vm6169, %v6126, 0.0
        %v6180 = vadd.f32 %v6178, %v6179
        %v6181 = vsel %vm6169, %v6127, 0.0
        %v6182 = vadd.f32 %v6180, %v6181
        %v6183 = vsel %vm6169, %v6128, 0.0
        %v6184 = vadd.f32 %v6182, %v6183
        %v6185 = vsel %vm6169, %v6129, 0.0
        %v6186 = vadd.f32 %v6184, %v6185
        %v6187 = vsel %vm6169, %v6130, 0.0
        %v6188 = vadd.f32 %v6186, %v6187
        %v6189 = vsel %vm6169, %v6131, 0.0
        %v6190 = vadd.f32 %v6188, %v6189
        %v6191 = vsel %vm6169, %v6132, 0.0
        %v6192 = vadd.f32 %v6190, %v6191
        %v6193 = vsel %vm6169, %v6133, 0.0
        %v6194 = vadd.f32 %v6192, %v6193
        %v6195 = vsel %vm6169, %v6134, 0.0
        %v6196 = vadd.f32 %v6194, %v6195
        %v6197 = vsel %vm6169, %v6135, 0.0
        %v6198 = vadd.f32 %v6196, %v6197
        %v6199 = vsel %vm6169, %v6136, 0.0
        %v6200 = vadd.f32 %v6198, %v6199
        %v6201 = vsel %vm6169, %v6137, 0.0
        %v6202 = vadd.f32 %v6200, %v6201
        %v6203 = vsel %vm6169, %v6138, 0.0
        %v6204 = vadd.f32 %v6202, %v6203
        %v6205 = vsel %vm6169, %v6139, 0.0
        %v6206 = vadd.f32 %v6204, %v6205
        %v6207 = vsel %vm6169, %v6140, 0.0
        %v6208 = vadd.f32 %v6206, %v6207
        %v6209 = vsel %vm6169, %v6141, 0.0
        %v6210 = vadd.f32 %v6208, %v6209
        %v6211 = vsel %vm6169, %v6142, 0.0
        %v6212 = vadd.f32 %v6210, %v6211
        %v6213 = vsel %vm6169, %v6143, 0.0
        %v6214 = vadd.f32 %v6212, %v6213
        %v6215 = vsel %vm6169, %v6144, 0.0
        %v6216 = vadd.f32 %v6214, %v6215
        %v6217 = vsel %vm6169, %v6145, 0.0
        %v6218 = vadd.f32 %v6216, %v6217
        %v6219 = vsel %vm6169, %v6146, 0.0
        %v6220 = vadd.f32 %v6218, %v6219
        %v6221 = vsel %vm6169, %v6147, 0.0
        %v6222 = vadd.f32 %v6220, %v6221
        %v6223 = vsel %vm6169, %v6148, 0.0
        %v6224 = vadd.f32 %v6222, %v6223
        %v6225 = vsel %vm6169, %v6149, 0.0
        %v6226 = vadd.f32 %v6224, %v6225
        %v6227 = vsel %vm6169, %v6150, 0.0
        %v6228 = vadd.f32 %v6226, %v6227
        %v6229 = vsel %vm6169, %v6151, 0.0
        %v6230 = vadd.f32 %v6228, %v6229
        %v6231 = vsel %vm6169, %v6152, 0.0
        %v6232 = vadd.f32 %v6230, %v6231
        %v6233 = vsel %vm6169, %v6153, 0.0
        %v6234 = vadd.f32 %v6232, %v6233
        %v6235 = vsel %vm6169, %v6154, 0.0
        %v6236 = vadd.f32 %v6234, %v6235
        %v6237 = vsel %vm6169, %v6155, 0.0
        %v6238 = vadd.f32 %v6236, %v6237
        %v6239 = vsel %vm6169, %v6156, 0.0
        %v6240 = vadd.f32 %v6238, %v6239
        %v6241 = vsel %vm6169, %v6157, 0.0
        %v6242 = vadd.f32 %v6240, %v6241
        %v6243 = vsel %vm6169, %v6158, 0.0
        %v6244 = vadd.f32 %v6242, %v6243
        %v6245 = vsel %vm6169, %v6159, 0.0
        %v6246 = vadd.f32 %v6244, %v6245
        %v6247 = vsel %vm6169, %v6160, 0.0
        %v6248 = vadd.f32 %v6246, %v6247
        %v6249 = vsel %vm6169, %v6161, 0.0
        %v6250 = vadd.f32 %v6248, %v6249
        %v6251 = vsel %vm6169, %v6162, 0.0
        %v6252 = vadd.f32 %v6250, %v6251
        %v6253 = vsel %vm6169, %v6163, 0.0
        %v6254 = vadd.f32 %v6252, %v6253
        %v6255 = vsel %vm6169, %v6164, 0.0
        %v6256 = vadd.f32 %v6254, %v6255
        %v6257 = vsel %vm6169, %v6165, 0.0
        %v6258 = vadd.f32 %v6256, %v6257
        %v6259 = vsel %vm6169, %v6166, 0.0
        %v6260 = vadd.f32 %v6258, %v6259
        %v6261 = vsel %vm6169, %v6167, 0.0
        %v6262 = vadd.f32 %v6260, %v6261
        %v6263 = vsel %vm6169, %v6168, 0.0
        %v6264 = vadd.f32 %v6262, %v6263
        %v6265 = vrot.slane %v6264, 4
        %v6266 = vadd.f32 %v6264, %v6265
        %v6267 = vrot.slane %v6266, 2
        %v6268 = vadd.f32 %v6266, %v6267
        %v6269 = vrot.slane %v6268, 1
        %v6270 = vadd.f32 %v6268, %v6269
        %v6271 = vld [vmem:[%s5] sm:$0xff]
        %v6273 = vsel %vm6169, %v6270, 0
        %6275 = vmatprep.subr.mxu0 0.0
        %6276 = vmatpush1.msra.mxu0 %v6271
        %6277 = vmatprep.subr.mxu0 0.0
        %6278 = vmatpush1.msra.mxu0 0.0
        %6279 = vmatprep.subr.mxu0 0.0
        %6280 = vmatpush1.msra.mxu0 0.0
        %6281 = vmatprep.subr.mxu0 0.0
        %6282 = vmatpush1.msra.mxu0 0.0
        %6283 = vmatprep.subr.mxu0 0.0
        %6284 = vmatpush1.msra.mxu0 0.0
        %6285 = vmatprep.subr.mxu0 0.0
        %6286 = vmatpush1.msra.mxu0 0.0
        %6287 = vmatprep.subr.mxu0 0.0
        %6288 = vmatpush1.msra.mxu0 0.0
        %6289 = vmatprep.subr.mxu0 0.0
        %6290 = vmatpush1.msra.mxu0 0.0
        %6291 = vmatprep.subr.mxu0 0.0
        %6292 = vmatpush1.msra.mxu0 0.0
        %6293 = vmatprep.subr.mxu0 0.0
        %6294 = vmatpush1.msra.mxu0 0.0
        %6295 = vmatprep.subr.mxu0 0.0
        %6296 = vmatpush1.msra.mxu0 0.0
        %6297 = vmatprep.subr.mxu0 0.0
        %6298 = vmatpush1.msra.mxu0 0.0
        %6299 = vmatprep.subr.mxu0 0.0
        %6300 = vmatpush1.msra.mxu0 0.0
        %6301 = vmatprep.subr.mxu0 0.0
        %6302 = vmatpush1.msra.mxu0 0.0
        %6303 = vmatprep.subr.mxu0 0.0
        %6304 = vmatpush1.msra.mxu0 0.0
        %6305 = vmatprep.subr.mxu0 0.0
        %6306 = vmatpush1.msra.mxu0 0.0
        %6307 = vmatprep.subr.mxu0 0.0
        %6308 = vmatpush1.msra.mxu0 0.0
        %6309 = vmatprep.subr.mxu0 0.0
        %6310 = vmatpush1.msra.mxu0 0.0
        %6311 = vmatprep.subr.mxu0 0.0
        %6312 = vmatpush1.msra.mxu0 0.0
        %6313 = vmatprep.subr.mxu0 0.0
        %6314 = vmatpush1.msra.mxu0 0.0
        %6315 = vmatprep.subr.mxu0 0.0
        %6316 = vmatpush1.msra.mxu0 0.0
        %6317 = vmatprep.subr.mxu0 0.0
        %6318 = vmatpush1.msra.mxu0 0.0
        %6319 = vmatprep.subr.mxu0 0.0
        %6320 = vmatpush1.msra.mxu0 0.0
        %6321 = vmatprep.subr.mxu0 0.0
        %6322 = vmatpush1.msra.mxu0 0.0
        %6323 = vmatprep.subr.mxu0 0.0
        %6324 = vmatpush1.msra.mxu0 0.0
        %6325 = vmatprep.subr.mxu0 0.0
        %6326 = vmatpush1.msra.mxu0 0.0
        %6327 = vmatprep.subr.mxu0 0.0
        %6328 = vmatpush1.msra.mxu0 0.0
        %6329 = vmatprep.subr.mxu0 0.0
        %6330 = vmatpush1.msra.mxu0 0.0
        %6331 = vmatprep.subr.mxu0 0.0
        %6332 = vmatpush1.msra.mxu0 0.0
        %6333 = vmatprep.subr.mxu0 0.0
        %6334 = vmatpush1.msra.mxu0 0.0
        %6335 = vmatprep.subr.mxu0 0.0
        %6336 = vmatpush1.msra.mxu0 0.0
        %6337 = vmatprep.subr.mxu0 0.0
        %6338 = vmatpush1.msra.mxu0 0.0
        %6339 = vmatprep.mubr.f32.mxu0 0.0
        %6340 = vmatmul.mubr.f32.gmra.mrb[0].mxu0 %v6273
        %v6341 = vpop.f32.mrb[0].mxu0
        %v6342 = vadd.f32 0.0, %v6341
        %v6343 = vpop.f32.mrb[0].mxu0
        %6344 = vdwg.mxu0
        %v6345 = vlaneseq
        %v6346 = vshrl.u32 %v6345, 7
        %v6347 = vsub.s32 0, %v6346
        %v6348 = vrot.slane %v6342, %v6347
        %v6349 = vsub.f32 %v5112, %v6348
        %v6350 = vsub.f32 %v5113, %v6348
        %v6351 = vsub.f32 %v5114, %v6348
        %v6352 = vsub.f32 %v5115, %v6348
        %v6353 = vsub.f32 %v5116, %v6348
        %v6354 = vsub.f32 %v5117, %v6348
        %v6355 = vsub.f32 %v5118, %v6348
        %v6356 = vsub.f32 %v5119, %v6348
        %v6357 = vsub.f32 %v5120, %v6348
        %v6358 = vsub.f32 %v5121, %v6348
        %v6359 = vsub.f32 %v5122, %v6348
        %v6360 = vsub.f32 %v5123, %v6348
        %v6361 = vsub.f32 %v5124, %v6348
        %v6362 = vsub.f32 %v5125, %v6348
        %v6363 = vsub.f32 %v5126, %v6348
        %v6364 = vsub.f32 %v5127, %v6348
        %v6365 = vsub.f32 %v5128, %v6348
        %v6366 = vsub.f32 %v5129, %v6348
        %v6367 = vsub.f32 %v5130, %v6348
        %v6368 = vsub.f32 %v5131, %v6348
        %v6369 = vsub.f32 %v5132, %v6348
        %v6370 = vsub.f32 %v5133, %v6348
        %v6371 = vsub.f32 %v5134, %v6348
        %v6372 = vsub.f32 %v5135, %v6348
        %v6373 = vsub.f32 %v5136, %v6348
        %v6374 = vsub.f32 %v5137, %v6348
        %v6375 = vsub.f32 %v5138, %v6348
        %v6376 = vsub.f32 %v5139, %v6348
        %v6377 = vsub.f32 %v5140, %v6348
        %v6378 = vsub.f32 %v5141, %v6348
        %v6379 = vsub.f32 %v5142, %v6348
        %v6380 = vsub.f32 %v5143, %v6348
        %v6381 = vsub.f32 %v5144, %v6348
        %v6382 = vsub.f32 %v5145, %v6348
        %v6383 = vsub.f32 %v5146, %v6348
        %v6384 = vsub.f32 %v5147, %v6348
        %v6385 = vsub.f32 %v5148, %v6348
        %v6386 = vsub.f32 %v5149, %v6348
        %v6387 = vsub.f32 %v5150, %v6348
        %v6388 = vsub.f32 %v5151, %v6348
        %v6389 = vsub.f32 %v5152, %v6348
        %v6390 = vsub.f32 %v5153, %v6348
        %v6391 = vsub.f32 %v5154, %v6348
        %v6392 = vsub.f32 %v5155, %v6348
        %v6393 = vsub.f32 %v5156, %v6348
        %v6394 = vsub.f32 %v5157, %v6348
        %v6395 = vsub.f32 %v5158, %v6348
        %v6396 = vsub.f32 %v5159, %v6348
        %v6397 = vmul.f32 %v6349, %v6073
        %v6398 = vmul.f32 %v6350, %v6074
        %v6399 = vmul.f32 %v6351, %v6075
        %v6400 = vmul.f32 %v6352, %v6076
        %v6401 = vmul.f32 %v6353, %v6077
        %v6402 = vmul.f32 %v6354, %v6078
        %v6403 = vmul.f32 %v6355, %v6079
        %v6404 = vmul.f32 %v6356, %v6080
        %v6405 = vmul.f32 %v6357, %v6081
        %v6406 = vmul.f32 %v6358, %v6082
        %v6407 = vmul.f32 %v6359, %v6083
        %v6408 = vmul.f32 %v6360, %v6084
        %v6409 = vmul.f32 %v6361, %v6085
        %v6410 = vmul.f32 %v6362, %v6086
        %v6411 = vmul.f32 %v6363, %v6087
        %v6412 = vmul.f32 %v6364, %v6088
        %v6413 = vmul.f32 %v6365, %v6089
        %v6414 = vmul.f32 %v6366, %v6090
        %v6415 = vmul.f32 %v6367, %v6091
        %v6416 = vmul.f32 %v6368, %v6092
        %v6417 = vmul.f32 %v6369, %v6093
        %v6418 = vmul.f32 %v6370, %v6094
        %v6419 = vmul.f32 %v6371, %v6095
        %v6420 = vmul.f32 %v6372, %v6096
        %v6421 = vmul.f32 %v6373, %v6097
        %v6422 = vmul.f32 %v6374, %v6098
        %v6423 = vmul.f32 %v6375, %v6099
        %v6424 = vmul.f32 %v6376, %v6100
        %v6425 = vmul.f32 %v6377, %v6101
        %v6426 = vmul.f32 %v6378, %v6102
        %v6427 = vmul.f32 %v6379, %v6103
        %v6428 = vmul.f32 %v6380, %v6104
        %v6429 = vmul.f32 %v6381, %v6105
        %v6430 = vmul.f32 %v6382, %v6106
        %v6431 = vmul.f32 %v6383, %v6107
        %v6432 = vmul.f32 %v6384, %v6108
        %v6433 = vmul.f32 %v6385, %v6109
        %v6434 = vmul.f32 %v6386, %v6110
        %v6435 = vmul.f32 %v6387, %v6111
        %v6436 = vmul.f32 %v6388, %v6112
        %v6437 = vmul.f32 %v6389, %v6113
        %v6438 = vmul.f32 %v6390, %v6114
        %v6439 = vmul.f32 %v6391, %v6115
        %v6440 = vmul.f32 %v6392, %v6116
        %v6441 = vmul.f32 %v6393, %v6117
        %v6442 = vmul.f32 %v6394, %v6118
        %v6443 = vmul.f32 %v6395, %v6119
        %v6444 = vmul.f32 %v6396, %v6120
        %v6445 = vmul.f32 %v6397, %v6397
        %v6446 = vmul.f32 %v6398, %v6398
        %v6447 = vmul.f32 %v6399, %v6399
        %v6448 = vmul.f32 %v6400, %v6400
        %v6449 = vmul.f32 %v6401, %v6401
        %v6450 = vmul.f32 %v6402, %v6402
        %v6451 = vmul.f32 %v6403, %v6403
        %v6452 = vmul.f32 %v6404, %v6404
        %v6453 = vmul.f32 %v6405, %v6405
        %v6454 = vmul.f32 %v6406, %v6406
        %v6455 = vmul.f32 %v6407, %v6407
        %v6456 = vmul.f32 %v6408, %v6408
        %v6457 = vmul.f32 %v6409, %v6409
        %v6458 = vmul.f32 %v6410, %v6410
        %v6459 = vmul.f32 %v6411, %v6411
        %v6460 = vmul.f32 %v6412, %v6412
        %v6461 = vmul.f32 %v6413, %v6413
        %v6462 = vmul.f32 %v6414, %v6414
        %v6463 = vmul.f32 %v6415, %v6415
        %v6464 = vmul.f32 %v6416, %v6416
        %v6465 = vmul.f32 %v6417, %v6417
        %v6466 = vmul.f32 %v6418, %v6418
        %v6467 = vmul.f32 %v6419, %v6419
        %v6468 = vmul.f32 %v6420, %v6420
        %v6469 = vmul.f32 %v6421, %v6421
        %v6470 = vmul.f32 %v6422, %v6422
        %v6471 = vmul.f32 %v6423, %v6423
        %v6472 = vmul.f32 %v6424, %v6424
        %v6473 = vmul.f32 %v6425, %v6425
        %v6474 = vmul.f32 %v6426, %v6426
        %v6475 = vmul.f32 %v6427, %v6427
        %v6476 = vmul.f32 %v6428, %v6428
        %v6477 = vmul.f32 %v6429, %v6429
        %v6478 = vmul.f32 %v6430, %v6430
        %v6479 = vmul.f32 %v6431, %v6431
        %v6480 = vmul.f32 %v6432, %v6432
        %v6481 = vmul.f32 %v6433, %v6433
        %v6482 = vmul.f32 %v6434, %v6434
        %v6483 = vmul.f32 %v6435, %v6435
        %v6484 = vmul.f32 %v6436, %v6436
        %v6485 = vmul.f32 %v6437, %v6437
        %v6486 = vmul.f32 %v6438, %v6438
        %v6487 = vmul.f32 %v6439, %v6439
        %v6488 = vmul.f32 %v6440, %v6440
        %v6489 = vmul.f32 %v6441, %v6441
        %v6490 = vmul.f32 %v6442, %v6442
        %v6491 = vmul.f32 %v6443, %v6443
        %v6492 = vmul.f32 %v6444, %v6444
        %v6493 = vsel %vm6169, %v6445, 0.0
        %v6494 = vsel %vm6169, %v6446, 0.0
        %v6495 = vadd.f32 %v6493, %v6494
        %v6496 = vsel %vm6169, %v6447, 0.0
        %v6497 = vadd.f32 %v6495, %v6496
        %v6498 = vsel %vm6169, %v6448, 0.0
        %v6499 = vadd.f32 %v6497, %v6498
        %v6500 = vsel %vm6169, %v6449, 0.0
        %v6501 = vadd.f32 %v6499, %v6500
        %v6502 = vsel %vm6169, %v6450, 0.0
        %v6503 = vadd.f32 %v6501, %v6502
        %v6504 = vsel %vm6169, %v6451, 0.0
        %v6505 = vadd.f32 %v6503, %v6504
        %v6506 = vsel %vm6169, %v6452, 0.0
        %v6507 = vadd.f32 %v6505, %v6506
        %v6508 = vsel %vm6169, %v6453, 0.0
        %v6509 = vadd.f32 %v6507, %v6508
        %v6510 = vsel %vm6169, %v6454, 0.0
        %v6511 = vadd.f32 %v6509, %v6510
        %v6512 = vsel %vm6169, %v6455, 0.0
        %v6513 = vadd.f32 %v6511, %v6512
        %v6514 = vsel %vm6169, %v6456, 0.0
        %v6515 = vadd.f32 %v6513, %v6514
        %v6516 = vsel %vm6169, %v6457, 0.0
        %v6517 = vadd.f32 %v6515, %v6516
        %v6518 = vsel %vm6169, %v6458, 0.0
        %v6519 = vadd.f32 %v6517, %v6518
        %v6520 = vsel %vm6169, %v6459, 0.0
        %v6521 = vadd.f32 %v6519, %v6520
        %v6522 = vsel %vm6169, %v6460, 0.0
        %v6523 = vadd.f32 %v6521, %v6522
        %v6524 = vsel %vm6169, %v6461, 0.0
        %v6525 = vadd.f32 %v6523, %v6524
        %v6526 = vsel %vm6169, %v6462, 0.0
        %v6527 = vadd.f32 %v6525, %v6526
        %v6528 = vsel %vm6169, %v6463, 0.0
        %v6529 = vadd.f32 %v6527, %v6528
        %v6530 = vsel %vm6169, %v6464, 0.0
        %v6531 = vadd.f32 %v6529, %v6530
        %v6532 = vsel %vm6169, %v6465, 0.0
        %v6533 = vadd.f32 %v6531, %v6532
        %v6534 = vsel %vm6169, %v6466, 0.0
        %v6535 = vadd.f32 %v6533, %v6534
        %v6536 = vsel %vm6169, %v6467, 0.0
        %v6537 = vadd.f32 %v6535, %v6536
        %v6538 = vsel %vm6169, %v6468, 0.0
        %v6539 = vadd.f32 %v6537, %v6538
        %v6540 = vsel %vm6169, %v6469, 0.0
        %v6541 = vadd.f32 %v6539, %v6540
        %v6542 = vsel %vm6169, %v6470, 0.0
        %v6543 = vadd.f32 %v6541, %v6542
        %v6544 = vsel %vm6169, %v6471, 0.0
        %v6545 = vadd.f32 %v6543, %v6544
        %v6546 = vsel %vm6169, %v6472, 0.0
        %v6547 = vadd.f32 %v6545, %v6546
        %v6548 = vsel %vm6169, %v6473, 0.0
        %v6549 = vadd.f32 %v6547, %v6548
        %v6550 = vsel %vm6169, %v6474, 0.0
        %v6551 = vadd.f32 %v6549, %v6550
        %v6552 = vsel %vm6169, %v6475, 0.0
        %v6553 = vadd.f32 %v6551, %v6552
        %v6554 = vsel %vm6169, %v6476, 0.0
        %v6555 = vadd.f32 %v6553, %v6554
        %v6556 = vsel %vm6169, %v6477, 0.0
        %v6557 = vadd.f32 %v6555, %v6556
        %v6558 = vsel %vm6169, %v6478, 0.0
        %v6559 = vadd.f32 %v6557, %v6558
        %v6560 = vsel %vm6169, %v6479, 0.0
        %v6561 = vadd.f32 %v6559, %v6560
        %v6562 = vsel %vm6169, %v6480, 0.0
        %v6563 = vadd.f32 %v6561, %v6562
        %v6564 = vsel %vm6169, %v6481, 0.0
        %v6565 = vadd.f32 %v6563, %v6564
        %v6566 = vsel %vm6169, %v6482, 0.0
        %v6567 = vadd.f32 %v6565, %v6566
        %v6568 = vsel %vm6169, %v6483, 0.0
        %v6569 = vadd.f32 %v6567, %v6568
        %v6570 = vsel %vm6169, %v6484, 0.0
        %v6571 = vadd.f32 %v6569, %v6570
        %v6572 = vsel %vm6169, %v6485, 0.0
        %v6573 = vadd.f32 %v6571, %v6572
        %v6574 = vsel %vm6169, %v6486, 0.0
        %v6575 = vadd.f32 %v6573, %v6574
        %v6576 = vsel %vm6169, %v6487, 0.0
        %v6577 = vadd.f32 %v6575, %v6576
        %v6578 = vsel %vm6169, %v6488, 0.0
        %v6579 = vadd.f32 %v6577, %v6578
        %v6580 = vsel %vm6169, %v6489, 0.0
        %v6581 = vadd.f32 %v6579, %v6580
        %v6582 = vsel %vm6169, %v6490, 0.0
        %v6583 = vadd.f32 %v6581, %v6582
        %v6584 = vsel %vm6169, %v6491, 0.0
        %v6585 = vadd.f32 %v6583, %v6584
        %v6586 = vsel %vm6169, %v6492, 0.0
        %v6587 = vadd.f32 %v6585, %v6586
        %v6588 = vrot.slane %v6587, 4
        %v6589 = vadd.f32 %v6587, %v6588
        %v6590 = vrot.slane %v6589, 2
        %v6591 = vadd.f32 %v6589, %v6590
        %v6592 = vrot.slane %v6591, 1
        %v6593 = vadd.f32 %v6591, %v6592
        %v6595 = vsel %vm6169, %v6593, 0
        %6597 = vmatprep.subr.mxu0 0.0
        %6598 = vmatpush1.msra.mxu0 %v6271
        %6599 = vmatprep.subr.mxu0 0.0
        %6600 = vmatpush1.msra.mxu0 0.0
        %6601 = vmatprep.subr.mxu0 0.0
        %6602 = vmatpush1.msra.mxu0 0.0
        %6603 = vmatprep.subr.mxu0 0.0
        %6604 = vmatpush1.msra.mxu0 0.0
        %6605 = vmatprep.subr.mxu0 0.0
        %6606 = vmatpush1.msra.mxu0 0.0
        %6607 = vmatprep.subr.mxu0 0.0
        %6608 = vmatpush1.msra.mxu0 0.0
        %6609 = vmatprep.subr.mxu0 0.0
        %6610 = vmatpush1.msra.mxu0 0.0
        %6611 = vmatprep.subr.mxu0 0.0
        %6612 = vmatpush1.msra.mxu0 0.0
        %6613 = vmatprep.subr.mxu0 0.0
        %6614 = vmatpush1.msra.mxu0 0.0
        %6615 = vmatprep.subr.mxu0 0.0
        %6616 = vmatpush1.msra.mxu0 0.0
        %6617 = vmatprep.subr.mxu0 0.0
        %6618 = vmatpush1.msra.mxu0 0.0
        %6619 = vmatprep.subr.mxu0 0.0
        %6620 = vmatpush1.msra.mxu0 0.0
        %6621 = vmatprep.subr.mxu0 0.0
        %6622 = vmatpush1.msra.mxu0 0.0
        %6623 = vmatprep.subr.mxu0 0.0
        %6624 = vmatpush1.msra.mxu0 0.0
        %6625 = vmatprep.subr.mxu0 0.0
        %6626 = vmatpush1.msra.mxu0 0.0
        %6627 = vmatprep.subr.mxu0 0.0
        %6628 = vmatpush1.msra.mxu0 0.0
        %6629 = vmatprep.subr.mxu0 0.0
        %6630 = vmatpush1.msra.mxu0 0.0
        %6631 = vmatprep.subr.mxu0 0.0
        %6632 = vmatpush1.msra.mxu0 0.0
        %6633 = vmatprep.subr.mxu0 0.0
        %6634 = vmatpush1.msra.mxu0 0.0
        %6635 = vmatprep.subr.mxu0 0.0
        %6636 = vmatpush1.msra.mxu0 0.0
        %6637 = vmatprep.subr.mxu0 0.0
        %6638 = vmatpush1.msra.mxu0 0.0
        %6639 = vmatprep.subr.mxu0 0.0
        %6640 = vmatpush1.msra.mxu0 0.0
        %6641 = vmatprep.subr.mxu0 0.0
        %6642 = vmatpush1.msra.mxu0 0.0
        %6643 = vmatprep.subr.mxu0 0.0
        %6644 = vmatpush1.msra.mxu0 0.0
        %6645 = vmatprep.subr.mxu0 0.0
        %6646 = vmatpush1.msra.mxu0 0.0
        %6647 = vmatprep.subr.mxu0 0.0
        %6648 = vmatpush1.msra.mxu0 0.0
        %6649 = vmatprep.subr.mxu0 0.0
        %6650 = vmatpush1.msra.mxu0 0.0
        %6651 = vmatprep.subr.mxu0 0.0
        %6652 = vmatpush1.msra.mxu0 0.0
        %6653 = vmatprep.subr.mxu0 0.0
        %6654 = vmatpush1.msra.mxu0 0.0
        %6655 = vmatprep.subr.mxu0 0.0
        %6656 = vmatpush1.msra.mxu0 0.0
        %6657 = vmatprep.subr.mxu0 0.0
        %6658 = vmatpush1.msra.mxu0 0.0
        %6659 = vmatprep.subr.mxu0 0.0
        %6660 = vmatpush1.msra.mxu0 0.0
        %6661 = vmatprep.mubr.f32.mxu0 0.0
        %6662 = vmatmul.mubr.f32.gmra.mrb[0].mxu0 %v6595
        %v6663 = vpop.f32.mrb[0].mxu0
        %v6664 = vadd.f32 1e-06, %v6663
        %v6665 = vpop.f32.mrb[0].mxu0
        %6666 = vdwg.mxu0
        %v6667 = vrsqrt.pop %v6664
        %v6668 = vld [vmem:[%s3] sm:$0x1]
        %v6669 = vmul.f32 %v6667, %v6668
        %v6670 = vlaneseq
        %v6671 = vshrl.u32 %v6670, 7
        %v6672 = vsub.s32 0, %v6671
        %v6673 = vrot.slane %v6669, %v6672
        %v6674 = vmul.f32 %v6349, %v6673
        %v6675 = vmul.f32 %v6350, %v6673
        %v6676 = vmul.f32 %v6351, %v6673
        %v6677 = vmul.f32 %v6352, %v6673
        %v6678 = vmul.f32 %v6353, %v6673
        %v6679 = vmul.f32 %v6354, %v6673
        %v6680 = vmul.f32 %v6355, %v6673
        %v6681 = vmul.f32 %v6356, %v6673
        %v6682 = vmul.f32 %v6357, %v6673
        %v6683 = vmul.f32 %v6358, %v6673
        %v6684 = vmul.f32 %v6359, %v6673
        %v6685 = vmul.f32 %v6360, %v6673
        %v6686 = vmul.f32 %v6361, %v6673
        %v6687 = vmul.f32 %v6362, %v6673
        %v6688 = vmul.f32 %v6363, %v6673
        %v6689 = vmul.f32 %v6364, %v6673
        %v6690 = vmul.f32 %v6365, %v6673
        %v6691 = vmul.f32 %v6366, %v6673
        %v6692 = vmul.f32 %v6367, %v6673
        %v6693 = vmul.f32 %v6368, %v6673
        %v6694 = vmul.f32 %v6369, %v6673
        %v6695 = vmul.f32 %v6370, %v6673
        %v6696 = vmul.f32 %v6371, %v6673
        %v6697 = vmul.f32 %v6372, %v6673
        %v6698 = vmul.f32 %v6373, %v6673
        %v6699 = vmul.f32 %v6374, %v6673
        %v6700 = vmul.f32 %v6375, %v6673
        %v6701 = vmul.f32 %v6376, %v6673
        %v6702 = vmul.f32 %v6377, %v6673
        %v6703 = vmul.f32 %v6378, %v6673
        %v6704 = vmul.f32 %v6379, %v6673
        %v6705 = vmul.f32 %v6380, %v6673
        %v6706 = vmul.f32 %v6381, %v6673
        %v6707 = vmul.f32 %v6382, %v6673
        %v6708 = vmul.f32 %v6383, %v6673
        %v6709 = vmul.f32 %v6384, %v6673
        %v6710 = vmul.f32 %v6385, %v6673
        %v6711 = vmul.f32 %v6386, %v6673
        %v6712 = vmul.f32 %v6387, %v6673
        %v6713 = vmul.f32 %v6388, %v6673
        %v6714 = vmul.f32 %v6389, %v6673
        %v6715 = vmul.f32 %v6390, %v6673
        %v6716 = vmul.f32 %v6391, %v6673
        %v6717 = vmul.f32 %v6392, %v6673
        %v6718 = vmul.f32 %v6393, %v6673
        %v6719 = vmul.f32 %v6394, %v6673
        %v6720 = vmul.f32 %v6395, %v6673
        %v6721 = vmul.f32 %v6396, %v6673
        %v6722 = vld [vmem:[%s4] sm:$0x1]
        %v6724 = vlaneseq
        %v6725 = vshrl.u32 %v6724, 7
        %v6726 = vsub.s32 0, %v6725
        %v6727 = vrot.slane %v6722, %v6726
        %v6729 = vadd.f32 %v6674, %v6727
        %v6730 = vadd.f32 %v6675, %v6727
        %v6731 = vadd.f32 %v6676, %v6727
        %v6732 = vadd.f32 %v6677, %v6727
        %v6733 = vadd.f32 %v6678, %v6727
        %v6734 = vadd.f32 %v6679, %v6727
        %v6735 = vadd.f32 %v6680, %v6727
        %v6736 = vadd.f32 %v6681, %v6727
        %v6737 = vadd.f32 %v6682, %v6727
        %v6738 = vadd.f32 %v6683, %v6727
        %v6739 = vadd.f32 %v6684, %v6727
        %v6740 = vadd.f32 %v6685, %v6727
        %v6741 = vadd.f32 %v6686, %v6727
        %v6742 = vadd.f32 %v6687, %v6727
        %v6743 = vadd.f32 %v6688, %v6727
        %v6744 = vadd.f32 %v6689, %v6727
        %v6745 = vadd.f32 %v6690, %v6727
        %v6746 = vadd.f32 %v6691, %v6727
        %v6747 = vadd.f32 %v6692, %v6727
        %v6748 = vadd.f32 %v6693, %v6727
        %v6749 = vadd.f32 %v6694, %v6727
        %v6750 = vadd.f32 %v6695, %v6727
        %v6751 = vadd.f32 %v6696, %v6727
        %v6752 = vadd.f32 %v6697, %v6727
        %v6753 = vadd.f32 %v6698, %v6727
        %v6754 = vadd.f32 %v6699, %v6727
        %v6755 = vadd.f32 %v6700, %v6727
        %v6756 = vadd.f32 %v6701, %v6727
        %v6757 = vadd.f32 %v6702, %v6727
        %v6758 = vadd.f32 %v6703, %v6727
        %v6759 = vadd.f32 %v6704, %v6727
        %v6760 = vadd.f32 %v6705, %v6727
        %v6761 = vadd.f32 %v6706, %v6727
        %v6762 = vadd.f32 %v6707, %v6727
        %v6763 = vadd.f32 %v6708, %v6727
        %v6764 = vadd.f32 %v6709, %v6727
        %v6765 = vadd.f32 %v6710, %v6727
        %v6766 = vadd.f32 %v6711, %v6727
        %v6767 = vadd.f32 %v6712, %v6727
        %v6768 = vadd.f32 %v6713, %v6727
        %v6769 = vadd.f32 %v6714, %v6727
        %v6770 = vadd.f32 %v6715, %v6727
        %v6771 = vadd.f32 %v6716, %v6727
        %v6772 = vadd.f32 %v6717, %v6727
        %v6773 = vadd.f32 %v6718, %v6727
        %v6774 = vadd.f32 %v6719, %v6727
        %v6775 = vadd.f32 %v6720, %v6727
        %v6776 = vadd.f32 %v6721, %v6727
        %v6777 = vsub.f32 0.0, %v6729
        %v6778 = vsub.f32 0.0, %v6730
        %v6779 = vsub.f32 0.0, %v6731
        %v6780 = vsub.f32 0.0, %v6732
        %v6781 = vsub.f32 0.0, %v6733
        %v6782 = vsub.f32 0.0, %v6734
        %v6783 = vsub.f32 0.0, %v6735
        %v6784 = vsub.f32 0.0, %v6736
        %v6785 = vsub.f32 0.0, %v6737
        %v6786 = vsub.f32 0.0, %v6738
        %v6787 = vsub.f32 0.0, %v6739
        %v6788 = vsub.f32 0.0, %v6740
        %v6789 = vsub.f32 0.0, %v6741
        %v6790 = vsub.f32 0.0, %v6742
        %v6791 = vsub.f32 0.0, %v6743
        %v6792 = vsub.f32 0.0, %v6744
        %v6793 = vsub.f32 0.0, %v6745
        %v6794 = vsub.f32 0.0, %v6746
        %v6795 = vsub.f32 0.0, %v6747
        %v6796 = vsub.f32 0.0, %v6748
        %v6797 = vsub.f32 0.0, %v6749
        %v6798 = vsub.f32 0.0, %v6750
        %v6799 = vsub.f32 0.0, %v6751
        %v6800 = vsub.f32 0.0, %v6752
        %v6801 = vsub.f32 0.0, %v6753
        %v6802 = vsub.f32 0.0, %v6754
        %v6803 = vsub.f32 0.0, %v6755
        %v6804 = vsub.f32 0.0, %v6756
        %v6805 = vsub.f32 0.0, %v6757
        %v6806 = vsub.f32 0.0, %v6758
        %v6807 = vsub.f32 0.0, %v6759
        %v6808 = vsub.f32 0.0, %v6760
        %v6809 = vsub.f32 0.0, %v6761
        %v6810 = vsub.f32 0.0, %v6762
        %v6811 = vsub.f32 0.0, %v6763
        %v6812 = vsub.f32 0.0, %v6764
        %v6813 = vsub.f32 0.0, %v6765
        %v6814 = vsub.f32 0.0, %v6766
        %v6815 = vsub.f32 0.0, %v6767
        %v6816 = vsub.f32 0.0, %v6768
        %v6817 = vsub.f32 0.0, %v6769
        %v6818 = vsub.f32 0.0, %v6770
        %v6819 = vsub.f32 0.0, %v6771
        %v6820 = vsub.f32 0.0, %v6772
        %v6821 = vsub.f32 0.0, %v6773
        %v6822 = vsub.f32 0.0, %v6774
        %v6823 = vsub.f32 0.0, %v6775
        %v6824 = vsub.f32 0.0, %v6776
        %v6825 = vmul.f32 %v6777, 1.442695
        %v6826 = vpow.pop %v6825
        %v6827 = vmul.f32 %v6778, 1.442695
        %v6828 = vpow.pop %v6827
        %v6829 = vmul.f32 %v6779, 1.442695
        %v6830 = vpow.pop %v6829
        %v6831 = vmul.f32 %v6780, 1.442695
        %v6832 = vpow.pop %v6831
        %v6833 = vmul.f32 %v6781, 1.442695
        %v6834 = vpow.pop %v6833
        %v6835 = vmul.f32 %v6782, 1.442695
        %v6836 = vpow.pop %v6835
        %v6837 = vmul.f32 %v6783, 1.442695
        %v6838 = vpow.pop %v6837
        %v6839 = vmul.f32 %v6784, 1.442695
        %v6840 = vpow.pop %v6839
        %v6841 = vmul.f32 %v6785, 1.442695
        %v6842 = vpow.pop %v6841
        %v6843 = vmul.f32 %v6786, 1.442695
        %v6844 = vpow.pop %v6843
        %v6845 = vmul.f32 %v6787, 1.442695
        %v6846 = vpow.pop %v6845
        %v6847 = vmul.f32 %v6788, 1.442695
        %v6848 = vpow.pop %v6847
        %v6849 = vmul.f32 %v6789, 1.442695
        %v6850 = vpow.pop %v6849
        %v6851 = vmul.f32 %v6790, 1.442695
        %v6852 = vpow.pop %v6851
        %v6853 = vmul.f32 %v6791, 1.442695
        %v6854 = vpow.pop %v6853
        %v6855 = vmul.f32 %v6792, 1.442695
        %v6856 = vpow.pop %v6855
        %v6857 = vmul.f32 %v6793, 1.442695
        %v6858 = vpow.pop %v6857
        %v6859 = vmul.f32 %v6794, 1.442695
        %v6860 = vpow.pop %v6859
        %v6861 = vmul.f32 %v6795, 1.442695
        %v6862 = vpow.pop %v6861
        %v6863 = vmul.f32 %v6796, 1.442695
        %v6864 = vpow.pop %v6863
        %v6865 = vmul.f32 %v6797, 1.442695
        %v6866 = vpow.pop %v6865
        %v6867 = vmul.f32 %v6798, 1.442695
        %v6868 = vpow.pop %v6867
        %v6869 = vmul.f32 %v6799, 1.442695
        %v6870 = vpow.pop %v6869
        %v6871 = vmul.f32 %v6800, 1.442695
        %v6872 = vpow.pop %v6871
        %v6873 = vmul.f32 %v6801, 1.442695
        %v6874 = vpow.pop %v6873
        %v6875 = vmul.f32 %v6802, 1.442695
        %v6876 = vpow.pop %v6875
        %v6877 = vmul.f32 %v6803, 1.442695
        %v6878 = vpow.pop %v6877
        %v6879 = vmul.f32 %v6804, 1.442695
        %v6880 = vpow.pop %v6879
        %v6881 = vmul.f32 %v6805, 1.442695
        %v6882 = vpow.pop %v6881
        %v6883 = vmul.f32 %v6806, 1.442695
        %v6884 = vpow.pop %v6883
        %v6885 = vmul.f32 %v6807, 1.442695
        %v6886 = vpow.pop %v6885
        %v6887 = vmul.f32 %v6808, 1.442695
        %v6888 = vpow.pop %v6887
        %v6889 = vmul.f32 %v6809, 1.442695
        %v6890 = vpow.pop %v6889
        %v6891 = vmul.f32 %v6810, 1.442695
        %v6892 = vpow.pop %v6891
        %v6893 = vmul.f32 %v6811, 1.442695
        %v6894 = vpow.pop %v6893
        %v6895 = vmul.f32 %v6812, 1.442695
        %v6896 = vpow.pop %v6895
        %v6897 = vmul.f32 %v6813, 1.442695
        %v6898 = vpow.pop %v6897
        %v6899 = vmul.f32 %v6814, 1.442695
        %v6900 = vpow.pop %v6899
        %v6901 = vmul.f32 %v6815, 1.442695
        %v6902 = vpow.pop %v6901
        %v6903 = vmul.f32 %v6816, 1.442695
        %v6904 = vpow.pop %v6903
        %v6905 = vmul.f32 %v6817, 1.442695
        %v6906 = vpow.pop %v6905
        %v6907 = vmul.f32 %v6818, 1.442695
        %v6908 = vpow.pop %v6907
        %v6909 = vmul.f32 %v6819, 1.442695
        %v6910 = vpow.pop %v6909
        %v6911 = vmul.f32 %v6820, 1.442695
        %v6912 = vpow.pop %v6911
        %v6913 = vmul.f32 %v6821, 1.442695
        %v6914 = vpow.pop %v6913
        %v6915 = vmul.f32 %v6822, 1.442695
        %v6916 = vpow.pop %v6915
        %v6917 = vmul.f32 %v6823, 1.442695
        %v6918 = vpow.pop %v6917
        %v6919 = vmul.f32 %v6824, 1.442695
        %v6920 = vpow.pop %v6919
        %v6921 = vadd.f32 %v6826, 1.0
        %v6922 = vadd.f32 %v6828, 1.0
        %v6923 = vadd.f32 %v6830, 1.0
        %v6924 = vadd.f32 %v6832, 1.0
        %v6925 = vadd.f32 %v6834, 1.0
        %v6926 = vadd.f32 %v6836, 1.0
        %v6927 = vadd.f32 %v6838, 1.0
        %v6928 = vadd.f32 %v6840, 1.0
        %v6929 = vadd.f32 %v6842, 1.0
        %v6930 = vadd.f32 %v6844, 1.0
        %v6931 = vadd.f32 %v6846, 1.0
        %v6932 = vadd.f32 %v6848, 1.0
        %v6933 = vadd.f32 %v6850, 1.0
        %v6934 = vadd.f32 %v6852, 1.0
        %v6935 = vadd.f32 %v6854, 1.0
        %v6936 = vadd.f32 %v6856, 1.0
        %v6937 = vadd.f32 %v6858, 1.0
        %v6938 = vadd.f32 %v6860, 1.0
        %v6939 = vadd.f32 %v6862, 1.0
        %v6940 = vadd.f32 %v6864, 1.0
        %v6941 = vadd.f32 %v6866, 1.0
        %v6942 = vadd.f32 %v6868, 1.0
        %v6943 = vadd.f32 %v6870, 1.0
        %v6944 = vadd.f32 %v6872, 1.0
        %v6945 = vadd.f32 %v6874, 1.0
        %v6946 = vadd.f32 %v6876, 1.0
        %v6947 = vadd.f32 %v6878, 1.0
        %v6948 = vadd.f32 %v6880, 1.0
        %v6949 = vadd.f32 %v6882, 1.0
        %v6950 = vadd.f32 %v6884, 1.0
        %v6951 = vadd.f32 %v6886, 1.0
        %v6952 = vadd.f32 %v6888, 1.0
        %v6953 = vadd.f32 %v6890, 1.0
        %v6954 = vadd.f32 %v6892, 1.0
        %v6955 = vadd.f32 %v6894, 1.0
        %v6956 = vadd.f32 %v6896, 1.0
        %v6957 = vadd.f32 %v6898, 1.0
        %v6958 = vadd.f32 %v6900, 1.0
        %v6959 = vadd.f32 %v6902, 1.0
        %v6960 = vadd.f32 %v6904, 1.0
        %v6961 = vadd.f32 %v6906, 1.0
        %v6962 = vadd.f32 %v6908, 1.0
        %v6963 = vadd.f32 %v6910, 1.0
        %v6964 = vadd.f32 %v6912, 1.0
        %v6965 = vadd.f32 %v6914, 1.0
        %v6966 = vadd.f32 %v6916, 1.0
        %v6967 = vadd.f32 %v6918, 1.0
        %v6968 = vadd.f32 %v6920, 1.0
        %v6969 = vrcp.pop %v6921
        %v6970 = vrcp.pop %v6922
        %v6971 = vrcp.pop %v6923
        %v6972 = vrcp.pop %v6924
        %v6973 = vrcp.pop %v6925
        %v6974 = vrcp.pop %v6926
        %v6975 = vrcp.pop %v6927
        %v6976 = vrcp.pop %v6928
        %v6977 = vrcp.pop %v6929
        %v6978 = vrcp.pop %v6930
        %v6979 = vrcp.pop %v6931
        %v6980 = vrcp.pop %v6932
        %v6981 = vrcp.pop %v6933
        %v6982 = vrcp.pop %v6934
        %v6983 = vrcp.pop %v6935
        %v6984 = vrcp.pop %v6936
        %v6985 = vrcp.pop %v6937
        %v6986 = vrcp.pop %v6938
        %v6987 = vrcp.pop %v6939
        %v6988 = vrcp.pop %v6940
        %v6989 = vrcp.pop %v6941
        %v6990 = vrcp.pop %v6942
        %v6991 = vrcp.pop %v6943
        %v6992 = vrcp.pop %v6944
        %v6993 = vrcp.pop %v6945
        %v6994 = vrcp.pop %v6946
        %v6995 = vrcp.pop %v6947
        %v6996 = vrcp.pop %v6948
        %v6997 = vrcp.pop %v6949
        %v6998 = vrcp.pop %v6950
        %v6999 = vrcp.pop %v6951
        %v7000 = vrcp.pop %v6952
        %v7001 = vrcp.pop %v6953
        %v7002 = vrcp.pop %v6954
        %v7003 = vrcp.pop %v6955
        %v7004 = vrcp.pop %v6956
        %v7005 = vrcp.pop %v6957
        %v7006 = vrcp.pop %v6958
        %v7007 = vrcp.pop %v6959
        %v7008 = vrcp.pop %v6960
        %v7009 = vrcp.pop %v6961
        %v7010 = vrcp.pop %v6962
        %v7011 = vrcp.pop %v6963
        %v7012 = vrcp.pop %v6964
        %v7013 = vrcp.pop %v6965
        %v7014 = vrcp.pop %v6966
        %v7015 = vrcp.pop %v6967
        %v7016 = vrcp.pop %v6968
        %v7017 = vmul.f32 %v6729, %v6969
        %v7018 = vmul.f32 %v6730, %v6970
        %v7019 = vmul.f32 %v6731, %v6971
        %v7020 = vmul.f32 %v6732, %v6972
        %v7021 = vmul.f32 %v6733, %v6973
        %v7022 = vmul.f32 %v6734, %v6974
        %v7023 = vmul.f32 %v6735, %v6975
        %v7024 = vmul.f32 %v6736, %v6976
        %v7025 = vmul.f32 %v6737, %v6977
        %v7026 = vmul.f32 %v6738, %v6978
        %v7027 = vmul.f32 %v6739, %v6979
        %v7028 = vmul.f32 %v6740, %v6980
        %v7029 = vmul.f32 %v6741, %v6981
        %v7030 = vmul.f32 %v6742, %v6982
        %v7031 = vmul.f32 %v6743, %v6983
        %v7032 = vmul.f32 %v6744, %v6984
        %v7033 = vmul.f32 %v6745, %v6985
        %v7034 = vmul.f32 %v6746, %v6986
        %v7035 = vmul.f32 %v6747, %v6987
        %v7036 = vmul.f32 %v6748, %v6988
        %v7037 = vmul.f32 %v6749, %v6989
        %v7038 = vmul.f32 %v6750, %v6990
        %v7039 = vmul.f32 %v6751, %v6991
        %v7040 = vmul.f32 %v6752, %v6992
        %v7041 = vmul.f32 %v6753, %v6993
        %v7042 = vmul.f32 %v6754, %v6994
        %v7043 = vmul.f32 %v6755, %v6995
        %v7044 = vmul.f32 %v6756, %v6996
        %v7045 = vmul.f32 %v6757, %v6997
        %v7046 = vmul.f32 %v6758, %v6998
        %v7047 = vmul.f32 %v6759, %v6999
        %v7048 = vmul.f32 %v6760, %v7000
        %v7049 = vmul.f32 %v6761, %v7001
        %v7050 = vmul.f32 %v6762, %v7002
        %v7051 = vmul.f32 %v6763, %v7003
        %v7052 = vmul.f32 %v6764, %v7004
        %v7053 = vmul.f32 %v6765, %v7005
        %v7054 = vmul.f32 %v6766, %v7006
        %v7055 = vmul.f32 %v6767, %v7007
        %v7056 = vmul.f32 %v6768, %v7008
        %v7057 = vmul.f32 %v6769, %v7009
        %v7058 = vmul.f32 %v6770, %v7010
        %v7059 = vmul.f32 %v6771, %v7011
        %v7060 = vmul.f32 %v6772, %v7012
        %v7061 = vmul.f32 %v6773, %v7013
        %v7062 = vmul.f32 %v6774, %v7014
        %v7063 = vmul.f32 %v6775, %v7015
        %v7064 = vmul.f32 %v6776, %v7016
        %v7065 = vmax.f32 %v7017, %v7020
        %v7066 = vmax.f32 %v7018, %v7021
        %v7067 = vmax.f32 %v7019, %v7022
        %v7068 = vmax.f32 %v7023, %v7026
        %v7069 = vmax.f32 %v7024, %v7027
        %v7070 = vmax.f32 %v7025, %v7028
        %v7071 = vmax.f32 %v7029, %v7032
        %v7072 = vmax.f32 %v7030, %v7033
        %v7073 = vmax.f32 %v7031, %v7034
        %v7074 = vmax.f32 %v7035, %v7038
        %v7075 = vmax.f32 %v7036, %v7039
        %v7076 = vmax.f32 %v7037, %v7040
        %v7077 = vmax.f32 %v7041, %v7044
        %v7078 = vmax.f32 %v7042, %v7045
        %v7079 = vmax.f32 %v7043, %v7046
        %v7080 = vmax.f32 %v7047, %v7050
        %v7081 = vmax.f32 %v7048, %v7051
        %v7082 = vmax.f32 %v7049, %v7052
        %v7083 = vmax.f32 %v7053, %v7056
        %v7084 = vmax.f32 %v7054, %v7057
        %v7085 = vmax.f32 %v7055, %v7058
        %v7086 = vmax.f32 %v7059, %v7062
        %v7087 = vmax.f32 %v7060, %v7063
        %v7088 = vmax.f32 %v7061, %v7064
        %7089 = vst.msk [vmem:[#allocation2] sm:$0xff] %vm6169, %v7065
        %7090 = vst.msk [vmem:[#allocation2 + $0x8] sm:$0xff] %vm6169, %v7066
        %7091 = vst.msk [vmem:[#allocation2 + $0x10] sm:$0xff] %vm6169, %v7067
        %7092 = vst.msk [vmem:[#allocation2 + $0x18] sm:$0xff] %vm6169, %v7068
        %7093 = vst.msk [vmem:[#allocation2 + $0x20] sm:$0xff] %vm6169, %v7069
        %7094 = vst.msk [vmem:[#allocation2 + $0x28] sm:$0xff] %vm6169, %v7070
        %7095 = vst.msk [vmem:[#allocation2 + $0x30] sm:$0xff] %vm6169, %v7071
        %7096 = vst.msk [vmem:[#allocation2 + $0x38] sm:$0xff] %vm6169, %v7072
        %7097 = vst.msk [vmem:[#allocation2 + $0x40] sm:$0xff] %vm6169, %v7073
        %7098 = vst.msk [vmem:[#allocation2 + $0x48] sm:$0xff] %vm6169, %v7074
        %7099 = vst.msk [vmem:[#allocation2 + $0x50] sm:$0xff] %vm6169, %v7075
        %7100 = vst.msk [vmem:[#allocation2 + $0x58] sm:$0xff] %vm6169, %v7076
        %7101 = vst.msk [vmem:[#allocation2 + $0x60] sm:$0xff] %vm6169, %v7077
        %7102 = vst.msk [vmem:[#allocation2 + $0x68] sm:$0xff] %vm6169, %v7078
        %7103 = vst.msk [vmem:[#allocation2 + $0x70] sm:$0xff] %vm6169, %v7079
        %7104 = vst.msk [vmem:[#allocation2 + $0x78] sm:$0xff] %vm6169, %v7080
        %7105 = vst.msk [vmem:[#allocation2 + $0x80] sm:$0xff] %vm6169, %v7081
        %7106 = vst.msk [vmem:[#allocation2 + $0x88] sm:$0xff] %vm6169, %v7082
        %7107 = vst.msk [vmem:[#allocation2 + $0x90] sm:$0xff] %vm6169, %v7083
        %7108 = vst.msk [vmem:[#allocation2 + $0x98] sm:$0xff] %vm6169, %v7084
        %7109 = vst.msk [vmem:[#allocation2 + $0xa0] sm:$0xff] %vm6169, %v7085
        %7110 = vst.msk [vmem:[#allocation2 + $0xa8] sm:$0xff] %vm6169, %v7086
        %7111 = vst.msk [vmem:[#allocation2 + $0xb0] sm:$0xff] %vm6169, %v7087
        %7112 = vst.msk [vmem:[#allocation2 + $0xb8] sm:$0xff] %vm6169, %v7088
        %v7113 = vld [vmem:[#allocation2] ss:$2 sm:$0xff]
        %s7114 = scalar_lea.vmem [#allocation2], 24
        %v7115 = vld [vmem:[%s7114] ss:$2 sm:$0xff]
        %s7116 = scalar_lea.vmem [#allocation2], 48
        %v7117 = vld [vmem:[%s7116] ss:$2 sm:$0xff]
        %s7118 = scalar_lea.vmem [#allocation2], 72
        %v7119 = vld [vmem:[%s7118] ss:$2 sm:$0xff]
        %s7120 = scalar_lea.vmem [#allocation2], 96
        %v7121 = vld [vmem:[%s7120] ss:$2 sm:$0xff]
        %s7122 = scalar_lea.vmem [#allocation2], 120
        %v7123 = vld [vmem:[%s7122] ss:$2 sm:$0xff]
        %s7124 = scalar_lea.vmem [#allocation2], 144
        %v7125 = vld [vmem:[%s7124] ss:$2 sm:$0xff]
        %s7126 = scalar_lea.vmem [#allocation2], 168
        %v7127 = vld [vmem:[%s7126] ss:$2 sm:$0xff]
        %s7128 = scalar_lea.vmem [#allocation2], 1
        %v7129 = vld [vmem:[%s7128] ss:$2 sm:$0xff]
        %s7130 = scalar_lea.vmem [#allocation2], 25
        %v7131 = vld [vmem:[%s7130] ss:$2 sm:$0xff]
        %s7132 = scalar_lea.vmem [#allocation2], 49
        %v7133 = vld [vmem:[%s7132] ss:$2 sm:$0xff]
        %s7134 = scalar_lea.vmem [#allocation2], 73
        %v7135 = vld [vmem:[%s7134] ss:$2 sm:$0xff]
        %s7136 = scalar_lea.vmem [#allocation2], 97
        %v7137 = vld [vmem:[%s7136] ss:$2 sm:$0xff]
        %s7138 = scalar_lea.vmem [#allocation2], 121
        %v7139 = vld [vmem:[%s7138] ss:$2 sm:$0xff]
        %s7140 = scalar_lea.vmem [#allocation2], 145
        %v7141 = vld [vmem:[%s7140] ss:$2 sm:$0xff]
        %s7142 = scalar_lea.vmem [#allocation2], 169
        %v7143 = vld [vmem:[%s7142] ss:$2 sm:$0xff]
        %v7144 = vmax.f32 %v7113, %v7129
        %v7145 = vmax.f32 %v7115, %v7131
        %v7146 = vmax.f32 %v7117, %v7133
        %v7147 = vmax.f32 %v7119, %v7135
        %v7148 = vmax.f32 %v7121, %v7137
        %v7149 = vmax.f32 %v7123, %v7139
        %v7150 = vmax.f32 %v7125, %v7141
        %v7151 = vmax.f32 %v7127, %v7143
        %7152 = vst.msk [vmem:[%s244] sm:$0xff] %vm6169, %v7144
        %7153 = vst.msk [vmem:[%s244 + $0x8] sm:$0xff] %vm6169, %v7145
        %7154 = vst.msk [vmem:[%s244 + $0x10] sm:$0xff] %vm6169, %v7146
        %7155 = vst.msk [vmem:[%s244 + $0x18] sm:$0xff] %vm6169, %v7147
        %7156 = vst.msk [vmem:[%s244 + $0x20] sm:$0xff] %vm6169, %v7148
        %7157 = vst.msk [vmem:[%s244 + $0x28] sm:$0xff] %vm6169, %v7149
        %7158 = vst.msk [vmem:[%s244 + $0x30] sm:$0xff] %vm6169, %v7150
        %7159 = vst.msk [vmem:[%s244 + $0x38] sm:$0xff] %vm6169, %v7151
        %s7160 = sand.u32 %s159, 1
        %s7161 = scalar_lea.sflag [#allocation4], %s7160
        %s7162 = sand.u32 %s159, 1
        %s7163 = smul.addr %s7162, 64
        %s7164 = scalar_lea.vmem [#allocation3], %s7163
        // Predicated region
        $region45: #{tpu_custom_call.1} parent=43 // pred_check
          %p7165 = pneg %p169
        $region46: #{tpu_custom_call.1} parent=43 // pred_check_branch
          %7167 = sbr.rel (%p7165) target = $region48
        $region47: #{tpu_custom_call.1} parent=43 // pred_region
          %s7169 = ssub.s32 1024, 1024
          %7170 = vsyncadd %s7161, %s7169
          %s7171 = smul.addr %s20, 8
          %s7172 = smul.addr %s7171, 128
          %s7173 = scalar_lea.hbm %s6, %s7172
          %s7174 = sshll.u32 %s7164, 4
          %s7175 = int_to_ptr.vmem [resolvable:$true] %s7174
          %7180 = dma.vmem_to_hbm [thread:$0]  %s7175, 1024, %s7173, %s7161, 128, 128, 8
        $region48: #{tpu_custom_call.1} parent=43 // pred_fallthru
          _
      $region44: #{tpu_custom_call.1} parent=5 // pred_fallthru
        _
      %p7181 = scmp.le.s32.totalorder 2, %s15
      // Predicated region
      $region49: #{tpu_custom_call.1} parent=5 // pred_check
        %p7182 = pneg %p7181
      $region50: #{tpu_custom_call.1} parent=5 // pred_check_branch
        %7184 = sbr.rel (%p7182) target = $region52
      $region51: #{tpu_custom_call.1} parent=5 // pred_region
        %s7185 = ssub.s32 %s15, 2
        // Predicated region
        $region53: #{tpu_custom_call.1} parent=51 // pred_check
          %p7186 = pneg %p175
        $region54: #{tpu_custom_call.1} parent=51 // pred_check_branch
          %7188 = sbr.rel (%p7186) target = $region56
        $region55: #{tpu_custom_call.1} parent=51 // pred_region
          %s7189 = sand.u32 %s160, 1
          %s7190 = scalar_lea.sflag [#allocation4], %s7189
          %s7191 = sand.u32 %s160, 1
          %s7192 = smul.addr %s7191, 64
          %s7193 = scalar_lea.vmem [#allocation3], %s7192
          %7194 = dma.done %s7190, 1024
        $region56: #{tpu_custom_call.1} parent=51 // pred_fallthru
          _
      $region52: #{tpu_custom_call.1} parent=5 // pred_fallthru
        _
    $region6: #{tpu_custom_call.1} parent=1 // loop_footer
      %s19 = sadd.s32 1, %s15
    $region7: #{tpu_custom_call.1} parent=1 // loop_footer_branch
      %14 = sbr.rel target = $region3
    $region8: #{tpu_custom_call.1} parent=1 // loop_exit
      _
    %7195 = vsyncpa [#allocation4], 1
    %s7196 = scalar_lea.sflag [#allocation4], 1
    %7197 = vsyncpa %s7196, 1

</llo_original>
